<compile_context>
chip_gen: v7x
topology: tpu7x:2x2x1
jax: 0.10.0
libtpu: 0.0.40
codegen_flags: <defaults>
</compile_context>

<pallas_src>
import functools

import jax
import jax.numpy as jnp
import numpy as np
from jax.experimental import pallas as pl
from jax.experimental.pallas import tpu as pltpu


LANE = 128  # down-conv output channels == tidy lane-dense slab width


def _round_up(n, m):
    return ((n + m - 1) // m) * m


def _geom(h, w):
    """Padded-grid geometry for a 3x3 / pad-1 conv whose input is (h, w)."""
    hp, wp = h + 2, w + 2
    r = hp * wp               # rows of the row-flattened padded grid
    g = wp + 1                # zero margin so every 3x3 tap is a pure row shift
    rbuf = _round_up(r + 2 * g, 16)
    return hp, wp, r, g, rbuf


def _tap_tree_sum(p, wp, rows, cout):
    """Combine the 9 tap column-blocks of p by (row-shift, add), pairwise tree."""
    taps = []
    for dy in range(3):
        for dx in range(3):
            sh = dy * wp + dx
            c0 = (dy * 3 + dx) * cout
            taps.append(p[sh:sh + rows, c0:c0 + cout])
    while len(taps) > 1:
        nxt = [taps[i] + taps[i + 1] for i in range(0, len(taps) - 1, 2)]
        if len(taps) % 2:
            nxt.append(taps[-1])
        taps = nxt
    return taps[0]


def _vmem_limit(est_bytes):
    # derived working-set estimate + headroom for compiler temporaries,
    # clamped under v7x's 64 MiB physical VMEM (v5e/v6e have 128 MiB).
    return int(min(est_bytes + 16 * 2**20, 64 * 2**20))


# ----------------------------------------------------------------------------
# Geometry -> tiny 0/1 matrices (applied on the MXU inside the kernels).
# ----------------------------------------------------------------------------
def _placement_matrix(hp_in, wp_in, stride, hp_out, wp_out, g_out, rbuf_out):
    """Places stride-sampled valid conv outputs into the next layer's
    zero-framed, zero-margined, row-flattened input buffer."""
    m = np.zeros((rbuf_out, hp_in * wp_in), np.float32)
    for i in range(1, hp_out - 1):
        for j in range(1, wp_out - 1):
            src = (stride * (i - 1) + 1) * wp_in + (stride * (j - 1) + 1)
            m[g_out + i * wp_out + j, src] = 1.0
    return jnp.asarray(m, jnp.bfloat16)


def _keep_matrix(hp_in, wp_in, stride, ho, wo):
    """Selects the ho*wo valid stride-sampled output rows in raster order."""
    m = np.zeros((_round_up(ho * wo, 8), hp_in * wp_in), np.float32)
    for oy in range(ho):
        for ox in range(wo):
            m[oy * wo + ox, (stride * oy + 1) * wp_in + (stride * ox + 1)] = 1.0
    return jnp.asarray(m, jnp.bfloat16)


# ----------------------------------------------------------------------------
# Kernel A: down1 (3x3, stride 1) + ReLU + tidy1, K-blocked over Cin.
# ----------------------------------------------------------------------------
def _down1_tidy1_kernel(x_ref, w_ref, b_ref, tw_ref, tb_ref, place_ref, sel_ref,
                        d_ref, t_ref, acc_ref, *, wp, r):
    k = pl.program_id(1)

    @pl.when(k == 0)
    def _init():
        acc_ref[...] = jnp.zeros_like(acc_ref)

    # One MXU matmul per (image, Cin-block) grid step; weight blocks stream in.
    acc_ref[...] += jnp.dot(x_ref[...], w_ref[...],
                            preferred_element_type=jnp.float32)

    @pl.when(k == pl.num_programs(1) - 1)
    def _epilogue():
        cout = b_ref.shape[1]
        p = acc_ref[...]
        y = jnp.maximum(_tap_tree_sum(p, wp, r, cout) + b_ref[...], 0.0)
        yb = y.astype(jnp.bfloat16)
        # Emit d1 directly in the next layer's zero-framed/margined bf16 layout.
        d_ref[...] = jnp.dot(place_ref[...], yb,
                             preferred_element_type=jnp.float32).astype(jnp.bfloat16)
        # tidy1 on the kept (valid-output) rows only -> lane-dense [n_keep, 128] store.
        kept = jnp.dot(sel_ref[...], yb,
                       preferred_element_type=jnp.float32).astype(jnp.bfloat16)
        t_ref[...] = jnp.dot(kept, tw_ref[...],
                             preferred_element_type=jnp.float32) + tb_ref[...]


def _call_down1_tidy1(x_buf, w_cols, bias, tw, tb, place, keep, *, wp, r, rbuf_out):
    B, rbuf_in, cin = x_buf.shape
    cout = bias.shape[1]
    n_keep = keep.shape[0]

    k_blk = next((k for k in (512, 256, 128) if cin % k == 0), cin)
    kb = cin // k_blk

    kernel = functools.partial(_down1_tidy1_kernel, wp=wp, r=r)

    est = (2 * (rbuf_in * k_blk * 2 + k_blk * 9 * cout * 2            # x / w blocks (x2 buf)
                + cout * 4 + cout * LANE * 2 + LANE * 4               # bias / tidy params
                + rbuf_out * r * 2 + n_keep * r * 2                   # placement / keep
                + rbuf_out * cout * 2 + n_keep * LANE * 4)            # outputs
           + rbuf_in * 9 * cout * 4)                                  # f32 accumulator

    grid_spec = pltpu.PrefetchScalarGridSpec(
        num_scalar_prefetch=0,
        grid=(B, kb),
        in_specs=[
            pl.BlockSpec((None, rbuf_in, k_blk), lambda b, k: (b, 0, k)),
            pl.BlockSpec((k_blk, 9 * cout), lambda b, k: (k, 0)),
            pl.BlockSpec((1, cout), lambda b, k: (0, 0)),
            pl.BlockSpec((cout, LANE), lambda b, k: (0, 0)),
            pl.BlockSpec((1, LANE), lambda b, k: (0, 0)),
            pl.BlockSpec((rbuf_out, r), lambda b, k: (0, 0)),
            pl.BlockSpec((n_keep, r), lambda b, k: (0, 0)),
        ],
        out_specs=[
            pl.BlockSpec((None, rbuf_out, cout), lambda b, k: (b, 0, 0)),
            pl.BlockSpec((None, n_keep, LANE), lambda b, k: (b, 0, 0)),
        ],
        scratch_shapes=[pltpu.VMEM((rbuf_in, 9 * cout), jnp.float32)],
    )
    return pl.pallas_call(
        kernel,
        out_shape=(jax.ShapeDtypeStruct((B, rbuf_out, cout), jnp.bfloat16),
                   jax.ShapeDtypeStruct((B, n_keep, LANE), jnp.float32)),
        grid_spec=grid_spec,
        compiler_params=pltpu.CompilerParams(
            dimension_semantics=("parallel", "arbitrary"),
            vmem_limit_bytes=_vmem_limit(est)),
    )(x_buf, w_cols, bias, tw, tb, place, keep)


# ----------------------------------------------------------------------------
# Kernel B: down2+ReLU+tidy2 and down3+ReLU+tidy3 fused; d2/d3 stay in VMEM.
# ----------------------------------------------------------------------------
def _down23_tidy23_kernel(x_ref, w2_ref, b2_ref, tw2_ref, tb2_ref,
                          w3_ref, b3_ref, tw3_ref, tb3_ref,
                          place_ref, sel2_ref, sel3_ref,
                          t2_ref, t3_ref, *, wp2, r2, wp3, r3):
    cout = b2_ref.shape[1]

    # down2 (stride-2 handled by the selection matrices below) + ReLU
    p2 = jnp.dot(x_ref[...], w2_ref[...], preferred_element_type=jnp.float32)
    y2 = jnp.maximum(_tap_tree_sum(p2, wp2, r2, cout) + b2_ref[...], 0.0)
    y2b = y2.astype(jnp.bfloat16)

    # tidy2 on the stride-2 kept rows only
    k2 = jnp.dot(sel2_ref[...], y2b, preferred_element_type=jnp.float32).astype(jnp.bfloat16)
    t2_ref[...] = jnp.dot(k2, tw2_ref[...], preferred_element_type=jnp.float32) + tb2_ref[...]

    # down3 input buffer (stride-2 pick + zero frame/margins) built in VMEM only
    x3 = jnp.dot(place_ref[...], y2b, preferred_element_type=jnp.float32).astype(jnp.bfloat16)

    # down3 + ReLU + tidy3; d3 never touches HBM
    p3 = jnp.dot(x3, w3_ref[...], preferred_element_type=jnp.float32)
    y3 = jnp.maximum(_tap_tree_sum(p3, wp3, r3, cout) + b3_ref[...], 0.0)
    y3b = y3.astype(jnp.bfloat16)
    k3 = jnp.dot(sel3_ref[...], y3b, preferred_element_type=jnp.float32).astype(jnp.bfloat16)
    t3_ref[...] = jnp.dot(k3, tw3_ref[...], preferred_element_type=jnp.float32) + tb3_ref[...]


def _call_tail(d1_buf, w2, b2, tw2, tb2, w3, b3, tw3, tb3, place, keep2, keep3,
               *, wp2, r2, wp3, r3):
    B, rbuf_in, cout = d1_buf.shape
    rbuf3 = place.shape[0]
    n2, n3 = keep2.shape[0], keep3.shape[0]

    kernel = functools.partial(_down23_tidy23_kernel, wp2=wp2, r2=r2, wp3=wp3, r3=r3)

    est = (2 * (rbuf_in * cout * 2 + 2 * cout * 9 * cout * 2
                + 2 * cout * 4 + 2 * cout * LANE * 2 + 2 * LANE * 4
                + rbuf3 * r2 * 2 + n2 * r2 * 2 + n3 * r3 * 2
                + n2 * LANE * 4 + n3 * LANE * 4)
           + rbuf_in * 9 * cout * 4 + rbuf3 * 9 * cout * 4)   # p2 / p3 f32 temporaries

    grid_spec = pltpu.PrefetchScalarGridSpec(
        num_scalar_prefetch=0,
        grid=(B,),
        in_specs=[
            pl.BlockSpec((None, rbuf_in, cout), lambda b: (b, 0, 0)),
            pl.BlockSpec((cout, 9 * cout), lambda b: (0, 0)),
            pl.BlockSpec((1, cout), lambda b: (0, 0)),
            pl.BlockSpec((cout, LANE), lambda b: (0, 0)),
            pl.BlockSpec((1, LANE), lambda b: (0, 0)),
            pl.BlockSpec((cout, 9 * cout), lambda b: (0, 0)),
            pl.BlockSpec((1, cout), lambda b: (0, 0)),
            pl.BlockSpec((cout, LANE), lambda b: (0, 0)),
            pl.BlockSpec((1, LANE), lambda b: (0, 0)),
            pl.BlockSpec((rbuf3, r2), lambda b: (0, 0)),
            pl.BlockSpec((n2, r2), lambda b: (0, 0)),
            pl.BlockSpec((n3, r3), lambda b: (0, 0)),
        ],
        out_specs=[
            pl.BlockSpec((None, n2, LANE), lambda b: (b, 0, 0)),
            pl.BlockSpec((None, n3, LANE), lambda b: (b, 0, 0)),
        ],
    )
    return pl.pallas_call(
        kernel,
        out_shape=(jax.ShapeDtypeStruct((B, n2, LANE), jnp.float32),
                   jax.ShapeDtypeStruct((B, n3, LANE), jnp.float32)),
        grid_spec=grid_spec,
        compiler_params=pltpu.CompilerParams(
            dimension_semantics=("parallel",),
            vmem_limit_bytes=_vmem_limit(est)),
    )(d1_buf, w2, b2, tw2, tb2, w3, b3, tw3, tb3, place, keep2, keep3)


# ----------------------------------------------------------------------------
# Parameters (f32 HWIO, shapes from the PyTorch __init__) + one-time prep.
# ----------------------------------------------------------------------------
def init_params(key):
    def conv_init(k, kh, kw, cin, cout):
        kw_, kb_ = jax.random.split(k)
        fan_in = kh * kw * cin
        w = jax.random.normal(kw_, (kh, kw, cin, cout), jnp.float32) / jnp.sqrt(fan_in)
        b = 0.01 * jax.random.normal(kb_, (cout,), jnp.float32)
        return w, b

    keys = jax.random.split(key, 6)
    p = {}
    p["down1_w"], p["down1_b"] = conv_init(keys[0], 3, 3, 2048, 128)
    p["down2_w"], p["down2_b"] = conv_init(keys[1], 3, 3, 128, 128)
    p["down3_w"], p["down3_b"] = conv_init(keys[2], 3, 3, 128, 128)
    p["tidy1_w"], p["tidy1_b"] = conv_init(keys[3], 1, 1, 128, 6)
    p["tidy2_w"], p["tidy2_b"] = conv_init(keys[4], 1, 1, 128, 6)
    p["tidy3_w"], p["tidy3_b"] = conv_init(keys[5], 1, 1, 128, 9)
    return p


def prepare_params(params):
    """One-time conversion into kernel layout (bf16, tap-stacked, lane-padded)."""
    def down(w, b):
        cin, cout = w.shape[2], w.shape[3]
        w_cols = jnp.transpose(w, (2, 0, 1, 3)).reshape(cin, 9 * cout).astype(jnp.bfloat16)
        return w_cols, b.reshape(1, cout).astype(jnp.float32)

    def tidy(w, b):
        cin, n = w.shape[2], w.shape[3]
        tw = jnp.zeros((cin, LANE), jnp.bfloat16).at[:, :n].set(
            w.reshape(cin, n).astype(jnp.bfloat16))
        tb = jnp.zeros((1, LANE), jnp.float32).at[0, :n].set(b.astype(jnp.float32))
        return tw, tb

    return {
        "down1": down(params["down1_w"], params["down1_b"]),
        "down2": down(params["down2_w"], params["down2_b"]),
        "down3": down(params["down3_w"], params["down3_b"]),
        "tidy1": tidy(params["tidy1_w"], params["tidy1_b"]),
        "tidy2": tidy(params["tidy2_w"], params["tidy2_b"]),
        "tidy3": tidy(params["tidy3_w"], params["tidy3_b"]),
    }


# ----------------------------------------------------------------------------
# ProposalNet forward: 2 pallas_calls + thin JAX glue (input layout + flatten).
# ----------------------------------------------------------------------------
@jax.jit
def proposal_net_forward(x_nchw, prepared):
    B, cin, H, W = x_nchw.shape

    # static geometry (trace time)
    h2, w2 = H, W                                   # down1 output (stride 1)
    h3, w3 = (h2 - 1) // 2 + 1, (w2 - 1) // 2 + 1   # down2 output (stride 2)
    h4, w4 = (h3 - 1) // 2 + 1, (w3 - 1) // 2 + 1   # down3 output (stride 2)
    hp1, wp1, r1, g1, rbuf1 = _geom(H, W)           # down1 conv grid
    hp2, wp2, r2, g2, rbuf2 = _geom(h2, w2)         # down2 conv grid
    hp3, wp3, r3, g3, rbuf3 = _geom(h3, w3)         # down3 conv grid

    # tiny 0/1 bf16 matrices (gather / scatter done on the MXU inside kernels)
    place1 = _placement_matrix(hp1, wp1, 1, hp2, wp2, g2, rbuf2)
    keep1 = _keep_matrix(hp1, wp1, 1, h2, w2)
    place2 = _placement_matrix(hp2, wp2, 2, hp3, wp3, g3, rbuf3)
    keep2 = _keep_matrix(hp2, wp2, 2, h3, w3)
    keep3 = _keep_matrix(hp3, wp3, 2, h4, w4)

    # only per-forward glue pass: NCHW -> bf16 padded/margined flattened buffer
    x_nhwc = jnp.transpose(x_nchw, (0, 2, 3, 1)).astype(jnp.bfloat16)
    x_pad = jnp.pad(x_nhwc, ((0, 0), (1, 1), (1, 1), (0, 0)))
    x_buf = jnp.pad(x_pad.reshape(B, r1, cin),
                    ((0, 0), (g1, rbuf1 - g1 - r1), (0, 0)))

    (w1c, b1), (tw1, tb1) = prepared["down1"], prepared["tidy1"]
    (w2c, b2), (tw2, tb2) = prepared["down2"], prepared["tidy2"]
    (w3c, b3), (tw3, tb3) = prepared["down3"], prepared["tidy3"]

    d1_buf, t1 = _call_down1_tidy1(x_buf, w1c, b1, tw1, tb1, place1, keep1,
                                   wp=wp1, r=r1, rbuf_out=rbuf2)
    t2, t3 = _call_tail(d1_buf, w2c, b2, tw2, tb2, w3c, b3, tw3, tb3,
                        place2, keep2, keep3, wp2=wp2, r2=r2, wp3=wp3, r3=r3)

    def flat_nchw(t, n_rows, n_ch):  # PyTorch tidy(d).view(B,-1): channel-major flatten
        return jnp.transpose(t[:, :n_rows, :n_ch], (0, 2, 1)).reshape(B, -1)

    return jnp.concatenate([flat_nchw(t1, h2 * w2, 6),
                            flat_nchw(t2, h3 * w3, 6),
                            flat_nchw(t3, h4 * w4, 9)], axis=1)


# ----------------------------------------------------------------------------
# Pure-JAX reference (lax conv, f32, HIGHEST precision) for a sanity check.
# ----------------------------------------------------------------------------
def _ref_forward(x_nchw, params):
    def conv(x, w, b, stride, padding, relu):
        y = jax.lax.conv_general_dilated(
            x, w, window_strides=(stride, stride),
            padding=((padding, padding), (padding, padding)),
            dimension_numbers=("NHWC", "HWIO", "NHWC"),
            precision=jax.lax.Precision.HIGHEST,
        ) + b
        return jnp.maximum(y, 0.0) if relu else y

    B = x_nchw.shape[0]
    x = jnp.transpose(x_nchw, (0, 2, 3, 1))
    d1 = conv(x, params["down1_w"], params["down1_b"], 1, 1, True)
    d2 = conv(d1, params["down2_w"], params["down2_b"], 2, 1, True)
    d3 = conv(d2, params["down3_w"], params["down3_b"], 2, 1, True)
    t1 = conv(d1, params["tidy1_w"], params["tidy1_b"], 1, 0, False)
    t2 = conv(d2, params["tidy2_w"], params["tidy2_b"], 1, 0, False)
    t3 = conv(d3, params["tidy3_w"], params["tidy3_b"], 1, 0, False)
    f = lambda t: jnp.transpose(t, (0, 3, 1, 2)).reshape(B, -1)
    return jnp.concatenate([f(t1), f(t2), f(t3)], axis=1)


if __name__ == "__main__":
    key = jax.random.PRNGKey(0)
    kx, kp = jax.random.split(key)

    # Small shapes consistent with the module: 2048-channel feature map, 8x8 spatial.
    B, C, H, W = 2, 2048, 8, 8
    x = jax.random.normal(kx, (B, C, H, W), jnp.float32)
    params = init_params(kp)
    prepared = prepare_params(params)   # one-time bf16 / layout conversion

    out = jax.block_until_ready(proposal_net_forward(x, prepared))

    h3, w3 = (H - 1) // 2 + 1, (W - 1) // 2 + 1
    h4, w4 = (h3 - 1) // 2 + 1, (w3 - 1) // 2 + 1
    expected = 6 * H * W + 6 * h3 * w3 + 9 * h4 * w4   # 384 + 96 + 36 = 516
    assert out.shape == (B, expected), out.shape
    assert bool(jnp.all(jnp.isfinite(out)))

    ref = jax.block_until_ready(_ref_forward(x, params))
    assert bool(jnp.allclose(out, ref, rtol=5e-2, atol=5e-2)), \
        float(jnp.max(jnp.abs(out - ref)))

    print("KERNEL_OK")
</pallas_src>

<mosaic_0001>
module attributes {stable_mosaic.version = 11 : i64} {
  func.func @_down1_tidy1_kernel(%arg0: i32, %arg1: i32, %arg2: memref<1x128x512xbf16, #tpu.memory_space<vmem>>, %arg3: memref<512x1152xbf16, #tpu.memory_space<vmem>>, %arg4: memref<1x128xf32, #tpu.memory_space<vmem>>, %arg5: memref<128x128xbf16, #tpu.memory_space<vmem>>, %arg6: memref<1x128xf32, #tpu.memory_space<vmem>>, %arg7: memref<128x100xbf16, #tpu.memory_space<vmem>>, %arg8: memref<64x100xbf16, #tpu.memory_space<vmem>>, %arg9: memref<1x128x128xbf16, #tpu.memory_space<vmem>>, %arg10: memref<1x64x128xf32, #tpu.memory_space<vmem>>, %arg11: memref<128x1152xf32, #tpu.memory_space<vmem>>) attributes {dimension_semantics = [#tpu.dimension_semantics<parallel>, #tpu.dimension_semantics<arbitrary>], iteration_bounds = array<i64: 2, 4>, scalar_prefetch = 0 : i64, scratch_operands = 1 : i64, tpu.core_type = #tpu.core_type<tc>, window_params = [{transform_indices = @transform_0, window_bounds = array<i64: 1, 128, 512>}, {transform_indices = @transform_1, window_bounds = array<i64: 512, 1152>}, {pipeline_mode = #tpu.pipeline_mode<synchronous>, transform_indices = @transform_2, window_bounds = array<i64: 1, 128>}, {pipeline_mode = #tpu.pipeline_mode<synchronous>, transform_indices = @transform_3, window_bounds = array<i64: 128, 128>}, {pipeline_mode = #tpu.pipeline_mode<synchronous>, transform_indices = @transform_4, window_bounds = array<i64: 1, 128>}, {pipeline_mode = #tpu.pipeline_mode<synchronous>, transform_indices = @transform_5, window_bounds = array<i64: 128, 100>}, {pipeline_mode = #tpu.pipeline_mode<synchronous>, transform_indices = @transform_6, window_bounds = array<i64: 64, 100>}, {transform_indices = @transform_7, window_bounds = array<i64: 1, 128, 128>}, {transform_indices = @transform_8, window_bounds = array<i64: 1, 64, 128>}]} {
    %c0_i32 = arith.constant 0 : i32
    %0 = arith.cmpi eq, %arg1, %c0_i32 : i32
    %1 = arith.extui %0 : i1 to i32
    %c0_i32_0 = arith.constant 0 : i32
    %2 = arith.cmpi ne, %1, %c0_i32_0 : i32
    scf.if %2 {
      %cst_10 = arith.constant 0.000000e+00 : f32
      %13 = vector.broadcast %cst_10 : f32 to vector<128x1152xf32>
      %c0_11 = arith.constant 0 : index
      %c0_12 = arith.constant 0 : index
      %14 = vector.load %arg11[%c0_11, %c0_12] : memref<128x1152xf32, #tpu.memory_space<vmem>>, vector<128x1152xf32>
      tpu.vector_store %arg11[%c0_11, %c0_12], %13 {strides = array<i32>} : memref<128x1152xf32, #tpu.memory_space<vmem>>, vector<128x1152xf32>,
    } else {
    }
    %c0 = arith.constant 0 : index
    %c0_1 = arith.constant 0 : index
    %3 = vector.load %arg11[%c0, %c0_1] : memref<128x1152xf32, #tpu.memory_space<vmem>>, vector<128x1152xf32>
    %c0_2 = arith.constant 0 : index
    %c0_3 = arith.constant 0 : index
    %c0_4 = arith.constant 0 : index
    %4 = vector.load %arg2[%c0_2, %c0_3, %c0_4] : memref<1x128x512xbf16, #tpu.memory_space<vmem>>, vector<1x128x512xbf16>
    %5 = vector.shape_cast %4 : vector<1x128x512xbf16> to vector<128x512xbf16>
    %c0_5 = arith.constant 0 : index
    %c0_6 = arith.constant 0 : index
    %6 = vector.load %arg3[%c0_5, %c0_6] : memref<512x1152xbf16, #tpu.memory_space<vmem>>, vector<512x1152xbf16>
    %cst = arith.constant dense<0.000000e+00> : vector<128x1152xf32>
    %7 = tpu.matmul %5, %6, %cst {dimension_numbers = #tpu.dot_dimension_numbers<[1], [0], [0], [1], [0, 0, 1, 1], [], []>} : vector<128x512xbf16>, vector<512x1152xbf16>, vector<128x1152xf32> -> vector<128x1152xf32>
    %8 = arith.addf %3, %7 : vector<128x1152xf32>
    %c0_7 = arith.constant 0 : index
    %c0_8 = arith.constant 0 : index
    %9 = vector.load %arg11[%c0_7, %c0_8] : memref<128x1152xf32, #tpu.memory_space<vmem>>, vector<128x1152xf32>
    tpu.vector_store %arg11[%c0_7, %c0_8], %8 {strides = array<i32>} : memref<128x1152xf32, #tpu.memory_space<vmem>>, vector<128x1152xf32>,
    %c3_i32 = arith.constant 3 : i32
    %10 = arith.cmpi eq, %arg1, %c3_i32 : i32
    %11 = arith.extui %10 : i1 to i32
    %c0_i32_9 = arith.constant 0 : i32
    %12 = arith.cmpi ne, %11, %c0_i32_9 : i32
    scf.if %12 {
      %c0_10 = arith.constant 0 : index
      %c0_11 = arith.constant 0 : index
      %13 = vector.load %arg11[%c0_10, %c0_11] : memref<128x1152xf32, #tpu.memory_space<vmem>>, vector<128x1152xf32>
      %14 = vector.extract_strided_slice %13 {offsets = [0, 0], sizes = [100, 128], strides = [1, 1]} : vector<128x1152xf32> to vector<100x128xf32>
      %15 = vector.extract_strided_slice %13 {offsets = [1, 128], sizes = [100, 128], strides = [1, 1]} : vector<128x1152xf32> to vector<100x128xf32>
      %16 = vector.extract_strided_slice %13 {offsets = [2, 256], sizes = [100, 128], strides = [1, 1]} : vector<128x1152xf32> to vector<100x128xf32>
      %17 = vector.extract_strided_slice %13 {offsets = [10, 384], sizes = [100, 128], strides = [1, 1]} : vector<128x1152xf32> to vector<100x128xf32>
      %18 = vector.extract_strided_slice %13 {offsets = [11, 512], sizes = [100, 128], strides = [1, 1]} : vector<128x1152xf32> to vector<100x128xf32>
      %19 = vector.extract_strided_slice %13 {offsets = [12, 640], sizes = [100, 128], strides = [1, 1]} : vector<128x1152xf32> to vector<100x128xf32>
      %20 = vector.extract_strided_slice %13 {offsets = [20, 768], sizes = [100, 128], strides = [1, 1]} : vector<128x1152xf32> to vector<100x128xf32>
      %21 = vector.extract_strided_slice %13 {offsets = [21, 896], sizes = [100, 128], strides = [1, 1]} : vector<128x1152xf32> to vector<100x128xf32>
      %22 = vector.extract_strided_slice %13 {offsets = [22, 1024], sizes = [100, 128], strides = [1, 1]} : vector<128x1152xf32> to vector<100x128xf32>
      %23 = arith.addf %14, %15 : vector<100x128xf32>
      %24 = arith.addf %16, %17 : vector<100x128xf32>
      %25 = arith.addf %18, %19 : vector<100x128xf32>
      %26 = arith.addf %20, %21 : vector<100x128xf32>
      %27 = arith.addf %23, %24 : vector<100x128xf32>
      %28 = arith.addf %25, %26 : vector<100x128xf32>
      %29 = arith.addf %27, %28 : vector<100x128xf32>
      %30 = arith.addf %29, %22 : vector<100x128xf32>
      %c0_12 = arith.constant 0 : index
      %c0_13 = arith.constant 0 : index
      %31 = vector.load %arg4[%c0_12, %c0_13] : memref<1x128xf32, #tpu.memory_space<vmem>>, vector<1x128xf32>
      %32 = vector.broadcast %31 : vector<1x128xf32> to vector<100x128xf32>
      %33 = arith.addf %30, %32 : vector<100x128xf32>
      %cst_14 = arith.constant 0.000000e+00 : f32
      %34 = vector.broadcast %cst_14 : f32 to vector<100x128xf32>
      %35 = arith.maximumf %33, %34 : vector<100x128xf32>
      %36 = arith.truncf %35 : vector<100x128xf32> to vector<100x128xbf16>
      %c0_15 = arith.constant 0 : index
      %c0_16 = arith.constant 0 : index
      %37 = vector.load %arg7[%c0_15, %c0_16] : memref<128x100xbf16, #tpu.memory_space<vmem>>, vector<128x100xbf16>
      %cst_17 = arith.constant dense<0.000000e+00> : vector<128x128xf32>
      %38 = tpu.matmul %37, %36, %cst_17 {dimension_numbers = #tpu.dot_dimension_numbers<[1], [0], [0], [1], [0, 0, 1, 1], [], []>} : vector<128x100xbf16>, vector<100x128xbf16>, vector<128x128xf32> -> vector<128x128xf32>
      %39 = arith.truncf %38 : vector<128x128xf32> to vector<128x128xbf16>
      %c0_18 = arith.constant 0 : index
      %c0_19 = arith.constant 0 : index
      %c0_20 = arith.constant 0 : index
      %40 = vector.load %arg9[%c0_18, %c0_19, %c0_20] : memref<1x128x128xbf16, #tpu.memory_space<vmem>>, vector<1x128x128xbf16>
      %41 = vector.shape_cast %40 : vector<1x128x128xbf16> to vector<128x128xbf16>
      %42 = vector.shape_cast %39 : vector<128x128xbf16> to vector<1x128x128xbf16>
      tpu.vector_store %arg9[%c0_18, %c0_19, %c0_20], %42 {strides = array<i32>} : memref<1x128x128xbf16, #tpu.memory_space<vmem>>, vector<1x128x128xbf16>,
      %c0_21 = arith.constant 0 : index
      %c0_22 = arith.constant 0 : index
      %43 = vector.load %arg8[%c0_21, %c0_22] : memref<64x100xbf16, #tpu.memory_space<vmem>>, vector<64x100xbf16>
      %cst_23 = arith.constant dense<0.000000e+00> : vector<64x128xf32>
      %44 = tpu.matmul %43, %36, %cst_23 {dimension_numbers = #tpu.dot_dimension_numbers<[1], [0], [0], [1], [0, 0, 1, 1], [], []>} : vector<64x100xbf16>, vector<100x128xbf16>, vector<64x128xf32> -> vector<64x128xf32>
      %45 = arith.truncf %44 : vector<64x128xf32> to vector<64x128xbf16>
      %c0_24 = arith.constant 0 : index
      %c0_25 = arith.constant 0 : index
      %46 = vector.load %arg5[%c0_24, %c0_25] : memref<128x128xbf16, #tpu.memory_space<vmem>>, vector<128x128xbf16>
      %cst_26 = arith.constant dense<0.000000e+00> : vector<64x128xf32>
      %47 = tpu.matmul %45, %46, %cst_26 {dimension_numbers = #tpu.dot_dimension_numbers<[1], [0], [0], [1], [0, 0, 1, 1], [], []>} : vector<64x128xbf16>, vector<128x128xbf16>, vector<64x128xf32> -> vector<64x128xf32>
      %c0_27 = arith.constant 0 : index
      %c0_28 = arith.constant 0 : index
      %48 = vector.load %arg6[%c0_27, %c0_28] : memref<1x128xf32, #tpu.memory_space<vmem>>, vector<1x128xf32>
      %49 = vector.broadcast %48 : vector<1x128xf32> to vector<64x128xf32>
      %50 = arith.addf %47, %49 : vector<64x128xf32>
      %c0_29 = arith.constant 0 : index
      %c0_30 = arith.constant 0 : index
      %c0_31 = arith.constant 0 : index
      %51 = vector.load %arg10[%c0_29, %c0_30, %c0_31] : memref<1x64x128xf32, #tpu.memory_space<vmem>>, vector<1x64x128xf32>
      %52 = vector.shape_cast %51 : vector<1x64x128xf32> to vector<64x128xf32>
      %53 = vector.shape_cast %50 : vector<64x128xf32> to vector<1x64x128xf32>
      tpu.vector_store %arg10[%c0_29, %c0_30, %c0_31], %53 {strides = array<i32>} : memref<1x64x128xf32, #tpu.memory_space<vmem>>, vector<1x64x128xf32>,
    } else {
    }
    return
  }
  func.func @transform_0(%arg0: i32, %arg1: i32) -> (i32, i32, i32) {
    %c0_i32 = arith.constant 0 : i32
    %c0_i32_0 = arith.constant 0 : i32
    return %arg0, %c0_i32, %arg1 : i32, i32, i32
  }
  func.func @transform_1(%arg0: i32, %arg1: i32) -> (i32, i32) {
    %c0_i32 = arith.constant 0 : i32
    %c0_i32_0 = arith.constant 0 : i32
    return %arg1, %c0_i32 : i32, i32
  }
  func.func @transform_2(%arg0: i32, %arg1: i32) -> (i32, i32) {
    %c0_i32 = arith.constant 0 : i32
    %c0_i32_0 = arith.constant 0 : i32
    %c0_i32_1 = arith.constant 0 : i32
    return %c0_i32, %c0_i32_0 : i32, i32
  }
  func.func @transform_3(%arg0: i32, %arg1: i32) -> (i32, i32) {
    %c0_i32 = arith.constant 0 : i32
    %c0_i32_0 = arith.constant 0 : i32
    %c0_i32_1 = arith.constant 0 : i32
    return %c0_i32, %c0_i32_0 : i32, i32
  }
  func.func @transform_4(%arg0: i32, %arg1: i32) -> (i32, i32) {
    %c0_i32 = arith.constant 0 : i32
    %c0_i32_0 = arith.constant 0 : i32
    %c0_i32_1 = arith.constant 0 : i32
    return %c0_i32, %c0_i32_0 : i32, i32
  }
  func.func @transform_5(%arg0: i32, %arg1: i32) -> (i32, i32) {
    %c0_i32 = arith.constant 0 : i32
    %c0_i32_0 = arith.constant 0 : i32
    %c0_i32_1 = arith.constant 0 : i32
    return %c0_i32, %c0_i32_0 : i32, i32
  }
  func.func @transform_6(%arg0: i32, %arg1: i32) -> (i32, i32) {
    %c0_i32 = arith.constant 0 : i32
    %c0_i32_0 = arith.constant 0 : i32
    %c0_i32_1 = arith.constant 0 : i32
    return %c0_i32, %c0_i32_0 : i32, i32
  }
  func.func @transform_7(%arg0: i32, %arg1: i32) -> (i32, i32, i32) {
    %c0_i32 = arith.constant 0 : i32
    %c0_i32_0 = arith.constant 0 : i32
    %c0_i32_1 = arith.constant 0 : i32
    return %arg0, %c0_i32, %c0_i32_0 : i32, i32, i32
  }
  func.func @transform_8(%arg0: i32, %arg1: i32) -> (i32, i32, i32) {
    %c0_i32 = arith.constant 0 : i32
    %c0_i32_0 = arith.constant 0 : i32
    %c0_i32_1 = arith.constant 0 : i32
    return %arg0, %c0_i32, %c0_i32_0 : i32, i32, i32
  }
}

module attributes {stable_mosaic.version = 11 : i64} {
  func.func @_down23_tidy23_kernel(%arg0: i32, %arg1: memref<1x128x128xbf16, #tpu.memory_space<vmem>>, %arg2: memref<128x1152xbf16, #tpu.memory_space<vmem>>, %arg3: memref<1x128xf32, #tpu.memory_space<vmem>>, %arg4: memref<128x128xbf16, #tpu.memory_space<vmem>>, %arg5: memref<1x128xf32, #tpu.memory_space<vmem>>, %arg6: memref<128x1152xbf16, #tpu.memory_space<vmem>>, %arg7: memref<1x128xf32, #tpu.memory_space<vmem>>, %arg8: memref<128x128xbf16, #tpu.memory_space<vmem>>, %arg9: memref<1x128xf32, #tpu.memory_space<vmem>>, %arg10: memref<64x100xbf16, #tpu.memory_space<vmem>>, %arg11: memref<16x100xbf16, #tpu.memory_space<vmem>>, %arg12: memref<8x36xbf16, #tpu.memory_space<vmem>>, %arg13: memref<1x16x128xf32, #tpu.memory_space<vmem>>, %arg14: memref<1x8x128xf32, #tpu.memory_space<vmem>>) attributes {dimension_semantics = [#tpu.dimension_semantics<parallel>], iteration_bounds = array<i64: 2>, scalar_prefetch = 0 : i64, scratch_operands = 0 : i64, tpu.core_type = #tpu.core_type<tc>, window_params = [{transform_indices = @transform_0, window_bounds = array<i64: 1, 128, 128>}, {pipeline_mode = #tpu.pipeline_mode<synchronous>, transform_indices = @transform_1, window_bounds = array<i64: 128, 1152>}, {pipeline_mode = #tpu.pipeline_mode<synchronous>, transform_indices = @transform_2, window_bounds = array<i64: 1, 128>}, {pipeline_mode = #tpu.pipeline_mode<synchronous>, transform_indices = @transform_3, window_bounds = array<i64: 128, 128>}, {pipeline_mode = #tpu.pipeline_mode<synchronous>, transform_indices = @transform_4, window_bounds = array<i64: 1, 128>}, {pipeline_mode = #tpu.pipeline_mode<synchronous>, transform_indices = @transform_5, window_bounds = array<i64: 128, 1152>}, {pipeline_mode = #tpu.pipeline_mode<synchronous>, transform_indices = @transform_6, window_bounds = array<i64: 1, 128>}, {pipeline_mode = #tpu.pipeline_mode<synchronous>, transform_indices = @transform_7, window_bounds = array<i64: 128, 128>}, {pipeline_mode = #tpu.pipeline_mode<synchronous>, transform_indices = @transform_8, window_bounds = array<i64: 1, 128>}, {pipeline_mode = #tpu.pipeline_mode<synchronous>, transform_indices = @transform_9, window_bounds = array<i64: 64, 100>}, {pipeline_mode = #tpu.pipeline_mode<synchronous>, transform_indices = @transform_10, window_bounds = array<i64: 16, 100>}, {pipeline_mode = #tpu.pipeline_mode<synchronous>, transform_indices = @transform_11, window_bounds = array<i64: 8, 36>}, {transform_indices = @transform_12, window_bounds = array<i64: 1, 16, 128>}, {transform_indices = @transform_13, window_bounds = array<i64: 1, 8, 128>}]} {
    %c0 = arith.constant 0 : index
    %c0_0 = arith.constant 0 : index
    %c0_1 = arith.constant 0 : index
    %0 = vector.load %arg1[%c0, %c0_0, %c0_1] : memref<1x128x128xbf16, #tpu.memory_space<vmem>>, vector<1x128x128xbf16>
    %1 = vector.shape_cast %0 : vector<1x128x128xbf16> to vector<128x128xbf16>
    %c0_2 = arith.constant 0 : index
    %c0_3 = arith.constant 0 : index
    %2 = vector.load %arg2[%c0_2, %c0_3] : memref<128x1152xbf16, #tpu.memory_space<vmem>>, vector<128x1152xbf16>
    %cst = arith.constant dense<0.000000e+00> : vector<128x1152xf32>
    %3 = tpu.matmul %1, %2, %cst {dimension_numbers = #tpu.dot_dimension_numbers<[1], [0], [0], [1], [0, 0, 1, 1], [], []>} : vector<128x128xbf16>, vector<128x1152xbf16>, vector<128x1152xf32> -> vector<128x1152xf32>
    %4 = vector.extract_strided_slice %3 {offsets = [0, 0], sizes = [100, 128], strides = [1, 1]} : vector<128x1152xf32> to vector<100x128xf32>
    %5 = vector.extract_strided_slice %3 {offsets = [1, 128], sizes = [100, 128], strides = [1, 1]} : vector<128x1152xf32> to vector<100x128xf32>
    %6 = vector.extract_strided_slice %3 {offsets = [2, 256], sizes = [100, 128], strides = [1, 1]} : vector<128x1152xf32> to vector<100x128xf32>
    %7 = vector.extract_strided_slice %3 {offsets = [10, 384], sizes = [100, 128], strides = [1, 1]} : vector<128x1152xf32> to vector<100x128xf32>
    %8 = vector.extract_strided_slice %3 {offsets = [11, 512], sizes = [100, 128], strides = [1, 1]} : vector<128x1152xf32> to vector<100x128xf32>
    %9 = vector.extract_strided_slice %3 {offsets = [12, 640], sizes = [100, 128], strides = [1, 1]} : vector<128x1152xf32> to vector<100x128xf32>
    %10 = vector.extract_strided_slice %3 {offsets = [20, 768], sizes = [100, 128], strides = [1, 1]} : vector<128x1152xf32> to vector<100x128xf32>
    %11 = vector.extract_strided_slice %3 {offsets = [21, 896], sizes = [100, 128], strides = [1, 1]} : vector<128x1152xf32> to vector<100x128xf32>
    %12 = vector.extract_strided_slice %3 {offsets = [22, 1024], sizes = [100, 128], strides = [1, 1]} : vector<128x1152xf32> to vector<100x128xf32>
    %13 = arith.addf %4, %5 : vector<100x128xf32>
    %14 = arith.addf %6, %7 : vector<100x128xf32>
    %15 = arith.addf %8, %9 : vector<100x128xf32>
    %16 = arith.addf %10, %11 : vector<100x128xf32>
    %17 = arith.addf %13, %14 : vector<100x128xf32>
    %18 = arith.addf %15, %16 : vector<100x128xf32>
    %19 = arith.addf %17, %18 : vector<100x128xf32>
    %20 = arith.addf %19, %12 : vector<100x128xf32>
    %c0_4 = arith.constant 0 : index
    %c0_5 = arith.constant 0 : index
    %21 = vector.load %arg3[%c0_4, %c0_5] : memref<1x128xf32, #tpu.memory_space<vmem>>, vector<1x128xf32>
    %22 = vector.broadcast %21 : vector<1x128xf32> to vector<100x128xf32>
    %23 = arith.addf %20, %22 : vector<100x128xf32>
    %cst_6 = arith.constant 0.000000e+00 : f32
    %24 = vector.broadcast %cst_6 : f32 to vector<100x128xf32>
    %25 = arith.maximumf %23, %24 : vector<100x128xf32>
    %26 = arith.truncf %25 : vector<100x128xf32> to vector<100x128xbf16>
    %c0_7 = arith.constant 0 : index
    %c0_8 = arith.constant 0 : index
    %27 = vector.load %arg11[%c0_7, %c0_8] : memref<16x100xbf16, #tpu.memory_space<vmem>>, vector<16x100xbf16>
    %cst_9 = arith.constant dense<0.000000e+00> : vector<16x128xf32>
    %28 = tpu.matmul %27, %26, %cst_9 {dimension_numbers = #tpu.dot_dimension_numbers<[1], [0], [0], [1], [0, 0, 1, 1], [], []>} : vector<16x100xbf16>, vector<100x128xbf16>, vector<16x128xf32> -> vector<16x128xf32>
    %29 = arith.truncf %28 : vector<16x128xf32> to vector<16x128xbf16>
    %c0_10 = arith.constant 0 : index
    %c0_11 = arith.constant 0 : index
    %30 = vector.load %arg4[%c0_10, %c0_11] : memref<128x128xbf16, #tpu.memory_space<vmem>>, vector<128x128xbf16>
    %cst_12 = arith.constant dense<0.000000e+00> : vector<16x128xf32>
    %31 = tpu.matmul %29, %30, %cst_12 {dimension_numbers = #tpu.dot_dimension_numbers<[1], [0], [0], [1], [0, 0, 1, 1], [], []>} : vector<16x128xbf16>, vector<128x128xbf16>, vector<16x128xf32> -> vector<16x128xf32>
    %c0_13 = arith.constant 0 : index
    %c0_14 = arith.constant 0 : index
    %32 = vector.load %arg5[%c0_13, %c0_14] : memref<1x128xf32, #tpu.memory_space<vmem>>, vector<1x128xf32>
    %33 = vector.broadcast %32 : vector<1x128xf32> to vector<16x128xf32>
    %34 = arith.addf %31, %33 : vector<16x128xf32>
    %c0_15 = arith.constant 0 : index
    %c0_16 = arith.constant 0 : index
    %c0_17 = arith.constant 0 : index
    %35 = vector.load %arg13[%c0_15, %c0_16, %c0_17] : memref<1x16x128xf32, #tpu.memory_space<vmem>>, vector<1x16x128xf32>
    %36 = vector.shape_cast %35 : vector<1x16x128xf32> to vector<16x128xf32>
    %37 = vector.shape_cast %34 : vector<16x128xf32> to vector<1x16x128xf32>
    tpu.vector_store %arg13[%c0_15, %c0_16, %c0_17], %37 {strides = array<i32>} : memref<1x16x128xf32, #tpu.memory_space<vmem>>, vector<1x16x128xf32>,
    %c0_18 = arith.constant 0 : index
    %c0_19 = arith.constant 0 : index
    %38 = vector.load %arg10[%c0_18, %c0_19] : memref<64x100xbf16, #tpu.memory_space<vmem>>, vector<64x100xbf16>
    %cst_20 = arith.constant dense<0.000000e+00> : vector<64x128xf32>
    %39 = tpu.matmul %38, %26, %cst_20 {dimension_numbers = #tpu.dot_dimension_numbers<[1], [0], [0], [1], [0, 0, 1, 1], [], []>} : vector<64x100xbf16>, vector<100x128xbf16>, vector<64x128xf32> -> vector<64x128xf32>
    %40 = arith.truncf %39 : vector<64x128xf32> to vector<64x128xbf16>
    %c0_21 = arith.constant 0 : index
    %c0_22 = arith.constant 0 : index
    %41 = vector.load %arg6[%c0_21, %c0_22] : memref<128x1152xbf16, #tpu.memory_space<vmem>>, vector<128x1152xbf16>
    %cst_23 = arith.constant dense<0.000000e+00> : vector<64x1152xf32>
    %42 = tpu.matmul %40, %41, %cst_23 {dimension_numbers = #tpu.dot_dimension_numbers<[1], [0], [0], [1], [0, 0, 1, 1], [], []>} : vector<64x128xbf16>, vector<128x1152xbf16>, vector<64x1152xf32> -> vector<64x1152xf32>
    %43 = vector.extract_strided_slice %42 {offsets = [0, 0], sizes = [36, 128], strides = [1, 1]} : vector<64x1152xf32> to vector<36x128xf32>
    %44 = vector.extract_strided_slice %42 {offsets = [1, 128], sizes = [36, 128], strides = [1, 1]} : vector<64x1152xf32> to vector<36x128xf32>
    %45 = vector.extract_strided_slice %42 {offsets = [2, 256], sizes = [36, 128], strides = [1, 1]} : vector<64x1152xf32> to vector<36x128xf32>
    %46 = vector.extract_strided_slice %42 {offsets = [6, 384], sizes = [36, 128], strides = [1, 1]} : vector<64x1152xf32> to vector<36x128xf32>
    %47 = vector.extract_strided_slice %42 {offsets = [7, 512], sizes = [36, 128], strides = [1, 1]} : vector<64x1152xf32> to vector<36x128xf32>
    %48 = vector.extract_strided_slice %42 {offsets = [8, 640], sizes = [36, 128], strides = [1, 1]} : vector<64x1152xf32> to vector<36x128xf32>
    %49 = vector.extract_strided_slice %42 {offsets = [12, 768], sizes = [36, 128], strides = [1, 1]} : vector<64x1152xf32> to vector<36x128xf32>
    %50 = vector.extract_strided_slice %42 {offsets = [13, 896], sizes = [36, 128], strides = [1, 1]} : vector<64x1152xf32> to vector<36x128xf32>
    %51 = vector.extract_strided_slice %42 {offsets = [14, 1024], sizes = [36, 128], strides = [1, 1]} : vector<64x1152xf32> to vector<36x128xf32>
    %52 = arith.addf %43, %44 : vector<36x128xf32>
    %53 = arith.addf %45, %46 : vector<36x128xf32>
    %54 = arith.addf %47, %48 : vector<36x128xf32>
    %55 = arith.addf %49, %50 : vector<36x128xf32>
    %56 = arith.addf %52, %53 : vector<36x128xf32>
    %57 = arith.addf %54, %55 : vector<36x128xf32>
    %58 = arith.addf %56, %57 : vector<36x128xf32>
    %59 = arith.addf %58, %51 : vector<36x128xf32>
    %c0_24 = arith.constant 0 : index
    %c0_25 = arith.constant 0 : index
    %60 = vector.load %arg7[%c0_24, %c0_25] : memref<1x128xf32, #tpu.memory_space<vmem>>, vector<1x128xf32>
    %61 = vector.broadcast %60 : vector<1x128xf32> to vector<36x128xf32>
    %62 = arith.addf %59, %61 : vector<36x128xf32>
    %cst_26 = arith.constant 0.000000e+00 : f32
    %63 = vector.broadcast %cst_26 : f32 to vector<36x128xf32>
    %64 = arith.maximumf %62, %63 : vector<36x128xf32>
    %65 = arith.truncf %64 : vector<36x128xf32> to vector<36x128xbf16>
    %c0_27 = arith.constant 0 : index
    %c0_28 = arith.constant 0 : index
    %66 = vector.load %arg12[%c0_27, %c0_28] : memref<8x36xbf16, #tpu.memory_space<vmem>>, vector<8x36xbf16>
    %cst_29 = arith.constant dense<0.000000e+00> : vector<8x128xf32>
    %67 = tpu.matmul %66, %65, %cst_29 {dimension_numbers = #tpu.dot_dimension_numbers<[1], [0], [0], [1], [0, 0, 1, 1], [], []>} : vector<8x36xbf16>, vector<36x128xbf16>, vector<8x128xf32> -> vector<8x128xf32>
    %68 = arith.truncf %67 : vector<8x128xf32> to vector<8x128xbf16>
    %c0_30 = arith.constant 0 : index
    %c0_31 = arith.constant 0 : index
    %69 = vector.load %arg8[%c0_30, %c0_31] : memref<128x128xbf16, #tpu.memory_space<vmem>>, vector<128x128xbf16>
    %cst_32 = arith.constant dense<0.000000e+00> : vector<8x128xf32>
    %70 = tpu.matmul %68, %69, %cst_32 {dimension_numbers = #tpu.dot_dimension_numbers<[1], [0], [0], [1], [0, 0, 1, 1], [], []>} : vector<8x128xbf16>, vector<128x128xbf16>, vector<8x128xf32> -> vector<8x128xf32>
    %c0_33 = arith.constant 0 : index
    %c0_34 = arith.constant 0 : index
    %71 = vector.load %arg9[%c0_33, %c0_34] : memref<1x128xf32, #tpu.memory_space<vmem>>, vector<1x128xf32>
    %72 = vector.broadcast %71 : vector<1x128xf32> to vector<8x128xf32>
    %73 = arith.addf %70, %72 : vector<8x128xf32>
    %c0_35 = arith.constant 0 : index
    %c0_36 = arith.constant 0 : index
    %c0_37 = arith.constant 0 : index
    %74 = vector.load %arg14[%c0_35, %c0_36, %c0_37] : memref<1x8x128xf32, #tpu.memory_space<vmem>>, vector<1x8x128xf32>
    %75 = vector.shape_cast %74 : vector<1x8x128xf32> to vector<8x128xf32>
    %76 = vector.shape_cast %73 : vector<8x128xf32> to vector<1x8x128xf32>
    tpu.vector_store %arg14[%c0_35, %c0_36, %c0_37], %76 {strides = array<i32>} : memref<1x8x128xf32, #tpu.memory_space<vmem>>, vector<1x8x128xf32>,
    return
  }
  func.func @transform_0(%arg0: i32) -> (i32, i32, i32) {
    %c0_i32 = arith.constant 0 : i32
    %c0_i32_0 = arith.constant 0 : i32
    %c0_i32_1 = arith.constant 0 : i32
    return %arg0, %c0_i32, %c0_i32_0 : i32, i32, i32
  }
  func.func @transform_1(%arg0: i32) -> (i32, i32) {
    %c0_i32 = arith.constant 0 : i32
    %c0_i32_0 = arith.constant 0 : i32
    %c0_i32_1 = arith.constant 0 : i32
    return %c0_i32, %c0_i32_0 : i32, i32
  }
  func.func @transform_2(%arg0: i32) -> (i32, i32) {
    %c0_i32 = arith.constant 0 : i32
    %c0_i32_0 = arith.constant 0 : i32
    %c0_i32_1 = arith.constant 0 : i32
    return %c0_i32, %c0_i32_0 : i32, i32
  }
  func.func @transform_3(%arg0: i32) -> (i32, i32) {
    %c0_i32 = arith.constant 0 : i32
    %c0_i32_0 = arith.constant 0 : i32
    %c0_i32_1 = arith.constant 0 : i32
    return %c0_i32, %c0_i32_0 : i32, i32
  }
  func.func @transform_4(%arg0: i32) -> (i32, i32) {
    %c0_i32 = arith.constant 0 : i32
    %c0_i32_0 = arith.constant 0 : i32
    %c0_i32_1 = arith.constant 0 : i32
    return %c0_i32, %c0_i32_0 : i32, i32
  }
  func.func @transform_5(%arg0: i32) -> (i32, i32) {
    %c0_i32 = arith.constant 0 : i32
    %c0_i32_0 = arith.constant 0 : i32
    %c0_i32_1 = arith.constant 0 : i32
    return %c0_i32, %c0_i32_0 : i32, i32
  }
  func.func @transform_6(%arg0: i32) -> (i32, i32) {
    %c0_i32 = arith.constant 0 : i32
    %c0_i32_0 = arith.constant 0 : i32
    %c0_i32_1 = arith.constant 0 : i32
    return %c0_i32, %c0_i32_0 : i32, i32
  }
  func.func @transform_7(%arg0: i32) -> (i32, i32) {
    %c0_i32 = arith.constant 0 : i32
    %c0_i32_0 = arith.constant 0 : i32
    %c0_i32_1 = arith.constant 0 : i32
    return %c0_i32, %c0_i32_0 : i32, i32
  }
  func.func @transform_8(%arg0: i32) -> (i32, i32) {
    %c0_i32 = arith.constant 0 : i32
    %c0_i32_0 = arith.constant 0 : i32
    %c0_i32_1 = arith.constant 0 : i32
    return %c0_i32, %c0_i32_0 : i32, i32
  }
  func.func @transform_9(%arg0: i32) -> (i32, i32) {
    %c0_i32 = arith.constant 0 : i32
    %c0_i32_0 = arith.constant 0 : i32
    %c0_i32_1 = arith.constant 0 : i32
    return %c0_i32, %c0_i32_0 : i32, i32
  }
  func.func @transform_10(%arg0: i32) -> (i32, i32) {
    %c0_i32 = arith.constant 0 : i32
    %c0_i32_0 = arith.constant 0 : i32
    %c0_i32_1 = arith.constant 0 : i32
    return %c0_i32, %c0_i32_0 : i32, i32
  }
  func.func @transform_11(%arg0: i32) -> (i32, i32) {
    %c0_i32 = arith.constant 0 : i32
    %c0_i32_0 = arith.constant 0 : i32
    %c0_i32_1 = arith.constant 0 : i32
    return %c0_i32, %c0_i32_0 : i32, i32
  }
  func.func @transform_12(%arg0: i32) -> (i32, i32, i32) {
    %c0_i32 = arith.constant 0 : i32
    %c0_i32_0 = arith.constant 0 : i32
    %c0_i32_1 = arith.constant 0 : i32
    return %arg0, %c0_i32, %c0_i32_0 : i32, i32, i32
  }
  func.func @transform_13(%arg0: i32) -> (i32, i32, i32) {
    %c0_i32 = arith.constant 0 : i32
    %c0_i32_0 = arith.constant 0 : i32
    %c0_i32_1 = arith.constant 0 : i32
    return %arg0, %c0_i32, %c0_i32_0 : i32, i32, i32
  }
}

</mosaic_0001>

<llo_original>
// kernel: proposal_net_forward.3
$region0: #{proposal_net_forward.3}
  #allocation0 [shape = 'u32[]', space=smem, size = 0x4, offset = 0x4, fixed_abs, tag = 'smem constant byte address 0x4 - core index']
  #allocation1 [shape = 'u32[144,128]{1,0:T(1,128)}', space=vmem, size = 0x12000, scoped, tag = 'internal scratch']
  %s0 = inlined_call_operand.vmem [shape: bf16[2,128,128], index: 0, kind: input, shape index: {}]
  %s1 = inlined_call_operand.vmem [shape: bf16[128,1152], index: 1, kind: input, shape index: {}]
  %s2 = inlined_call_operand.vmem [shape: f32[1,128], index: 2, kind: input, shape index: {}]
  %s3 = inlined_call_operand.vmem [shape: bf16[128,128], index: 3, kind: input, shape index: {}]
  %s4 = inlined_call_operand.vmem [shape: f32[1,128], index: 4, kind: input, shape index: {}]
  %s5 = inlined_call_operand.vmem [shape: bf16[128,1152], index: 5, kind: input, shape index: {}]
  %s6 = inlined_call_operand.vmem [shape: f32[1,128], index: 6, kind: input, shape index: {}]
  %s7 = inlined_call_operand.vmem [shape: bf16[128,128], index: 7, kind: input, shape index: {}]
  %s8 = inlined_call_operand.vmem [shape: f32[1,128], index: 8, kind: input, shape index: {}]
  %s9 = inlined_call_operand.vmem [shape: bf16[64,100], index: 9, kind: input, shape index: {}]
  %s10 = inlined_call_operand.vmem [shape: bf16[16,100], index: 10, kind: input, shape index: {}]
  %s11 = inlined_call_operand.vmem [shape: bf16[8,36], index: 11, kind: input, shape index: {}]
  %s12 = inlined_call_operand.vmem [shape: f32[2,16,128], index: 12, kind: output, shape index: {0}]
  %s13 = inlined_call_operand.vmem [shape: f32[2,8,128], index: 13, kind: output, shape index: {1}]
  %14 = xla_tuple %s12, %s13
  %s15 = sld [smem:[#allocation0]]
  $region89: #{proposal_net_forward.3} parent=0
    _
  %s17 = ssub.s32 1, %s15
  %s18 = scalar_select 0, %s17, %s15
  loop: start=0, step=1, limit=4
  $region2: #{proposal_net_forward.3} parent=0 // loop_pre_header
    _
  $region3: #{proposal_net_forward.3} parent=0 // loop_header
    %s20 = sphi 0, %s24
    %p21 = scmp.ge.s32.totalorder %s20, 4
    %s30 = sphi 0, %s32
    %s33 = sphi 0, %s30
    %s34 = sphi 0, %s33
    %s50 = sphi 0, %s34
    %s54 = sphi 0, %s54
    %s56 = sphi 0, %s54
    %s57 = sphi 0, %s56
    %s71 = sphi 0, %s57
    %s75 = sphi 0, %s75
    %s77 = sphi 0, %s75
    %s78 = sphi 0, %s77
    %s92 = sphi 0, %s78
    %s96 = sphi 0, %s96
    %s98 = sphi 0, %s96
    %s99 = sphi 0, %s98
    %s113 = sphi 0, %s99
    %s117 = sphi 0, %s117
    %s119 = sphi 0, %s117
    %s120 = sphi 0, %s119
    %s134 = sphi 0, %s120
    %s138 = sphi 0, %s138
    %s140 = sphi 0, %s138
    %s141 = sphi 0, %s140
    %s155 = sphi 0, %s141
    %s159 = sphi 0, %s159
    %s161 = sphi 0, %s159
    %s162 = sphi 0, %s161
    %s176 = sphi 0, %s162
    %s180 = sphi 0, %s180
    %s182 = sphi 0, %s180
    %s183 = sphi 0, %s182
    %s197 = sphi 0, %s183
    %s201 = sphi 0, %s201
    %s203 = sphi 0, %s201
    %s204 = sphi 0, %s203
    %s218 = sphi 0, %s204
    %s222 = sphi 0, %s222
    %s224 = sphi 0, %s222
    %s225 = sphi 0, %s224
    %s239 = sphi 0, %s225
    %s243 = sphi 0, %s243
    %s245 = sphi 0, %s243
    %s246 = sphi 0, %s245
    %s260 = sphi 0, %s246
    %s264 = sphi 0, %s264
    %s266 = sphi 0, %s264
    %s267 = sphi 0, %s266
    %s281 = sphi 0, %s267
    %s287 = sphi 0, %s289
    %s290 = sphi 0, %s287
    %s291 = sphi 0, %s290
    %s307 = sphi 0, %s291
    %s313 = sphi 0, %s315
    %s316 = sphi 0, %s313
    %s317 = sphi 0, %s316
    %s333 = sphi 0, %s317
  $region4: #{proposal_net_forward.3} parent=0 // loop_header_branch
    %23 = sbr.rel (%p21) target = $region8
  $region5: #{proposal_net_forward.3} parent=0 // loop_body
    %s25 = ssub.s32 %s20, 1
    %s26 = ssub.s32 %s20, 2
    %s27 = sadd.s32 %s20, 1
    %s28 = ssub.s32 %s20, %s27
    %p29 = scmp.eq.s32.totalorder %s28, 0
    %s31 = sadd.s32 %s30, 1
    %s32 = scalar_select %p29, %s30, %s31
    %p35 = pneg %p29
    %p36 = scmp.eq.s32.totalorder %s20, 1
    %p37 = por %p35, %p36
    %p38 = scmp.ne.s32.totalorder %s30, %s33
    %p39 = scmp.eq.s32.totalorder %s20, 0
    %p40 = por %p38, %p39
    %p41 = scmp.ne.s32.totalorder %s30, %s33
    %p42 = scmp.eq.s32.totalorder %s25, 1
    %p43 = por %p41, %p42
    %p44 = scmp.ne.s32.totalorder %s33, %s34
    %p45 = scmp.eq.s32.totalorder %s25, 0
    %p46 = por %p44, %p45
    %p47 = scmp.ne.s32.totalorder %s33, %s34
    %p48 = scmp.eq.s32.totalorder %s26, 1
    %p49 = por %p47, %p48
    %p51 = scmp.ne.s32.totalorder %s34, %s50
    %p52 = scmp.eq.s32.totalorder %s26, 0
    %p53 = por %p51, %p52
    %s55 = sadd.s32 %s54, 1
    %p58 = scmp.eq.s32.totalorder %s20, 1
    %p59 = scmp.ne.s32.totalorder %s54, %s56
    %p60 = scmp.eq.s32.totalorder %s20, 0
    %p61 = por %p59, %p60
    %p62 = scmp.ne.s32.totalorder %s54, %s56
    %p63 = scmp.eq.s32.totalorder %s25, 1
    %p64 = por %p62, %p63
    %p65 = scmp.ne.s32.totalorder %s56, %s57
    %p66 = scmp.eq.s32.totalorder %s25, 0
    %p67 = por %p65, %p66
    %p68 = scmp.ne.s32.totalorder %s56, %s57
    %p69 = scmp.eq.s32.totalorder %s26, 1
    %p70 = por %p68, %p69
    %p72 = scmp.ne.s32.totalorder %s57, %s71
    %p73 = scmp.eq.s32.totalorder %s26, 0
    %p74 = por %p72, %p73
    %s76 = sadd.s32 %s75, 1
    %p79 = scmp.eq.s32.totalorder %s20, 1
    %p80 = scmp.ne.s32.totalorder %s75, %s77
    %p81 = scmp.eq.s32.totalorder %s20, 0
    %p82 = por %p80, %p81
    %p83 = scmp.ne.s32.totalorder %s75, %s77
    %p84 = scmp.eq.s32.totalorder %s25, 1
    %p85 = por %p83, %p84
    %p86 = scmp.ne.s32.totalorder %s77, %s78
    %p87 = scmp.eq.s32.totalorder %s25, 0
    %p88 = por %p86, %p87
    %p89 = scmp.ne.s32.totalorder %s77, %s78
    %p90 = scmp.eq.s32.totalorder %s26, 1
    %p91 = por %p89, %p90
    %p93 = scmp.ne.s32.totalorder %s78, %s92
    %p94 = scmp.eq.s32.totalorder %s26, 0
    %p95 = por %p93, %p94
    %s97 = sadd.s32 %s96, 1
    %p100 = scmp.eq.s32.totalorder %s20, 1
    %p101 = scmp.ne.s32.totalorder %s96, %s98
    %p102 = scmp.eq.s32.totalorder %s20, 0
    %p103 = por %p101, %p102
    %p104 = scmp.ne.s32.totalorder %s96, %s98
    %p105 = scmp.eq.s32.totalorder %s25, 1
    %p106 = por %p104, %p105
    %p107 = scmp.ne.s32.totalorder %s98, %s99
    %p108 = scmp.eq.s32.totalorder %s25, 0
    %p109 = por %p107, %p108
    %p110 = scmp.ne.s32.totalorder %s98, %s99
    %p111 = scmp.eq.s32.totalorder %s26, 1
    %p112 = por %p110, %p111
    %p114 = scmp.ne.s32.totalorder %s99, %s113
    %p115 = scmp.eq.s32.totalorder %s26, 0
    %p116 = por %p114, %p115
    %s118 = sadd.s32 %s117, 1
    %p121 = scmp.eq.s32.totalorder %s20, 1
    %p122 = scmp.ne.s32.totalorder %s117, %s119
    %p123 = scmp.eq.s32.totalorder %s20, 0
    %p124 = por %p122, %p123
    %p125 = scmp.ne.s32.totalorder %s117, %s119
    %p126 = scmp.eq.s32.totalorder %s25, 1
    %p127 = por %p125, %p126
    %p128 = scmp.ne.s32.totalorder %s119, %s120
    %p129 = scmp.eq.s32.totalorder %s25, 0
    %p130 = por %p128, %p129
    %p131 = scmp.ne.s32.totalorder %s119, %s120
    %p132 = scmp.eq.s32.totalorder %s26, 1
    %p133 = por %p131, %p132
    %p135 = scmp.ne.s32.totalorder %s120, %s134
    %p136 = scmp.eq.s32.totalorder %s26, 0
    %p137 = por %p135, %p136
    %s139 = sadd.s32 %s138, 1
    %p142 = scmp.eq.s32.totalorder %s20, 1
    %p143 = scmp.ne.s32.totalorder %s138, %s140
    %p144 = scmp.eq.s32.totalorder %s20, 0
    %p145 = por %p143, %p144
    %p146 = scmp.ne.s32.totalorder %s138, %s140
    %p147 = scmp.eq.s32.totalorder %s25, 1
    %p148 = por %p146, %p147
    %p149 = scmp.ne.s32.totalorder %s140, %s141
    %p150 = scmp.eq.s32.totalorder %s25, 0
    %p151 = por %p149, %p150
    %p152 = scmp.ne.s32.totalorder %s140, %s141
    %p153 = scmp.eq.s32.totalorder %s26, 1
    %p154 = por %p152, %p153
    %p156 = scmp.ne.s32.totalorder %s141, %s155
    %p157 = scmp.eq.s32.totalorder %s26, 0
    %p158 = por %p156, %p157
    %s160 = sadd.s32 %s159, 1
    %p163 = scmp.eq.s32.totalorder %s20, 1
    %p164 = scmp.ne.s32.totalorder %s159, %s161
    %p165 = scmp.eq.s32.totalorder %s20, 0
    %p166 = por %p164, %p165
    %p167 = scmp.ne.s32.totalorder %s159, %s161
    %p168 = scmp.eq.s32.totalorder %s25, 1
    %p169 = por %p167, %p168
    %p170 = scmp.ne.s32.totalorder %s161, %s162
    %p171 = scmp.eq.s32.totalorder %s25, 0
    %p172 = por %p170, %p171
    %p173 = scmp.ne.s32.totalorder %s161, %s162
    %p174 = scmp.eq.s32.totalorder %s26, 1
    %p175 = por %p173, %p174
    %p177 = scmp.ne.s32.totalorder %s162, %s176
    %p178 = scmp.eq.s32.totalorder %s26, 0
    %p179 = por %p177, %p178
    %s181 = sadd.s32 %s180, 1
    %p184 = scmp.eq.s32.totalorder %s20, 1
    %p185 = scmp.ne.s32.totalorder %s180, %s182
    %p186 = scmp.eq.s32.totalorder %s20, 0
    %p187 = por %p185, %p186
    %p188 = scmp.ne.s32.totalorder %s180, %s182
    %p189 = scmp.eq.s32.totalorder %s25, 1
    %p190 = por %p188, %p189
    %p191 = scmp.ne.s32.totalorder %s182, %s183
    %p192 = scmp.eq.s32.totalorder %s25, 0
    %p193 = por %p191, %p192
    %p194 = scmp.ne.s32.totalorder %s182, %s183
    %p195 = scmp.eq.s32.totalorder %s26, 1
    %p196 = por %p194, %p195
    %p198 = scmp.ne.s32.totalorder %s183, %s197
    %p199 = scmp.eq.s32.totalorder %s26, 0
    %p200 = por %p198, %p199
    %s202 = sadd.s32 %s201, 1
    %p205 = scmp.eq.s32.totalorder %s20, 1
    %p206 = scmp.ne.s32.totalorder %s201, %s203
    %p207 = scmp.eq.s32.totalorder %s20, 0
    %p208 = por %p206, %p207
    %p209 = scmp.ne.s32.totalorder %s201, %s203
    %p210 = scmp.eq.s32.totalorder %s25, 1
    %p211 = por %p209, %p210
    %p212 = scmp.ne.s32.totalorder %s203, %s204
    %p213 = scmp.eq.s32.totalorder %s25, 0
    %p214 = por %p212, %p213
    %p215 = scmp.ne.s32.totalorder %s203, %s204
    %p216 = scmp.eq.s32.totalorder %s26, 1
    %p217 = por %p215, %p216
    %p219 = scmp.ne.s32.totalorder %s204, %s218
    %p220 = scmp.eq.s32.totalorder %s26, 0
    %p221 = por %p219, %p220
    %s223 = sadd.s32 %s222, 1
    %p226 = scmp.eq.s32.totalorder %s20, 1
    %p227 = scmp.ne.s32.totalorder %s222, %s224
    %p228 = scmp.eq.s32.totalorder %s20, 0
    %p229 = por %p227, %p228
    %p230 = scmp.ne.s32.totalorder %s222, %s224
    %p231 = scmp.eq.s32.totalorder %s25, 1
    %p232 = por %p230, %p231
    %p233 = scmp.ne.s32.totalorder %s224, %s225
    %p234 = scmp.eq.s32.totalorder %s25, 0
    %p235 = por %p233, %p234
    %p236 = scmp.ne.s32.totalorder %s224, %s225
    %p237 = scmp.eq.s32.totalorder %s26, 1
    %p238 = por %p236, %p237
    %p240 = scmp.ne.s32.totalorder %s225, %s239
    %p241 = scmp.eq.s32.totalorder %s26, 0
    %p242 = por %p240, %p241
    %s244 = sadd.s32 %s243, 1
    %p247 = scmp.eq.s32.totalorder %s20, 1
    %p248 = scmp.ne.s32.totalorder %s243, %s245
    %p249 = scmp.eq.s32.totalorder %s20, 0
    %p250 = por %p248, %p249
    %p251 = scmp.ne.s32.totalorder %s243, %s245
    %p252 = scmp.eq.s32.totalorder %s25, 1
    %p253 = por %p251, %p252
    %p254 = scmp.ne.s32.totalorder %s245, %s246
    %p255 = scmp.eq.s32.totalorder %s25, 0
    %p256 = por %p254, %p255
    %p257 = scmp.ne.s32.totalorder %s245, %s246
    %p258 = scmp.eq.s32.totalorder %s26, 1
    %p259 = por %p257, %p258
    %p261 = scmp.ne.s32.totalorder %s246, %s260
    %p262 = scmp.eq.s32.totalorder %s26, 0
    %p263 = por %p261, %p262
    %s265 = sadd.s32 %s264, 1
    %p268 = scmp.eq.s32.totalorder %s20, 1
    %p269 = scmp.ne.s32.totalorder %s264, %s266
    %p270 = scmp.eq.s32.totalorder %s20, 0
    %p271 = por %p269, %p270
    %p272 = scmp.ne.s32.totalorder %s264, %s266
    %p273 = scmp.eq.s32.totalorder %s25, 1
    %p274 = por %p272, %p273
    %p275 = scmp.ne.s32.totalorder %s266, %s267
    %p276 = scmp.eq.s32.totalorder %s25, 0
    %p277 = por %p275, %p276
    %p278 = scmp.ne.s32.totalorder %s266, %s267
    %p279 = scmp.eq.s32.totalorder %s26, 1
    %p280 = por %p278, %p279
    %p282 = scmp.ne.s32.totalorder %s267, %s281
    %p283 = scmp.eq.s32.totalorder %s26, 0
    %p284 = por %p282, %p283
    %s285 = ssub.s32 %s20, %s27
    %p286 = scmp.eq.s32.totalorder %s285, 0
    %s288 = sadd.s32 %s287, 1
    %s289 = scalar_select %p286, %s287, %s288
    %p292 = pneg %p286
    %p293 = scmp.eq.s32.totalorder %s20, 1
    %p294 = por %p292, %p293
    %p295 = scmp.ne.s32.totalorder %s287, %s290
    %p296 = scmp.eq.s32.totalorder %s20, 0
    %p297 = por %p295, %p296
    %p298 = scmp.ne.s32.totalorder %s287, %s290
    %p299 = scmp.eq.s32.totalorder %s25, 1
    %p300 = por %p298, %p299
    %p301 = scmp.ne.s32.totalorder %s290, %s291
    %p302 = scmp.eq.s32.totalorder %s25, 0
    %p303 = por %p301, %p302
    %p304 = scmp.ne.s32.totalorder %s290, %s291
    %p305 = scmp.eq.s32.totalorder %s26, 1
    %p306 = por %p304, %p305
    %p308 = scmp.ne.s32.totalorder %s291, %s307
    %p309 = scmp.eq.s32.totalorder %s26, 0
    %p310 = por %p308, %p309
    %s311 = ssub.s32 %s20, %s27
    %p312 = scmp.eq.s32.totalorder %s311, 0
    %s314 = sadd.s32 %s313, 1
    %s315 = scalar_select %p312, %s313, %s314
    %p318 = pneg %p312
    %p319 = scmp.eq.s32.totalorder %s20, 1
    %p320 = por %p318, %p319
    %p321 = scmp.ne.s32.totalorder %s313, %s316
    %p322 = scmp.eq.s32.totalorder %s20, 0
    %p323 = por %p321, %p322
    %p324 = scmp.ne.s32.totalorder %s313, %s316
    %p325 = scmp.eq.s32.totalorder %s25, 1
    %p326 = por %p324, %p325
    %p327 = scmp.ne.s32.totalorder %s316, %s317
    %p328 = scmp.eq.s32.totalorder %s25, 0
    %p329 = por %p327, %p328
    %p330 = scmp.ne.s32.totalorder %s316, %s317
    %p331 = scmp.eq.s32.totalorder %s26, 1
    %p332 = por %p330, %p331
    %p334 = scmp.ne.s32.totalorder %s317, %s333
    %p335 = scmp.eq.s32.totalorder %s26, 0
    %p336 = por %p334, %p335
    %p337 = scmp.le.s32.totalorder 1, %s20
    %p338 = scmp.lt.s32.totalorder %s20, 3
    %p339 = pnand %p337, %p338
    %p340 = pneg %p339
    // Predicated region
    $region9: #{proposal_net_forward.3} parent=5 // pred_check
      _
    $region10: #{proposal_net_forward.3} parent=5 // pred_check_branch
      %342 = sbr.rel (%p339) target = $region12
    $region11: #{proposal_net_forward.3} parent=5 // pred_region
      %s343 = ssub.s32 %s20, 1
      // Predicated region
      $region13: #{proposal_net_forward.3} parent=11 // pred_check
        %p344 = pneg %p67
      $region14: #{proposal_net_forward.3} parent=11 // pred_check_branch
        %346 = sbr.rel (%p344) target = $region16
      $region15: #{proposal_net_forward.3} parent=11 // pred_region
        _
      $region16: #{proposal_net_forward.3} parent=11 // pred_fallthru
        _
      // Predicated region
      $region17: #{proposal_net_forward.3} parent=11 // pred_check
        %p347 = pneg %p88
      $region18: #{proposal_net_forward.3} parent=11 // pred_check_branch
        %349 = sbr.rel (%p347) target = $region20
      $region19: #{proposal_net_forward.3} parent=11 // pred_region
        _
      $region20: #{proposal_net_forward.3} parent=11 // pred_fallthru
        _
      // Predicated region
      $region21: #{proposal_net_forward.3} parent=11 // pred_check
        %p350 = pneg %p109
      $region22: #{proposal_net_forward.3} parent=11 // pred_check_branch
        %352 = sbr.rel (%p350) target = $region24
      $region23: #{proposal_net_forward.3} parent=11 // pred_region
        _
      $region24: #{proposal_net_forward.3} parent=11 // pred_fallthru
        _
      // Predicated region
      $region25: #{proposal_net_forward.3} parent=11 // pred_check
        %p353 = pneg %p130
      $region26: #{proposal_net_forward.3} parent=11 // pred_check_branch
        %355 = sbr.rel (%p353) target = $region28
      $region27: #{proposal_net_forward.3} parent=11 // pred_region
        _
      $region28: #{proposal_net_forward.3} parent=11 // pred_fallthru
        _
      // Predicated region
      $region29: #{proposal_net_forward.3} parent=11 // pred_check
        %p356 = pneg %p151
      $region30: #{proposal_net_forward.3} parent=11 // pred_check_branch
        %358 = sbr.rel (%p356) target = $region32
      $region31: #{proposal_net_forward.3} parent=11 // pred_region
        _
      $region32: #{proposal_net_forward.3} parent=11 // pred_fallthru
        _
      // Predicated region
      $region33: #{proposal_net_forward.3} parent=11 // pred_check
        %p359 = pneg %p172
      $region34: #{proposal_net_forward.3} parent=11 // pred_check_branch
        %361 = sbr.rel (%p359) target = $region36
      $region35: #{proposal_net_forward.3} parent=11 // pred_region
        _
      $region36: #{proposal_net_forward.3} parent=11 // pred_fallthru
        _
      // Predicated region
      $region37: #{proposal_net_forward.3} parent=11 // pred_check
        %p362 = pneg %p193
      $region38: #{proposal_net_forward.3} parent=11 // pred_check_branch
        %364 = sbr.rel (%p362) target = $region40
      $region39: #{proposal_net_forward.3} parent=11 // pred_region
        _
      $region40: #{proposal_net_forward.3} parent=11 // pred_fallthru
        _
      // Predicated region
      $region41: #{proposal_net_forward.3} parent=11 // pred_check
        %p365 = pneg %p214
      $region42: #{proposal_net_forward.3} parent=11 // pred_check_branch
        %367 = sbr.rel (%p365) target = $region44
      $region43: #{proposal_net_forward.3} parent=11 // pred_region
        _
      $region44: #{proposal_net_forward.3} parent=11 // pred_fallthru
        _
      // Predicated region
      $region45: #{proposal_net_forward.3} parent=11 // pred_check
        %p368 = pneg %p235
      $region46: #{proposal_net_forward.3} parent=11 // pred_check_branch
        %370 = sbr.rel (%p368) target = $region48
      $region47: #{proposal_net_forward.3} parent=11 // pred_region
        _
      $region48: #{proposal_net_forward.3} parent=11 // pred_fallthru
        _
      // Predicated region
      $region49: #{proposal_net_forward.3} parent=11 // pred_check
        %p371 = pneg %p256
      $region50: #{proposal_net_forward.3} parent=11 // pred_check_branch
        %373 = sbr.rel (%p371) target = $region52
      $region51: #{proposal_net_forward.3} parent=11 // pred_region
        _
      $region52: #{proposal_net_forward.3} parent=11 // pred_fallthru
        _
      // Predicated region
      $region53: #{proposal_net_forward.3} parent=11 // pred_check
        %p374 = pneg %p277
      $region54: #{proposal_net_forward.3} parent=11 // pred_check_branch
        %376 = sbr.rel (%p374) target = $region56
      $region55: #{proposal_net_forward.3} parent=11 // pred_region
        _
      $region56: #{proposal_net_forward.3} parent=11 // pred_fallthru
        _
    $region12: #{proposal_net_forward.3} parent=5 // pred_fallthru
      _
    %p377 = scmp.lt.s32.totalorder %s20, 2
    // Predicated region
    $region57: #{proposal_net_forward.3} parent=5 // pred_check
      %p378 = pneg %p377
    $region58: #{proposal_net_forward.3} parent=5 // pred_check_branch
      %380 = sbr.rel (%p378) target = $region60
    $region59: #{proposal_net_forward.3} parent=5 // pred_region
      // Predicated region
      $region61: #{proposal_net_forward.3} parent=59 // pred_check
        %p381 = pneg %p40
      $region62: #{proposal_net_forward.3} parent=59 // pred_check_branch
        %383 = sbr.rel (%p381) target = $region64
      $region63: #{proposal_net_forward.3} parent=59 // pred_region
        %p384 = scmp.lt.s32.totalorder %s20, 1
        %s385 = scalar_select %p384, %s20, 1
        %s386 = smul.addr %s385, 16
        %s387 = smul.addr %s386, 4
        %s388 = scalar_lea.vmem %s0, %s387
      $region64: #{proposal_net_forward.3} parent=59 // pred_fallthru
        _
    $region60: #{proposal_net_forward.3} parent=5 // pred_fallthru
      _
    %p389 = scmp.le.s32.totalorder 1, %s20
    %p390 = scmp.lt.s32.totalorder %s20, 3
    %p391 = pnand %p389, %p390
    %p392 = pneg %p391
    // Predicated region
    $region65: #{proposal_net_forward.3} parent=5 // pred_check
      _
    $region66: #{proposal_net_forward.3} parent=5 // pred_check_branch
      %394 = sbr.rel (%p391) target = $region68
    $region67: #{proposal_net_forward.3} parent=5 // pred_region
      %s395 = ssub.s32 %s20, 1
      %p396 = scmp.lt.s32.totalorder %s25, 1
      %s397 = scalar_select %p396, %s25, 1
      %s398 = smul.addr %s397, 16
      %s399 = smul.addr %s398, 4
      %s400 = scalar_lea.vmem %s0, %s399
      %p401 = pneg %p46
      %p402 = pneg %p43
      %p403 = pneg %p67
      %p404 = pneg %p64
      %p405 = pneg %p88
      %p406 = pneg %p85
      %p407 = pneg %p109
      %p408 = pneg %p106
      %p409 = pneg %p130
      %p410 = pneg %p127
      %p411 = pneg %p151
      %p412 = pneg %p148
      %p413 = pneg %p172
      %p414 = pneg %p169
      %p415 = pneg %p193
      %p416 = pneg %p190
      %p417 = pneg %p214
      %p418 = pneg %p211
      %p419 = pneg %p235
      %p420 = pneg %p232
      %p421 = pneg %p256
      %p422 = pneg %p253
      %p423 = pneg %p277
      %p424 = pneg %p274
      %p425 = pneg %p303
      %p426 = pneg %p300
      %p427 = scmp.lt.s32.totalorder %s25, 1
      %s428 = scalar_select %p427, %s25, 1
      %s429 = smul.addr %s428, 2
      %s430 = smul.addr %s429, 8
      %s431 = scalar_lea.vmem %s12, %s430
      %p432 = pneg %p329
      %p433 = pneg %p326
      %p434 = scmp.lt.s32.totalorder %s25, 1
      %s435 = scalar_select %p434, %s25, 1
      %s436 = smul.addr %s435, 8
      %s437 = scalar_lea.vmem %s13, %s436
      %p438 = scmp.lt.s32.totalorder %s25, 1
      %s439 = scalar_select %p438, %s25, 1
      %s440 = smul.addr %s439, 16
      %s441 = smul.addr %s440, 4
      %s442 = scalar_lea.vmem %s0, %s441
      %p443 = scmp.lt.s32.totalorder %s25, 1
      %s444 = scalar_select %p443, %s25, 1
      %s445 = smul.addr %s444, 2
      %s446 = smul.addr %s445, 8
      %s447 = scalar_lea.vmem %s12, %s446
      %p448 = scmp.lt.s32.totalorder %s25, 1
      %s449 = scalar_select %p448, %s25, 1
      %s450 = smul.addr %s449, 8
      %s451 = scalar_lea.vmem %s13, %s450
      %v453 = vld [vmem:[%s442] sm:$0xf]
      %v454 = vld [vmem:[%s442 + $0x4] sm:$0xf]
      %v455 = vld [vmem:[%s442 + $0x8] sm:$0xf]
      %v456 = vld [vmem:[%s442 + $0xc] sm:$0xf]
      %v457 = vld [vmem:[%s442 + $0x10] sm:$0xf]
      %v458 = vld [vmem:[%s442 + $0x14] sm:$0xf]
      %v459 = vld [vmem:[%s442 + $0x18] sm:$0xf]
      %v460 = vld [vmem:[%s442 + $0x1c] sm:$0xf]
      %v461 = vld [vmem:[%s442 + $0x20] sm:$0xf]
      %v462 = vld [vmem:[%s442 + $0x24] sm:$0xf]
      %v463 = vld [vmem:[%s442 + $0x28] sm:$0xf]
      %v464 = vld [vmem:[%s442 + $0x2c] sm:$0xf]
      %v465 = vld [vmem:[%s442 + $0x30] sm:$0xf]
      %v466 = vld [vmem:[%s442 + $0x34] sm:$0xf]
      %v467 = vld [vmem:[%s442 + $0x38] sm:$0xf]
      %v468 = vld [vmem:[%s442 + $0x3c] sm:$0xf]
      %v469 = vld [vmem:[%s1] sm:$0xff]
      %v470 = vld [vmem:[%s1 + $0x8] sm:$0xff]
      %v471 = vld [vmem:[%s1 + $0x10] sm:$0xff]
      %v472 = vld [vmem:[%s1 + $0x18] sm:$0xff]
      %v473 = vld [vmem:[%s1 + $0x20] sm:$0xf]
      %v474 = vld [vmem:[%s1 + $0x24] sm:$0xff]
      %v475 = vld [vmem:[%s1 + $0x2c] sm:$0xff]
      %v476 = vld [vmem:[%s1 + $0x34] sm:$0xff]
      %v477 = vld [vmem:[%s1 + $0x3c] sm:$0xff]
      %v478 = vld [vmem:[%s1 + $0x44] sm:$0xf]
      %v479 = vld [vmem:[%s1 + $0x48] sm:$0xff]
      %v480 = vld [vmem:[%s1 + $0x50] sm:$0xff]
      %v481 = vld [vmem:[%s1 + $0x58] sm:$0xff]
      %v482 = vld [vmem:[%s1 + $0x60] sm:$0xff]
      %v483 = vld [vmem:[%s1 + $0x68] sm:$0xf]
      %v484 = vld [vmem:[%s1 + $0x6c] sm:$0xff]
      %v485 = vld [vmem:[%s1 + $0x74] sm:$0xff]
      %v486 = vld [vmem:[%s1 + $0x7c] sm:$0xff]
      %v487 = vld [vmem:[%s1 + $0x84] sm:$0xff]
      %v488 = vld [vmem:[%s1 + $0x8c] sm:$0xf]
      %v489 = vld [vmem:[%s1 + $0x90] sm:$0xff]
      %v490 = vld [vmem:[%s1 + $0x98] sm:$0xff]
      %v491 = vld [vmem:[%s1 + $0xa0] sm:$0xff]
      %v492 = vld [vmem:[%s1 + $0xa8] sm:$0xff]
      %v493 = vld [vmem:[%s1 + $0xb0] sm:$0xf]
      %v494 = vld [vmem:[%s1 + $0xb4] sm:$0xff]
      %v495 = vld [vmem:[%s1 + $0xbc] sm:$0xff]
      %v496 = vld [vmem:[%s1 + $0xc4] sm:$0xff]
      %v497 = vld [vmem:[%s1 + $0xcc] sm:$0xff]
      %v498 = vld [vmem:[%s1 + $0xd4] sm:$0xf]
      %v499 = vld [vmem:[%s1 + $0xd8] sm:$0xff]
      %v500 = vld [vmem:[%s1 + $0xe0] sm:$0xff]
      %v501 = vld [vmem:[%s1 + $0xe8] sm:$0xff]
      %v502 = vld [vmem:[%s1 + $0xf0] sm:$0xff]
      %v503 = vld [vmem:[%s1 + $0xf8] sm:$0xf]
      %v504 = vld [vmem:[%s1 + $0xfc] sm:$0xff]
      %v505 = vld [vmem:[%s1 + $0x104] sm:$0xff]
      %v506 = vld [vmem:[%s1 + $0x10c] sm:$0xff]
      %v507 = vld [vmem:[%s1 + $0x114] sm:$0xff]
      %v508 = vld [vmem:[%s1 + $0x11c] sm:$0xf]
      %v509 = vld [vmem:[%s1 + $0x120] sm:$0xff]
      %v510 = vld [vmem:[%s1 + $0x128] sm:$0xff]
      %v511 = vld [vmem:[%s1 + $0x130] sm:$0xff]
      %v512 = vld [vmem:[%s1 + $0x138] sm:$0xff]
      %v513 = vld [vmem:[%s1 + $0x140] sm:$0xf]
      %v514 = vld [vmem:[%s1 + $0x144] sm:$0xff]
      %v515 = vld [vmem:[%s1 + $0x14c] sm:$0xff]
      %v516 = vld [vmem:[%s1 + $0x154] sm:$0xff]
      %v517 = vld [vmem:[%s1 + $0x15c] sm:$0xff]
      %v518 = vld [vmem:[%s1 + $0x164] sm:$0xf]
      %v519 = vld [vmem:[%s1 + $0x168] sm:$0xff]
      %v520 = vld [vmem:[%s1 + $0x170] sm:$0xff]
      %v521 = vld [vmem:[%s1 + $0x178] sm:$0xff]
      %v522 = vld [vmem:[%s1 + $0x180] sm:$0xff]
      %v523 = vld [vmem:[%s1 + $0x188] sm:$0xf]
      %v524 = vld [vmem:[%s1 + $0x18c] sm:$0xff]
      %v525 = vld [vmem:[%s1 + $0x194] sm:$0xff]
      %v526 = vld [vmem:[%s1 + $0x19c] sm:$0xff]
      %v527 = vld [vmem:[%s1 + $0x1a4] sm:$0xff]
      %v528 = vld [vmem:[%s1 + $0x1ac] sm:$0xf]
      %v529 = vld [vmem:[%s1 + $0x1b0] sm:$0xff]
      %v530 = vld [vmem:[%s1 + $0x1b8] sm:$0xff]
      %v531 = vld [vmem:[%s1 + $0x1c0] sm:$0xff]
      %v532 = vld [vmem:[%s1 + $0x1c8] sm:$0xff]
      %v533 = vld [vmem:[%s1 + $0x1d0] sm:$0xf]
      %v534 = vld [vmem:[%s1 + $0x1d4] sm:$0xff]
      %v535 = vld [vmem:[%s1 + $0x1dc] sm:$0xff]
      %v536 = vld [vmem:[%s1 + $0x1e4] sm:$0xff]
      %v537 = vld [vmem:[%s1 + $0x1ec] sm:$0xff]
      %v538 = vld [vmem:[%s1 + $0x1f4] sm:$0xf]
      %v539 = vld [vmem:[%s1 + $0x1f8] sm:$0xff]
      %v540 = vld [vmem:[%s1 + $0x200] sm:$0xff]
      %v541 = vld [vmem:[%s1 + $0x208] sm:$0xff]
      %v542 = vld [vmem:[%s1 + $0x210] sm:$0xff]
      %v543 = vld [vmem:[%s1 + $0x218] sm:$0xf]
      %v544 = vld [vmem:[%s1 + $0x21c] sm:$0xff]
      %v545 = vld [vmem:[%s1 + $0x224] sm:$0xff]
      %v546 = vld [vmem:[%s1 + $0x22c] sm:$0xff]
      %v547 = vld [vmem:[%s1 + $0x234] sm:$0xff]
      %v548 = vld [vmem:[%s1 + $0x23c] sm:$0xf]
      %v565 = vunpack.c.l.b16 %v453
      %v566 = vunpack.c.l.b16 %v454
      %v567 = vunpack.c.l.b16 %v455
      %v568 = vunpack.c.l.b16 %v456
      %v569 = vunpack.c.l.b16 %v457
      %v570 = vunpack.c.l.b16 %v458
      %v571 = vunpack.c.l.b16 %v459
      %v572 = vunpack.c.l.b16 %v460
      %v573 = vunpack.c.l.b16 %v461
      %v574 = vunpack.c.l.b16 %v462
      %v575 = vunpack.c.l.b16 %v463
      %v576 = vunpack.c.l.b16 %v464
      %v577 = vunpack.c.l.b16 %v465
      %v578 = vunpack.c.l.b16 %v466
      %v579 = vunpack.c.l.b16 %v467
      %v580 = vunpack.c.l.b16 %v468
      %v581 = vpack.c.b16 %v566, %v565
      %v582 = vpack.c.b16 %v568, %v567
      %v583 = vpack.c.b16 %v570, %v569
      %v584 = vpack.c.b16 %v572, %v571
      %v585 = vpack.c.b16 %v574, %v573
      %v586 = vpack.c.b16 %v576, %v575
      %v587 = vpack.c.b16 %v578, %v577
      %v588 = vpack.c.b16 %v580, %v579
      %v677 = vunpack.c.l.b16 %v469
      %v678 = vunpack.c.h.b16 %v469
      %v679 = vunpack.c.l.b16 %v470
      %v680 = vunpack.c.h.b16 %v470
      %v681 = vunpack.c.l.b16 %v471
      %v682 = vunpack.c.h.b16 %v471
      %v683 = vunpack.c.l.b16 %v472
      %v684 = vunpack.c.h.b16 %v472
      %v685 = vunpack.c.l.b16 %v473
      %v686 = vunpack.c.l.b16 %v474
      %v687 = vunpack.c.h.b16 %v474
      %v688 = vunpack.c.l.b16 %v475
      %v689 = vunpack.c.h.b16 %v475
      %v690 = vunpack.c.l.b16 %v476
      %v691 = vunpack.c.h.b16 %v476
      %v692 = vunpack.c.l.b16 %v477
      %v693 = vunpack.c.h.b16 %v477
      %v694 = vunpack.c.l.b16 %v478
      %v695 = vunpack.c.l.b16 %v479
      %v696 = vunpack.c.h.b16 %v479
      %v697 = vunpack.c.l.b16 %v480
      %v698 = vunpack.c.h.b16 %v480
      %v699 = vunpack.c.l.b16 %v481
      %v700 = vunpack.c.h.b16 %v481
      %v701 = vunpack.c.l.b16 %v482
      %v702 = vunpack.c.h.b16 %v482
      %v703 = vunpack.c.l.b16 %v483
      %v704 = vunpack.c.l.b16 %v484
      %v705 = vunpack.c.h.b16 %v484
      %v706 = vunpack.c.l.b16 %v485
      %v707 = vunpack.c.h.b16 %v485
      %v708 = vunpack.c.l.b16 %v486
      %v709 = vunpack.c.h.b16 %v486
      %v710 = vunpack.c.l.b16 %v487
      %v711 = vunpack.c.h.b16 %v487
      %v712 = vunpack.c.l.b16 %v488
      %v713 = vunpack.c.l.b16 %v489
      %v714 = vunpack.c.h.b16 %v489
      %v715 = vunpack.c.l.b16 %v490
      %v716 = vunpack.c.h.b16 %v490
      %v717 = vunpack.c.l.b16 %v491
      %v718 = vunpack.c.h.b16 %v491
      %v719 = vunpack.c.l.b16 %v492
      %v720 = vunpack.c.h.b16 %v492
      %v721 = vunpack.c.l.b16 %v493
      %v722 = vunpack.c.l.b16 %v494
      %v723 = vunpack.c.h.b16 %v494
      %v724 = vunpack.c.l.b16 %v495
      %v725 = vunpack.c.h.b16 %v495
      %v726 = vunpack.c.l.b16 %v496
      %v727 = vunpack.c.h.b16 %v496
      %v728 = vunpack.c.l.b16 %v497
      %v729 = vunpack.c.h.b16 %v497
      %v730 = vunpack.c.l.b16 %v498
      %v731 = vunpack.c.l.b16 %v499
      %v732 = vunpack.c.h.b16 %v499
      %v733 = vunpack.c.l.b16 %v500
      %v734 = vunpack.c.h.b16 %v500
      %v735 = vunpack.c.l.b16 %v501
      %v736 = vunpack.c.h.b16 %v501
      %v737 = vunpack.c.l.b16 %v502
      %v738 = vunpack.c.h.b16 %v502
      %v739 = vunpack.c.l.b16 %v503
      %v740 = vunpack.c.l.b16 %v504
      %v741 = vunpack.c.h.b16 %v504
      %v742 = vunpack.c.l.b16 %v505
      %v743 = vunpack.c.h.b16 %v505
      %v744 = vunpack.c.l.b16 %v506
      %v745 = vunpack.c.h.b16 %v506
      %v746 = vunpack.c.l.b16 %v507
      %v747 = vunpack.c.h.b16 %v507
      %v748 = vunpack.c.l.b16 %v508
      %v749 = vunpack.c.l.b16 %v509
      %v750 = vunpack.c.h.b16 %v509
      %v751 = vunpack.c.l.b16 %v510
      %v752 = vunpack.c.h.b16 %v510
      %v753 = vunpack.c.l.b16 %v511
      %v754 = vunpack.c.h.b16 %v511
      %v755 = vunpack.c.l.b16 %v512
      %v756 = vunpack.c.h.b16 %v512
      %v757 = vunpack.c.l.b16 %v513
      %v758 = vunpack.c.l.b16 %v514
      %v759 = vunpack.c.h.b16 %v514
      %v760 = vunpack.c.l.b16 %v515
      %v761 = vunpack.c.h.b16 %v515
      %v762 = vunpack.c.l.b16 %v516
      %v763 = vunpack.c.h.b16 %v516
      %v764 = vunpack.c.l.b16 %v517
      %v765 = vunpack.c.h.b16 %v517
      %v766 = vunpack.c.l.b16 %v518
      %v767 = vunpack.c.l.b16 %v519
      %v768 = vunpack.c.h.b16 %v519
      %v769 = vunpack.c.l.b16 %v520
      %v770 = vunpack.c.h.b16 %v520
      %v771 = vunpack.c.l.b16 %v521
      %v772 = vunpack.c.h.b16 %v521
      %v773 = vunpack.c.l.b16 %v522
      %v774 = vunpack.c.h.b16 %v522
      %v775 = vunpack.c.l.b16 %v523
      %v776 = vunpack.c.l.b16 %v524
      %v777 = vunpack.c.h.b16 %v524
      %v778 = vunpack.c.l.b16 %v525
      %v779 = vunpack.c.h.b16 %v525
      %v780 = vunpack.c.l.b16 %v526
      %v781 = vunpack.c.h.b16 %v526
      %v782 = vunpack.c.l.b16 %v527
      %v783 = vunpack.c.h.b16 %v527
      %v784 = vunpack.c.l.b16 %v528
      %v785 = vunpack.c.l.b16 %v529
      %v786 = vunpack.c.h.b16 %v529
      %v787 = vunpack.c.l.b16 %v530
      %v788 = vunpack.c.h.b16 %v530
      %v789 = vunpack.c.l.b16 %v531
      %v790 = vunpack.c.h.b16 %v531
      %v791 = vunpack.c.l.b16 %v532
      %v792 = vunpack.c.h.b16 %v532
      %v793 = vunpack.c.l.b16 %v533
      %v794 = vunpack.c.l.b16 %v534
      %v795 = vunpack.c.h.b16 %v534
      %v796 = vunpack.c.l.b16 %v535
      %v797 = vunpack.c.h.b16 %v535
      %v798 = vunpack.c.l.b16 %v536
      %v799 = vunpack.c.h.b16 %v536
      %v800 = vunpack.c.l.b16 %v537
      %v801 = vunpack.c.h.b16 %v537
      %v802 = vunpack.c.l.b16 %v538
      %v803 = vunpack.c.l.b16 %v539
      %v804 = vunpack.c.h.b16 %v539
      %v805 = vunpack.c.l.b16 %v540
      %v806 = vunpack.c.h.b16 %v540
      %v807 = vunpack.c.l.b16 %v541
      %v808 = vunpack.c.h.b16 %v541
      %v809 = vunpack.c.l.b16 %v542
      %v810 = vunpack.c.h.b16 %v542
      %v811 = vunpack.c.l.b16 %v543
      %v812 = vunpack.c.l.b16 %v544
      %v813 = vunpack.c.h.b16 %v544
      %v814 = vunpack.c.l.b16 %v545
      %v815 = vunpack.c.h.b16 %v545
      %v816 = vunpack.c.l.b16 %v546
      %v817 = vunpack.c.h.b16 %v546
      %v818 = vunpack.c.l.b16 %v547
      %v819 = vunpack.c.h.b16 %v547
      %v820 = vunpack.c.l.b16 %v548
      %v821 = vpack.c.b16 %v686, %v677
      %v822 = vpack.c.b16 %v687, %v678
      %v823 = vpack.c.b16 %v688, %v679
      %v824 = vpack.c.b16 %v689, %v680
      %v825 = vpack.c.b16 %v690, %v681
      %v826 = vpack.c.b16 %v691, %v682
      %v827 = vpack.c.b16 %v692, %v683
      %v828 = vpack.c.b16 %v693, %v684
      %v829 = vpack.c.b16 %v694, %v685
      %v830 = vpack.c.b16 %v704, %v695
      %v831 = vpack.c.b16 %v705, %v696
      %v832 = vpack.c.b16 %v706, %v697
      %v833 = vpack.c.b16 %v707, %v698
      %v834 = vpack.c.b16 %v708, %v699
      %v835 = vpack.c.b16 %v709, %v700
      %v836 = vpack.c.b16 %v710, %v701
      %v837 = vpack.c.b16 %v711, %v702
      %v838 = vpack.c.b16 %v712, %v703
      %v839 = vpack.c.b16 %v722, %v713
      %v840 = vpack.c.b16 %v723, %v714
      %v841 = vpack.c.b16 %v724, %v715
      %v842 = vpack.c.b16 %v725, %v716
      %v843 = vpack.c.b16 %v726, %v717
      %v844 = vpack.c.b16 %v727, %v718
      %v845 = vpack.c.b16 %v728, %v719
      %v846 = vpack.c.b16 %v729, %v720
      %v847 = vpack.c.b16 %v730, %v721
      %v848 = vpack.c.b16 %v740, %v731
      %v849 = vpack.c.b16 %v741, %v732
      %v850 = vpack.c.b16 %v742, %v733
      %v851 = vpack.c.b16 %v743, %v734
      %v852 = vpack.c.b16 %v744, %v735
      %v853 = vpack.c.b16 %v745, %v736
      %v854 = vpack.c.b16 %v746, %v737
      %v855 = vpack.c.b16 %v747, %v738
      %v856 = vpack.c.b16 %v748, %v739
      %v857 = vpack.c.b16 %v758, %v749
      %v858 = vpack.c.b16 %v759, %v750
      %v859 = vpack.c.b16 %v760, %v751
      %v860 = vpack.c.b16 %v761, %v752
      %v861 = vpack.c.b16 %v762, %v753
      %v862 = vpack.c.b16 %v763, %v754
      %v863 = vpack.c.b16 %v764, %v755
      %v864 = vpack.c.b16 %v765, %v756
      %v865 = vpack.c.b16 %v766, %v757
      %v866 = vpack.c.b16 %v776, %v767
      %v867 = vpack.c.b16 %v777, %v768
      %v868 = vpack.c.b16 %v778, %v769
      %v869 = vpack.c.b16 %v779, %v770
      %v870 = vpack.c.b16 %v780, %v771
      %v871 = vpack.c.b16 %v781, %v772
      %v872 = vpack.c.b16 %v782, %v773
      %v873 = vpack.c.b16 %v783, %v774
      %v874 = vpack.c.b16 %v784, %v775
      %v875 = vpack.c.b16 %v794, %v785
      %v876 = vpack.c.b16 %v795, %v786
      %v877 = vpack.c.b16 %v796, %v787
      %v878 = vpack.c.b16 %v797, %v788
      %v879 = vpack.c.b16 %v798, %v789
      %v880 = vpack.c.b16 %v799, %v790
      %v881 = vpack.c.b16 %v800, %v791
      %v882 = vpack.c.b16 %v801, %v792
      %v883 = vpack.c.b16 %v802, %v793
      %v884 = vpack.c.b16 %v812, %v803
      %v885 = vpack.c.b16 %v813, %v804
      %v886 = vpack.c.b16 %v814, %v805
      %v887 = vpack.c.b16 %v815, %v806
      %v888 = vpack.c.b16 %v816, %v807
      %v889 = vpack.c.b16 %v817, %v808
      %v890 = vpack.c.b16 %v818, %v809
      %v891 = vpack.c.b16 %v819, %v810
      %v892 = vpack.c.b16 %v820, %v811
      %965 = vmatprep.subr.bf16.mxu0 %v822
      %966 = vmatpush1.bf16.msra.mxu0 %v821
      %967 = vmatprep.subr.bf16.mxu0 %v831
      %968 = vmatpush1.bf16.msra.mxu0 %v830
      %969 = vmatprep.subr.bf16.mxu0 %v840
      %970 = vmatpush1.bf16.msra.mxu0 %v839
      %971 = vmatprep.subr.bf16.mxu0 %v849
      %972 = vmatpush1.bf16.msra.mxu0 %v848
      %973 = vmatprep.subr.bf16.mxu0 %v858
      %974 = vmatpush1.bf16.msra.mxu0 %v857
      %975 = vmatprep.subr.bf16.mxu0 %v867
      %976 = vmatpush1.bf16.msra.mxu0 %v866
      %977 = vmatprep.subr.bf16.mxu0 %v876
      %978 = vmatpush1.bf16.msra.mxu0 %v875
      %979 = vmatprep.subr.bf16.mxu0 %v885
      %980 = vmatpush1.bf16.msra.mxu0 %v884
      %981 = vmatprep.subr.bf16.mxu0 0
      %982 = vmatpush1.bf16.msra.mxu0 0
      %983 = vmatprep.subr.bf16.mxu0 0
      %984 = vmatpush1.bf16.msra.mxu0 0
      %985 = vmatprep.subr.bf16.mxu0 0
      %986 = vmatpush1.bf16.msra.mxu0 0
      %987 = vmatprep.subr.bf16.mxu0 0
      %988 = vmatpush1.bf16.msra.mxu0 0
      %989 = vmatprep.subr.bf16.mxu0 0
      %990 = vmatpush1.bf16.msra.mxu0 0
      %991 = vmatprep.subr.bf16.mxu0 0
      %992 = vmatpush1.bf16.msra.mxu0 0
      %993 = vmatprep.subr.bf16.mxu0 0
      %994 = vmatpush1.bf16.msra.mxu0 0
      %995 = vmatprep.subr.bf16.mxu0 0
      %996 = vmatpush1.bf16.msra.mxu0 0
      %997 = vmatprep.mubr.bf16.mxu0 0
      %998 = vmatmul.mubr.bf16.gmra.mrb[0].mxu0 %v581
      %v999 = vpop.f32.mrb[0].mxu0
      %v1000 = vadd.f32 0.0, %v999
      %v1001 = vpop.f32.mrb[0].mxu0
      %v1002 = vadd.f32 0.0, %v1001
      %v1003 = vpop.f32.mrb[0].mxu0
      %v1004 = vadd.f32 0.0, %v1003
      %v1005 = vpop.f32.mrb[0].mxu0
      %v1006 = vadd.f32 0.0, %v1005
      %1007 = vmatprep.mubr.bf16.mxu0 0
      %1008 = vmatmul.mubr.bf16.gmra.mrb[0].mxu0 %v582
      %v1009 = vpop.f32.mrb[0].mxu0
      %v1010 = vadd.f32 0.0, %v1009
      %v1011 = vpop.f32.mrb[0].mxu0
      %v1012 = vadd.f32 0.0, %v1011
      %v1013 = vpop.f32.mrb[0].mxu0
      %v1014 = vadd.f32 0.0, %v1013
      %v1015 = vpop.f32.mrb[0].mxu0
      %v1016 = vadd.f32 0.0, %v1015
      %1017 = vmatprep.mubr.bf16.mxu0 0
      %1018 = vmatmul.mubr.bf16.gmra.mrb[0].mxu0 %v583
      %v1019 = vpop.f32.mrb[0].mxu0
      %v1020 = vadd.f32 0.0, %v1019
      %v1021 = vpop.f32.mrb[0].mxu0
      %v1022 = vadd.f32 0.0, %v1021
      %v1023 = vpop.f32.mrb[0].mxu0
      %v1024 = vadd.f32 0.0, %v1023
      %v1025 = vpop.f32.mrb[0].mxu0
      %v1026 = vadd.f32 0.0, %v1025
      %1027 = vmatprep.mubr.bf16.mxu0 0
      %1028 = vmatmul.mubr.bf16.gmra.mrb[0].mxu0 %v584
      %v1029 = vpop.f32.mrb[0].mxu0
      %v1030 = vadd.f32 0.0, %v1029
      %v1031 = vpop.f32.mrb[0].mxu0
      %v1032 = vadd.f32 0.0, %v1031
      %v1033 = vpop.f32.mrb[0].mxu0
      %v1034 = vadd.f32 0.0, %v1033
      %v1035 = vpop.f32.mrb[0].mxu0
      %v1036 = vadd.f32 0.0, %v1035
      %1037 = vmatprep.mubr.bf16.mxu0 0
      %1038 = vmatmul.mubr.bf16.gmra.mrb[0].mxu0 %v585
      %v1039 = vpop.f32.mrb[0].mxu0
      %v1040 = vadd.f32 0.0, %v1039
      %v1041 = vpop.f32.mrb[0].mxu0
      %v1042 = vadd.f32 0.0, %v1041
      %v1043 = vpop.f32.mrb[0].mxu0
      %v1044 = vadd.f32 0.0, %v1043
      %v1045 = vpop.f32.mrb[0].mxu0
      %v1046 = vadd.f32 0.0, %v1045
      %1047 = vmatprep.mubr.bf16.mxu0 0
      %1048 = vmatmul.mubr.bf16.gmra.mrb[0].mxu0 %v586
      %v1049 = vpop.f32.mrb[0].mxu0
      %v1050 = vadd.f32 0.0, %v1049
      %v1051 = vpop.f32.mrb[0].mxu0
      %v1052 = vadd.f32 0.0, %v1051
      %v1053 = vpop.f32.mrb[0].mxu0
      %v1054 = vadd.f32 0.0, %v1053
      %v1055 = vpop.f32.mrb[0].mxu0
      %v1056 = vadd.f32 0.0, %v1055
      %1057 = vmatprep.mubr.bf16.mxu0 0
      %1058 = vmatmul.mubr.bf16.gmra.mrb[0].mxu0 %v587
      %v1059 = vpop.f32.mrb[0].mxu0
      %v1060 = vadd.f32 0.0, %v1059
      %v1061 = vpop.f32.mrb[0].mxu0
      %v1062 = vadd.f32 0.0, %v1061
      %v1063 = vpop.f32.mrb[0].mxu0
      %v1064 = vpop.f32.mrb[0].mxu0
      %1065 = vmatprep.mubr.bf16.mxu0 0
      %1066 = vmatmul.mubr.bf16.gmra.mrb[0].mxu0 %v588
      %v1067 = vpop.f32.mrb[0].mxu0
      %v1068 = vpop.f32.mrb[0].mxu0
      %v1069 = vpop.f32.mrb[0].mxu0
      %v1070 = vpop.f32.mrb[0].mxu0
      %1071 = vdwg.mxu0
      %1072 = vmatprep.subr.bf16.mxu0 %v824
      %1073 = vmatpush1.bf16.msra.mxu0 %v823
      %1074 = vmatprep.subr.bf16.mxu0 %v833
      %1075 = vmatpush1.bf16.msra.mxu0 %v832
      %1076 = vmatprep.subr.bf16.mxu0 %v842
      %1077 = vmatpush1.bf16.msra.mxu0 %v841
      %1078 = vmatprep.subr.bf16.mxu0 %v851
      %1079 = vmatpush1.bf16.msra.mxu0 %v850
      %1080 = vmatprep.subr.bf16.mxu0 %v860
      %1081 = vmatpush1.bf16.msra.mxu0 %v859
      %1082 = vmatprep.subr.bf16.mxu0 %v869
      %1083 = vmatpush1.bf16.msra.mxu0 %v868
      %1084 = vmatprep.subr.bf16.mxu0 %v878
      %1085 = vmatpush1.bf16.msra.mxu0 %v877
      %1086 = vmatprep.subr.bf16.mxu0 %v887
      %1087 = vmatpush1.bf16.msra.mxu0 %v886
      %1088 = vmatprep.subr.bf16.mxu0 0
      %1089 = vmatpush1.bf16.msra.mxu0 0
      %1090 = vmatprep.subr.bf16.mxu0 0
      %1091 = vmatpush1.bf16.msra.mxu0 0
      %1092 = vmatprep.subr.bf16.mxu0 0
      %1093 = vmatpush1.bf16.msra.mxu0 0
      %1094 = vmatprep.subr.bf16.mxu0 0
      %1095 = vmatpush1.bf16.msra.mxu0 0
      %1096 = vmatprep.subr.bf16.mxu0 0
      %1097 = vmatpush1.bf16.msra.mxu0 0
      %1098 = vmatprep.subr.bf16.mxu0 0
      %1099 = vmatpush1.bf16.msra.mxu0 0
      %1100 = vmatprep.subr.bf16.mxu0 0
      %1101 = vmatpush1.bf16.msra.mxu0 0
      %1102 = vmatprep.subr.bf16.mxu0 0
      %1103 = vmatpush1.bf16.msra.mxu0 0
      %1104 = vmatprep.mubr.bf16.mxu0 0
      %1105 = vmatmul.mubr.bf16.gmra.mrb[0].mxu0 %v581
      %v1106 = vpop.f32.mrb[0].mxu0
      %v1107 = vadd.f32 0.0, %v1106
      %v1108 = vpop.f32.mrb[0].mxu0
      %v1109 = vpop.f32.mrb[0].mxu0
      %v1110 = vadd.f32 0.0, %v1109
      %v1111 = vpop.f32.mrb[0].mxu0
      %v1112 = vadd.f32 0.0, %v1111
      %1113 = vmatprep.mubr.bf16.mxu0 0
      %1114 = vmatmul.mubr.bf16.gmra.mrb[0].mxu0 %v582
      %v1115 = vpop.f32.mrb[0].mxu0
      %v1116 = vadd.f32 0.0, %v1115
      %v1117 = vpop.f32.mrb[0].mxu0
      %v1118 = vadd.f32 0.0, %v1117
      %v1119 = vpop.f32.mrb[0].mxu0
      %v1120 = vadd.f32 0.0, %v1119
      %v1121 = vpop.f32.mrb[0].mxu0
      %v1122 = vadd.f32 0.0, %v1121
      %1123 = vmatprep.mubr.bf16.mxu0 0
      %1124 = vmatmul.mubr.bf16.gmra.mrb[0].mxu0 %v583
      %v1125 = vpop.f32.mrb[0].mxu0
      %v1126 = vadd.f32 0.0, %v1125
      %v1127 = vpop.f32.mrb[0].mxu0
      %v1128 = vadd.f32 0.0, %v1127
      %v1129 = vpop.f32.mrb[0].mxu0
      %v1130 = vadd.f32 0.0, %v1129
      %v1131 = vpop.f32.mrb[0].mxu0
      %v1132 = vadd.f32 0.0, %v1131
      %1133 = vmatprep.mubr.bf16.mxu0 0
      %1134 = vmatmul.mubr.bf16.gmra.mrb[0].mxu0 %v584
      %v1135 = vpop.f32.mrb[0].mxu0
      %v1136 = vadd.f32 0.0, %v1135
      %v1137 = vpop.f32.mrb[0].mxu0
      %v1138 = vadd.f32 0.0, %v1137
      %v1139 = vpop.f32.mrb[0].mxu0
      %v1140 = vadd.f32 0.0, %v1139
      %v1141 = vpop.f32.mrb[0].mxu0
      %v1142 = vadd.f32 0.0, %v1141
      %1143 = vmatprep.mubr.bf16.mxu0 0
      %1144 = vmatmul.mubr.bf16.gmra.mrb[0].mxu0 %v585
      %v1145 = vpop.f32.mrb[0].mxu0
      %v1146 = vadd.f32 0.0, %v1145
      %v1147 = vpop.f32.mrb[0].mxu0
      %v1148 = vadd.f32 0.0, %v1147
      %v1149 = vpop.f32.mrb[0].mxu0
      %v1150 = vadd.f32 0.0, %v1149
      %v1151 = vpop.f32.mrb[0].mxu0
      %v1152 = vadd.f32 0.0, %v1151
      %1153 = vmatprep.mubr.bf16.mxu0 0
      %1154 = vmatmul.mubr.bf16.gmra.mrb[0].mxu0 %v586
      %v1155 = vpop.f32.mrb[0].mxu0
      %v1156 = vadd.f32 0.0, %v1155
      %v1157 = vpop.f32.mrb[0].mxu0
      %v1158 = vadd.f32 0.0, %v1157
      %v1159 = vpop.f32.mrb[0].mxu0
      %v1160 = vadd.f32 0.0, %v1159
      %v1161 = vpop.f32.mrb[0].mxu0
      %v1162 = vadd.f32 0.0, %v1161
      %1163 = vmatprep.mubr.bf16.mxu0 0
      %1164 = vmatmul.mubr.bf16.gmra.mrb[0].mxu0 %v587
      %v1165 = vpop.f32.mrb[0].mxu0
      %v1166 = vadd.f32 0.0, %v1165
      %v1167 = vpop.f32.mrb[0].mxu0
      %v1168 = vadd.f32 0.0, %v1167
      %v1169 = vpop.f32.mrb[0].mxu0
      %v1170 = vpop.f32.mrb[0].mxu0
      %v1171 = vadd.f32 0.0, %v1170
      %1172 = vmatprep.mubr.bf16.mxu0 0
      %1173 = vmatmul.mubr.bf16.gmra.mrb[0].mxu0 %v588
      %v1174 = vpop.f32.mrb[0].mxu0
      %v1175 = vpop.f32.mrb[0].mxu0
      %v1176 = vpop.f32.mrb[0].mxu0
      %v1177 = vpop.f32.mrb[0].mxu0
      %1178 = vdwg.mxu0
      %1179 = vmatprep.subr.bf16.mxu0 %v826
      %1180 = vmatpush1.bf16.msra.mxu0 %v825
      %1181 = vmatprep.subr.bf16.mxu0 %v835
      %1182 = vmatpush1.bf16.msra.mxu0 %v834
      %1183 = vmatprep.subr.bf16.mxu0 %v844
      %1184 = vmatpush1.bf16.msra.mxu0 %v843
      %1185 = vmatprep.subr.bf16.mxu0 %v853
      %1186 = vmatpush1.bf16.msra.mxu0 %v852
      %1187 = vmatprep.subr.bf16.mxu0 %v862
      %1188 = vmatpush1.bf16.msra.mxu0 %v861
      %1189 = vmatprep.subr.bf16.mxu0 %v871
      %1190 = vmatpush1.bf16.msra.mxu0 %v870
      %1191 = vmatprep.subr.bf16.mxu0 %v880
      %1192 = vmatpush1.bf16.msra.mxu0 %v879
      %1193 = vmatprep.subr.bf16.mxu0 %v889
      %1194 = vmatpush1.bf16.msra.mxu0 %v888
      %1195 = vmatprep.subr.bf16.mxu0 0
      %1196 = vmatpush1.bf16.msra.mxu0 0
      %1197 = vmatprep.subr.bf16.mxu0 0
      %1198 = vmatpush1.bf16.msra.mxu0 0
      %1199 = vmatprep.subr.bf16.mxu0 0
      %1200 = vmatpush1.bf16.msra.mxu0 0
      %1201 = vmatprep.subr.bf16.mxu0 0
      %1202 = vmatpush1.bf16.msra.mxu0 0
      %1203 = vmatprep.subr.bf16.mxu0 0
      %1204 = vmatpush1.bf16.msra.mxu0 0
      %1205 = vmatprep.subr.bf16.mxu0 0
      %1206 = vmatpush1.bf16.msra.mxu0 0
      %1207 = vmatprep.subr.bf16.mxu0 0
      %1208 = vmatpush1.bf16.msra.mxu0 0
      %1209 = vmatprep.subr.bf16.mxu0 0
      %1210 = vmatpush1.bf16.msra.mxu0 0
      %1211 = vmatprep.mubr.bf16.mxu0 0
      %1212 = vmatmul.mubr.bf16.gmra.mrb[0].mxu0 %v581
      %v1213 = vpop.f32.mrb[0].mxu0
      %v1214 = vpop.f32.mrb[0].mxu0
      %v1215 = vpop.f32.mrb[0].mxu0
      %v1216 = vadd.f32 0.0, %v1215
      %v1217 = vpop.f32.mrb[0].mxu0
      %v1218 = vadd.f32 0.0, %v1217
      %1219 = vmatprep.mubr.bf16.mxu0 0
      %1220 = vmatmul.mubr.bf16.gmra.mrb[0].mxu0 %v582
      %v1221 = vpop.f32.mrb[0].mxu0
      %v1222 = vadd.f32 0.0, %v1221
      %v1223 = vpop.f32.mrb[0].mxu0
      %v1224 = vadd.f32 0.0, %v1223
      %v1225 = vpop.f32.mrb[0].mxu0
      %v1226 = vadd.f32 0.0, %v1225
      %v1227 = vpop.f32.mrb[0].mxu0
      %v1228 = vadd.f32 0.0, %v1227
      %1229 = vmatprep.mubr.bf16.mxu0 0
      %1230 = vmatmul.mubr.bf16.gmra.mrb[0].mxu0 %v583
      %v1231 = vpop.f32.mrb[0].mxu0
      %v1232 = vadd.f32 0.0, %v1231
      %v1233 = vpop.f32.mrb[0].mxu0
      %v1234 = vadd.f32 0.0, %v1233
      %v1235 = vpop.f32.mrb[0].mxu0
      %v1236 = vadd.f32 0.0, %v1235
      %v1237 = vpop.f32.mrb[0].mxu0
      %v1238 = vadd.f32 0.0, %v1237
      %1239 = vmatprep.mubr.bf16.mxu0 0
      %1240 = vmatmul.mubr.bf16.gmra.mrb[0].mxu0 %v584
      %v1241 = vpop.f32.mrb[0].mxu0
      %v1242 = vadd.f32 0.0, %v1241
      %v1243 = vpop.f32.mrb[0].mxu0
      %v1244 = vadd.f32 0.0, %v1243
      %v1245 = vpop.f32.mrb[0].mxu0
      %v1246 = vadd.f32 0.0, %v1245
      %v1247 = vpop.f32.mrb[0].mxu0
      %v1248 = vadd.f32 0.0, %v1247
      %1249 = vmatprep.mubr.bf16.mxu0 0
      %1250 = vmatmul.mubr.bf16.gmra.mrb[0].mxu0 %v585
      %v1251 = vpop.f32.mrb[0].mxu0
      %v1252 = vadd.f32 0.0, %v1251
      %v1253 = vpop.f32.mrb[0].mxu0
      %v1254 = vadd.f32 0.0, %v1253
      %v1255 = vpop.f32.mrb[0].mxu0
      %v1256 = vadd.f32 0.0, %v1255
      %v1257 = vpop.f32.mrb[0].mxu0
      %v1258 = vadd.f32 0.0, %v1257
      %1259 = vmatprep.mubr.bf16.mxu0 0
      %1260 = vmatmul.mubr.bf16.gmra.mrb[0].mxu0 %v586
      %v1261 = vpop.f32.mrb[0].mxu0
      %v1262 = vadd.f32 0.0, %v1261
      %v1263 = vpop.f32.mrb[0].mxu0
      %v1264 = vadd.f32 0.0, %v1263
      %v1265 = vpop.f32.mrb[0].mxu0
      %v1266 = vadd.f32 0.0, %v1265
      %v1267 = vpop.f32.mrb[0].mxu0
      %v1268 = vadd.f32 0.0, %v1267
      %1269 = vmatprep.mubr.bf16.mxu0 0
      %1270 = vmatmul.mubr.bf16.gmra.mrb[0].mxu0 %v587
      %v1271 = vpop.f32.mrb[0].mxu0
      %v1272 = vadd.f32 0.0, %v1271
      %v1273 = vpop.f32.mrb[0].mxu0
      %v1274 = vadd.f32 0.0, %v1273
      %v1275 = vpop.f32.mrb[0].mxu0
      %v1276 = vadd.f32 0.0, %v1275
      %v1277 = vpop.f32.mrb[0].mxu0
      %v1278 = vadd.f32 0.0, %v1277
      %1279 = vmatprep.mubr.bf16.mxu0 0
      %1280 = vmatmul.mubr.bf16.gmra.mrb[0].mxu0 %v588
      %v1281 = vpop.f32.mrb[0].mxu0
      %v1282 = vpop.f32.mrb[0].mxu0
      %v1283 = vpop.f32.mrb[0].mxu0
      %v1284 = vpop.f32.mrb[0].mxu0
      %1285 = vdwg.mxu0
      %1286 = vmatprep.subr.bf16.mxu0 %v828
      %1287 = vmatpush1.bf16.msra.mxu0 %v827
      %1288 = vmatprep.subr.bf16.mxu0 %v837
      %1289 = vmatpush1.bf16.msra.mxu0 %v836
      %1290 = vmatprep.subr.bf16.mxu0 %v846
      %1291 = vmatpush1.bf16.msra.mxu0 %v845
      %1292 = vmatprep.subr.bf16.mxu0 %v855
      %1293 = vmatpush1.bf16.msra.mxu0 %v854
      %1294 = vmatprep.subr.bf16.mxu0 %v864
      %1295 = vmatpush1.bf16.msra.mxu0 %v863
      %1296 = vmatprep.subr.bf16.mxu0 %v873
      %1297 = vmatpush1.bf16.msra.mxu0 %v872
      %1298 = vmatprep.subr.bf16.mxu0 %v882
      %1299 = vmatpush1.bf16.msra.mxu0 %v881
      %1300 = vmatprep.subr.bf16.mxu0 %v891
      %1301 = vmatpush1.bf16.msra.mxu0 %v890
      %1302 = vmatprep.subr.bf16.mxu0 0
      %1303 = vmatpush1.bf16.msra.mxu0 0
      %1304 = vmatprep.subr.bf16.mxu0 0
      %1305 = vmatpush1.bf16.msra.mxu0 0
      %1306 = vmatprep.subr.bf16.mxu0 0
      %1307 = vmatpush1.bf16.msra.mxu0 0
      %1308 = vmatprep.subr.bf16.mxu0 0
      %1309 = vmatpush1.bf16.msra.mxu0 0
      %1310 = vmatprep.subr.bf16.mxu0 0
      %1311 = vmatpush1.bf16.msra.mxu0 0
      %1312 = vmatprep.subr.bf16.mxu0 0
      %1313 = vmatpush1.bf16.msra.mxu0 0
      %1314 = vmatprep.subr.bf16.mxu0 0
      %1315 = vmatpush1.bf16.msra.mxu0 0
      %1316 = vmatprep.subr.bf16.mxu0 0
      %1317 = vmatpush1.bf16.msra.mxu0 0
      %1318 = vmatprep.mubr.bf16.mxu0 0
      %1319 = vmatmul.mubr.bf16.gmra.mrb[0].mxu0 %v581
      %v1320 = vpop.f32.mrb[0].mxu0
      %v1321 = vpop.f32.mrb[0].mxu0
      %v1322 = vpop.f32.mrb[0].mxu0
      %v1323 = vpop.f32.mrb[0].mxu0
      %1324 = vmatprep.mubr.bf16.mxu0 0
      %1325 = vmatmul.mubr.bf16.gmra.mrb[0].mxu0 %v582
      %v1326 = vpop.f32.mrb[0].mxu0
      %v1327 = vadd.f32 0.0, %v1326
      %v1328 = vpop.f32.mrb[0].mxu0
      %v1329 = vadd.f32 0.0, %v1328
      %v1330 = vpop.f32.mrb[0].mxu0
      %v1331 = vadd.f32 0.0, %v1330
      %v1332 = vpop.f32.mrb[0].mxu0
      %v1333 = vadd.f32 0.0, %v1332
      %1334 = vmatprep.mubr.bf16.mxu0 0
      %1335 = vmatmul.mubr.bf16.gmra.mrb[0].mxu0 %v583
      %v1336 = vpop.f32.mrb[0].mxu0
      %v1337 = vadd.f32 0.0, %v1336
      %v1338 = vpop.f32.mrb[0].mxu0
      %v1339 = vadd.f32 0.0, %v1338
      %v1340 = vpop.f32.mrb[0].mxu0
      %v1341 = vadd.f32 0.0, %v1340
      %v1342 = vpop.f32.mrb[0].mxu0
      %v1343 = vadd.f32 0.0, %v1342
      %1344 = vmatprep.mubr.bf16.mxu0 0
      %1345 = vmatmul.mubr.bf16.gmra.mrb[0].mxu0 %v584
      %v1346 = vpop.f32.mrb[0].mxu0
      %v1347 = vadd.f32 0.0, %v1346
      %v1348 = vpop.f32.mrb[0].mxu0
      %v1349 = vadd.f32 0.0, %v1348
      %v1350 = vpop.f32.mrb[0].mxu0
      %v1351 = vadd.f32 0.0, %v1350
      %v1352 = vpop.f32.mrb[0].mxu0
      %v1353 = vadd.f32 0.0, %v1352
      %1354 = vmatprep.mubr.bf16.mxu0 0
      %1355 = vmatmul.mubr.bf16.gmra.mrb[0].mxu0 %v585
      %v1356 = vpop.f32.mrb[0].mxu0
      %v1357 = vadd.f32 0.0, %v1356
      %v1358 = vpop.f32.mrb[0].mxu0
      %v1359 = vadd.f32 0.0, %v1358
      %v1360 = vpop.f32.mrb[0].mxu0
      %v1361 = vadd.f32 0.0, %v1360
      %v1362 = vpop.f32.mrb[0].mxu0
      %v1363 = vadd.f32 0.0, %v1362
      %1364 = vmatprep.mubr.bf16.mxu0 0
      %1365 = vmatmul.mubr.bf16.gmra.mrb[0].mxu0 %v586
      %v1366 = vpop.f32.mrb[0].mxu0
      %v1367 = vadd.f32 0.0, %v1366
      %v1368 = vpop.f32.mrb[0].mxu0
      %v1369 = vadd.f32 0.0, %v1368
      %v1370 = vpop.f32.mrb[0].mxu0
      %v1371 = vadd.f32 0.0, %v1370
      %v1372 = vpop.f32.mrb[0].mxu0
      %v1373 = vadd.f32 0.0, %v1372
      %1374 = vmatprep.mubr.bf16.mxu0 0
      %1375 = vmatmul.mubr.bf16.gmra.mrb[0].mxu0 %v587
      %v1376 = vpop.f32.mrb[0].mxu0
      %v1377 = vadd.f32 0.0, %v1376
      %v1378 = vpop.f32.mrb[0].mxu0
      %v1379 = vadd.f32 0.0, %v1378
      %v1380 = vpop.f32.mrb[0].mxu0
      %v1381 = vadd.f32 0.0, %v1380
      %v1382 = vpop.f32.mrb[0].mxu0
      %v1383 = vadd.f32 0.0, %v1382
      %1384 = vmatprep.mubr.bf16.mxu0 0
      %1385 = vmatmul.mubr.bf16.gmra.mrb[0].mxu0 %v588
      %v1386 = vpop.f32.mrb[0].mxu0
      %v1387 = vadd.f32 0.0, %v1386
      %v1388 = vpop.f32.mrb[0].mxu0
      %v1389 = vadd.f32 0.0, %v1388
      %v1390 = vpop.f32.mrb[0].mxu0
      %v1391 = vpop.f32.mrb[0].mxu0
      %v1392 = vadd.f32 0.0, %v1391
      %1393 = vdwg.mxu0
      %1394 = vmatprep.subr.bf16.mxu0 0
      %1395 = vmatpush1.bf16.msra.mxu0 %v829
      %1396 = vmatprep.subr.bf16.mxu0 0
      %1397 = vmatpush1.bf16.msra.mxu0 %v838
      %1398 = vmatprep.subr.bf16.mxu0 0
      %1399 = vmatpush1.bf16.msra.mxu0 %v847
      %1400 = vmatprep.subr.bf16.mxu0 0
      %1401 = vmatpush1.bf16.msra.mxu0 %v856
      %1402 = vmatprep.subr.bf16.mxu0 0
      %1403 = vmatpush1.bf16.msra.mxu0 %v865
      %1404 = vmatprep.subr.bf16.mxu0 0
      %1405 = vmatpush1.bf16.msra.mxu0 %v874
      %1406 = vmatprep.subr.bf16.mxu0 0
      %1407 = vmatpush1.bf16.msra.mxu0 %v883
      %1408 = vmatprep.subr.bf16.mxu0 0
      %1409 = vmatpush1.bf16.msra.mxu0 %v892
      %1410 = vmatprep.subr.bf16.mxu0 0
      %1411 = vmatpush1.bf16.msra.mxu0 0
      %1412 = vmatprep.subr.bf16.mxu0 0
      %1413 = vmatpush1.bf16.msra.mxu0 0
      %1414 = vmatprep.subr.bf16.mxu0 0
      %1415 = vmatpush1.bf16.msra.mxu0 0
      %1416 = vmatprep.subr.bf16.mxu0 0
      %1417 = vmatpush1.bf16.msra.mxu0 0
      %1418 = vmatprep.subr.bf16.mxu0 0
      %1419 = vmatpush1.bf16.msra.mxu0 0
      %1420 = vmatprep.subr.bf16.mxu0 0
      %1421 = vmatpush1.bf16.msra.mxu0 0
      %1422 = vmatprep.subr.bf16.mxu0 0
      %1423 = vmatpush1.bf16.msra.mxu0 0
      %1424 = vmatprep.subr.bf16.mxu0 0
      %1425 = vmatpush1.bf16.msra.mxu0 0
      %1426 = vmatprep.mubr.bf16.mxu0 0
      %1427 = vmatmul.mubr.bf16.gmra.mrb[0].mxu0 %v581
      %v1428 = vpop.f32.mrb[0].mxu0
      %v1429 = vpop.f32.mrb[0].mxu0
      %v1430 = vpop.f32.mrb[0].mxu0
      %v1431 = vpop.f32.mrb[0].mxu0
      %1432 = vmatprep.mubr.bf16.mxu0 0
      %1433 = vmatmul.mubr.bf16.gmra.mrb[0].mxu0 %v582
      %v1434 = vpop.f32.mrb[0].mxu0
      %v1435 = vadd.f32 0.0, %v1434
      %v1436 = vpop.f32.mrb[0].mxu0
      %v1437 = vpop.f32.mrb[0].mxu0
      %v1438 = vadd.f32 0.0, %v1437
      %v1439 = vpop.f32.mrb[0].mxu0
      %1440 = vmatprep.mubr.bf16.mxu0 0
      %1441 = vmatmul.mubr.bf16.gmra.mrb[0].mxu0 %v583
      %v1442 = vpop.f32.mrb[0].mxu0
      %v1443 = vadd.f32 0.0, %v1442
      %v1444 = vpop.f32.mrb[0].mxu0
      %v1445 = vpop.f32.mrb[0].mxu0
      %v1446 = vadd.f32 0.0, %v1445
      %v1447 = vpop.f32.mrb[0].mxu0
      %1448 = vmatprep.mubr.bf16.mxu0 0
      %1449 = vmatmul.mubr.bf16.gmra.mrb[0].mxu0 %v584
      %v1450 = vpop.f32.mrb[0].mxu0
      %v1451 = vadd.f32 0.0, %v1450
      %v1452 = vpop.f32.mrb[0].mxu0
      %v1453 = vpop.f32.mrb[0].mxu0
      %v1454 = vadd.f32 0.0, %v1453
      %v1455 = vpop.f32.mrb[0].mxu0
      %1456 = vmatprep.mubr.bf16.mxu0 0
      %1457 = vmatmul.mubr.bf16.gmra.mrb[0].mxu0 %v585
      %v1458 = vpop.f32.mrb[0].mxu0
      %v1459 = vadd.f32 0.0, %v1458
      %v1460 = vpop.f32.mrb[0].mxu0
      %v1461 = vpop.f32.mrb[0].mxu0
      %v1462 = vadd.f32 0.0, %v1461
      %v1463 = vpop.f32.mrb[0].mxu0
      %1464 = vmatprep.mubr.bf16.mxu0 0
      %1465 = vmatmul.mubr.bf16.gmra.mrb[0].mxu0 %v586
      %v1466 = vpop.f32.mrb[0].mxu0
      %v1467 = vadd.f32 0.0, %v1466
      %v1468 = vpop.f32.mrb[0].mxu0
      %v1469 = vpop.f32.mrb[0].mxu0
      %v1470 = vadd.f32 0.0, %v1469
      %v1471 = vpop.f32.mrb[0].mxu0
      %1472 = vmatprep.mubr.bf16.mxu0 0
      %1473 = vmatmul.mubr.bf16.gmra.mrb[0].mxu0 %v587
      %v1474 = vpop.f32.mrb[0].mxu0
      %v1475 = vadd.f32 0.0, %v1474
      %v1476 = vpop.f32.mrb[0].mxu0
      %v1477 = vpop.f32.mrb[0].mxu0
      %v1478 = vadd.f32 0.0, %v1477
      %v1479 = vpop.f32.mrb[0].mxu0
      %1480 = vmatprep.mubr.bf16.mxu0 0
      %1481 = vmatmul.mubr.bf16.gmra.mrb[0].mxu0 %v588
      %v1482 = vpop.f32.mrb[0].mxu0
      %v1483 = vadd.f32 0.0, %v1482
      %v1484 = vpop.f32.mrb[0].mxu0
      %v1485 = vpop.f32.mrb[0].mxu0
      %v1486 = vadd.f32 0.0, %v1485
      %v1487 = vpop.f32.mrb[0].mxu0
      %1488 = vdwg.mxu0
      %vm1502 = vcmask 1046528
      %v1503 = vrot.slane %v1002, 1
      %v1504 = vrot.slane %v1006, 1
      %v1505 = vsel %vm1502, %v1503, %v1504
      %v1506 = vrot.slane %v1012, 1
      %v1507 = vsel %vm1502, %v1504, %v1506
      %v1508 = vrot.slane %v1016, 1
      %v1509 = vsel %vm1502, %v1506, %v1508
      %v1510 = vrot.slane %v1022, 1
      %v1511 = vsel %vm1502, %v1508, %v1510
      %v1512 = vrot.slane %v1026, 1
      %v1513 = vsel %vm1502, %v1510, %v1512
      %v1514 = vrot.slane %v1032, 1
      %v1515 = vsel %vm1502, %v1512, %v1514
      %v1516 = vrot.slane %v1036, 1
      %v1517 = vsel %vm1502, %v1514, %v1516
      %v1518 = vrot.slane %v1042, 1
      %v1519 = vsel %vm1502, %v1516, %v1518
      %v1520 = vrot.slane %v1046, 1
      %v1521 = vsel %vm1502, %v1518, %v1520
      %v1522 = vrot.slane %v1052, 1
      %v1523 = vsel %vm1502, %v1520, %v1522
      %v1524 = vrot.slane %v1056, 1
      %v1525 = vsel %vm1502, %v1522, %v1524
      %v1526 = vrot.slane %v1062, 1
      %v1527 = vsel %vm1502, %v1524, %v1526
      %v1541 = vadd.f32 %v1000, %v1505
      %v1542 = vadd.f32 %v1004, %v1507
      %v1543 = vadd.f32 %v1010, %v1509
      %v1544 = vadd.f32 %v1014, %v1511
      %v1545 = vadd.f32 %v1020, %v1513
      %v1546 = vadd.f32 %v1024, %v1515
      %v1547 = vadd.f32 %v1030, %v1517
      %v1548 = vadd.f32 %v1034, %v1519
      %v1549 = vadd.f32 %v1040, %v1521
      %v1550 = vadd.f32 %v1044, %v1523
      %v1551 = vadd.f32 %v1050, %v1525
      %v1552 = vadd.f32 %v1054, %v1527
      %v1553 = vadd.f32 %v1060, %v1526
      %v1554 = vadd.f32 %v1107, %v1112
      %v1555 = vadd.f32 %v1110, %v1118
      %v1556 = vadd.f32 %v1116, %v1122
      %v1557 = vadd.f32 %v1120, %v1128
      %v1558 = vadd.f32 %v1126, %v1132
      %v1559 = vadd.f32 %v1130, %v1138
      %v1560 = vadd.f32 %v1136, %v1142
      %v1561 = vadd.f32 %v1140, %v1148
      %v1562 = vadd.f32 %v1146, %v1152
      %v1563 = vadd.f32 %v1150, %v1158
      %v1564 = vadd.f32 %v1156, %v1162
      %v1565 = vadd.f32 %v1160, %v1168
      %v1566 = vadd.f32 %v1166, %v1171
      %v1580 = vrot.slane %v1218, 1
      %v1581 = vrot.slane %v1224, 1
      %v1582 = vsel %vm1502, %v1580, %v1581
      %v1583 = vrot.slane %v1228, 1
      %v1584 = vsel %vm1502, %v1581, %v1583
      %v1585 = vrot.slane %v1234, 1
      %v1586 = vsel %vm1502, %v1583, %v1585
      %v1587 = vrot.slane %v1238, 1
      %v1588 = vsel %vm1502, %v1585, %v1587
      %v1589 = vrot.slane %v1244, 1
      %v1590 = vsel %vm1502, %v1587, %v1589
      %v1591 = vrot.slane %v1248, 1
      %v1592 = vsel %vm1502, %v1589, %v1591
      %v1593 = vrot.slane %v1254, 1
      %v1594 = vsel %vm1502, %v1591, %v1593
      %v1595 = vrot.slane %v1258, 1
      %v1596 = vsel %vm1502, %v1593, %v1595
      %v1597 = vrot.slane %v1264, 1
      %v1598 = vsel %vm1502, %v1595, %v1597
      %v1599 = vrot.slane %v1268, 1
      %v1600 = vsel %vm1502, %v1597, %v1599
      %v1601 = vrot.slane %v1274, 1
      %v1602 = vsel %vm1502, %v1599, %v1601
      %v1603 = vrot.slane %v1278, 1
      %v1604 = vsel %vm1502, %v1601, %v1603
      %v1618 = vadd.f32 %v1216, %v1582
      %v1619 = vadd.f32 %v1222, %v1584
      %v1620 = vadd.f32 %v1226, %v1586
      %v1621 = vadd.f32 %v1232, %v1588
      %v1622 = vadd.f32 %v1236, %v1590
      %v1623 = vadd.f32 %v1242, %v1592
      %v1624 = vadd.f32 %v1246, %v1594
      %v1625 = vadd.f32 %v1252, %v1596
      %v1626 = vadd.f32 %v1256, %v1598
      %v1627 = vadd.f32 %v1262, %v1600
      %v1628 = vadd.f32 %v1266, %v1602
      %v1629 = vadd.f32 %v1272, %v1604
      %v1630 = vadd.f32 %v1276, %v1603
      %v1645 = vrot.slane %v1329, 1
      %v1646 = vrot.slane %v1333, 1
      %v1647 = vsel %vm1502, %v1645, %v1646
      %v1648 = vrot.slane %v1339, 1
      %v1649 = vsel %vm1502, %v1646, %v1648
      %v1650 = vrot.slane %v1343, 1
      %v1651 = vsel %vm1502, %v1648, %v1650
      %v1652 = vrot.slane %v1349, 1
      %v1653 = vsel %vm1502, %v1650, %v1652
      %v1654 = vrot.slane %v1353, 1
      %v1655 = vsel %vm1502, %v1652, %v1654
      %v1656 = vrot.slane %v1359, 1
      %v1657 = vsel %vm1502, %v1654, %v1656
      %v1658 = vrot.slane %v1363, 1
      %v1659 = vsel %vm1502, %v1656, %v1658
      %v1660 = vrot.slane %v1369, 1
      %v1661 = vsel %vm1502, %v1658, %v1660
      %v1662 = vrot.slane %v1373, 1
      %v1663 = vsel %vm1502, %v1660, %v1662
      %v1664 = vrot.slane %v1379, 1
      %v1665 = vsel %vm1502, %v1662, %v1664
      %v1666 = vrot.slane %v1383, 1
      %v1667 = vsel %vm1502, %v1664, %v1666
      %v1668 = vrot.slane %v1389, 1
      %v1669 = vsel %vm1502, %v1666, %v1668
      %v1670 = vrot.slane %v1392, 1
      %v1671 = vsel %vm1502, %v1668, %v1670
      %v1685 = vadd.f32 %v1327, %v1647
      %v1686 = vadd.f32 %v1331, %v1649
      %v1687 = vadd.f32 %v1337, %v1651
      %v1688 = vadd.f32 %v1341, %v1653
      %v1689 = vadd.f32 %v1347, %v1655
      %v1690 = vadd.f32 %v1351, %v1657
      %v1691 = vadd.f32 %v1357, %v1659
      %v1692 = vadd.f32 %v1361, %v1661
      %v1693 = vadd.f32 %v1367, %v1663
      %v1694 = vadd.f32 %v1371, %v1665
      %v1695 = vadd.f32 %v1377, %v1667
      %v1696 = vadd.f32 %v1381, %v1669
      %v1697 = vadd.f32 %v1387, %v1671
      %vm1711 = vcmask 1045504
      %v1712 = vrot.slane %v1554, 2
      %v1713 = vrot.slane %v1555, 2
      %v1714 = vsel %vm1711, %v1712, %v1713
      %v1715 = vrot.slane %v1556, 2
      %v1716 = vsel %vm1711, %v1713, %v1715
      %v1717 = vrot.slane %v1557, 2
      %v1718 = vsel %vm1711, %v1715, %v1717
      %v1719 = vrot.slane %v1558, 2
      %v1720 = vsel %vm1711, %v1717, %v1719
      %v1721 = vrot.slane %v1559, 2
      %v1722 = vsel %vm1711, %v1719, %v1721
      %v1723 = vrot.slane %v1560, 2
      %v1724 = vsel %vm1711, %v1721, %v1723
      %v1725 = vrot.slane %v1561, 2
      %v1726 = vsel %vm1711, %v1723, %v1725
      %v1727 = vrot.slane %v1562, 2
      %v1728 = vsel %vm1711, %v1725, %v1727
      %v1729 = vrot.slane %v1563, 2
      %v1730 = vsel %vm1711, %v1727, %v1729
      %v1731 = vrot.slane %v1564, 2
      %v1732 = vsel %vm1711, %v1729, %v1731
      %v1733 = vrot.slane %v1565, 2
      %v1734 = vsel %vm1711, %v1731, %v1733
      %v1735 = vrot.slane %v1566, 2
      %v1736 = vsel %vm1711, %v1733, %v1735
      %v1750 = vadd.f32 %v1541, %v1714
      %v1751 = vadd.f32 %v1542, %v1716
      %v1752 = vadd.f32 %v1543, %v1718
      %v1753 = vadd.f32 %v1544, %v1720
      %v1754 = vadd.f32 %v1545, %v1722
      %v1755 = vadd.f32 %v1546, %v1724
      %v1756 = vadd.f32 %v1547, %v1726
      %v1757 = vadd.f32 %v1548, %v1728
      %v1758 = vadd.f32 %v1549, %v1730
      %v1759 = vadd.f32 %v1550, %v1732
      %v1760 = vadd.f32 %v1551, %v1734
      %v1761 = vadd.f32 %v1552, %v1736
      %v1762 = vadd.f32 %v1553, %v1735
      %v1776 = vrot.slane %v1685, 1
      %v1777 = vrot.slane %v1686, 1
      %v1778 = vsel %vm1502, %v1776, %v1777
      %v1779 = vrot.slane %v1687, 1
      %v1780 = vsel %vm1502, %v1777, %v1779
      %v1781 = vrot.slane %v1688, 1
      %v1782 = vsel %vm1502, %v1779, %v1781
      %v1783 = vrot.slane %v1689, 1
      %v1784 = vsel %vm1502, %v1781, %v1783
      %v1785 = vrot.slane %v1690, 1
      %v1786 = vsel %vm1502, %v1783, %v1785
      %v1787 = vrot.slane %v1691, 1
      %v1788 = vsel %vm1502, %v1785, %v1787
      %v1789 = vrot.slane %v1692, 1
      %v1790 = vsel %vm1502, %v1787, %v1789
      %v1791 = vrot.slane %v1693, 1
      %v1792 = vsel %vm1502, %v1789, %v1791
      %v1793 = vrot.slane %v1694, 1
      %v1794 = vsel %vm1502, %v1791, %v1793
      %v1795 = vrot.slane %v1695, 1
      %v1796 = vsel %vm1502, %v1793, %v1795
      %v1797 = vrot.slane %v1696, 1
      %v1798 = vsel %vm1502, %v1795, %v1797
      %v1799 = vrot.slane %v1697, 1
      %v1800 = vsel %vm1502, %v1797, %v1799
      %v1814 = vadd.f32 %v1618, %v1778
      %v1815 = vadd.f32 %v1619, %v1780
      %v1816 = vadd.f32 %v1620, %v1782
      %v1817 = vadd.f32 %v1621, %v1784
      %v1818 = vadd.f32 %v1622, %v1786
      %v1819 = vadd.f32 %v1623, %v1788
      %v1820 = vadd.f32 %v1624, %v1790
      %v1821 = vadd.f32 %v1625, %v1792
      %v1822 = vadd.f32 %v1626, %v1794
      %v1823 = vadd.f32 %v1627, %v1796
      %v1824 = vadd.f32 %v1628, %v1798
      %v1825 = vadd.f32 %v1629, %v1800
      %v1826 = vadd.f32 %v1630, %v1799
      %vm1840 = vcmask 1044480
      %v1841 = vrot.slane %v1814, 3
      %v1842 = vrot.slane %v1815, 3
      %v1843 = vsel %vm1840, %v1841, %v1842
      %v1844 = vrot.slane %v1816, 3
      %v1845 = vsel %vm1840, %v1842, %v1844
      %v1846 = vrot.slane %v1817, 3
      %v1847 = vsel %vm1840, %v1844, %v1846
      %v1848 = vrot.slane %v1818, 3
      %v1849 = vsel %vm1840, %v1846, %v1848
      %v1850 = vrot.slane %v1819, 3
      %v1851 = vsel %vm1840, %v1848, %v1850
      %v1852 = vrot.slane %v1820, 3
      %v1853 = vsel %vm1840, %v1850, %v1852
      %v1854 = vrot.slane %v1821, 3
      %v1855 = vsel %vm1840, %v1852, %v1854
      %v1856 = vrot.slane %v1822, 3
      %v1857 = vsel %vm1840, %v1854, %v1856
      %v1858 = vrot.slane %v1823, 3
      %v1859 = vsel %vm1840, %v1856, %v1858
      %v1860 = vrot.slane %v1824, 3
      %v1861 = vsel %vm1840, %v1858, %v1860
      %v1862 = vrot.slane %v1825, 3
      %v1863 = vsel %vm1840, %v1860, %v1862
      %v1864 = vrot.slane %v1826, 3
      %v1865 = vsel %vm1840, %v1862, %v1864
      %v1879 = vadd.f32 %v1750, %v1843
      %v1880 = vadd.f32 %v1751, %v1845
      %v1881 = vadd.f32 %v1752, %v1847
      %v1882 = vadd.f32 %v1753, %v1849
      %v1883 = vadd.f32 %v1754, %v1851
      %v1884 = vadd.f32 %v1755, %v1853
      %v1885 = vadd.f32 %v1756, %v1855
      %v1886 = vadd.f32 %v1757, %v1857
      %v1887 = vadd.f32 %v1758, %v1859
      %v1888 = vadd.f32 %v1759, %v1861
      %v1889 = vadd.f32 %v1760, %v1863
      %v1890 = vadd.f32 %v1761, %v1865
      %v1891 = vadd.f32 %v1762, %v1864
      %vm1906 = vcmask 1041408
      %v1907 = vrot.slane %v1435, 6
      %v1908 = vrot.slane %v1438, 6
      %v1909 = vsel %vm1906, %v1907, %v1908
      %v1910 = vrot.slane %v1443, 6
      %v1911 = vsel %vm1906, %v1908, %v1910
      %v1912 = vrot.slane %v1446, 6
      %v1913 = vsel %vm1906, %v1910, %v1912
      %v1914 = vrot.slane %v1451, 6
      %v1915 = vsel %vm1906, %v1912, %v1914
      %v1916 = vrot.slane %v1454, 6
      %v1917 = vsel %vm1906, %v1914, %v1916
      %v1918 = vrot.slane %v1459, 6
      %v1919 = vsel %vm1906, %v1916, %v1918
      %v1920 = vrot.slane %v1462, 6
      %v1921 = vsel %vm1906, %v1918, %v1920
      %v1922 = vrot.slane %v1467, 6
      %v1923 = vsel %vm1906, %v1920, %v1922
      %v1924 = vrot.slane %v1470, 6
      %v1925 = vsel %vm1906, %v1922, %v1924
      %v1926 = vrot.slane %v1475, 6
      %v1927 = vsel %vm1906, %v1924, %v1926
      %v1928 = vrot.slane %v1478, 6
      %v1929 = vsel %vm1906, %v1926, %v1928
      %v1930 = vrot.slane %v1483, 6
      %v1931 = vsel %vm1906, %v1928, %v1930
      %v1932 = vrot.slane %v1486, 6
      %v1933 = vsel %vm1906, %v1930, %v1932
      %v1947 = vadd.f32 %v1879, %v1909
      %v1948 = vadd.f32 %v1880, %v1911
      %v1949 = vadd.f32 %v1881, %v1913
      %v1950 = vadd.f32 %v1882, %v1915
      %v1951 = vadd.f32 %v1883, %v1917
      %v1952 = vadd.f32 %v1884, %v1919
      %v1953 = vadd.f32 %v1885, %v1921
      %v1954 = vadd.f32 %v1886, %v1923
      %v1955 = vadd.f32 %v1887, %v1925
      %v1956 = vadd.f32 %v1888, %v1927
      %v1957 = vadd.f32 %v1889, %v1929
      %v1958 = vadd.f32 %v1890, %v1931
      %v1959 = vadd.f32 %v1891, %v1933
      %v1960 = vld [vmem:[%s2] sm:$0x1]
      %v1962 = vlaneseq
      %v1963 = vshrl.u32 %v1962, 7
      %v1964 = vsub.s32 0, %v1963
      %v1965 = vrot.slane %v1960, %v1964
      %v1967 = vadd.f32 %v1947, %v1965
      %v1968 = vadd.f32 %v1948, %v1965
      %v1969 = vadd.f32 %v1949, %v1965
      %v1970 = vadd.f32 %v1950, %v1965
      %v1971 = vadd.f32 %v1951, %v1965
      %v1972 = vadd.f32 %v1952, %v1965
      %v1973 = vadd.f32 %v1953, %v1965
      %v1974 = vadd.f32 %v1954, %v1965
      %v1975 = vadd.f32 %v1955, %v1965
      %v1976 = vadd.f32 %v1956, %v1965
      %v1977 = vadd.f32 %v1957, %v1965
      %v1978 = vadd.f32 %v1958, %v1965
      %v1979 = vadd.f32 %v1959, %v1965
      %v1980 = vmax.f32 %v1967, 0.0
      %v1981 = vmax.f32 %v1968, 0.0
      %v1982 = vmax.f32 %v1969, 0.0
      %v1983 = vmax.f32 %v1970, 0.0
      %v1984 = vmax.f32 %v1971, 0.0
      %v1985 = vmax.f32 %v1972, 0.0
      %v1986 = vmax.f32 %v1973, 0.0
      %v1987 = vmax.f32 %v1974, 0.0
      %v1988 = vmax.f32 %v1975, 0.0
      %v1989 = vmax.f32 %v1976, 0.0
      %v1990 = vmax.f32 %v1977, 0.0
      %v1991 = vmax.f32 %v1978, 0.0
      %v1992 = vmax.f32 %v1979, 0.0
      %v1993 = vpack.c.bf16 %v1981, %v1980
      %v1994 = vpack.c.bf16 %v1983, %v1982
      %v1995 = vpack.c.bf16 %v1985, %v1984
      %v1996 = vpack.c.bf16 %v1987, %v1986
      %v1997 = vpack.c.bf16 %v1989, %v1988
      %v1998 = vpack.c.bf16 %v1991, %v1990
      %v1999 = vpack.c.bf16 %v1992, %v1992
      %v2000 = vld [vmem:[%s10] sm:$0xf]
      %v2001 = vld [vmem:[%s10 + $0x4] sm:$0xf]
      %v2004 = vunpack.c.l.b16 %v2000
      %v2005 = vunpack.c.l.b16 %v2001
      %v2006 = vpack.c.b16 %v2005, %v2004
      %vm2007 = vcmask 818176
      %v2009 = vsel %vm2007, %v2006, 0
      %v2012 = vsel %vm1906, %v1999, 0
      %2014 = vmatprep.subr.bf16.mxu0 0
      %2015 = vmatpush1.bf16.msra.mxu0 %v1993
      %2016 = vmatprep.subr.bf16.mxu0 0
      %2017 = vmatpush1.bf16.msra.mxu0 %v1994
      %2018 = vmatprep.subr.bf16.mxu0 0
      %2019 = vmatpush1.bf16.msra.mxu0 %v1995
      %2020 = vmatprep.subr.bf16.mxu0 0
      %2021 = vmatpush1.bf16.msra.mxu0 %v1996
      %2022 = vmatprep.subr.bf16.mxu0 0
      %2023 = vmatpush1.bf16.msra.mxu0 %v1997
      %2024 = vmatprep.subr.bf16.mxu0 0
      %2025 = vmatpush1.bf16.msra.mxu0 %v1998
      %2026 = vmatprep.subr.bf16.mxu0 0
      %2027 = vmatpush1.bf16.msra.mxu0 %v2012
      %2028 = vmatprep.subr.bf16.mxu0 0
      %2029 = vmatpush1.bf16.msra.mxu0 0
      %2030 = vmatprep.subr.bf16.mxu0 0
      %2031 = vmatpush1.bf16.msra.mxu0 0
      %2032 = vmatprep.subr.bf16.mxu0 0
      %2033 = vmatpush1.bf16.msra.mxu0 0
      %2034 = vmatprep.subr.bf16.mxu0 0
      %2035 = vmatpush1.bf16.msra.mxu0 0
      %2036 = vmatprep.subr.bf16.mxu0 0
      %2037 = vmatpush1.bf16.msra.mxu0 0
      %2038 = vmatprep.subr.bf16.mxu0 0
      %2039 = vmatpush1.bf16.msra.mxu0 0
      %2040 = vmatprep.subr.bf16.mxu0 0
      %2041 = vmatpush1.bf16.msra.mxu0 0
      %2042 = vmatprep.subr.bf16.mxu0 0
      %2043 = vmatpush1.bf16.msra.mxu0 0
      %2044 = vmatprep.subr.bf16.mxu0 0
      %2045 = vmatpush1.bf16.msra.mxu0 0
      %2046 = vmatprep.mubr.bf16.mxu0 0
      %2047 = vmatmul.mubr.bf16.gmra.mrb[0].mxu0 %v2009
      %v2048 = vpop.f32.mrb[0].mxu0
      %v2049 = vadd.f32 0.0, %v2048
      %v2050 = vpop.f32.mrb[0].mxu0
      %v2051 = vpop.f32.mrb[0].mxu0
      %v2052 = vadd.f32 0.0, %v2051
      %v2053 = vpop.f32.mrb[0].mxu0
      %2054 = vdwg.mxu0
      %v2055 = vpack.c.bf16 %v2052, %v2049
      %v2056 = vld [vmem:[%s3] sm:$0xf]
      %v2057 = vld [vmem:[%s3 + $0x4] sm:$0xf]
      %v2058 = vld [vmem:[%s3 + $0x8] sm:$0xf]
      %v2059 = vld [vmem:[%s3 + $0xc] sm:$0xf]
      %v2060 = vld [vmem:[%s3 + $0x10] sm:$0xf]
      %v2061 = vld [vmem:[%s3 + $0x14] sm:$0xf]
      %v2062 = vld [vmem:[%s3 + $0x18] sm:$0xf]
      %v2063 = vld [vmem:[%s3 + $0x1c] sm:$0xf]
      %v2064 = vld [vmem:[%s3 + $0x20] sm:$0xf]
      %v2065 = vld [vmem:[%s3 + $0x24] sm:$0xf]
      %v2066 = vld [vmem:[%s3 + $0x28] sm:$0xf]
      %v2067 = vld [vmem:[%s3 + $0x2c] sm:$0xf]
      %v2068 = vld [vmem:[%s3 + $0x30] sm:$0xf]
      %v2069 = vld [vmem:[%s3 + $0x34] sm:$0xf]
      %v2070 = vld [vmem:[%s3 + $0x38] sm:$0xf]
      %v2071 = vld [vmem:[%s3 + $0x3c] sm:$0xf]
      %v2072 = vld [vmem:[%s4] sm:$0x1]
      %v2074 = vlaneseq
      %v2075 = vshrl.u32 %v2074, 7
      %v2076 = vsub.s32 0, %v2075
      %v2077 = vrot.slane %v2072, %v2076
      %v2095 = vunpack.c.l.b16 %v2056
      %v2096 = vunpack.c.l.b16 %v2057
      %v2097 = vunpack.c.l.b16 %v2058
      %v2098 = vunpack.c.l.b16 %v2059
      %v2099 = vunpack.c.l.b16 %v2060
      %v2100 = vunpack.c.l.b16 %v2061
      %v2101 = vunpack.c.l.b16 %v2062
      %v2102 = vunpack.c.l.b16 %v2063
      %v2103 = vunpack.c.l.b16 %v2064
      %v2104 = vunpack.c.l.b16 %v2065
      %v2105 = vunpack.c.l.b16 %v2066
      %v2106 = vunpack.c.l.b16 %v2067
      %v2107 = vunpack.c.l.b16 %v2068
      %v2108 = vunpack.c.l.b16 %v2069
      %v2109 = vunpack.c.l.b16 %v2070
      %v2110 = vunpack.c.l.b16 %v2071
      %v2111 = vpack.c.b16 %v2096, %v2095
      %v2112 = vpack.c.b16 %v2098, %v2097
      %v2113 = vpack.c.b16 %v2100, %v2099
      %v2114 = vpack.c.b16 %v2102, %v2101
      %v2115 = vpack.c.b16 %v2104, %v2103
      %v2116 = vpack.c.b16 %v2106, %v2105
      %v2117 = vpack.c.b16 %v2108, %v2107
      %v2118 = vpack.c.b16 %v2110, %v2109
      %2127 = vmatprep.subr.bf16.mxu0 0
      %2128 = vmatpush1.bf16.msra.mxu0 %v2111
      %2129 = vmatprep.subr.bf16.mxu0 0
      %2130 = vmatpush1.bf16.msra.mxu0 %v2112
      %2131 = vmatprep.subr.bf16.mxu0 0
      %2132 = vmatpush1.bf16.msra.mxu0 %v2113
      %2133 = vmatprep.subr.bf16.mxu0 0
      %2134 = vmatpush1.bf16.msra.mxu0 %v2114
      %2135 = vmatprep.subr.bf16.mxu0 0
      %2136 = vmatpush1.bf16.msra.mxu0 %v2115
      %2137 = vmatprep.subr.bf16.mxu0 0
      %2138 = vmatpush1.bf16.msra.mxu0 %v2116
      %2139 = vmatprep.subr.bf16.mxu0 0
      %2140 = vmatpush1.bf16.msra.mxu0 %v2117
      %2141 = vmatprep.subr.bf16.mxu0 0
      %2142 = vmatpush1.bf16.msra.mxu0 %v2118
      %2143 = vmatprep.subr.bf16.mxu0 0
      %2144 = vmatpush1.bf16.msra.mxu0 0
      %2145 = vmatprep.subr.bf16.mxu0 0
      %2146 = vmatpush1.bf16.msra.mxu0 0
      %2147 = vmatprep.subr.bf16.mxu0 0
      %2148 = vmatpush1.bf16.msra.mxu0 0
      %2149 = vmatprep.subr.bf16.mxu0 0
      %2150 = vmatpush1.bf16.msra.mxu0 0
      %2151 = vmatprep.subr.bf16.mxu0 0
      %2152 = vmatpush1.bf16.msra.mxu0 0
      %2153 = vmatprep.subr.bf16.mxu0 0
      %2154 = vmatpush1.bf16.msra.mxu0 0
      %2155 = vmatprep.subr.bf16.mxu0 0
      %2156 = vmatpush1.bf16.msra.mxu0 0
      %2157 = vmatprep.subr.bf16.mxu0 0
      %2158 = vmatpush1.bf16.msra.mxu0 0
      %2159 = vmatprep.mubr.bf16.mxu0 0
      %2160 = vmatmul.mubr.bf16.gmra.mrb[0].mxu0 %v2055
      %v2161 = vpop.f32.mrb[0].mxu0
      %v2162 = vadd.f32 %v2077, %v2161
      %v2163 = vpop.f32.mrb[0].mxu0
      %v2164 = vpop.f32.mrb[0].mxu0
      %v2165 = vadd.f32 %v2077, %v2164
      %v2166 = vpop.f32.mrb[0].mxu0
      %2167 = vdwg.mxu0
      %2168 = vst [vmem:[%s447] sm:$0xff] %v2162
      %2169 = vst [vmem:[%s447 + $0x8] sm:$0xff] %v2165
      %v2170 = vld [vmem:[%s9] sm:$0xf]
      %v2171 = vld [vmem:[%s9 + $0x4] sm:$0xf]
      %v2172 = vld [vmem:[%s9 + $0x8] sm:$0xf]
      %v2173 = vld [vmem:[%s9 + $0xc] sm:$0xf]
      %v2174 = vld [vmem:[%s9 + $0x10] sm:$0xf]
      %v2175 = vld [vmem:[%s9 + $0x14] sm:$0xf]
      %v2176 = vld [vmem:[%s9 + $0x18] sm:$0xf]
      %v2177 = vld [vmem:[%s9 + $0x1c] sm:$0xf]
      %v2186 = vunpack.c.l.b16 %v2170
      %v2187 = vunpack.c.l.b16 %v2171
      %v2188 = vunpack.c.l.b16 %v2172
      %v2189 = vunpack.c.l.b16 %v2173
      %v2190 = vunpack.c.l.b16 %v2174
      %v2191 = vunpack.c.l.b16 %v2175
      %v2192 = vunpack.c.l.b16 %v2176
      %v2193 = vunpack.c.l.b16 %v2177
      %v2194 = vpack.c.b16 %v2187, %v2186
      %v2195 = vpack.c.b16 %v2189, %v2188
      %v2196 = vpack.c.b16 %v2191, %v2190
      %v2197 = vpack.c.b16 %v2193, %v2192
      %v2199 = vsel %vm2007, %v2194, 0
      %v2202 = vsel %vm2007, %v2195, 0
      %v2205 = vsel %vm2007, %v2196, 0
      %v2208 = vsel %vm2007, %v2197, 0
      %2210 = vmatprep.subr.bf16.mxu0 0
      %2211 = vmatpush1.bf16.msra.mxu0 %v1993
      %2212 = vmatprep.subr.bf16.mxu0 0
      %2213 = vmatpush1.bf16.msra.mxu0 %v1994
      %2214 = vmatprep.subr.bf16.mxu0 0
      %2215 = vmatpush1.bf16.msra.mxu0 %v1995
      %2216 = vmatprep.subr.bf16.mxu0 0
      %2217 = vmatpush1.bf16.msra.mxu0 %v1996
      %2218 = vmatprep.subr.bf16.mxu0 0
      %2219 = vmatpush1.bf16.msra.mxu0 %v1997
      %2220 = vmatprep.subr.bf16.mxu0 0
      %2221 = vmatpush1.bf16.msra.mxu0 %v1998
      %2222 = vmatprep.subr.bf16.mxu0 0
      %2223 = vmatpush1.bf16.msra.mxu0 %v2012
      %2224 = vmatprep.subr.bf16.mxu0 0
      %2225 = vmatpush1.bf16.msra.mxu0 0
      %2226 = vmatprep.subr.bf16.mxu0 0
      %2227 = vmatpush1.bf16.msra.mxu0 0
      %2228 = vmatprep.subr.bf16.mxu0 0
      %2229 = vmatpush1.bf16.msra.mxu0 0
      %2230 = vmatprep.subr.bf16.mxu0 0
      %2231 = vmatpush1.bf16.msra.mxu0 0
      %2232 = vmatprep.subr.bf16.mxu0 0
      %2233 = vmatpush1.bf16.msra.mxu0 0
      %2234 = vmatprep.subr.bf16.mxu0 0
      %2235 = vmatpush1.bf16.msra.mxu0 0
      %2236 = vmatprep.subr.bf16.mxu0 0
      %2237 = vmatpush1.bf16.msra.mxu0 0
      %2238 = vmatprep.subr.bf16.mxu0 0
      %2239 = vmatpush1.bf16.msra.mxu0 0
      %2240 = vmatprep.subr.bf16.mxu0 0
      %2241 = vmatpush1.bf16.msra.mxu0 0
      %2242 = vmatprep.mubr.bf16.mxu0 0
      %2243 = vmatmul.mubr.bf16.gmra.mrb[0].mxu0 %v2199
      %v2244 = vpop.f32.mrb[0].mxu0
      %v2245 = vadd.f32 0.0, %v2244
      %v2246 = vpop.f32.mrb[0].mxu0
      %v2247 = vpop.f32.mrb[0].mxu0
      %v2248 = vadd.f32 0.0, %v2247
      %v2249 = vpop.f32.mrb[0].mxu0
      %2250 = vmatprep.mubr.bf16.mxu0 0
      %2251 = vmatmul.mubr.bf16.gmra.mrb[0].mxu0 %v2202
      %v2252 = vpop.f32.mrb[0].mxu0
      %v2253 = vadd.f32 0.0, %v2252
      %v2254 = vpop.f32.mrb[0].mxu0
      %v2255 = vpop.f32.mrb[0].mxu0
      %v2256 = vadd.f32 0.0, %v2255
      %v2257 = vpop.f32.mrb[0].mxu0
      %2258 = vmatprep.mubr.bf16.mxu0 0
      %2259 = vmatmul.mubr.bf16.gmra.mrb[0].mxu0 %v2205
      %v2260 = vpop.f32.mrb[0].mxu0
      %v2261 = vadd.f32 0.0, %v2260
      %v2262 = vpop.f32.mrb[0].mxu0
      %v2263 = vpop.f32.mrb[0].mxu0
      %v2264 = vadd.f32 0.0, %v2263
      %v2265 = vpop.f32.mrb[0].mxu0
      %2266 = vmatprep.mubr.bf16.mxu0 0
      %2267 = vmatmul.mubr.bf16.gmra.mrb[0].mxu0 %v2208
      %v2268 = vpop.f32.mrb[0].mxu0
      %v2269 = vadd.f32 0.0, %v2268
      %v2270 = vpop.f32.mrb[0].mxu0
      %v2271 = vpop.f32.mrb[0].mxu0
      %v2272 = vadd.f32 0.0, %v2271
      %v2273 = vpop.f32.mrb[0].mxu0
      %2274 = vdwg.mxu0
      %v2275 = vpack.c.bf16 %v2248, %v2245
      %v2276 = vpack.c.bf16 %v2256, %v2253
      %v2277 = vpack.c.bf16 %v2264, %v2261
      %v2278 = vpack.c.bf16 %v2272, %v2269
      %v2279 = vld [vmem:[%s5] sm:$0xff]
      %v2280 = vld [vmem:[%s5 + $0x8] sm:$0xff]
      %v2281 = vld [vmem:[%s5 + $0x10] sm:$0xff]
      %v2282 = vld [vmem:[%s5 + $0x18] sm:$0xff]
      %v2283 = vld [vmem:[%s5 + $0x20] sm:$0xf]
      %v2284 = vld [vmem:[%s5 + $0x24] sm:$0xff]
      %v2285 = vld [vmem:[%s5 + $0x2c] sm:$0xff]
      %v2286 = vld [vmem:[%s5 + $0x34] sm:$0xff]
      %v2287 = vld [vmem:[%s5 + $0x3c] sm:$0xff]
      %v2288 = vld [vmem:[%s5 + $0x44] sm:$0xf]
      %v2289 = vld [vmem:[%s5 + $0x48] sm:$0xff]
      %v2290 = vld [vmem:[%s5 + $0x50] sm:$0xff]
      %v2291 = vld [vmem:[%s5 + $0x58] sm:$0xff]
      %v2292 = vld [vmem:[%s5 + $0x60] sm:$0xff]
      %v2293 = vld [vmem:[%s5 + $0x68] sm:$0xf]
      %v2294 = vld [vmem:[%s5 + $0x6c] sm:$0xff]
      %v2295 = vld [vmem:[%s5 + $0x74] sm:$0xff]
      %v2296 = vld [vmem:[%s5 + $0x7c] sm:$0xff]
      %v2297 = vld [vmem:[%s5 + $0x84] sm:$0xff]
      %v2298 = vld [vmem:[%s5 + $0x8c] sm:$0xf]
      %v2299 = vld [vmem:[%s5 + $0x90] sm:$0xff]
      %v2300 = vld [vmem:[%s5 + $0x98] sm:$0xff]
      %v2301 = vld [vmem:[%s5 + $0xa0] sm:$0xff]
      %v2302 = vld [vmem:[%s5 + $0xa8] sm:$0xff]
      %v2303 = vld [vmem:[%s5 + $0xb0] sm:$0xf]
      %v2304 = vld [vmem:[%s5 + $0xb4] sm:$0xff]
      %v2305 = vld [vmem:[%s5 + $0xbc] sm:$0xff]
      %v2306 = vld [vmem:[%s5 + $0xc4] sm:$0xff]
      %v2307 = vld [vmem:[%s5 + $0xcc] sm:$0xff]
      %v2308 = vld [vmem:[%s5 + $0xd4] sm:$0xf]
      %v2309 = vld [vmem:[%s5 + $0xd8] sm:$0xff]
      %v2310 = vld [vmem:[%s5 + $0xe0] sm:$0xff]
      %v2311 = vld [vmem:[%s5 + $0xe8] sm:$0xff]
      %v2312 = vld [vmem:[%s5 + $0xf0] sm:$0xff]
      %v2313 = vld [vmem:[%s5 + $0xf8] sm:$0xf]
      %v2314 = vld [vmem:[%s5 + $0xfc] sm:$0xff]
      %v2315 = vld [vmem:[%s5 + $0x104] sm:$0xff]
      %v2316 = vld [vmem:[%s5 + $0x10c] sm:$0xff]
      %v2317 = vld [vmem:[%s5 + $0x114] sm:$0xff]
      %v2318 = vld [vmem:[%s5 + $0x11c] sm:$0xf]
      %v2319 = vld [vmem:[%s5 + $0x120] sm:$0xff]
      %v2320 = vld [vmem:[%s5 + $0x128] sm:$0xff]
      %v2321 = vld [vmem:[%s5 + $0x130] sm:$0xff]
      %v2322 = vld [vmem:[%s5 + $0x138] sm:$0xff]
      %v2323 = vld [vmem:[%s5 + $0x140] sm:$0xf]
      %v2324 = vld [vmem:[%s5 + $0x144] sm:$0xff]
      %v2325 = vld [vmem:[%s5 + $0x14c] sm:$0xff]
      %v2326 = vld [vmem:[%s5 + $0x154] sm:$0xff]
      %v2327 = vld [vmem:[%s5 + $0x15c] sm:$0xff]
      %v2328 = vld [vmem:[%s5 + $0x164] sm:$0xf]
      %v2329 = vld [vmem:[%s5 + $0x168] sm:$0xff]
      %v2330 = vld [vmem:[%s5 + $0x170] sm:$0xff]
      %v2331 = vld [vmem:[%s5 + $0x178] sm:$0xff]
      %v2332 = vld [vmem:[%s5 + $0x180] sm:$0xff]
      %v2333 = vld [vmem:[%s5 + $0x188] sm:$0xf]
      %v2334 = vld [vmem:[%s5 + $0x18c] sm:$0xff]
      %v2335 = vld [vmem:[%s5 + $0x194] sm:$0xff]
      %v2336 = vld [vmem:[%s5 + $0x19c] sm:$0xff]
      %v2337 = vld [vmem:[%s5 + $0x1a4] sm:$0xff]
      %v2338 = vld [vmem:[%s5 + $0x1ac] sm:$0xf]
      %v2339 = vld [vmem:[%s5 + $0x1b0] sm:$0xff]
      %v2340 = vld [vmem:[%s5 + $0x1b8] sm:$0xff]
      %v2341 = vld [vmem:[%s5 + $0x1c0] sm:$0xff]
      %v2342 = vld [vmem:[%s5 + $0x1c8] sm:$0xff]
      %v2343 = vld [vmem:[%s5 + $0x1d0] sm:$0xf]
      %v2344 = vld [vmem:[%s5 + $0x1d4] sm:$0xff]
      %v2345 = vld [vmem:[%s5 + $0x1dc] sm:$0xff]
      %v2346 = vld [vmem:[%s5 + $0x1e4] sm:$0xff]
      %v2347 = vld [vmem:[%s5 + $0x1ec] sm:$0xff]
      %v2348 = vld [vmem:[%s5 + $0x1f4] sm:$0xf]
      %v2349 = vld [vmem:[%s5 + $0x1f8] sm:$0xff]
      %v2350 = vld [vmem:[%s5 + $0x200] sm:$0xff]
      %v2351 = vld [vmem:[%s5 + $0x208] sm:$0xff]
      %v2352 = vld [vmem:[%s5 + $0x210] sm:$0xff]
      %v2353 = vld [vmem:[%s5 + $0x218] sm:$0xf]
      %v2354 = vld [vmem:[%s5 + $0x21c] sm:$0xff]
      %v2355 = vld [vmem:[%s5 + $0x224] sm:$0xff]
      %v2356 = vld [vmem:[%s5 + $0x22c] sm:$0xff]
      %v2357 = vld [vmem:[%s5 + $0x234] sm:$0xff]
      %v2358 = vld [vmem:[%s5 + $0x23c] sm:$0xf]
      %v2439 = vunpack.c.l.b16 %v2279
      %v2440 = vunpack.c.h.b16 %v2279
      %v2441 = vunpack.c.l.b16 %v2280
      %v2442 = vunpack.c.h.b16 %v2280
      %v2443 = vunpack.c.l.b16 %v2281
      %v2444 = vunpack.c.h.b16 %v2281
      %v2445 = vunpack.c.l.b16 %v2282
      %v2446 = vunpack.c.h.b16 %v2282
      %v2447 = vunpack.c.l.b16 %v2283
      %v2448 = vunpack.c.l.b16 %v2284
      %v2449 = vunpack.c.h.b16 %v2284
      %v2450 = vunpack.c.l.b16 %v2285
      %v2451 = vunpack.c.h.b16 %v2285
      %v2452 = vunpack.c.l.b16 %v2286
      %v2453 = vunpack.c.h.b16 %v2286
      %v2454 = vunpack.c.l.b16 %v2287
      %v2455 = vunpack.c.h.b16 %v2287
      %v2456 = vunpack.c.l.b16 %v2288
      %v2457 = vunpack.c.l.b16 %v2289
      %v2458 = vunpack.c.h.b16 %v2289
      %v2459 = vunpack.c.l.b16 %v2290
      %v2460 = vunpack.c.h.b16 %v2290
      %v2461 = vunpack.c.l.b16 %v2291
      %v2462 = vunpack.c.h.b16 %v2291
      %v2463 = vunpack.c.l.b16 %v2292
      %v2464 = vunpack.c.h.b16 %v2292
      %v2465 = vunpack.c.l.b16 %v2293
      %v2466 = vunpack.c.l.b16 %v2294
      %v2467 = vunpack.c.h.b16 %v2294
      %v2468 = vunpack.c.l.b16 %v2295
      %v2469 = vunpack.c.h.b16 %v2295
      %v2470 = vunpack.c.l.b16 %v2296
      %v2471 = vunpack.c.h.b16 %v2296
      %v2472 = vunpack.c.l.b16 %v2297
      %v2473 = vunpack.c.h.b16 %v2297
      %v2474 = vunpack.c.l.b16 %v2298
      %v2475 = vunpack.c.l.b16 %v2299
      %v2476 = vunpack.c.h.b16 %v2299
      %v2477 = vunpack.c.l.b16 %v2300
      %v2478 = vunpack.c.h.b16 %v2300
      %v2479 = vunpack.c.l.b16 %v2301
      %v2480 = vunpack.c.h.b16 %v2301
      %v2481 = vunpack.c.l.b16 %v2302
      %v2482 = vunpack.c.h.b16 %v2302
      %v2483 = vunpack.c.l.b16 %v2303
      %v2484 = vunpack.c.l.b16 %v2304
      %v2485 = vunpack.c.h.b16 %v2304
      %v2486 = vunpack.c.l.b16 %v2305
      %v2487 = vunpack.c.h.b16 %v2305
      %v2488 = vunpack.c.l.b16 %v2306
      %v2489 = vunpack.c.h.b16 %v2306
      %v2490 = vunpack.c.l.b16 %v2307
      %v2491 = vunpack.c.h.b16 %v2307
      %v2492 = vunpack.c.l.b16 %v2308
      %v2493 = vunpack.c.l.b16 %v2309
      %v2494 = vunpack.c.h.b16 %v2309
      %v2495 = vunpack.c.l.b16 %v2310
      %v2496 = vunpack.c.h.b16 %v2310
      %v2497 = vunpack.c.l.b16 %v2311
      %v2498 = vunpack.c.h.b16 %v2311
      %v2499 = vunpack.c.l.b16 %v2312
      %v2500 = vunpack.c.h.b16 %v2312
      %v2501 = vunpack.c.l.b16 %v2313
      %v2502 = vunpack.c.l.b16 %v2314
      %v2503 = vunpack.c.h.b16 %v2314
      %v2504 = vunpack.c.l.b16 %v2315
      %v2505 = vunpack.c.h.b16 %v2315
      %v2506 = vunpack.c.l.b16 %v2316
      %v2507 = vunpack.c.h.b16 %v2316
      %v2508 = vunpack.c.l.b16 %v2317
      %v2509 = vunpack.c.h.b16 %v2317
      %v2510 = vunpack.c.l.b16 %v2318
      %v2511 = vunpack.c.l.b16 %v2319
      %v2512 = vunpack.c.h.b16 %v2319
      %v2513 = vunpack.c.l.b16 %v2320
      %v2514 = vunpack.c.h.b16 %v2320
      %v2515 = vunpack.c.l.b16 %v2321
      %v2516 = vunpack.c.h.b16 %v2321
      %v2517 = vunpack.c.l.b16 %v2322
      %v2518 = vunpack.c.h.b16 %v2322
      %v2519 = vunpack.c.l.b16 %v2323
      %v2520 = vunpack.c.l.b16 %v2324
      %v2521 = vunpack.c.h.b16 %v2324
      %v2522 = vunpack.c.l.b16 %v2325
      %v2523 = vunpack.c.h.b16 %v2325
      %v2524 = vunpack.c.l.b16 %v2326
      %v2525 = vunpack.c.h.b16 %v2326
      %v2526 = vunpack.c.l.b16 %v2327
      %v2527 = vunpack.c.h.b16 %v2327
      %v2528 = vunpack.c.l.b16 %v2328
      %v2529 = vunpack.c.l.b16 %v2329
      %v2530 = vunpack.c.h.b16 %v2329
      %v2531 = vunpack.c.l.b16 %v2330
      %v2532 = vunpack.c.h.b16 %v2330
      %v2533 = vunpack.c.l.b16 %v2331
      %v2534 = vunpack.c.h.b16 %v2331
      %v2535 = vunpack.c.l.b16 %v2332
      %v2536 = vunpack.c.h.b16 %v2332
      %v2537 = vunpack.c.l.b16 %v2333
      %v2538 = vunpack.c.l.b16 %v2334
      %v2539 = vunpack.c.h.b16 %v2334
      %v2540 = vunpack.c.l.b16 %v2335
      %v2541 = vunpack.c.h.b16 %v2335
      %v2542 = vunpack.c.l.b16 %v2336
      %v2543 = vunpack.c.h.b16 %v2336
      %v2544 = vunpack.c.l.b16 %v2337
      %v2545 = vunpack.c.h.b16 %v2337
      %v2546 = vunpack.c.l.b16 %v2338
      %v2547 = vunpack.c.l.b16 %v2339
      %v2548 = vunpack.c.h.b16 %v2339
      %v2549 = vunpack.c.l.b16 %v2340
      %v2550 = vunpack.c.h.b16 %v2340
      %v2551 = vunpack.c.l.b16 %v2341
      %v2552 = vunpack.c.h.b16 %v2341
      %v2553 = vunpack.c.l.b16 %v2342
      %v2554 = vunpack.c.h.b16 %v2342
      %v2555 = vunpack.c.l.b16 %v2343
      %v2556 = vunpack.c.l.b16 %v2344
      %v2557 = vunpack.c.h.b16 %v2344
      %v2558 = vunpack.c.l.b16 %v2345
      %v2559 = vunpack.c.h.b16 %v2345
      %v2560 = vunpack.c.l.b16 %v2346
      %v2561 = vunpack.c.h.b16 %v2346
      %v2562 = vunpack.c.l.b16 %v2347
      %v2563 = vunpack.c.h.b16 %v2347
      %v2564 = vunpack.c.l.b16 %v2348
      %v2565 = vunpack.c.l.b16 %v2349
      %v2566 = vunpack.c.h.b16 %v2349
      %v2567 = vunpack.c.l.b16 %v2350
      %v2568 = vunpack.c.h.b16 %v2350
      %v2569 = vunpack.c.l.b16 %v2351
      %v2570 = vunpack.c.h.b16 %v2351
      %v2571 = vunpack.c.l.b16 %v2352
      %v2572 = vunpack.c.h.b16 %v2352
      %v2573 = vunpack.c.l.b16 %v2353
      %v2574 = vunpack.c.l.b16 %v2354
      %v2575 = vunpack.c.h.b16 %v2354
      %v2576 = vunpack.c.l.b16 %v2355
      %v2577 = vunpack.c.h.b16 %v2355
      %v2578 = vunpack.c.l.b16 %v2356
      %v2579 = vunpack.c.h.b16 %v2356
      %v2580 = vunpack.c.l.b16 %v2357
      %v2581 = vunpack.c.h.b16 %v2357
      %v2582 = vunpack.c.l.b16 %v2358
      %v2583 = vpack.c.b16 %v2448, %v2439
      %v2584 = vpack.c.b16 %v2449, %v2440
      %v2585 = vpack.c.b16 %v2450, %v2441
      %v2586 = vpack.c.b16 %v2451, %v2442
      %v2587 = vpack.c.b16 %v2452, %v2443
      %v2588 = vpack.c.b16 %v2453, %v2444
      %v2589 = vpack.c.b16 %v2454, %v2445
      %v2590 = vpack.c.b16 %v2455, %v2446
      %v2591 = vpack.c.b16 %v2456, %v2447
      %v2592 = vpack.c.b16 %v2466, %v2457
      %v2593 = vpack.c.b16 %v2467, %v2458
      %v2594 = vpack.c.b16 %v2468, %v2459
      %v2595 = vpack.c.b16 %v2469, %v2460
      %v2596 = vpack.c.b16 %v2470, %v2461
      %v2597 = vpack.c.b16 %v2471, %v2462
      %v2598 = vpack.c.b16 %v2472, %v2463
      %v2599 = vpack.c.b16 %v2473, %v2464
      %v2600 = vpack.c.b16 %v2474, %v2465
      %v2601 = vpack.c.b16 %v2484, %v2475
      %v2602 = vpack.c.b16 %v2485, %v2476
      %v2603 = vpack.c.b16 %v2486, %v2477
      %v2604 = vpack.c.b16 %v2487, %v2478
      %v2605 = vpack.c.b16 %v2488, %v2479
      %v2606 = vpack.c.b16 %v2489, %v2480
      %v2607 = vpack.c.b16 %v2490, %v2481
      %v2608 = vpack.c.b16 %v2491, %v2482
      %v2609 = vpack.c.b16 %v2492, %v2483
      %v2610 = vpack.c.b16 %v2502, %v2493
      %v2611 = vpack.c.b16 %v2503, %v2494
      %v2612 = vpack.c.b16 %v2504, %v2495
      %v2613 = vpack.c.b16 %v2505, %v2496
      %v2614 = vpack.c.b16 %v2506, %v2497
      %v2615 = vpack.c.b16 %v2507, %v2498
      %v2616 = vpack.c.b16 %v2508, %v2499
      %v2617 = vpack.c.b16 %v2509, %v2500
      %v2618 = vpack.c.b16 %v2510, %v2501
      %v2619 = vpack.c.b16 %v2520, %v2511
      %v2620 = vpack.c.b16 %v2521, %v2512
      %v2621 = vpack.c.b16 %v2522, %v2513
      %v2622 = vpack.c.b16 %v2523, %v2514
      %v2623 = vpack.c.b16 %v2524, %v2515
      %v2624 = vpack.c.b16 %v2525, %v2516
      %v2625 = vpack.c.b16 %v2526, %v2517
      %v2626 = vpack.c.b16 %v2527, %v2518
      %v2627 = vpack.c.b16 %v2528, %v2519
      %v2628 = vpack.c.b16 %v2538, %v2529
      %v2629 = vpack.c.b16 %v2539, %v2530
      %v2630 = vpack.c.b16 %v2540, %v2531
      %v2631 = vpack.c.b16 %v2541, %v2532
      %v2632 = vpack.c.b16 %v2542, %v2533
      %v2633 = vpack.c.b16 %v2543, %v2534
      %v2634 = vpack.c.b16 %v2544, %v2535
      %v2635 = vpack.c.b16 %v2545, %v2536
      %v2636 = vpack.c.b16 %v2546, %v2537
      %v2637 = vpack.c.b16 %v2556, %v2547
      %v2638 = vpack.c.b16 %v2557, %v2548
      %v2639 = vpack.c.b16 %v2558, %v2549
      %v2640 = vpack.c.b16 %v2559, %v2550
      %v2641 = vpack.c.b16 %v2560, %v2551
      %v2642 = vpack.c.b16 %v2561, %v2552
      %v2643 = vpack.c.b16 %v2562, %v2553
      %v2644 = vpack.c.b16 %v2563, %v2554
      %v2645 = vpack.c.b16 %v2564, %v2555
      %v2646 = vpack.c.b16 %v2574, %v2565
      %v2647 = vpack.c.b16 %v2575, %v2566
      %v2648 = vpack.c.b16 %v2576, %v2567
      %v2649 = vpack.c.b16 %v2577, %v2568
      %v2650 = vpack.c.b16 %v2578, %v2569
      %v2651 = vpack.c.b16 %v2579, %v2570
      %v2652 = vpack.c.b16 %v2580, %v2571
      %v2653 = vpack.c.b16 %v2581, %v2572
      %v2654 = vpack.c.b16 %v2582, %v2573
      %2727 = vmatprep.subr.bf16.mxu0 %v2584
      %2728 = vmatpush1.bf16.msra.mxu0 %v2583
      %2729 = vmatprep.subr.bf16.mxu0 %v2593
      %2730 = vmatpush1.bf16.msra.mxu0 %v2592
      %2731 = vmatprep.subr.bf16.mxu0 %v2602
      %2732 = vmatpush1.bf16.msra.mxu0 %v2601
      %2733 = vmatprep.subr.bf16.mxu0 %v2611
      %2734 = vmatpush1.bf16.msra.mxu0 %v2610
      %2735 = vmatprep.subr.bf16.mxu0 %v2620
      %2736 = vmatpush1.bf16.msra.mxu0 %v2619
      %2737 = vmatprep.subr.bf16.mxu0 %v2629
      %2738 = vmatpush1.bf16.msra.mxu0 %v2628
      %2739 = vmatprep.subr.bf16.mxu0 %v2638
      %2740 = vmatpush1.bf16.msra.mxu0 %v2637
      %2741 = vmatprep.subr.bf16.mxu0 %v2647
      %2742 = vmatpush1.bf16.msra.mxu0 %v2646
      %2743 = vmatprep.subr.bf16.mxu0 0
      %2744 = vmatpush1.bf16.msra.mxu0 0
      %2745 = vmatprep.subr.bf16.mxu0 0
      %2746 = vmatpush1.bf16.msra.mxu0 0
      %2747 = vmatprep.subr.bf16.mxu0 0
      %2748 = vmatpush1.bf16.msra.mxu0 0
      %2749 = vmatprep.subr.bf16.mxu0 0
      %2750 = vmatpush1.bf16.msra.mxu0 0
      %2751 = vmatprep.subr.bf16.mxu0 0
      %2752 = vmatpush1.bf16.msra.mxu0 0
      %2753 = vmatprep.subr.bf16.mxu0 0
      %2754 = vmatpush1.bf16.msra.mxu0 0
      %2755 = vmatprep.subr.bf16.mxu0 0
      %2756 = vmatpush1.bf16.msra.mxu0 0
      %2757 = vmatprep.subr.bf16.mxu0 0
      %2758 = vmatpush1.bf16.msra.mxu0 0
      %2759 = vmatprep.mubr.bf16.mxu0 0
      %2760 = vmatmul.mubr.bf16.gmra.mrb[0].mxu0 %v2275
      %v2761 = vpop.f32.mrb[0].mxu0
      %v2762 = vadd.f32 0.0, %v2761
      %v2763 = vpop.f32.mrb[0].mxu0
      %v2764 = vadd.f32 0.0, %v2763
      %v2765 = vpop.f32.mrb[0].mxu0
      %v2766 = vadd.f32 0.0, %v2765
      %v2767 = vpop.f32.mrb[0].mxu0
      %v2768 = vadd.f32 0.0, %v2767
      %2769 = vmatprep.mubr.bf16.mxu0 0
      %2770 = vmatmul.mubr.bf16.gmra.mrb[0].mxu0 %v2276
      %v2771 = vpop.f32.mrb[0].mxu0
      %v2772 = vadd.f32 0.0, %v2771
      %v2773 = vpop.f32.mrb[0].mxu0
      %v2774 = vadd.f32 0.0, %v2773
      %v2775 = vpop.f32.mrb[0].mxu0
      %v2776 = vadd.f32 0.0, %v2775
      %v2777 = vpop.f32.mrb[0].mxu0
      %v2778 = vadd.f32 0.0, %v2777
      %2779 = vmatprep.mubr.bf16.mxu0 0
      %2780 = vmatmul.mubr.bf16.gmra.mrb[0].mxu0 %v2277
      %v2781 = vpop.f32.mrb[0].mxu0
      %v2782 = vadd.f32 0.0, %v2781
      %v2783 = vpop.f32.mrb[0].mxu0
      %v2784 = vadd.f32 0.0, %v2783
      %v2785 = vpop.f32.mrb[0].mxu0
      %v2786 = vpop.f32.mrb[0].mxu0
      %2787 = vmatprep.mubr.bf16.mxu0 0
      %2788 = vmatmul.mubr.bf16.gmra.mrb[0].mxu0 %v2278
      %v2789 = vpop.f32.mrb[0].mxu0
      %v2790 = vpop.f32.mrb[0].mxu0
      %v2791 = vpop.f32.mrb[0].mxu0
      %v2792 = vpop.f32.mrb[0].mxu0
      %2793 = vdwg.mxu0
      %2794 = vmatprep.subr.bf16.mxu0 %v2586
      %2795 = vmatpush1.bf16.msra.mxu0 %v2585
      %2796 = vmatprep.subr.bf16.mxu0 %v2595
      %2797 = vmatpush1.bf16.msra.mxu0 %v2594
      %2798 = vmatprep.subr.bf16.mxu0 %v2604
      %2799 = vmatpush1.bf16.msra.mxu0 %v2603
      %2800 = vmatprep.subr.bf16.mxu0 %v2613
      %2801 = vmatpush1.bf16.msra.mxu0 %v2612
      %2802 = vmatprep.subr.bf16.mxu0 %v2622
      %2803 = vmatpush1.bf16.msra.mxu0 %v2621
      %2804 = vmatprep.subr.bf16.mxu0 %v2631
      %2805 = vmatpush1.bf16.msra.mxu0 %v2630
      %2806 = vmatprep.subr.bf16.mxu0 %v2640
      %2807 = vmatpush1.bf16.msra.mxu0 %v2639
      %2808 = vmatprep.subr.bf16.mxu0 %v2649
      %2809 = vmatpush1.bf16.msra.mxu0 %v2648
      %2810 = vmatprep.subr.bf16.mxu0 0
      %2811 = vmatpush1.bf16.msra.mxu0 0
      %2812 = vmatprep.subr.bf16.mxu0 0
      %2813 = vmatpush1.bf16.msra.mxu0 0
      %2814 = vmatprep.subr.bf16.mxu0 0
      %2815 = vmatpush1.bf16.msra.mxu0 0
      %2816 = vmatprep.subr.bf16.mxu0 0
      %2817 = vmatpush1.bf16.msra.mxu0 0
      %2818 = vmatprep.subr.bf16.mxu0 0
      %2819 = vmatpush1.bf16.msra.mxu0 0
      %2820 = vmatprep.subr.bf16.mxu0 0
      %2821 = vmatpush1.bf16.msra.mxu0 0
      %2822 = vmatprep.subr.bf16.mxu0 0
      %2823 = vmatpush1.bf16.msra.mxu0 0
      %2824 = vmatprep.subr.bf16.mxu0 0
      %2825 = vmatpush1.bf16.msra.mxu0 0
      %2826 = vmatprep.mubr.bf16.mxu0 0
      %2827 = vmatmul.mubr.bf16.gmra.mrb[0].mxu0 %v2275
      %v2828 = vpop.f32.mrb[0].mxu0
      %v2829 = vadd.f32 0.0, %v2828
      %v2830 = vpop.f32.mrb[0].mxu0
      %v2831 = vadd.f32 0.0, %v2830
      %v2832 = vpop.f32.mrb[0].mxu0
      %v2833 = vadd.f32 0.0, %v2832
      %v2834 = vpop.f32.mrb[0].mxu0
      %v2835 = vadd.f32 0.0, %v2834
      %2836 = vmatprep.mubr.bf16.mxu0 0
      %2837 = vmatmul.mubr.bf16.gmra.mrb[0].mxu0 %v2276
      %v2838 = vpop.f32.mrb[0].mxu0
      %v2839 = vadd.f32 0.0, %v2838
      %v2840 = vpop.f32.mrb[0].mxu0
      %v2841 = vadd.f32 0.0, %v2840
      %v2842 = vpop.f32.mrb[0].mxu0
      %v2843 = vadd.f32 0.0, %v2842
      %v2844 = vpop.f32.mrb[0].mxu0
      %v2845 = vadd.f32 0.0, %v2844
      %2846 = vmatprep.mubr.bf16.mxu0 0
      %2847 = vmatmul.mubr.bf16.gmra.mrb[0].mxu0 %v2277
      %v2848 = vpop.f32.mrb[0].mxu0
      %v2849 = vadd.f32 0.0, %v2848
      %v2850 = vpop.f32.mrb[0].mxu0
      %v2851 = vadd.f32 0.0, %v2850
      %v2852 = vpop.f32.mrb[0].mxu0
      %v2853 = vpop.f32.mrb[0].mxu0
      %v2854 = vadd.f32 0.0, %v2853
      %2855 = vmatprep.mubr.bf16.mxu0 0
      %2856 = vmatmul.mubr.bf16.gmra.mrb[0].mxu0 %v2278
      %v2857 = vpop.f32.mrb[0].mxu0
      %v2858 = vpop.f32.mrb[0].mxu0
      %v2859 = vpop.f32.mrb[0].mxu0
      %v2860 = vpop.f32.mrb[0].mxu0
      %2861 = vdwg.mxu0
      %2862 = vmatprep.subr.bf16.mxu0 %v2588
      %2863 = vmatpush1.bf16.msra.mxu0 %v2587
      %2864 = vmatprep.subr.bf16.mxu0 %v2597
      %2865 = vmatpush1.bf16.msra.mxu0 %v2596
      %2866 = vmatprep.subr.bf16.mxu0 %v2606
      %2867 = vmatpush1.bf16.msra.mxu0 %v2605
      %2868 = vmatprep.subr.bf16.mxu0 %v2615
      %2869 = vmatpush1.bf16.msra.mxu0 %v2614
      %2870 = vmatprep.subr.bf16.mxu0 %v2624
      %2871 = vmatpush1.bf16.msra.mxu0 %v2623
      %2872 = vmatprep.subr.bf16.mxu0 %v2633
      %2873 = vmatpush1.bf16.msra.mxu0 %v2632
      %2874 = vmatprep.subr.bf16.mxu0 %v2642
      %2875 = vmatpush1.bf16.msra.mxu0 %v2641
      %2876 = vmatprep.subr.bf16.mxu0 %v2651
      %2877 = vmatpush1.bf16.msra.mxu0 %v2650
      %2878 = vmatprep.subr.bf16.mxu0 0
      %2879 = vmatpush1.bf16.msra.mxu0 0
      %2880 = vmatprep.subr.bf16.mxu0 0
      %2881 = vmatpush1.bf16.msra.mxu0 0
      %2882 = vmatprep.subr.bf16.mxu0 0
      %2883 = vmatpush1.bf16.msra.mxu0 0
      %2884 = vmatprep.subr.bf16.mxu0 0
      %2885 = vmatpush1.bf16.msra.mxu0 0
      %2886 = vmatprep.subr.bf16.mxu0 0
      %2887 = vmatpush1.bf16.msra.mxu0 0
      %2888 = vmatprep.subr.bf16.mxu0 0
      %2889 = vmatpush1.bf16.msra.mxu0 0
      %2890 = vmatprep.subr.bf16.mxu0 0
      %2891 = vmatpush1.bf16.msra.mxu0 0
      %2892 = vmatprep.subr.bf16.mxu0 0
      %2893 = vmatpush1.bf16.msra.mxu0 0
      %2894 = vmatprep.mubr.bf16.mxu0 0
      %2895 = vmatmul.mubr.bf16.gmra.mrb[0].mxu0 %v2275
      %v2896 = vpop.f32.mrb[0].mxu0
      %v2897 = vadd.f32 0.0, %v2896
      %v2898 = vpop.f32.mrb[0].mxu0
      %v2899 = vpop.f32.mrb[0].mxu0
      %v2900 = vadd.f32 0.0, %v2899
      %v2901 = vpop.f32.mrb[0].mxu0
      %v2902 = vadd.f32 0.0, %v2901
      %2903 = vmatprep.mubr.bf16.mxu0 0
      %2904 = vmatmul.mubr.bf16.gmra.mrb[0].mxu0 %v2276
      %v2905 = vpop.f32.mrb[0].mxu0
      %v2906 = vadd.f32 0.0, %v2905
      %v2907 = vpop.f32.mrb[0].mxu0
      %v2908 = vadd.f32 0.0, %v2907
      %v2909 = vpop.f32.mrb[0].mxu0
      %v2910 = vadd.f32 0.0, %v2909
      %v2911 = vpop.f32.mrb[0].mxu0
      %v2912 = vadd.f32 0.0, %v2911
      %2913 = vmatprep.mubr.bf16.mxu0 0
      %2914 = vmatmul.mubr.bf16.gmra.mrb[0].mxu0 %v2277
      %v2915 = vpop.f32.mrb[0].mxu0
      %v2916 = vadd.f32 0.0, %v2915
      %v2917 = vpop.f32.mrb[0].mxu0
      %v2918 = vadd.f32 0.0, %v2917
      %v2919 = vpop.f32.mrb[0].mxu0
      %v2920 = vadd.f32 0.0, %v2919
      %v2921 = vpop.f32.mrb[0].mxu0
      %v2922 = vadd.f32 0.0, %v2921
      %2923 = vmatprep.mubr.bf16.mxu0 0
      %2924 = vmatmul.mubr.bf16.gmra.mrb[0].mxu0 %v2278
      %v2925 = vpop.f32.mrb[0].mxu0
      %v2926 = vpop.f32.mrb[0].mxu0
      %v2927 = vpop.f32.mrb[0].mxu0
      %v2928 = vpop.f32.mrb[0].mxu0
      %2929 = vdwg.mxu0
      %2930 = vmatprep.subr.bf16.mxu0 %v2590
      %2931 = vmatpush1.bf16.msra.mxu0 %v2589
      %2932 = vmatprep.subr.bf16.mxu0 %v2599
      %2933 = vmatpush1.bf16.msra.mxu0 %v2598
      %2934 = vmatprep.subr.bf16.mxu0 %v2608
      %2935 = vmatpush1.bf16.msra.mxu0 %v2607
      %2936 = vmatprep.subr.bf16.mxu0 %v2617
      %2937 = vmatpush1.bf16.msra.mxu0 %v2616
      %2938 = vmatprep.subr.bf16.mxu0 %v2626
      %2939 = vmatpush1.bf16.msra.mxu0 %v2625
      %2940 = vmatprep.subr.bf16.mxu0 %v2635
      %2941 = vmatpush1.bf16.msra.mxu0 %v2634
      %2942 = vmatprep.subr.bf16.mxu0 %v2644
      %2943 = vmatpush1.bf16.msra.mxu0 %v2643
      %2944 = vmatprep.subr.bf16.mxu0 %v2653
      %2945 = vmatpush1.bf16.msra.mxu0 %v2652
      %2946 = vmatprep.subr.bf16.mxu0 0
      %2947 = vmatpush1.bf16.msra.mxu0 0
      %2948 = vmatprep.subr.bf16.mxu0 0
      %2949 = vmatpush1.bf16.msra.mxu0 0
      %2950 = vmatprep.subr.bf16.mxu0 0
      %2951 = vmatpush1.bf16.msra.mxu0 0
      %2952 = vmatprep.subr.bf16.mxu0 0
      %2953 = vmatpush1.bf16.msra.mxu0 0
      %2954 = vmatprep.subr.bf16.mxu0 0
      %2955 = vmatpush1.bf16.msra.mxu0 0
      %2956 = vmatprep.subr.bf16.mxu0 0
      %2957 = vmatpush1.bf16.msra.mxu0 0
      %2958 = vmatprep.subr.bf16.mxu0 0
      %2959 = vmatpush1.bf16.msra.mxu0 0
      %2960 = vmatprep.subr.bf16.mxu0 0
      %2961 = vmatpush1.bf16.msra.mxu0 0
      %2962 = vmatprep.mubr.bf16.mxu0 0
      %2963 = vmatmul.mubr.bf16.gmra.mrb[0].mxu0 %v2275
      %v2964 = vpop.f32.mrb[0].mxu0
      %v2965 = vpop.f32.mrb[0].mxu0
      %v2966 = vpop.f32.mrb[0].mxu0
      %v2967 = vadd.f32 0.0, %v2966
      %v2968 = vpop.f32.mrb[0].mxu0
      %v2969 = vadd.f32 0.0, %v2968
      %2970 = vmatprep.mubr.bf16.mxu0 0
      %2971 = vmatmul.mubr.bf16.gmra.mrb[0].mxu0 %v2276
      %v2972 = vpop.f32.mrb[0].mxu0
      %v2973 = vadd.f32 0.0, %v2972
      %v2974 = vpop.f32.mrb[0].mxu0
      %v2975 = vadd.f32 0.0, %v2974
      %v2976 = vpop.f32.mrb[0].mxu0
      %v2977 = vadd.f32 0.0, %v2976
      %v2978 = vpop.f32.mrb[0].mxu0
      %v2979 = vadd.f32 0.0, %v2978
      %2980 = vmatprep.mubr.bf16.mxu0 0
      %2981 = vmatmul.mubr.bf16.gmra.mrb[0].mxu0 %v2277
      %v2982 = vpop.f32.mrb[0].mxu0
      %v2983 = vadd.f32 0.0, %v2982
      %v2984 = vpop.f32.mrb[0].mxu0
      %v2985 = vadd.f32 0.0, %v2984
      %v2986 = vpop.f32.mrb[0].mxu0
      %v2987 = vadd.f32 0.0, %v2986
      %v2988 = vpop.f32.mrb[0].mxu0
      %v2989 = vadd.f32 0.0, %v2988
      %2990 = vmatprep.mubr.bf16.mxu0 0
      %2991 = vmatmul.mubr.bf16.gmra.mrb[0].mxu0 %v2278
      %v2992 = vpop.f32.mrb[0].mxu0
      %v2993 = vpop.f32.mrb[0].mxu0
      %v2994 = vadd.f32 0.0, %v2993
      %v2995 = vpop.f32.mrb[0].mxu0
      %v2996 = vpop.f32.mrb[0].mxu0
      %2997 = vdwg.mxu0
      %2998 = vmatprep.subr.bf16.mxu0 0
      %2999 = vmatpush1.bf16.msra.mxu0 %v2591
      %3000 = vmatprep.subr.bf16.mxu0 0
      %3001 = vmatpush1.bf16.msra.mxu0 %v2600
      %3002 = vmatprep.subr.bf16.mxu0 0
      %3003 = vmatpush1.bf16.msra.mxu0 %v2609
      %3004 = vmatprep.subr.bf16.mxu0 0
      %3005 = vmatpush1.bf16.msra.mxu0 %v2618
      %3006 = vmatprep.subr.bf16.mxu0 0
      %3007 = vmatpush1.bf16.msra.mxu0 %v2627
      %3008 = vmatprep.subr.bf16.mxu0 0
      %3009 = vmatpush1.bf16.msra.mxu0 %v2636
      %3010 = vmatprep.subr.bf16.mxu0 0
      %3011 = vmatpush1.bf16.msra.mxu0 %v2645
      %3012 = vmatprep.subr.bf16.mxu0 0
      %3013 = vmatpush1.bf16.msra.mxu0 %v2654
      %3014 = vmatprep.subr.bf16.mxu0 0
      %3015 = vmatpush1.bf16.msra.mxu0 0
      %3016 = vmatprep.subr.bf16.mxu0 0
      %3017 = vmatpush1.bf16.msra.mxu0 0
      %3018 = vmatprep.subr.bf16.mxu0 0
      %3019 = vmatpush1.bf16.msra.mxu0 0
      %3020 = vmatprep.subr.bf16.mxu0 0
      %3021 = vmatpush1.bf16.msra.mxu0 0
      %3022 = vmatprep.subr.bf16.mxu0 0
      %3023 = vmatpush1.bf16.msra.mxu0 0
      %3024 = vmatprep.subr.bf16.mxu0 0
      %3025 = vmatpush1.bf16.msra.mxu0 0
      %3026 = vmatprep.subr.bf16.mxu0 0
      %3027 = vmatpush1.bf16.msra.mxu0 0
      %3028 = vmatprep.subr.bf16.mxu0 0
      %3029 = vmatpush1.bf16.msra.mxu0 0
      %3030 = vmatprep.mubr.bf16.mxu0 0
      %3031 = vmatmul.mubr.bf16.gmra.mrb[0].mxu0 %v2275
      %v3032 = vpop.f32.mrb[0].mxu0
      %v3033 = vpop.f32.mrb[0].mxu0
      %v3034 = vpop.f32.mrb[0].mxu0
      %v3035 = vadd.f32 0.0, %v3034
      %v3036 = vpop.f32.mrb[0].mxu0
      %3037 = vmatprep.mubr.bf16.mxu0 0
      %3038 = vmatmul.mubr.bf16.gmra.mrb[0].mxu0 %v2276
      %v3039 = vpop.f32.mrb[0].mxu0
      %v3040 = vadd.f32 0.0, %v3039
      %v3041 = vpop.f32.mrb[0].mxu0
      %v3042 = vpop.f32.mrb[0].mxu0
      %v3043 = vadd.f32 0.0, %v3042
      %v3044 = vpop.f32.mrb[0].mxu0
      %3045 = vmatprep.mubr.bf16.mxu0 0
      %3046 = vmatmul.mubr.bf16.gmra.mrb[0].mxu0 %v2277
      %v3047 = vpop.f32.mrb[0].mxu0
      %v3048 = vadd.f32 0.0, %v3047
      %v3049 = vpop.f32.mrb[0].mxu0
      %v3050 = vpop.f32.mrb[0].mxu0
      %v3051 = vadd.f32 0.0, %v3050
      %v3052 = vpop.f32.mrb[0].mxu0
      %3053 = vmatprep.mubr.bf16.mxu0 0
      %3054 = vmatmul.mubr.bf16.gmra.mrb[0].mxu0 %v2278
      %v3055 = vpop.f32.mrb[0].mxu0
      %v3056 = vadd.f32 0.0, %v3055
      %v3057 = vpop.f32.mrb[0].mxu0
      %v3058 = vpop.f32.mrb[0].mxu0
      %v3059 = vpop.f32.mrb[0].mxu0
      %3060 = vdwg.mxu0
      %v3066 = vrot.slane %v2764, 1
      %v3067 = vrot.slane %v2768, 1
      %v3068 = vsel %vm1502, %v3066, %v3067
      %v3069 = vrot.slane %v2774, 1
      %v3070 = vsel %vm1502, %v3067, %v3069
      %v3071 = vrot.slane %v2778, 1
      %v3072 = vsel %vm1502, %v3069, %v3071
      %v3073 = vrot.slane %v2784, 1
      %v3074 = vsel %vm1502, %v3071, %v3073
      %v3080 = vadd.f32 %v2762, %v3068
      %v3081 = vadd.f32 %v2766, %v3070
      %v3082 = vadd.f32 %v2772, %v3072
      %v3083 = vadd.f32 %v2776, %v3074
      %v3084 = vadd.f32 %v2782, %v3073
      %vm3091 = vcmask 1043456
      %v3092 = vrot.slane %v2831, 4
      %v3093 = vrot.slane %v2835, 4
      %v3094 = vsel %vm3091, %v3092, %v3093
      %v3095 = vrot.slane %v2841, 4
      %v3096 = vsel %vm3091, %v3093, %v3095
      %v3097 = vrot.slane %v2845, 4
      %v3098 = vsel %vm3091, %v3095, %v3097
      %v3099 = vrot.slane %v2851, 4
      %v3100 = vsel %vm3091, %v3097, %v3099
      %v3101 = vrot.slane %v2854, 4
      %v3102 = vsel %vm3091, %v3099, %v3101
      %v3108 = vadd.f32 %v2829, %v3094
      %v3109 = vadd.f32 %v2833, %v3096
      %v3110 = vadd.f32 %v2839, %v3098
      %v3111 = vadd.f32 %v2843, %v3100
      %v3112 = vadd.f32 %v2849, %v3102
      %v3118 = vrot.slane %v2902, 1
      %v3119 = vrot.slane %v2908, 1
      %v3120 = vsel %vm1502, %v3118, %v3119
      %v3121 = vrot.slane %v2912, 1
      %v3122 = vsel %vm1502, %v3119, %v3121
      %v3123 = vrot.slane %v2918, 1
      %v3124 = vsel %vm1502, %v3121, %v3123
      %v3125 = vrot.slane %v2922, 1
      %v3126 = vsel %vm1502, %v3123, %v3125
      %v3133 = vadd.f32 %v2897, %v3118
      %v3134 = vadd.f32 %v2900, %v3120
      %v3135 = vadd.f32 %v2906, %v3122
      %v3136 = vadd.f32 %v2910, %v3124
      %v3137 = vadd.f32 %v2916, %v3126
      %v3138 = vadd.f32 %v2920, %v3125
      %v3145 = vrot.slane %v2969, 1
      %v3146 = vrot.slane %v2975, 1
      %v3147 = vsel %vm1502, %v3145, %v3146
      %v3148 = vrot.slane %v2979, 1
      %v3149 = vsel %vm1502, %v3146, %v3148
      %v3150 = vrot.slane %v2985, 1
      %v3151 = vsel %vm1502, %v3148, %v3150
      %v3152 = vrot.slane %v2989, 1
      %v3153 = vsel %vm1502, %v3150, %v3152
      %v3154 = vrot.slane %v2994, 1
      %v3155 = vsel %vm1502, %v3152, %v3154
      %v3161 = vadd.f32 %v2967, %v3147
      %v3162 = vadd.f32 %v2973, %v3149
      %v3163 = vadd.f32 %v2977, %v3151
      %v3164 = vadd.f32 %v2983, %v3153
      %v3165 = vadd.f32 %v2987, %v3155
      %v3171 = vrot.slane %v3108, 2
      %v3172 = vrot.slane %v3109, 2
      %v3173 = vsel %vm1711, %v3171, %v3172
      %v3174 = vrot.slane %v3110, 2
      %v3175 = vsel %vm1711, %v3172, %v3174
      %v3176 = vrot.slane %v3111, 2
      %v3177 = vsel %vm1711, %v3174, %v3176
      %v3178 = vrot.slane %v3112, 2
      %v3179 = vsel %vm1711, %v3176, %v3178
      %v3185 = vadd.f32 %v3080, %v3173
      %v3186 = vadd.f32 %v3081, %v3175
      %v3187 = vadd.f32 %v3082, %v3177
      %v3188 = vadd.f32 %v3083, %v3179
      %v3189 = vadd.f32 %v3084, %v3178
      %vm3195 = vcmask 1042432
      %v3196 = vrot.slane %v3161, 5
      %v3197 = vrot.slane %v3162, 5
      %v3198 = vsel %vm3195, %v3196, %v3197
      %v3199 = vrot.slane %v3163, 5
      %v3200 = vsel %vm3195, %v3197, %v3199
      %v3201 = vrot.slane %v3164, 5
      %v3202 = vsel %vm3195, %v3199, %v3201
      %v3203 = vrot.slane %v3165, 5
      %v3204 = vsel %vm3195, %v3201, %v3203
      %v3211 = vadd.f32 %v3133, %v3196
      %v3212 = vadd.f32 %v3134, %v3198
      %v3213 = vadd.f32 %v3135, %v3200
      %v3214 = vadd.f32 %v3136, %v3202
      %v3215 = vadd.f32 %v3137, %v3204
      %v3216 = vadd.f32 %v3138, %v3203
      %vm3223 = vcmask 1040384
      %v3224 = vrot.slane %v3211, 7
      %v3225 = vrot.slane %v3212, 7
      %v3226 = vsel %vm3223, %v3224, %v3225
      %v3227 = vrot.slane %v3213, 7
      %v3228 = vsel %vm3223, %v3225, %v3227
      %v3229 = vrot.slane %v3214, 7
      %v3230 = vsel %vm3223, %v3227, %v3229
      %v3231 = vrot.slane %v3215, 7
      %v3232 = vsel %vm3223, %v3229, %v3231
      %v3233 = vrot.slane %v3216, 7
      %v3234 = vsel %vm3223, %v3231, %v3233
      %v3240 = vadd.f32 %v3185, %v3226
      %v3241 = vadd.f32 %v3186, %v3228
      %v3242 = vadd.f32 %v3187, %v3230
      %v3243 = vadd.f32 %v3188, %v3232
      %v3244 = vadd.f32 %v3189, %v3234
      %v3251 = vrot.slane %v3035, 6
      %v3252 = vrot.slane %v3040, 6
      %v3253 = vsel %vm1906, %v3251, %v3252
      %v3254 = vrot.slane %v3043, 6
      %v3255 = vsel %vm1906, %v3252, %v3254
      %v3256 = vrot.slane %v3048, 6
      %v3257 = vsel %vm1906, %v3254, %v3256
      %v3258 = vrot.slane %v3051, 6
      %v3259 = vsel %vm1906, %v3256, %v3258
      %v3260 = vrot.slane %v3056, 6
      %v3261 = vsel %vm1906, %v3258, %v3260
      %v3267 = vadd.f32 %v3240, %v3253
      %v3268 = vadd.f32 %v3241, %v3255
      %v3269 = vadd.f32 %v3242, %v3257
      %v3270 = vadd.f32 %v3243, %v3259
      %v3271 = vadd.f32 %v3244, %v3261
      %v3272 = vld [vmem:[%s6] sm:$0x1]
      %v3274 = vlaneseq
      %v3275 = vshrl.u32 %v3274, 7
      %v3276 = vsub.s32 0, %v3275
      %v3277 = vrot.slane %v3272, %v3276
      %v3279 = vadd.f32 %v3267, %v3277
      %v3280 = vadd.f32 %v3268, %v3277
      %v3281 = vadd.f32 %v3269, %v3277
      %v3282 = vadd.f32 %v3270, %v3277
      %v3283 = vadd.f32 %v3271, %v3277
      %v3284 = vmax.f32 %v3279, 0.0
      %v3285 = vmax.f32 %v3280, 0.0
      %v3286 = vmax.f32 %v3281, 0.0
      %v3287 = vmax.f32 %v3282, 0.0
      %v3288 = vmax.f32 %v3283, 0.0
      %v3289 = vpack.c.bf16 %v3285, %v3284
      %v3290 = vpack.c.bf16 %v3287, %v3286
      %v3291 = vpack.c.bf16 %v3288, %v3288
      %v3292 = vld [vmem:[%s11] sm:$0xf]
      %vm3293 = vcmask 293888
      %v3295 = vsel %vm3293, %v3292, 0
      %v3298 = vsel %vm1906, %v3291, 0
      %3300 = vmatprep.subr.bf16.mxu0 0
      %3301 = vmatpush1.bf16.msra.mxu0 %v3289
      %3302 = vmatprep.subr.bf16.mxu0 0
      %3303 = vmatpush1.bf16.msra.mxu0 %v3290
      %3304 = vmatprep.subr.bf16.mxu0 0
      %3305 = vmatpush1.bf16.msra.mxu0 %v3298
      %3306 = vmatprep.subr.bf16.mxu0 0
      %3307 = vmatpush1.bf16.msra.mxu0 0
      %3308 = vmatprep.subr.bf16.mxu0 0
      %3309 = vmatpush1.bf16.msra.mxu0 0
      %3310 = vmatprep.subr.bf16.mxu0 0
      %3311 = vmatpush1.bf16.msra.mxu0 0
      %3312 = vmatprep.subr.bf16.mxu0 0
      %3313 = vmatpush1.bf16.msra.mxu0 0
      %3314 = vmatprep.subr.bf16.mxu0 0
      %3315 = vmatpush1.bf16.msra.mxu0 0
      %3316 = vmatprep.subr.bf16.mxu0 0
      %3317 = vmatpush1.bf16.msra.mxu0 0
      %3318 = vmatprep.subr.bf16.mxu0 0
      %3319 = vmatpush1.bf16.msra.mxu0 0
      %3320 = vmatprep.subr.bf16.mxu0 0
      %3321 = vmatpush1.bf16.msra.mxu0 0
      %3322 = vmatprep.subr.bf16.mxu0 0
      %3323 = vmatpush1.bf16.msra.mxu0 0
      %3324 = vmatprep.subr.bf16.mxu0 0
      %3325 = vmatpush1.bf16.msra.mxu0 0
      %3326 = vmatprep.subr.bf16.mxu0 0
      %3327 = vmatpush1.bf16.msra.mxu0 0
      %3328 = vmatprep.subr.bf16.mxu0 0
      %3329 = vmatpush1.bf16.msra.mxu0 0
      %3330 = vmatprep.subr.bf16.mxu0 0
      %3331 = vmatpush1.bf16.msra.mxu0 0
      %3332 = vmatprep.mubr.bf16.mxu0 0
      %3333 = vmatmul.mubr.bf16.gmra.mrb[0].mxu0 %v3295
      %v3334 = vpop.f32.mrb[0].mxu0
      %v3335 = vadd.f32 0.0, %v3334
      %v3336 = vpop.f32.mrb[0].mxu0
      %v3337 = vpop.f32.mrb[0].mxu0
      %v3338 = vpop.f32.mrb[0].mxu0
      %3339 = vdwg.mxu0
      %v3340 = vpack.c.bf16 %v3335, %v3335
      %v3341 = vld [vmem:[%s7] sm:$0xf]
      %v3342 = vld [vmem:[%s7 + $0x4] sm:$0xf]
      %v3343 = vld [vmem:[%s7 + $0x8] sm:$0xf]
      %v3344 = vld [vmem:[%s7 + $0xc] sm:$0xf]
      %v3345 = vld [vmem:[%s7 + $0x10] sm:$0xf]
      %v3346 = vld [vmem:[%s7 + $0x14] sm:$0xf]
      %v3347 = vld [vmem:[%s7 + $0x18] sm:$0xf]
      %v3348 = vld [vmem:[%s7 + $0x1c] sm:$0xf]
      %v3349 = vld [vmem:[%s7 + $0x20] sm:$0xf]
      %v3350 = vld [vmem:[%s7 + $0x24] sm:$0xf]
      %v3351 = vld [vmem:[%s7 + $0x28] sm:$0xf]
      %v3352 = vld [vmem:[%s7 + $0x2c] sm:$0xf]
      %v3353 = vld [vmem:[%s7 + $0x30] sm:$0xf]
      %v3354 = vld [vmem:[%s7 + $0x34] sm:$0xf]
      %v3355 = vld [vmem:[%s7 + $0x38] sm:$0xf]
      %v3356 = vld [vmem:[%s7 + $0x3c] sm:$0xf]
      %v3357 = vld [vmem:[%s8] sm:$0x1]
      %v3359 = vlaneseq
      %v3360 = vshrl.u32 %v3359, 7
      %v3361 = vsub.s32 0, %v3360
      %v3362 = vrot.slane %v3357, %v3361
      %v3380 = vunpack.c.l.b16 %v3341
      %v3381 = vunpack.c.l.b16 %v3342
      %v3382 = vunpack.c.l.b16 %v3343
      %v3383 = vunpack.c.l.b16 %v3344
      %v3384 = vunpack.c.l.b16 %v3345
      %v3385 = vunpack.c.l.b16 %v3346
      %v3386 = vunpack.c.l.b16 %v3347
      %v3387 = vunpack.c.l.b16 %v3348
      %v3388 = vunpack.c.l.b16 %v3349
      %v3389 = vunpack.c.l.b16 %v3350
      %v3390 = vunpack.c.l.b16 %v3351
      %v3391 = vunpack.c.l.b16 %v3352
      %v3392 = vunpack.c.l.b16 %v3353
      %v3393 = vunpack.c.l.b16 %v3354
      %v3394 = vunpack.c.l.b16 %v3355
      %v3395 = vunpack.c.l.b16 %v3356
      %v3396 = vpack.c.b16 %v3381, %v3380
      %v3397 = vpack.c.b16 %v3383, %v3382
      %v3398 = vpack.c.b16 %v3385, %v3384
      %v3399 = vpack.c.b16 %v3387, %v3386
      %v3400 = vpack.c.b16 %v3389, %v3388
      %v3401 = vpack.c.b16 %v3391, %v3390
      %v3402 = vpack.c.b16 %v3393, %v3392
      %v3403 = vpack.c.b16 %v3395, %v3394
      %3412 = vmatprep.subr.bf16.mxu0 0
      %3413 = vmatpush1.bf16.msra.mxu0 %v3396
      %3414 = vmatprep.subr.bf16.mxu0 0
      %3415 = vmatpush1.bf16.msra.mxu0 %v3397
      %3416 = vmatprep.subr.bf16.mxu0 0
      %3417 = vmatpush1.bf16.msra.mxu0 %v3398
      %3418 = vmatprep.subr.bf16.mxu0 0
      %3419 = vmatpush1.bf16.msra.mxu0 %v3399
      %3420 = vmatprep.subr.bf16.mxu0 0
      %3421 = vmatpush1.bf16.msra.mxu0 %v3400
      %3422 = vmatprep.subr.bf16.mxu0 0
      %3423 = vmatpush1.bf16.msra.mxu0 %v3401
      %3424 = vmatprep.subr.bf16.mxu0 0
      %3425 = vmatpush1.bf16.msra.mxu0 %v3402
      %3426 = vmatprep.subr.bf16.mxu0 0
      %3427 = vmatpush1.bf16.msra.mxu0 %v3403
      %3428 = vmatprep.subr.bf16.mxu0 0
      %3429 = vmatpush1.bf16.msra.mxu0 0
      %3430 = vmatprep.subr.bf16.mxu0 0
      %3431 = vmatpush1.bf16.msra.mxu0 0
      %3432 = vmatprep.subr.bf16.mxu0 0
      %3433 = vmatpush1.bf16.msra.mxu0 0
      %3434 = vmatprep.subr.bf16.mxu0 0
      %3435 = vmatpush1.bf16.msra.mxu0 0
      %3436 = vmatprep.subr.bf16.mxu0 0
      %3437 = vmatpush1.bf16.msra.mxu0 0
      %3438 = vmatprep.subr.bf16.mxu0 0
      %3439 = vmatpush1.bf16.msra.mxu0 0
      %3440 = vmatprep.subr.bf16.mxu0 0
      %3441 = vmatpush1.bf16.msra.mxu0 0
      %3442 = vmatprep.subr.bf16.mxu0 0
      %3443 = vmatpush1.bf16.msra.mxu0 0
      %3444 = vmatprep.mubr.bf16.mxu0 0
      %3445 = vmatmul.mubr.bf16.gmra.mrb[0].mxu0 %v3340
      %v3446 = vpop.f32.mrb[0].mxu0
      %v3447 = vadd.f32 %v3362, %v3446
      %v3448 = vpop.f32.mrb[0].mxu0
      %v3449 = vpop.f32.mrb[0].mxu0
      %v3450 = vpop.f32.mrb[0].mxu0
      %3451 = vdwg.mxu0
      %3452 = vst [vmem:[%s451] sm:$0xff] %v3447
      %p3453 = scmp.lt.s32.totalorder %s25, 1
      %s3454 = scalar_select %p3453, %s25, 1
      %s3455 = smul.addr %s3454, 2
      %s3456 = smul.addr %s3455, 8
      %s3457 = scalar_lea.vmem %s12, %s3456
      %p3458 = scmp.lt.s32.totalorder %s25, 1
      %s3459 = scalar_select %p3458, %s25, 1
      %s3460 = smul.addr %s3459, 8
      %s3461 = scalar_lea.vmem %s13, %s3460
      // Predicated region
      $region69: #{proposal_net_forward.3} parent=67 // pred_check
        %p3462 = pneg %p300
      $region70: #{proposal_net_forward.3} parent=67 // pred_check_branch
        %3464 = sbr.rel (%p3462) target = $region72
      $region71: #{proposal_net_forward.3} parent=67 // pred_region
        _
      $region72: #{proposal_net_forward.3} parent=67 // pred_fallthru
        _
      // Predicated region
      $region73: #{proposal_net_forward.3} parent=67 // pred_check
        %p3465 = pneg %p326
      $region74: #{proposal_net_forward.3} parent=67 // pred_check_branch
        %3467 = sbr.rel (%p3465) target = $region76
      $region75: #{proposal_net_forward.3} parent=67 // pred_region
        _
      $region76: #{proposal_net_forward.3} parent=67 // pred_fallthru
        _
    $region68: #{proposal_net_forward.3} parent=5 // pred_fallthru
      _
    %p3468 = scmp.le.s32.totalorder 2, %s20
    // Predicated region
    $region77: #{proposal_net_forward.3} parent=5 // pred_check
      %p3469 = pneg %p3468
    $region78: #{proposal_net_forward.3} parent=5 // pred_check_branch
      %3471 = sbr.rel (%p3469) target = $region80
    $region79: #{proposal_net_forward.3} parent=5 // pred_region
      %s3472 = ssub.s32 %s20, 2
      // Predicated region
      $region81: #{proposal_net_forward.3} parent=79 // pred_check
        %p3473 = pneg %p306
      $region82: #{proposal_net_forward.3} parent=79 // pred_check_branch
        %3475 = sbr.rel (%p3473) target = $region84
      $region83: #{proposal_net_forward.3} parent=79 // pred_region
        %p3476 = scmp.lt.s32.totalorder %s26, 1
        %s3477 = scalar_select %p3476, %s26, 1
        %s3478 = smul.addr %s3477, 2
        %s3479 = smul.addr %s3478, 8
        %s3480 = scalar_lea.vmem %s12, %s3479
      $region84: #{proposal_net_forward.3} parent=79 // pred_fallthru
        _
      // Predicated region
      $region85: #{proposal_net_forward.3} parent=79 // pred_check
        %p3481 = pneg %p332
      $region86: #{proposal_net_forward.3} parent=79 // pred_check_branch
        %3483 = sbr.rel (%p3481) target = $region88
      $region87: #{proposal_net_forward.3} parent=79 // pred_region
        %p3484 = scmp.lt.s32.totalorder %s26, 1
        %s3485 = scalar_select %p3484, %s26, 1
        %s3486 = smul.addr %s3485, 8
        %s3487 = scalar_lea.vmem %s13, %s3486
      $region88: #{proposal_net_forward.3} parent=79 // pred_fallthru
        _
    $region80: #{proposal_net_forward.3} parent=5 // pred_fallthru
      _
  $region6: #{proposal_net_forward.3} parent=0 // loop_footer
    %s24 = sadd.s32 1, %s20
  $region7: #{proposal_net_forward.3} parent=0 // loop_footer_branch
    %19 = sbr.rel target = $region3
  $region8: #{proposal_net_forward.3} parent=0 // loop_exit
    _

// kernel: proposal_net_forward.2
$region0: #{proposal_net_forward.2}
  #allocation0 [shape = 'u32[]', space=smem, size = 0x4, offset = 0x4, fixed_abs, tag = 'smem constant byte address 0x4 - core index']
  #allocation1 [shape = 'u32[144,128]{1,0:T(1,128)}', space=vmem, size = 0x12000, scoped, tag = 'internal scratch']
  #allocation2 [shape = 'f32[128,1152]{1,0:T(8,128)}', space=vmem, size = 0x90000, scoped, tag = 'scratch operand']
  %s0 = inlined_call_operand.vmem [shape: bf16[2,128,2048], index: 0, kind: input, shape index: {}]
  %s1 = inlined_call_operand.vmem [shape: bf16[2048,1152], index: 1, kind: input, shape index: {}]
  %s2 = inlined_call_operand.vmem [shape: f32[1,128], index: 2, kind: input, shape index: {}]
  %s3 = inlined_call_operand.vmem [shape: bf16[128,128], index: 3, kind: input, shape index: {}]
  %s4 = inlined_call_operand.vmem [shape: f32[1,128], index: 4, kind: input, shape index: {}]
  %s5 = inlined_call_operand.vmem [shape: bf16[128,100], index: 5, kind: input, shape index: {}]
  %s6 = inlined_call_operand.vmem [shape: bf16[64,100], index: 6, kind: input, shape index: {}]
  %s7 = inlined_call_operand.vmem [shape: bf16[2,128,128], index: 7, kind: output, shape index: {0}]
  %s8 = inlined_call_operand.vmem [shape: f32[2,64,128], index: 8, kind: output, shape index: {1}]
  %9 = xla_tuple %s7, %s8
  %s10 = sld [smem:[#allocation0]]
  $region100: #{proposal_net_forward.2} parent=0
    _
  %s12 = ssub.s32 1, %s10
  %s13 = scalar_select 0, %s12, %s10
  $region1: #{proposal_net_forward.2} parent=0
    #allocation3 [shape = 'u8[262144]{0}', space=vmem, size = 0x40000, scoped, tag = 'input window, operand 0']
    loop: start=0, step=1, limit=10
    $region2: #{proposal_net_forward.2} parent=1 // loop_pre_header
      _
    $region3: #{proposal_net_forward.2} parent=1 // loop_header
      %s15 = sphi 0, %s19
      %p16 = scmp.ge.s32.totalorder %s15, 10
      %s22 = sphi 0, %s34
      %s23 = sphi 0, %s30
      %s24 = sphi 0, %s22
      %s25 = sphi 0, %s23
      %s26 = sphi 0, %s24
      %s27 = sphi 0, %s25
      %s39 = sphi 0, %s41
      %s42 = sphi 0, %s39
      %s43 = sphi 0, %s42
      %s59 = sphi 0, %s43
      %s65 = sphi 0, %s67
      %s68 = sphi 0, %s65
      %s69 = sphi 0, %s68
      %s85 = sphi 0, %s69
      %s89 = sphi 0, %s89
      %s91 = sphi 0, %s89
      %s92 = sphi 0, %s91
      %s106 = sphi 0, %s92
      %s110 = sphi 0, %s110
      %s112 = sphi 0, %s110
      %s113 = sphi 0, %s112
      %s127 = sphi 0, %s113
      %s131 = sphi 0, %s131
      %s133 = sphi 0, %s131
      %s134 = sphi 0, %s133
      %s148 = sphi 0, %s134
      %s152 = sphi 0, %s152
      %s154 = sphi 0, %s152
      %s155 = sphi 0, %s154
      %s169 = sphi 0, %s155
      %s173 = sphi 0, %s173
      %s175 = sphi 0, %s173
      %s176 = sphi 0, %s175
      %s190 = sphi 0, %s176
      %s196 = sphi 0, %s198
      %s199 = sphi 0, %s196
      %s200 = sphi 0, %s199
      %s216 = sphi 0, %s200
      %s222 = sphi 0, %s224
      %s225 = sphi 0, %s222
      %s226 = sphi 0, %s225
      %s242 = sphi 0, %s226
    $region4: #{proposal_net_forward.2} parent=1 // loop_header_branch
      %18 = sbr.rel (%p16) target = $region8
    $region5: #{proposal_net_forward.2} parent=1 // loop_body
      %s20 = ssub.s32 %s15, 1
      %s21 = ssub.s32 %s15, 2
      %s28 = sadd.s32 1, %s23
      %p29 = scmp.ge.s32.totalorder %s28, 4
      %s30 = scalar_select %p29, 0, %s28
      %s31 = sadd.s32 1, %s22
      %s32 = scalar_select %p29, %s31, %s22
      %p33 = scmp.ge.s32.totalorder %s32, 2
      %s34 = scalar_select %p33, 0, %s32
      %s35 = ssub.s32 %s22, %s34
      %s36 = ssub.s32 %s23, %s30
      %s37 = sor.u32 %s35, %s36
      %p38 = scmp.eq.s32.totalorder %s37, 0
      %s40 = sadd.s32 %s39, 1
      %s41 = scalar_select %p38, %s39, %s40
      %p44 = pneg %p38
      %p45 = scmp.eq.s32.totalorder %s15, 7
      %p46 = por %p44, %p45
      %p47 = scmp.ne.s32.totalorder %s39, %s42
      %p48 = scmp.eq.s32.totalorder %s15, 0
      %p49 = por %p47, %p48
      %p50 = scmp.ne.s32.totalorder %s39, %s42
      %p51 = scmp.eq.s32.totalorder %s20, 7
      %p52 = por %p50, %p51
      %p53 = scmp.ne.s32.totalorder %s42, %s43
      %p54 = scmp.eq.s32.totalorder %s20, 0
      %p55 = por %p53, %p54
      %p56 = scmp.ne.s32.totalorder %s42, %s43
      %p57 = scmp.eq.s32.totalorder %s21, 7
      %p58 = por %p56, %p57
      %p60 = scmp.ne.s32.totalorder %s43, %s59
      %p61 = scmp.eq.s32.totalorder %s21, 0
      %p62 = por %p60, %p61
      %s63 = ssub.s32 %s23, %s30
      %p64 = scmp.eq.s32.totalorder %s63, 0
      %s66 = sadd.s32 %s65, 1
      %s67 = scalar_select %p64, %s65, %s66
      %p70 = pneg %p64
      %p71 = scmp.eq.s32.totalorder %s15, 7
      %p72 = por %p70, %p71
      %p73 = scmp.ne.s32.totalorder %s65, %s68
      %p74 = scmp.eq.s32.totalorder %s15, 0
      %p75 = por %p73, %p74
      %p76 = scmp.ne.s32.totalorder %s65, %s68
      %p77 = scmp.eq.s32.totalorder %s20, 7
      %p78 = por %p76, %p77
      %p79 = scmp.ne.s32.totalorder %s68, %s69
      %p80 = scmp.eq.s32.totalorder %s20, 0
      %p81 = por %p79, %p80
      %p82 = scmp.ne.s32.totalorder %s68, %s69
      %p83 = scmp.eq.s32.totalorder %s21, 7
      %p84 = por %p82, %p83
      %p86 = scmp.ne.s32.totalorder %s69, %s85
      %p87 = scmp.eq.s32.totalorder %s21, 0
      %p88 = por %p86, %p87
      %s90 = sadd.s32 %s89, 1
      %p93 = scmp.eq.s32.totalorder %s15, 7
      %p94 = scmp.ne.s32.totalorder %s89, %s91
      %p95 = scmp.eq.s32.totalorder %s15, 0
      %p96 = por %p94, %p95
      %p97 = scmp.ne.s32.totalorder %s89, %s91
      %p98 = scmp.eq.s32.totalorder %s20, 7
      %p99 = por %p97, %p98
      %p100 = scmp.ne.s32.totalorder %s91, %s92
      %p101 = scmp.eq.s32.totalorder %s20, 0
      %p102 = por %p100, %p101
      %p103 = scmp.ne.s32.totalorder %s91, %s92
      %p104 = scmp.eq.s32.totalorder %s21, 7
      %p105 = por %p103, %p104
      %p107 = scmp.ne.s32.totalorder %s92, %s106
      %p108 = scmp.eq.s32.totalorder %s21, 0
      %p109 = por %p107, %p108
      %s111 = sadd.s32 %s110, 1
      %p114 = scmp.eq.s32.totalorder %s15, 7
      %p115 = scmp.ne.s32.totalorder %s110, %s112
      %p116 = scmp.eq.s32.totalorder %s15, 0
      %p117 = por %p115, %p116
      %p118 = scmp.ne.s32.totalorder %s110, %s112
      %p119 = scmp.eq.s32.totalorder %s20, 7
      %p120 = por %p118, %p119
      %p121 = scmp.ne.s32.totalorder %s112, %s113
      %p122 = scmp.eq.s32.totalorder %s20, 0
      %p123 = por %p121, %p122
      %p124 = scmp.ne.s32.totalorder %s112, %s113
      %p125 = scmp.eq.s32.totalorder %s21, 7
      %p126 = por %p124, %p125
      %p128 = scmp.ne.s32.totalorder %s113, %s127
      %p129 = scmp.eq.s32.totalorder %s21, 0
      %p130 = por %p128, %p129
      %s132 = sadd.s32 %s131, 1
      %p135 = scmp.eq.s32.totalorder %s15, 7
      %p136 = scmp.ne.s32.totalorder %s131, %s133
      %p137 = scmp.eq.s32.totalorder %s15, 0
      %p138 = por %p136, %p137
      %p139 = scmp.ne.s32.totalorder %s131, %s133
      %p140 = scmp.eq.s32.totalorder %s20, 7
      %p141 = por %p139, %p140
      %p142 = scmp.ne.s32.totalorder %s133, %s134
      %p143 = scmp.eq.s32.totalorder %s20, 0
      %p144 = por %p142, %p143
      %p145 = scmp.ne.s32.totalorder %s133, %s134
      %p146 = scmp.eq.s32.totalorder %s21, 7
      %p147 = por %p145, %p146
      %p149 = scmp.ne.s32.totalorder %s134, %s148
      %p150 = scmp.eq.s32.totalorder %s21, 0
      %p151 = por %p149, %p150
      %s153 = sadd.s32 %s152, 1
      %p156 = scmp.eq.s32.totalorder %s15, 7
      %p157 = scmp.ne.s32.totalorder %s152, %s154
      %p158 = scmp.eq.s32.totalorder %s15, 0
      %p159 = por %p157, %p158
      %p160 = scmp.ne.s32.totalorder %s152, %s154
      %p161 = scmp.eq.s32.totalorder %s20, 7
      %p162 = por %p160, %p161
      %p163 = scmp.ne.s32.totalorder %s154, %s155
      %p164 = scmp.eq.s32.totalorder %s20, 0
      %p165 = por %p163, %p164
      %p166 = scmp.ne.s32.totalorder %s154, %s155
      %p167 = scmp.eq.s32.totalorder %s21, 7
      %p168 = por %p166, %p167
      %p170 = scmp.ne.s32.totalorder %s155, %s169
      %p171 = scmp.eq.s32.totalorder %s21, 0
      %p172 = por %p170, %p171
      %s174 = sadd.s32 %s173, 1
      %p177 = scmp.eq.s32.totalorder %s15, 7
      %p178 = scmp.ne.s32.totalorder %s173, %s175
      %p179 = scmp.eq.s32.totalorder %s15, 0
      %p180 = por %p178, %p179
      %p181 = scmp.ne.s32.totalorder %s173, %s175
      %p182 = scmp.eq.s32.totalorder %s20, 7
      %p183 = por %p181, %p182
      %p184 = scmp.ne.s32.totalorder %s175, %s176
      %p185 = scmp.eq.s32.totalorder %s20, 0
      %p186 = por %p184, %p185
      %p187 = scmp.ne.s32.totalorder %s175, %s176
      %p188 = scmp.eq.s32.totalorder %s21, 7
      %p189 = por %p187, %p188
      %p191 = scmp.ne.s32.totalorder %s176, %s190
      %p192 = scmp.eq.s32.totalorder %s21, 0
      %p193 = por %p191, %p192
      %s194 = ssub.s32 %s22, %s34
      %p195 = scmp.eq.s32.totalorder %s194, 0
      %s197 = sadd.s32 %s196, 1
      %s198 = scalar_select %p195, %s196, %s197
      %p201 = pneg %p195
      %p202 = scmp.eq.s32.totalorder %s15, 7
      %p203 = por %p201, %p202
      %p204 = scmp.ne.s32.totalorder %s196, %s199
      %p205 = scmp.eq.s32.totalorder %s15, 0
      %p206 = por %p204, %p205
      %p207 = scmp.ne.s32.totalorder %s196, %s199
      %p208 = scmp.eq.s32.totalorder %s20, 7
      %p209 = por %p207, %p208
      %p210 = scmp.ne.s32.totalorder %s199, %s200
      %p211 = scmp.eq.s32.totalorder %s20, 0
      %p212 = por %p210, %p211
      %p213 = scmp.ne.s32.totalorder %s199, %s200
      %p214 = scmp.eq.s32.totalorder %s21, 7
      %p215 = por %p213, %p214
      %p217 = scmp.ne.s32.totalorder %s200, %s216
      %p218 = scmp.eq.s32.totalorder %s21, 0
      %p219 = por %p217, %p218
      %s220 = ssub.s32 %s22, %s34
      %p221 = scmp.eq.s32.totalorder %s220, 0
      %s223 = sadd.s32 %s222, 1
      %s224 = scalar_select %p221, %s222, %s223
      %p227 = pneg %p221
      %p228 = scmp.eq.s32.totalorder %s15, 7
      %p229 = por %p227, %p228
      %p230 = scmp.ne.s32.totalorder %s222, %s225
      %p231 = scmp.eq.s32.totalorder %s15, 0
      %p232 = por %p230, %p231
      %p233 = scmp.ne.s32.totalorder %s222, %s225
      %p234 = scmp.eq.s32.totalorder %s20, 7
      %p235 = por %p233, %p234
      %p236 = scmp.ne.s32.totalorder %s225, %s226
      %p237 = scmp.eq.s32.totalorder %s20, 0
      %p238 = por %p236, %p237
      %p239 = scmp.ne.s32.totalorder %s225, %s226
      %p240 = scmp.eq.s32.totalorder %s21, 7
      %p241 = por %p239, %p240
      %p243 = scmp.ne.s32.totalorder %s226, %s242
      %p244 = scmp.eq.s32.totalorder %s21, 0
      %p245 = por %p243, %p244
      %p246 = scmp.le.s32.totalorder 1, %s15
      %p247 = scmp.lt.s32.totalorder %s15, 9
      %p248 = pnand %p246, %p247
      %p249 = pneg %p248
      // Predicated region
      $region9: #{proposal_net_forward.2} parent=5 // pred_check
        _
      $region10: #{proposal_net_forward.2} parent=5 // pred_check_branch
        %251 = sbr.rel (%p248) target = $region12
      $region11: #{proposal_net_forward.2} parent=5 // pred_region
        %s252 = ssub.s32 %s15, 1
        // Predicated region
        $region13: #{proposal_net_forward.2} parent=11 // pred_check
          %p253 = pneg %p102
        $region14: #{proposal_net_forward.2} parent=11 // pred_check_branch
          %255 = sbr.rel (%p253) target = $region16
        $region15: #{proposal_net_forward.2} parent=11 // pred_region
          _
        $region16: #{proposal_net_forward.2} parent=11 // pred_fallthru
          _
        // Predicated region
        $region17: #{proposal_net_forward.2} parent=11 // pred_check
          %p256 = pneg %p123
        $region18: #{proposal_net_forward.2} parent=11 // pred_check_branch
          %258 = sbr.rel (%p256) target = $region20
        $region19: #{proposal_net_forward.2} parent=11 // pred_region
          _
        $region20: #{proposal_net_forward.2} parent=11 // pred_fallthru
          _
        // Predicated region
        $region21: #{proposal_net_forward.2} parent=11 // pred_check
          %p259 = pneg %p144
        $region22: #{proposal_net_forward.2} parent=11 // pred_check_branch
          %261 = sbr.rel (%p259) target = $region24
        $region23: #{proposal_net_forward.2} parent=11 // pred_region
          _
        $region24: #{proposal_net_forward.2} parent=11 // pred_fallthru
          _
        // Predicated region
        $region25: #{proposal_net_forward.2} parent=11 // pred_check
          %p262 = pneg %p165
        $region26: #{proposal_net_forward.2} parent=11 // pred_check_branch
          %264 = sbr.rel (%p262) target = $region28
        $region27: #{proposal_net_forward.2} parent=11 // pred_region
          _
        $region28: #{proposal_net_forward.2} parent=11 // pred_fallthru
          _
        // Predicated region
        $region29: #{proposal_net_forward.2} parent=11 // pred_check
          %p265 = pneg %p186
        $region30: #{proposal_net_forward.2} parent=11 // pred_check_branch
          %267 = sbr.rel (%p265) target = $region32
        $region31: #{proposal_net_forward.2} parent=11 // pred_region
          _
        $region32: #{proposal_net_forward.2} parent=11 // pred_fallthru
          _
      $region12: #{proposal_net_forward.2} parent=5 // pred_fallthru
        _
      %p268 = scmp.lt.s32.totalorder %s15, 8
      // Predicated region
      $region33: #{proposal_net_forward.2} parent=5 // pred_check
        %p269 = pneg %p268
      $region34: #{proposal_net_forward.2} parent=5 // pred_check_branch
        %271 = sbr.rel (%p269) target = $region36
      $region35: #{proposal_net_forward.2} parent=5 // pred_region
        // Predicated region
        $region37: #{proposal_net_forward.2} parent=35 // pred_check
          %p272 = pneg %p49
        $region38: #{proposal_net_forward.2} parent=35 // pred_check_branch
          %274 = sbr.rel (%p272) target = $region40
        $region39: #{proposal_net_forward.2} parent=35 // pred_region
          %s275 = sand.u32 %s39, 1
          %s276 = sand.u32 %s39, 1
          %s277 = smul.addr %s276, 256
          %s278 = scalar_lea.vmem [#allocation3], %s277
          %s279 = smul.u32 4, %s23
          %s280 = smul.addr %s22, 256
          %s281 = sadd.s32 %s279, %s280
          %s282 = smul.addr %s281, 4
          %s283 = scalar_lea.vmem %s0, %s282
          // Predicated region
          $region41: #{proposal_net_forward.2} parent=39 // pred_check
            _
          $region42: #{proposal_net_forward.2} parent=39 // pred_check_branch
            %285 = sbr.rel (0) target = $region44
          $region43: #{proposal_net_forward.2} parent=39 // pred_region
            // Predicated region
            $region45: #{proposal_net_forward.2} parent=43 // pred_check
              _
            $region46: #{proposal_net_forward.2} parent=43 // pred_check_branch
              %287 = sbr.rel (0) target = $region48
            $region47: #{proposal_net_forward.2} parent=43 // pred_region
              loop: start=0, step=1, limit=1
              $region49: #{proposal_net_forward.2} parent=47 // loop_pre_header
                _
              $region50: #{proposal_net_forward.2} parent=47 // loop_header
                %s289 = sphi 0, %s293
                %p290 = scmp.ge.s32.totalorder %s289, 1
                %s294 = sphi %s283, %s283
                %s295 = sphi %s278, %s278
              $region51: #{proposal_net_forward.2} parent=47 // loop_header_branch
                %292 = sbr.rel (%p290) target = $region55
              $region52: #{proposal_net_forward.2} parent=47 // loop_body
                %v296 = vld [vmem:[%s294] sm:$0xff]
                %297 = vst [vmem:[%s295] sm:$0xff] %v296
                %v298 = vld [vmem:[%s294 + $0x8] sm:$0xff]
                %299 = vst [vmem:[%s295 + $0x8] sm:$0xff] %v298
                %v300 = vld [vmem:[%s294 + $0x40] sm:$0xff]
                %301 = vst [vmem:[%s295 + $0x10] sm:$0xff] %v300
                %v302 = vld [vmem:[%s294 + $0x48] sm:$0xff]
                %303 = vst [vmem:[%s295 + $0x18] sm:$0xff] %v302
                %v304 = vld [vmem:[%s294 + $0x80] sm:$0xff]
                %305 = vst [vmem:[%s295 + $0x20] sm:$0xff] %v304
                %v306 = vld [vmem:[%s294 + $0x88] sm:$0xff]
                %307 = vst [vmem:[%s295 + $0x28] sm:$0xff] %v306
                %v308 = vld [vmem:[%s294 + $0xc0] sm:$0xff]
                %309 = vst [vmem:[%s295 + $0x30] sm:$0xff] %v308
                %v310 = vld [vmem:[%s294 + $0xc8] sm:$0xff]
                %311 = vst [vmem:[%s295 + $0x38] sm:$0xff] %v310
                %v312 = vld [vmem:[%s294 + $0x100] sm:$0xff]
                %313 = vst [vmem:[%s295 + $0x40] sm:$0xff] %v312
                %v314 = vld [vmem:[%s294 + $0x108] sm:$0xff]
                %315 = vst [vmem:[%s295 + $0x48] sm:$0xff] %v314
                %v316 = vld [vmem:[%s294 + $0x140] sm:$0xff]
                %317 = vst [vmem:[%s295 + $0x50] sm:$0xff] %v316
                %v318 = vld [vmem:[%s294 + $0x148] sm:$0xff]
                %319 = vst [vmem:[%s295 + $0x58] sm:$0xff] %v318
                %v320 = vld [vmem:[%s294 + $0x180] sm:$0xff]
                %321 = vst [vmem:[%s295 + $0x60] sm:$0xff] %v320
                %v322 = vld [vmem:[%s294 + $0x188] sm:$0xff]
                %323 = vst [vmem:[%s295 + $0x68] sm:$0xff] %v322
                %v324 = vld [vmem:[%s294 + $0x1c0] sm:$0xff]
                %325 = vst [vmem:[%s295 + $0x70] sm:$0xff] %v324
                %v326 = vld [vmem:[%s294 + $0x1c8] sm:$0xff]
                %327 = vst [vmem:[%s295 + $0x78] sm:$0xff] %v326
                %v328 = vld [vmem:[%s294 + $0x200] sm:$0xff]
                %329 = vst [vmem:[%s295 + $0x80] sm:$0xff] %v328
                %v330 = vld [vmem:[%s294 + $0x208] sm:$0xff]
                %331 = vst [vmem:[%s295 + $0x88] sm:$0xff] %v330
                %v332 = vld [vmem:[%s294 + $0x240] sm:$0xff]
                %333 = vst [vmem:[%s295 + $0x90] sm:$0xff] %v332
                %v334 = vld [vmem:[%s294 + $0x248] sm:$0xff]
                %335 = vst [vmem:[%s295 + $0x98] sm:$0xff] %v334
                %v336 = vld [vmem:[%s294 + $0x280] sm:$0xff]
                %337 = vst [vmem:[%s295 + $0xa0] sm:$0xff] %v336
                %v338 = vld [vmem:[%s294 + $0x288] sm:$0xff]
                %339 = vst [vmem:[%s295 + $0xa8] sm:$0xff] %v338
                %v340 = vld [vmem:[%s294 + $0x2c0] sm:$0xff]
                %341 = vst [vmem:[%s295 + $0xb0] sm:$0xff] %v340
                %v342 = vld [vmem:[%s294 + $0x2c8] sm:$0xff]
                %343 = vst [vmem:[%s295 + $0xb8] sm:$0xff] %v342
                %v344 = vld [vmem:[%s294 + $0x300] sm:$0xff]
                %345 = vst [vmem:[%s295 + $0xc0] sm:$0xff] %v344
                %v346 = vld [vmem:[%s294 + $0x308] sm:$0xff]
                %347 = vst [vmem:[%s295 + $0xc8] sm:$0xff] %v346
                %v348 = vld [vmem:[%s294 + $0x340] sm:$0xff]
                %349 = vst [vmem:[%s295 + $0xd0] sm:$0xff] %v348
                %v350 = vld [vmem:[%s294 + $0x348] sm:$0xff]
                %351 = vst [vmem:[%s295 + $0xd8] sm:$0xff] %v350
                %v352 = vld [vmem:[%s294 + $0x380] sm:$0xff]
                %353 = vst [vmem:[%s295 + $0xe0] sm:$0xff] %v352
                %v354 = vld [vmem:[%s294 + $0x388] sm:$0xff]
                %355 = vst [vmem:[%s295 + $0xe8] sm:$0xff] %v354
                %v356 = vld [vmem:[%s294 + $0x3c0] sm:$0xff]
                %357 = vst [vmem:[%s295 + $0xf0] sm:$0xff] %v356
                %v358 = vld [vmem:[%s294 + $0x3c8] sm:$0xff]
                %359 = vst [vmem:[%s295 + $0xf8] sm:$0xff] %v358
              $region53: #{proposal_net_forward.2} parent=47 // loop_footer
                %s293 = sadd.s32 1, %s289
              $region54: #{proposal_net_forward.2} parent=47 // loop_footer_branch
                %288 = sbr.rel target = $region50
              $region55: #{proposal_net_forward.2} parent=47 // loop_exit
                _
            $region48: #{proposal_net_forward.2} parent=43 // pred_fallthru
              _
            // Predicated region
            $region56: #{proposal_net_forward.2} parent=43 // pred_check
              _
            $region57: #{proposal_net_forward.2} parent=43 // pred_check_branch
              %361 = sbr.rel target = $region59
            $region58: #{proposal_net_forward.2} parent=43 // pred_region
              _
            $region59: #{proposal_net_forward.2} parent=43 // pred_fallthru
              _
          $region44: #{proposal_net_forward.2} parent=39 // pred_fallthru
            _
          %362 = vnop
        $region40: #{proposal_net_forward.2} parent=35 // pred_fallthru
          _
        // Predicated region
        $region60: #{proposal_net_forward.2} parent=35 // pred_check
          %p363 = pneg %p75
        $region61: #{proposal_net_forward.2} parent=35 // pred_check_branch
          %365 = sbr.rel (%p363) target = $region63
        $region62: #{proposal_net_forward.2} parent=35 // pred_region
          %s366 = smul.u32 64, %s23
          %p367 = scmp.lt.s32.totalorder %s366, 255
          %s368 = scalar_select %p367, %s366, 255
          %s369 = smul.addr %s368, 9
          %s370 = smul.addr %s369, 4
          %s371 = scalar_lea.vmem %s1, %s370
          %s372 = smul.u32 64, %s23
        $region63: #{proposal_net_forward.2} parent=35 // pred_fallthru
          _
      $region36: #{proposal_net_forward.2} parent=5 // pred_fallthru
        _
      %p373 = scmp.le.s32.totalorder 1, %s15
      %p374 = scmp.lt.s32.totalorder %s15, 9
      %p375 = pnand %p373, %p374
      %p376 = pneg %p375
      // Predicated region
      $region64: #{proposal_net_forward.2} parent=5 // pred_check
        _
      $region65: #{proposal_net_forward.2} parent=5 // pred_check_branch
        %378 = sbr.rel (%p375) target = $region67
      $region66: #{proposal_net_forward.2} parent=5 // pred_region
        %s379 = ssub.s32 %s15, 1
        %s380 = sand.u32 %s42, 1
        %s381 = sand.u32 %s42, 1
        %s382 = smul.addr %s381, 256
        %s383 = scalar_lea.vmem [#allocation3], %s382
        // Predicated region
        $region68: #{proposal_net_forward.2} parent=66 // pred_check
          %p384 = pneg %p55
        $region69: #{proposal_net_forward.2} parent=66 // pred_check_branch
          %386 = sbr.rel (%p384) target = $region71
        $region70: #{proposal_net_forward.2} parent=66 // pred_region
          _
        $region71: #{proposal_net_forward.2} parent=66 // pred_fallthru
          _
        %s387 = sand.u32 %s42, 1
        %s388 = sand.u32 %s42, 1
        %s389 = smul.addr %s388, 256
        %s390 = scalar_lea.vmem [#allocation3], %s389
        %p391 = pneg %p55
        %p392 = pneg %p52
        %s393 = smul.u32 64, %s25
        %p394 = scmp.lt.s32.totalorder %s393, 255
        %s395 = scalar_select %p394, %s393, 255
        %s396 = smul.addr %s395, 9
        %s397 = smul.addr %s396, 4
        %s398 = scalar_lea.vmem %s1, %s397
        %p399 = pneg %p81
        %p400 = pneg %p78
        %p401 = pneg %p102
        %p402 = pneg %p99
        %p403 = pneg %p123
        %p404 = pneg %p120
        %p405 = pneg %p144
        %p406 = pneg %p141
        %p407 = pneg %p165
        %p408 = pneg %p162
        %p409 = pneg %p186
        %p410 = pneg %p183
        %p411 = pneg %p212
        %p412 = pneg %p209
        %p413 = scmp.lt.s32.totalorder %s24, 1
        %s414 = scalar_select %p413, %s24, 1
        %s415 = smul.addr %s414, 16
        %s416 = smul.addr %s415, 4
        %s417 = scalar_lea.vmem %s7, %s416
        %p418 = pneg %p238
        %p419 = pneg %p235
        %p420 = scmp.lt.s32.totalorder %s24, 1
        %s421 = scalar_select %p420, %s24, 1
        %s422 = smul.addr %s421, 8
        %s423 = smul.addr %s422, 8
        %s424 = scalar_lea.vmem %s8, %s423
        %s425 = smul.u32 4, %s25
        %s426 = smul.u32 64, %s25
        %p427 = scmp.lt.s32.totalorder %s426, 255
        %s428 = scalar_select %p427, %s426, 255
        %s429 = smul.addr %s428, 9
        %s430 = smul.addr %s429, 4
        %s431 = scalar_lea.vmem %s1, %s430
        %s432 = smul.u32 64, %s25
        %p433 = scmp.lt.s32.totalorder %s24, 1
        %s434 = scalar_select %p433, %s24, 1
        %s435 = smul.addr %s434, 16
        %s436 = smul.addr %s435, 4
        %s437 = scalar_lea.vmem %s7, %s436
        %p438 = scmp.lt.s32.totalorder %s24, 1
        %s439 = scalar_select %p438, %s24, 1
        %s440 = smul.addr %s439, 8
        %s441 = smul.addr %s440, 8
        %s442 = scalar_lea.vmem %s8, %s441
        %p444 = scmp.eq.s32.totalorder %s25, 0
        // Predicated region
        $region72: #{proposal_net_forward.2} parent=66 // pred_check
          %p445 = pneg %p444
        $region73: #{proposal_net_forward.2} parent=66 // pred_check_branch
          %447 = sbr.rel (%p445) target = $region75
        $region74: #{proposal_net_forward.2} parent=66 // pred_region
          %448 = vst [vmem:[#allocation2] sm:$0xff] 0.0
          %449 = vst [vmem:[#allocation2 + $0x8] sm:$0xff] 0.0
          %450 = vst [vmem:[#allocation2 + $0x10] sm:$0xff] 0.0
          %451 = vst [vmem:[#allocation2 + $0x18] sm:$0xff] 0.0
          %452 = vst [vmem:[#allocation2 + $0x20] sm:$0xff] 0.0
          %453 = vst [vmem:[#allocation2 + $0x28] sm:$0xff] 0.0
          %454 = vst [vmem:[#allocation2 + $0x30] sm:$0xff] 0.0
          %455 = vst [vmem:[#allocation2 + $0x38] sm:$0xff] 0.0
          %456 = vst [vmem:[#allocation2 + $0x40] sm:$0xff] 0.0
          %457 = vst [vmem:[#allocation2 + $0x48] sm:$0xff] 0.0
          %458 = vst [vmem:[#allocation2 + $0x50] sm:$0xff] 0.0
          %459 = vst [vmem:[#allocation2 + $0x58] sm:$0xff] 0.0
          %460 = vst [vmem:[#allocation2 + $0x60] sm:$0xff] 0.0
          %461 = vst [vmem:[#allocation2 + $0x68] sm:$0xff] 0.0
          %462 = vst [vmem:[#allocation2 + $0x70] sm:$0xff] 0.0
          %463 = vst [vmem:[#allocation2 + $0x78] sm:$0xff] 0.0
          %464 = vst [vmem:[#allocation2 + $0x80] sm:$0xff] 0.0
          %465 = vst [vmem:[#allocation2 + $0x88] sm:$0xff] 0.0
          %466 = vst [vmem:[#allocation2 + $0x90] sm:$0xff] 0.0
          %467 = vst [vmem:[#allocation2 + $0x98] sm:$0xff] 0.0
          %468 = vst [vmem:[#allocation2 + $0xa0] sm:$0xff] 0.0
          %469 = vst [vmem:[#allocation2 + $0xa8] sm:$0xff] 0.0
          %470 = vst [vmem:[#allocation2 + $0xb0] sm:$0xff] 0.0
          %471 = vst [vmem:[#allocation2 + $0xb8] sm:$0xff] 0.0
          %472 = vst [vmem:[#allocation2 + $0xc0] sm:$0xff] 0.0
          %473 = vst [vmem:[#allocation2 + $0xc8] sm:$0xff] 0.0
          %474 = vst [vmem:[#allocation2 + $0xd0] sm:$0xff] 0.0
          %475 = vst [vmem:[#allocation2 + $0xd8] sm:$0xff] 0.0
          %476 = vst [vmem:[#allocation2 + $0xe0] sm:$0xff] 0.0
          %477 = vst [vmem:[#allocation2 + $0xe8] sm:$0xff] 0.0
          %478 = vst [vmem:[#allocation2 + $0xf0] sm:$0xff] 0.0
          %479 = vst [vmem:[#allocation2 + $0xf8] sm:$0xff] 0.0
          %480 = vst [vmem:[#allocation2 + $0x100] sm:$0xff] 0.0
          %481 = vst [vmem:[#allocation2 + $0x108] sm:$0xff] 0.0
          %482 = vst [vmem:[#allocation2 + $0x110] sm:$0xff] 0.0
          %483 = vst [vmem:[#allocation2 + $0x118] sm:$0xff] 0.0
          %484 = vst [vmem:[#allocation2 + $0x120] sm:$0xff] 0.0
          %485 = vst [vmem:[#allocation2 + $0x128] sm:$0xff] 0.0
          %486 = vst [vmem:[#allocation2 + $0x130] sm:$0xff] 0.0
          %487 = vst [vmem:[#allocation2 + $0x138] sm:$0xff] 0.0
          %488 = vst [vmem:[#allocation2 + $0x140] sm:$0xff] 0.0
          %489 = vst [vmem:[#allocation2 + $0x148] sm:$0xff] 0.0
          %490 = vst [vmem:[#allocation2 + $0x150] sm:$0xff] 0.0
          %491 = vst [vmem:[#allocation2 + $0x158] sm:$0xff] 0.0
          %492 = vst [vmem:[#allocation2 + $0x160] sm:$0xff] 0.0
          %493 = vst [vmem:[#allocation2 + $0x168] sm:$0xff] 0.0
          %494 = vst [vmem:[#allocation2 + $0x170] sm:$0xff] 0.0
          %495 = vst [vmem:[#allocation2 + $0x178] sm:$0xff] 0.0
          %496 = vst [vmem:[#allocation2 + $0x180] sm:$0xff] 0.0
          %497 = vst [vmem:[#allocation2 + $0x188] sm:$0xff] 0.0
          %498 = vst [vmem:[#allocation2 + $0x190] sm:$0xff] 0.0
          %499 = vst [vmem:[#allocation2 + $0x198] sm:$0xff] 0.0
          %500 = vst [vmem:[#allocation2 + $0x1a0] sm:$0xff] 0.0
          %501 = vst [vmem:[#allocation2 + $0x1a8] sm:$0xff] 0.0
          %502 = vst [vmem:[#allocation2 + $0x1b0] sm:$0xff] 0.0
          %503 = vst [vmem:[#allocation2 + $0x1b8] sm:$0xff] 0.0
          %504 = vst [vmem:[#allocation2 + $0x1c0] sm:$0xff] 0.0
          %505 = vst [vmem:[#allocation2 + $0x1c8] sm:$0xff] 0.0
          %506 = vst [vmem:[#allocation2 + $0x1d0] sm:$0xff] 0.0
          %507 = vst [vmem:[#allocation2 + $0x1d8] sm:$0xff] 0.0
          %508 = vst [vmem:[#allocation2 + $0x1e0] sm:$0xff] 0.0
          %509 = vst [vmem:[#allocation2 + $0x1e8] sm:$0xff] 0.0
          %510 = vst [vmem:[#allocation2 + $0x1f0] sm:$0xff] 0.0
          %511 = vst [vmem:[#allocation2 + $0x1f8] sm:$0xff] 0.0
          %512 = vst [vmem:[#allocation2 + $0x200] sm:$0xff] 0.0
          %513 = vst [vmem:[#allocation2 + $0x208] sm:$0xff] 0.0
          %514 = vst [vmem:[#allocation2 + $0x210] sm:$0xff] 0.0
          %515 = vst [vmem:[#allocation2 + $0x218] sm:$0xff] 0.0
          %516 = vst [vmem:[#allocation2 + $0x220] sm:$0xff] 0.0
          %517 = vst [vmem:[#allocation2 + $0x228] sm:$0xff] 0.0
          %518 = vst [vmem:[#allocation2 + $0x230] sm:$0xff] 0.0
          %519 = vst [vmem:[#allocation2 + $0x238] sm:$0xff] 0.0
          %520 = vst [vmem:[#allocation2 + $0x240] sm:$0xff] 0.0
          %521 = vst [vmem:[#allocation2 + $0x248] sm:$0xff] 0.0
          %522 = vst [vmem:[#allocation2 + $0x250] sm:$0xff] 0.0
          %523 = vst [vmem:[#allocation2 + $0x258] sm:$0xff] 0.0
          %524 = vst [vmem:[#allocation2 + $0x260] sm:$0xff] 0.0
          %525 = vst [vmem:[#allocation2 + $0x268] sm:$0xff] 0.0
          %526 = vst [vmem:[#allocation2 + $0x270] sm:$0xff] 0.0
          %527 = vst [vmem:[#allocation2 + $0x278] sm:$0xff] 0.0
          %528 = vst [vmem:[#allocation2 + $0x280] sm:$0xff] 0.0
          %529 = vst [vmem:[#allocation2 + $0x288] sm:$0xff] 0.0
          %530 = vst [vmem:[#allocation2 + $0x290] sm:$0xff] 0.0
          %531 = vst [vmem:[#allocation2 + $0x298] sm:$0xff] 0.0
          %532 = vst [vmem:[#allocation2 + $0x2a0] sm:$0xff] 0.0
          %533 = vst [vmem:[#allocation2 + $0x2a8] sm:$0xff] 0.0
          %534 = vst [vmem:[#allocation2 + $0x2b0] sm:$0xff] 0.0
          %535 = vst [vmem:[#allocation2 + $0x2b8] sm:$0xff] 0.0
          %536 = vst [vmem:[#allocation2 + $0x2c0] sm:$0xff] 0.0
          %537 = vst [vmem:[#allocation2 + $0x2c8] sm:$0xff] 0.0
          %538 = vst [vmem:[#allocation2 + $0x2d0] sm:$0xff] 0.0
          %539 = vst [vmem:[#allocation2 + $0x2d8] sm:$0xff] 0.0
          %540 = vst [vmem:[#allocation2 + $0x2e0] sm:$0xff] 0.0
          %541 = vst [vmem:[#allocation2 + $0x2e8] sm:$0xff] 0.0
          %542 = vst [vmem:[#allocation2 + $0x2f0] sm:$0xff] 0.0
          %543 = vst [vmem:[#allocation2 + $0x2f8] sm:$0xff] 0.0
          %544 = vst [vmem:[#allocation2 + $0x300] sm:$0xff] 0.0
          %545 = vst [vmem:[#allocation2 + $0x308] sm:$0xff] 0.0
          %546 = vst [vmem:[#allocation2 + $0x310] sm:$0xff] 0.0
          %547 = vst [vmem:[#allocation2 + $0x318] sm:$0xff] 0.0
          %548 = vst [vmem:[#allocation2 + $0x320] sm:$0xff] 0.0
          %549 = vst [vmem:[#allocation2 + $0x328] sm:$0xff] 0.0
          %550 = vst [vmem:[#allocation2 + $0x330] sm:$0xff] 0.0
          %551 = vst [vmem:[#allocation2 + $0x338] sm:$0xff] 0.0
          %552 = vst [vmem:[#allocation2 + $0x340] sm:$0xff] 0.0
          %553 = vst [vmem:[#allocation2 + $0x348] sm:$0xff] 0.0
          %554 = vst [vmem:[#allocation2 + $0x350] sm:$0xff] 0.0
          %555 = vst [vmem:[#allocation2 + $0x358] sm:$0xff] 0.0
          %556 = vst [vmem:[#allocation2 + $0x360] sm:$0xff] 0.0
          %557 = vst [vmem:[#allocation2 + $0x368] sm:$0xff] 0.0
          %558 = vst [vmem:[#allocation2 + $0x370] sm:$0xff] 0.0
          %559 = vst [vmem:[#allocation2 + $0x378] sm:$0xff] 0.0
          %560 = vst [vmem:[#allocation2 + $0x380] sm:$0xff] 0.0
          %561 = vst [vmem:[#allocation2 + $0x388] sm:$0xff] 0.0
          %562 = vst [vmem:[#allocation2 + $0x390] sm:$0xff] 0.0
          %563 = vst [vmem:[#allocation2 + $0x398] sm:$0xff] 0.0
          %564 = vst [vmem:[#allocation2 + $0x3a0] sm:$0xff] 0.0
          %565 = vst [vmem:[#allocation2 + $0x3a8] sm:$0xff] 0.0
          %566 = vst [vmem:[#allocation2 + $0x3b0] sm:$0xff] 0.0
          %567 = vst [vmem:[#allocation2 + $0x3b8] sm:$0xff] 0.0
          %568 = vst [vmem:[#allocation2 + $0x3c0] sm:$0xff] 0.0
          %569 = vst [vmem:[#allocation2 + $0x3c8] sm:$0xff] 0.0
          %570 = vst [vmem:[#allocation2 + $0x3d0] sm:$0xff] 0.0
          %571 = vst [vmem:[#allocation2 + $0x3d8] sm:$0xff] 0.0
          %572 = vst [vmem:[#allocation2 + $0x3e0] sm:$0xff] 0.0
          %573 = vst [vmem:[#allocation2 + $0x3e8] sm:$0xff] 0.0
          %574 = vst [vmem:[#allocation2 + $0x3f0] sm:$0xff] 0.0
          %575 = vst [vmem:[#allocation2 + $0x3f8] sm:$0xff] 0.0
          %576 = vst [vmem:[#allocation2 + $0x400] sm:$0xff] 0.0
          %577 = vst [vmem:[#allocation2 + $0x408] sm:$0xff] 0.0
          %578 = vst [vmem:[#allocation2 + $0x410] sm:$0xff] 0.0
          %579 = vst [vmem:[#allocation2 + $0x418] sm:$0xff] 0.0
          %580 = vst [vmem:[#allocation2 + $0x420] sm:$0xff] 0.0
          %581 = vst [vmem:[#allocation2 + $0x428] sm:$0xff] 0.0
          %582 = vst [vmem:[#allocation2 + $0x430] sm:$0xff] 0.0
          %583 = vst [vmem:[#allocation2 + $0x438] sm:$0xff] 0.0
          %584 = vst [vmem:[#allocation2 + $0x440] sm:$0xff] 0.0
          %585 = vst [vmem:[#allocation2 + $0x448] sm:$0xff] 0.0
          %586 = vst [vmem:[#allocation2 + $0x450] sm:$0xff] 0.0
          %587 = vst [vmem:[#allocation2 + $0x458] sm:$0xff] 0.0
          %588 = vst [vmem:[#allocation2 + $0x460] sm:$0xff] 0.0
          %589 = vst [vmem:[#allocation2 + $0x468] sm:$0xff] 0.0
          %590 = vst [vmem:[#allocation2 + $0x470] sm:$0xff] 0.0
          %591 = vst [vmem:[#allocation2 + $0x478] sm:$0xff] 0.0
        $region75: #{proposal_net_forward.2} parent=66 // pred_fallthru
          _
        %v592 = vld [vmem:[#allocation2] sm:$0xff]
        %v593 = vld [vmem:[#allocation2 + $0x8] sm:$0xff]
        %v594 = vld [vmem:[#allocation2 + $0x10] sm:$0xff]
        %v595 = vld [vmem:[#allocation2 + $0x18] sm:$0xff]
        %v596 = vld [vmem:[#allocation2 + $0x20] sm:$0xff]
        %v597 = vld [vmem:[#allocation2 + $0x28] sm:$0xff]
        %v598 = vld [vmem:[#allocation2 + $0x30] sm:$0xff]
        %v599 = vld [vmem:[#allocation2 + $0x38] sm:$0xff]
        %v600 = vld [vmem:[#allocation2 + $0x40] sm:$0xff]
        %v601 = vld [vmem:[#allocation2 + $0x48] sm:$0xff]
        %v602 = vld [vmem:[#allocation2 + $0x50] sm:$0xff]
        %v603 = vld [vmem:[#allocation2 + $0x58] sm:$0xff]
        %v604 = vld [vmem:[#allocation2 + $0x60] sm:$0xff]
        %v605 = vld [vmem:[#allocation2 + $0x68] sm:$0xff]
        %v606 = vld [vmem:[#allocation2 + $0x70] sm:$0xff]
        %v607 = vld [vmem:[#allocation2 + $0x78] sm:$0xff]
        %v608 = vld [vmem:[#allocation2 + $0x80] sm:$0xff]
        %v609 = vld [vmem:[#allocation2 + $0x88] sm:$0xff]
        %v610 = vld [vmem:[#allocation2 + $0x90] sm:$0xff]
        %v611 = vld [vmem:[#allocation2 + $0x98] sm:$0xff]
        %v612 = vld [vmem:[#allocation2 + $0xa0] sm:$0xff]
        %v613 = vld [vmem:[#allocation2 + $0xa8] sm:$0xff]
        %v614 = vld [vmem:[#allocation2 + $0xb0] sm:$0xff]
        %v615 = vld [vmem:[#allocation2 + $0xb8] sm:$0xff]
        %v616 = vld [vmem:[#allocation2 + $0xc0] sm:$0xff]
        %v617 = vld [vmem:[#allocation2 + $0xc8] sm:$0xff]
        %v618 = vld [vmem:[#allocation2 + $0xd0] sm:$0xff]
        %v619 = vld [vmem:[#allocation2 + $0xd8] sm:$0xff]
        %v620 = vld [vmem:[#allocation2 + $0xe0] sm:$0xff]
        %v621 = vld [vmem:[#allocation2 + $0xe8] sm:$0xff]
        %v622 = vld [vmem:[#allocation2 + $0xf0] sm:$0xff]
        %v623 = vld [vmem:[#allocation2 + $0xf8] sm:$0xff]
        %v624 = vld [vmem:[#allocation2 + $0x100] sm:$0xff]
        %v625 = vld [vmem:[#allocation2 + $0x108] sm:$0xff]
        %v626 = vld [vmem:[#allocation2 + $0x110] sm:$0xff]
        %v627 = vld [vmem:[#allocation2 + $0x118] sm:$0xff]
        %v628 = vld [vmem:[#allocation2 + $0x120] sm:$0xff]
        %v629 = vld [vmem:[#allocation2 + $0x128] sm:$0xff]
        %v630 = vld [vmem:[#allocation2 + $0x130] sm:$0xff]
        %v631 = vld [vmem:[#allocation2 + $0x138] sm:$0xff]
        %v632 = vld [vmem:[#allocation2 + $0x140] sm:$0xff]
        %v633 = vld [vmem:[#allocation2 + $0x148] sm:$0xff]
        %v634 = vld [vmem:[#allocation2 + $0x150] sm:$0xff]
        %v635 = vld [vmem:[#allocation2 + $0x158] sm:$0xff]
        %v636 = vld [vmem:[#allocation2 + $0x160] sm:$0xff]
        %v637 = vld [vmem:[#allocation2 + $0x168] sm:$0xff]
        %v638 = vld [vmem:[#allocation2 + $0x170] sm:$0xff]
        %v639 = vld [vmem:[#allocation2 + $0x178] sm:$0xff]
        %v640 = vld [vmem:[#allocation2 + $0x180] sm:$0xff]
        %v641 = vld [vmem:[#allocation2 + $0x188] sm:$0xff]
        %v642 = vld [vmem:[#allocation2 + $0x190] sm:$0xff]
        %v643 = vld [vmem:[#allocation2 + $0x198] sm:$0xff]
        %v644 = vld [vmem:[#allocation2 + $0x1a0] sm:$0xff]
        %v645 = vld [vmem:[#allocation2 + $0x1a8] sm:$0xff]
        %v646 = vld [vmem:[#allocation2 + $0x1b0] sm:$0xff]
        %v647 = vld [vmem:[#allocation2 + $0x1b8] sm:$0xff]
        %v648 = vld [vmem:[#allocation2 + $0x1c0] sm:$0xff]
        %v649 = vld [vmem:[#allocation2 + $0x1c8] sm:$0xff]
        %v650 = vld [vmem:[#allocation2 + $0x1d0] sm:$0xff]
        %v651 = vld [vmem:[#allocation2 + $0x1d8] sm:$0xff]
        %v652 = vld [vmem:[#allocation2 + $0x1e0] sm:$0xff]
        %v653 = vld [vmem:[#allocation2 + $0x1e8] sm:$0xff]
        %v654 = vld [vmem:[#allocation2 + $0x1f0] sm:$0xff]
        %v655 = vld [vmem:[#allocation2 + $0x1f8] sm:$0xff]
        %v656 = vld [vmem:[#allocation2 + $0x200] sm:$0xff]
        %v657 = vld [vmem:[#allocation2 + $0x208] sm:$0xff]
        %v658 = vld [vmem:[#allocation2 + $0x210] sm:$0xff]
        %v659 = vld [vmem:[#allocation2 + $0x218] sm:$0xff]
        %v660 = vld [vmem:[#allocation2 + $0x220] sm:$0xff]
        %v661 = vld [vmem:[#allocation2 + $0x228] sm:$0xff]
        %v662 = vld [vmem:[#allocation2 + $0x230] sm:$0xff]
        %v663 = vld [vmem:[#allocation2 + $0x238] sm:$0xff]
        %v664 = vld [vmem:[#allocation2 + $0x240] sm:$0xff]
        %v665 = vld [vmem:[#allocation2 + $0x248] sm:$0xff]
        %v666 = vld [vmem:[#allocation2 + $0x250] sm:$0xff]
        %v667 = vld [vmem:[#allocation2 + $0x258] sm:$0xff]
        %v668 = vld [vmem:[#allocation2 + $0x260] sm:$0xff]
        %v669 = vld [vmem:[#allocation2 + $0x268] sm:$0xff]
        %v670 = vld [vmem:[#allocation2 + $0x270] sm:$0xff]
        %v671 = vld [vmem:[#allocation2 + $0x278] sm:$0xff]
        %v672 = vld [vmem:[#allocation2 + $0x280] sm:$0xff]
        %v673 = vld [vmem:[#allocation2 + $0x288] sm:$0xff]
        %v674 = vld [vmem:[#allocation2 + $0x290] sm:$0xff]
        %v675 = vld [vmem:[#allocation2 + $0x298] sm:$0xff]
        %v676 = vld [vmem:[#allocation2 + $0x2a0] sm:$0xff]
        %v677 = vld [vmem:[#allocation2 + $0x2a8] sm:$0xff]
        %v678 = vld [vmem:[#allocation2 + $0x2b0] sm:$0xff]
        %v679 = vld [vmem:[#allocation2 + $0x2b8] sm:$0xff]
        %v680 = vld [vmem:[#allocation2 + $0x2c0] sm:$0xff]
        %v681 = vld [vmem:[#allocation2 + $0x2c8] sm:$0xff]
        %v682 = vld [vmem:[#allocation2 + $0x2d0] sm:$0xff]
        %v683 = vld [vmem:[#allocation2 + $0x2d8] sm:$0xff]
        %v684 = vld [vmem:[#allocation2 + $0x2e0] sm:$0xff]
        %v685 = vld [vmem:[#allocation2 + $0x2e8] sm:$0xff]
        %v686 = vld [vmem:[#allocation2 + $0x2f0] sm:$0xff]
        %v687 = vld [vmem:[#allocation2 + $0x2f8] sm:$0xff]
        %v688 = vld [vmem:[#allocation2 + $0x300] sm:$0xff]
        %v689 = vld [vmem:[#allocation2 + $0x308] sm:$0xff]
        %v690 = vld [vmem:[#allocation2 + $0x310] sm:$0xff]
        %v691 = vld [vmem:[#allocation2 + $0x318] sm:$0xff]
        %v692 = vld [vmem:[#allocation2 + $0x320] sm:$0xff]
        %v693 = vld [vmem:[#allocation2 + $0x328] sm:$0xff]
        %v694 = vld [vmem:[#allocation2 + $0x330] sm:$0xff]
        %v695 = vld [vmem:[#allocation2 + $0x338] sm:$0xff]
        %v696 = vld [vmem:[#allocation2 + $0x340] sm:$0xff]
        %v697 = vld [vmem:[#allocation2 + $0x348] sm:$0xff]
        %v698 = vld [vmem:[#allocation2 + $0x350] sm:$0xff]
        %v699 = vld [vmem:[#allocation2 + $0x358] sm:$0xff]
        %v700 = vld [vmem:[#allocation2 + $0x360] sm:$0xff]
        %v701 = vld [vmem:[#allocation2 + $0x368] sm:$0xff]
        %v702 = vld [vmem:[#allocation2 + $0x370] sm:$0xff]
        %v703 = vld [vmem:[#allocation2 + $0x378] sm:$0xff]
        %v704 = vld [vmem:[#allocation2 + $0x380] sm:$0xff]
        %v705 = vld [vmem:[#allocation2 + $0x388] sm:$0xff]
        %v706 = vld [vmem:[#allocation2 + $0x390] sm:$0xff]
        %v707 = vld [vmem:[#allocation2 + $0x398] sm:$0xff]
        %v708 = vld [vmem:[#allocation2 + $0x3a0] sm:$0xff]
        %v709 = vld [vmem:[#allocation2 + $0x3a8] sm:$0xff]
        %v710 = vld [vmem:[#allocation2 + $0x3b0] sm:$0xff]
        %v711 = vld [vmem:[#allocation2 + $0x3b8] sm:$0xff]
        %v712 = vld [vmem:[#allocation2 + $0x3c0] sm:$0xff]
        %v713 = vld [vmem:[#allocation2 + $0x3c8] sm:$0xff]
        %v714 = vld [vmem:[#allocation2 + $0x3d0] sm:$0xff]
        %v715 = vld [vmem:[#allocation2 + $0x3d8] sm:$0xff]
        %v716 = vld [vmem:[#allocation2 + $0x3e0] sm:$0xff]
        %v717 = vld [vmem:[#allocation2 + $0x3e8] sm:$0xff]
        %v718 = vld [vmem:[#allocation2 + $0x3f0] sm:$0xff]
        %v719 = vld [vmem:[#allocation2 + $0x3f8] sm:$0xff]
        %v720 = vld [vmem:[#allocation2 + $0x400] sm:$0xff]
        %v721 = vld [vmem:[#allocation2 + $0x408] sm:$0xff]
        %v722 = vld [vmem:[#allocation2 + $0x410] sm:$0xff]
        %v723 = vld [vmem:[#allocation2 + $0x418] sm:$0xff]
        %v724 = vld [vmem:[#allocation2 + $0x420] sm:$0xff]
        %v725 = vld [vmem:[#allocation2 + $0x428] sm:$0xff]
        %v726 = vld [vmem:[#allocation2 + $0x430] sm:$0xff]
        %v727 = vld [vmem:[#allocation2 + $0x438] sm:$0xff]
        %v728 = vld [vmem:[#allocation2 + $0x440] sm:$0xff]
        %v729 = vld [vmem:[#allocation2 + $0x448] sm:$0xff]
        %v730 = vld [vmem:[#allocation2 + $0x450] sm:$0xff]
        %v731 = vld [vmem:[#allocation2 + $0x458] sm:$0xff]
        %v732 = vld [vmem:[#allocation2 + $0x460] sm:$0xff]
        %v733 = vld [vmem:[#allocation2 + $0x468] sm:$0xff]
        %v734 = vld [vmem:[#allocation2 + $0x470] sm:$0xff]
        %v735 = vld [vmem:[#allocation2 + $0x478] sm:$0xff]
        %v736 = vld [vmem:[%s383] sm:$0xff]
        %v737 = vld [vmem:[%s383 + $0x8] sm:$0xff]
        %v738 = vld [vmem:[%s383 + $0x10] sm:$0xff]
        %v739 = vld [vmem:[%s383 + $0x18] sm:$0xff]
        %v740 = vld [vmem:[%s383 + $0x20] sm:$0xff]
        %v741 = vld [vmem:[%s383 + $0x28] sm:$0xff]
        %v742 = vld [vmem:[%s383 + $0x30] sm:$0xff]
        %v743 = vld [vmem:[%s383 + $0x38] sm:$0xff]
        %v744 = vld [vmem:[%s383 + $0x40] sm:$0xff]
        %v745 = vld [vmem:[%s383 + $0x48] sm:$0xff]
        %v746 = vld [vmem:[%s383 + $0x50] sm:$0xff]
        %v747 = vld [vmem:[%s383 + $0x58] sm:$0xff]
        %v748 = vld [vmem:[%s383 + $0x60] sm:$0xff]
        %v749 = vld [vmem:[%s383 + $0x68] sm:$0xff]
        %v750 = vld [vmem:[%s383 + $0x70] sm:$0xff]
        %v751 = vld [vmem:[%s383 + $0x78] sm:$0xff]
        %v752 = vld [vmem:[%s383 + $0x80] sm:$0xff]
        %v753 = vld [vmem:[%s383 + $0x88] sm:$0xff]
        %v754 = vld [vmem:[%s383 + $0x90] sm:$0xff]
        %v755 = vld [vmem:[%s383 + $0x98] sm:$0xff]
        %v756 = vld [vmem:[%s383 + $0xa0] sm:$0xff]
        %v757 = vld [vmem:[%s383 + $0xa8] sm:$0xff]
        %v758 = vld [vmem:[%s383 + $0xb0] sm:$0xff]
        %v759 = vld [vmem:[%s383 + $0xb8] sm:$0xff]
        %v760 = vld [vmem:[%s383 + $0xc0] sm:$0xff]
        %v761 = vld [vmem:[%s383 + $0xc8] sm:$0xff]
        %v762 = vld [vmem:[%s383 + $0xd0] sm:$0xff]
        %v763 = vld [vmem:[%s383 + $0xd8] sm:$0xff]
        %v764 = vld [vmem:[%s383 + $0xe0] sm:$0xff]
        %v765 = vld [vmem:[%s383 + $0xe8] sm:$0xff]
        %v766 = vld [vmem:[%s383 + $0xf0] sm:$0xff]
        %v767 = vld [vmem:[%s383 + $0xf8] sm:$0xff]
        %v768 = vld [vmem:[%s431] sm:$0xff]
        %v769 = vld [vmem:[%s431 + $0x8] sm:$0xff]
        %v770 = vld [vmem:[%s431 + $0x10] sm:$0xff]
        %v771 = vld [vmem:[%s431 + $0x18] sm:$0xff]
        %v772 = vld [vmem:[%s431 + $0x20] sm:$0xf]
        %v773 = vld [vmem:[%s431 + $0x24] sm:$0xff]
        %v774 = vld [vmem:[%s431 + $0x2c] sm:$0xff]
        %v775 = vld [vmem:[%s431 + $0x34] sm:$0xff]
        %v776 = vld [vmem:[%s431 + $0x3c] sm:$0xff]
        %v777 = vld [vmem:[%s431 + $0x44] sm:$0xf]
        %v778 = vld [vmem:[%s431 + $0x48] sm:$0xff]
        %v779 = vld [vmem:[%s431 + $0x50] sm:$0xff]
        %v780 = vld [vmem:[%s431 + $0x58] sm:$0xff]
        %v781 = vld [vmem:[%s431 + $0x60] sm:$0xff]
        %v782 = vld [vmem:[%s431 + $0x68] sm:$0xf]
        %v783 = vld [vmem:[%s431 + $0x6c] sm:$0xff]
        %v784 = vld [vmem:[%s431 + $0x74] sm:$0xff]
        %v785 = vld [vmem:[%s431 + $0x7c] sm:$0xff]
        %v786 = vld [vmem:[%s431 + $0x84] sm:$0xff]
        %v787 = vld [vmem:[%s431 + $0x8c] sm:$0xf]
        %v788 = vld [vmem:[%s431 + $0x90] sm:$0xff]
        %v789 = vld [vmem:[%s431 + $0x98] sm:$0xff]
        %v790 = vld [vmem:[%s431 + $0xa0] sm:$0xff]
        %v791 = vld [vmem:[%s431 + $0xa8] sm:$0xff]
        %v792 = vld [vmem:[%s431 + $0xb0] sm:$0xf]
        %v793 = vld [vmem:[%s431 + $0xb4] sm:$0xff]
        %v794 = vld [vmem:[%s431 + $0xbc] sm:$0xff]
        %v795 = vld [vmem:[%s431 + $0xc4] sm:$0xff]
        %v796 = vld [vmem:[%s431 + $0xcc] sm:$0xff]
        %v797 = vld [vmem:[%s431 + $0xd4] sm:$0xf]
        %v798 = vld [vmem:[%s431 + $0xd8] sm:$0xff]
        %v799 = vld [vmem:[%s431 + $0xe0] sm:$0xff]
        %v800 = vld [vmem:[%s431 + $0xe8] sm:$0xff]
        %v801 = vld [vmem:[%s431 + $0xf0] sm:$0xff]
        %v802 = vld [vmem:[%s431 + $0xf8] sm:$0xf]
        %v803 = vld [vmem:[%s431 + $0xfc] sm:$0xff]
        %v804 = vld [vmem:[%s431 + $0x104] sm:$0xff]
        %v805 = vld [vmem:[%s431 + $0x10c] sm:$0xff]
        %v806 = vld [vmem:[%s431 + $0x114] sm:$0xff]
        %v807 = vld [vmem:[%s431 + $0x11c] sm:$0xf]
        %v808 = vld [vmem:[%s431 + $0x120] sm:$0xff]
        %v809 = vld [vmem:[%s431 + $0x128] sm:$0xff]
        %v810 = vld [vmem:[%s431 + $0x130] sm:$0xff]
        %v811 = vld [vmem:[%s431 + $0x138] sm:$0xff]
        %v812 = vld [vmem:[%s431 + $0x140] sm:$0xf]
        %v813 = vld [vmem:[%s431 + $0x144] sm:$0xff]
        %v814 = vld [vmem:[%s431 + $0x14c] sm:$0xff]
        %v815 = vld [vmem:[%s431 + $0x154] sm:$0xff]
        %v816 = vld [vmem:[%s431 + $0x15c] sm:$0xff]
        %v817 = vld [vmem:[%s431 + $0x164] sm:$0xf]
        %v818 = vld [vmem:[%s431 + $0x168] sm:$0xff]
        %v819 = vld [vmem:[%s431 + $0x170] sm:$0xff]
        %v820 = vld [vmem:[%s431 + $0x178] sm:$0xff]
        %v821 = vld [vmem:[%s431 + $0x180] sm:$0xff]
        %v822 = vld [vmem:[%s431 + $0x188] sm:$0xf]
        %v823 = vld [vmem:[%s431 + $0x18c] sm:$0xff]
        %v824 = vld [vmem:[%s431 + $0x194] sm:$0xff]
        %v825 = vld [vmem:[%s431 + $0x19c] sm:$0xff]
        %v826 = vld [vmem:[%s431 + $0x1a4] sm:$0xff]
        %v827 = vld [vmem:[%s431 + $0x1ac] sm:$0xf]
        %v828 = vld [vmem:[%s431 + $0x1b0] sm:$0xff]
        %v829 = vld [vmem:[%s431 + $0x1b8] sm:$0xff]
        %v830 = vld [vmem:[%s431 + $0x1c0] sm:$0xff]
        %v831 = vld [vmem:[%s431 + $0x1c8] sm:$0xff]
        %v832 = vld [vmem:[%s431 + $0x1d0] sm:$0xf]
        %v833 = vld [vmem:[%s431 + $0x1d4] sm:$0xff]
        %v834 = vld [vmem:[%s431 + $0x1dc] sm:$0xff]
        %v835 = vld [vmem:[%s431 + $0x1e4] sm:$0xff]
        %v836 = vld [vmem:[%s431 + $0x1ec] sm:$0xff]
        %v837 = vld [vmem:[%s431 + $0x1f4] sm:$0xf]
        %v838 = vld [vmem:[%s431 + $0x1f8] sm:$0xff]
        %v839 = vld [vmem:[%s431 + $0x200] sm:$0xff]
        %v840 = vld [vmem:[%s431 + $0x208] sm:$0xff]
        %v841 = vld [vmem:[%s431 + $0x210] sm:$0xff]
        %v842 = vld [vmem:[%s431 + $0x218] sm:$0xf]
        %v843 = vld [vmem:[%s431 + $0x21c] sm:$0xff]
        %v844 = vld [vmem:[%s431 + $0x224] sm:$0xff]
        %v845 = vld [vmem:[%s431 + $0x22c] sm:$0xff]
        %v846 = vld [vmem:[%s431 + $0x234] sm:$0xff]
        %v847 = vld [vmem:[%s431 + $0x23c] sm:$0xf]
        %v848 = vld [vmem:[%s431 + $0x240] sm:$0xff]
        %v849 = vld [vmem:[%s431 + $0x248] sm:$0xff]
        %v850 = vld [vmem:[%s431 + $0x250] sm:$0xff]
        %v851 = vld [vmem:[%s431 + $0x258] sm:$0xff]
        %v852 = vld [vmem:[%s431 + $0x260] sm:$0xf]
        %v853 = vld [vmem:[%s431 + $0x264] sm:$0xff]
        %v854 = vld [vmem:[%s431 + $0x26c] sm:$0xff]
        %v855 = vld [vmem:[%s431 + $0x274] sm:$0xff]
        %v856 = vld [vmem:[%s431 + $0x27c] sm:$0xff]
        %v857 = vld [vmem:[%s431 + $0x284] sm:$0xf]
        %v858 = vld [vmem:[%s431 + $0x288] sm:$0xff]
        %v859 = vld [vmem:[%s431 + $0x290] sm:$0xff]
        %v860 = vld [vmem:[%s431 + $0x298] sm:$0xff]
        %v861 = vld [vmem:[%s431 + $0x2a0] sm:$0xff]
        %v862 = vld [vmem:[%s431 + $0x2a8] sm:$0xf]
        %v863 = vld [vmem:[%s431 + $0x2ac] sm:$0xff]
        %v864 = vld [vmem:[%s431 + $0x2b4] sm:$0xff]
        %v865 = vld [vmem:[%s431 + $0x2bc] sm:$0xff]
        %v866 = vld [vmem:[%s431 + $0x2c4] sm:$0xff]
        %v867 = vld [vmem:[%s431 + $0x2cc] sm:$0xf]
        %v868 = vld [vmem:[%s431 + $0x2d0] sm:$0xff]
        %v869 = vld [vmem:[%s431 + $0x2d8] sm:$0xff]
        %v870 = vld [vmem:[%s431 + $0x2e0] sm:$0xff]
        %v871 = vld [vmem:[%s431 + $0x2e8] sm:$0xff]
        %v872 = vld [vmem:[%s431 + $0x2f0] sm:$0xf]
        %v873 = vld [vmem:[%s431 + $0x2f4] sm:$0xff]
        %v874 = vld [vmem:[%s431 + $0x2fc] sm:$0xff]
        %v875 = vld [vmem:[%s431 + $0x304] sm:$0xff]
        %v876 = vld [vmem:[%s431 + $0x30c] sm:$0xff]
        %v877 = vld [vmem:[%s431 + $0x314] sm:$0xf]
        %v878 = vld [vmem:[%s431 + $0x318] sm:$0xff]
        %v879 = vld [vmem:[%s431 + $0x320] sm:$0xff]
        %v880 = vld [vmem:[%s431 + $0x328] sm:$0xff]
        %v881 = vld [vmem:[%s431 + $0x330] sm:$0xff]
        %v882 = vld [vmem:[%s431 + $0x338] sm:$0xf]
        %v883 = vld [vmem:[%s431 + $0x33c] sm:$0xff]
        %v884 = vld [vmem:[%s431 + $0x344] sm:$0xff]
        %v885 = vld [vmem:[%s431 + $0x34c] sm:$0xff]
        %v886 = vld [vmem:[%s431 + $0x354] sm:$0xff]
        %v887 = vld [vmem:[%s431 + $0x35c] sm:$0xf]
        %v888 = vld [vmem:[%s431 + $0x360] sm:$0xff]
        %v889 = vld [vmem:[%s431 + $0x368] sm:$0xff]
        %v890 = vld [vmem:[%s431 + $0x370] sm:$0xff]
        %v891 = vld [vmem:[%s431 + $0x378] sm:$0xff]
        %v892 = vld [vmem:[%s431 + $0x380] sm:$0xf]
        %v893 = vld [vmem:[%s431 + $0x384] sm:$0xff]
        %v894 = vld [vmem:[%s431 + $0x38c] sm:$0xff]
        %v895 = vld [vmem:[%s431 + $0x394] sm:$0xff]
        %v896 = vld [vmem:[%s431 + $0x39c] sm:$0xff]
        %v897 = vld [vmem:[%s431 + $0x3a4] sm:$0xf]
        %v898 = vld [vmem:[%s431 + $0x3a8] sm:$0xff]
        %v899 = vld [vmem:[%s431 + $0x3b0] sm:$0xff]
        %v900 = vld [vmem:[%s431 + $0x3b8] sm:$0xff]
        %v901 = vld [vmem:[%s431 + $0x3c0] sm:$0xff]
        %v902 = vld [vmem:[%s431 + $0x3c8] sm:$0xf]
        %v903 = vld [vmem:[%s431 + $0x3cc] sm:$0xff]
        %v904 = vld [vmem:[%s431 + $0x3d4] sm:$0xff]
        %v905 = vld [vmem:[%s431 + $0x3dc] sm:$0xff]
        %v906 = vld [vmem:[%s431 + $0x3e4] sm:$0xff]
        %v907 = vld [vmem:[%s431 + $0x3ec] sm:$0xf]
        %v908 = vld [vmem:[%s431 + $0x3f0] sm:$0xff]
        %v909 = vld [vmem:[%s431 + $0x3f8] sm:$0xff]
        %v910 = vld [vmem:[%s431 + $0x400] sm:$0xff]
        %v911 = vld [vmem:[%s431 + $0x408] sm:$0xff]
        %v912 = vld [vmem:[%s431 + $0x410] sm:$0xf]
        %v913 = vld [vmem:[%s431 + $0x414] sm:$0xff]
        %v914 = vld [vmem:[%s431 + $0x41c] sm:$0xff]
        %v915 = vld [vmem:[%s431 + $0x424] sm:$0xff]
        %v916 = vld [vmem:[%s431 + $0x42c] sm:$0xff]
        %v917 = vld [vmem:[%s431 + $0x434] sm:$0xf]
        %v918 = vld [vmem:[%s431 + $0x438] sm:$0xff]
        %v919 = vld [vmem:[%s431 + $0x440] sm:$0xff]
        %v920 = vld [vmem:[%s431 + $0x448] sm:$0xff]
        %v921 = vld [vmem:[%s431 + $0x450] sm:$0xff]
        %v922 = vld [vmem:[%s431 + $0x458] sm:$0xf]
        %v923 = vld [vmem:[%s431 + $0x45c] sm:$0xff]
        %v924 = vld [vmem:[%s431 + $0x464] sm:$0xff]
        %v925 = vld [vmem:[%s431 + $0x46c] sm:$0xff]
        %v926 = vld [vmem:[%s431 + $0x474] sm:$0xff]
        %v927 = vld [vmem:[%s431 + $0x47c] sm:$0xf]
        %v928 = vld [vmem:[%s431 + $0x480] sm:$0xff]
        %v929 = vld [vmem:[%s431 + $0x488] sm:$0xff]
        %v930 = vld [vmem:[%s431 + $0x490] sm:$0xff]
        %v931 = vld [vmem:[%s431 + $0x498] sm:$0xff]
        %v932 = vld [vmem:[%s431 + $0x4a0] sm:$0xf]
        %v933 = vld [vmem:[%s431 + $0x4a4] sm:$0xff]
        %v934 = vld [vmem:[%s431 + $0x4ac] sm:$0xff]
        %v935 = vld [vmem:[%s431 + $0x4b4] sm:$0xff]
        %v936 = vld [vmem:[%s431 + $0x4bc] sm:$0xff]
        %v937 = vld [vmem:[%s431 + $0x4c4] sm:$0xf]
        %v938 = vld [vmem:[%s431 + $0x4c8] sm:$0xff]
        %v939 = vld [vmem:[%s431 + $0x4d0] sm:$0xff]
        %v940 = vld [vmem:[%s431 + $0x4d8] sm:$0xff]
        %v941 = vld [vmem:[%s431 + $0x4e0] sm:$0xff]
        %v942 = vld [vmem:[%s431 + $0x4e8] sm:$0xf]
        %v943 = vld [vmem:[%s431 + $0x4ec] sm:$0xff]
        %v944 = vld [vmem:[%s431 + $0x4f4] sm:$0xff]
        %v945 = vld [vmem:[%s431 + $0x4fc] sm:$0xff]
        %v946 = vld [vmem:[%s431 + $0x504] sm:$0xff]
        %v947 = vld [vmem:[%s431 + $0x50c] sm:$0xf]
        %v948 = vld [vmem:[%s431 + $0x510] sm:$0xff]
        %v949 = vld [vmem:[%s431 + $0x518] sm:$0xff]
        %v950 = vld [vmem:[%s431 + $0x520] sm:$0xff]
        %v951 = vld [vmem:[%s431 + $0x528] sm:$0xff]
        %v952 = vld [vmem:[%s431 + $0x530] sm:$0xf]
        %v953 = vld [vmem:[%s431 + $0x534] sm:$0xff]
        %v954 = vld [vmem:[%s431 + $0x53c] sm:$0xff]
        %v955 = vld [vmem:[%s431 + $0x544] sm:$0xff]
        %v956 = vld [vmem:[%s431 + $0x54c] sm:$0xff]
        %v957 = vld [vmem:[%s431 + $0x554] sm:$0xf]
        %v958 = vld [vmem:[%s431 + $0x558] sm:$0xff]
        %v959 = vld [vmem:[%s431 + $0x560] sm:$0xff]
        %v960 = vld [vmem:[%s431 + $0x568] sm:$0xff]
        %v961 = vld [vmem:[%s431 + $0x570] sm:$0xff]
        %v962 = vld [vmem:[%s431 + $0x578] sm:$0xf]
        %v963 = vld [vmem:[%s431 + $0x57c] sm:$0xff]
        %v964 = vld [vmem:[%s431 + $0x584] sm:$0xff]
        %v965 = vld [vmem:[%s431 + $0x58c] sm:$0xff]
        %v966 = vld [vmem:[%s431 + $0x594] sm:$0xff]
        %v967 = vld [vmem:[%s431 + $0x59c] sm:$0xf]
        %v968 = vld [vmem:[%s431 + $0x5a0] sm:$0xff]
        %v969 = vld [vmem:[%s431 + $0x5a8] sm:$0xff]
        %v970 = vld [vmem:[%s431 + $0x5b0] sm:$0xff]
        %v971 = vld [vmem:[%s431 + $0x5b8] sm:$0xff]
        %v972 = vld [vmem:[%s431 + $0x5c0] sm:$0xf]
        %v973 = vld [vmem:[%s431 + $0x5c4] sm:$0xff]
        %v974 = vld [vmem:[%s431 + $0x5cc] sm:$0xff]
        %v975 = vld [vmem:[%s431 + $0x5d4] sm:$0xff]
        %v976 = vld [vmem:[%s431 + $0x5dc] sm:$0xff]
        %v977 = vld [vmem:[%s431 + $0x5e4] sm:$0xf]
        %v978 = vld [vmem:[%s431 + $0x5e8] sm:$0xff]
        %v979 = vld [vmem:[%s431 + $0x5f0] sm:$0xff]
        %v980 = vld [vmem:[%s431 + $0x5f8] sm:$0xff]
        %v981 = vld [vmem:[%s431 + $0x600] sm:$0xff]
        %v982 = vld [vmem:[%s431 + $0x608] sm:$0xf]
        %v983 = vld [vmem:[%s431 + $0x60c] sm:$0xff]
        %v984 = vld [vmem:[%s431 + $0x614] sm:$0xff]
        %v985 = vld [vmem:[%s431 + $0x61c] sm:$0xff]
        %v986 = vld [vmem:[%s431 + $0x624] sm:$0xff]
        %v987 = vld [vmem:[%s431 + $0x62c] sm:$0xf]
        %v988 = vld [vmem:[%s431 + $0x630] sm:$0xff]
        %v989 = vld [vmem:[%s431 + $0x638] sm:$0xff]
        %v990 = vld [vmem:[%s431 + $0x640] sm:$0xff]
        %v991 = vld [vmem:[%s431 + $0x648] sm:$0xff]
        %v992 = vld [vmem:[%s431 + $0x650] sm:$0xf]
        %v993 = vld [vmem:[%s431 + $0x654] sm:$0xff]
        %v994 = vld [vmem:[%s431 + $0x65c] sm:$0xff]
        %v995 = vld [vmem:[%s431 + $0x664] sm:$0xff]
        %v996 = vld [vmem:[%s431 + $0x66c] sm:$0xff]
        %v997 = vld [vmem:[%s431 + $0x674] sm:$0xf]
        %v998 = vld [vmem:[%s431 + $0x678] sm:$0xff]
        %v999 = vld [vmem:[%s431 + $0x680] sm:$0xff]
        %v1000 = vld [vmem:[%s431 + $0x688] sm:$0xff]
        %v1001 = vld [vmem:[%s431 + $0x690] sm:$0xff]
        %v1002 = vld [vmem:[%s431 + $0x698] sm:$0xf]
        %v1003 = vld [vmem:[%s431 + $0x69c] sm:$0xff]
        %v1004 = vld [vmem:[%s431 + $0x6a4] sm:$0xff]
        %v1005 = vld [vmem:[%s431 + $0x6ac] sm:$0xff]
        %v1006 = vld [vmem:[%s431 + $0x6b4] sm:$0xff]
        %v1007 = vld [vmem:[%s431 + $0x6bc] sm:$0xf]
        %v1008 = vld [vmem:[%s431 + $0x6c0] sm:$0xff]
        %v1009 = vld [vmem:[%s431 + $0x6c8] sm:$0xff]
        %v1010 = vld [vmem:[%s431 + $0x6d0] sm:$0xff]
        %v1011 = vld [vmem:[%s431 + $0x6d8] sm:$0xff]
        %v1012 = vld [vmem:[%s431 + $0x6e0] sm:$0xf]
        %v1013 = vld [vmem:[%s431 + $0x6e4] sm:$0xff]
        %v1014 = vld [vmem:[%s431 + $0x6ec] sm:$0xff]
        %v1015 = vld [vmem:[%s431 + $0x6f4] sm:$0xff]
        %v1016 = vld [vmem:[%s431 + $0x6fc] sm:$0xff]
        %v1017 = vld [vmem:[%s431 + $0x704] sm:$0xf]
        %v1018 = vld [vmem:[%s431 + $0x708] sm:$0xff]
        %v1019 = vld [vmem:[%s431 + $0x710] sm:$0xff]
        %v1020 = vld [vmem:[%s431 + $0x718] sm:$0xff]
        %v1021 = vld [vmem:[%s431 + $0x720] sm:$0xff]
        %v1022 = vld [vmem:[%s431 + $0x728] sm:$0xf]
        %v1023 = vld [vmem:[%s431 + $0x72c] sm:$0xff]
        %v1024 = vld [vmem:[%s431 + $0x734] sm:$0xff]
        %v1025 = vld [vmem:[%s431 + $0x73c] sm:$0xff]
        %v1026 = vld [vmem:[%s431 + $0x744] sm:$0xff]
        %v1027 = vld [vmem:[%s431 + $0x74c] sm:$0xf]
        %v1028 = vld [vmem:[%s431 + $0x750] sm:$0xff]
        %v1029 = vld [vmem:[%s431 + $0x758] sm:$0xff]
        %v1030 = vld [vmem:[%s431 + $0x760] sm:$0xff]
        %v1031 = vld [vmem:[%s431 + $0x768] sm:$0xff]
        %v1032 = vld [vmem:[%s431 + $0x770] sm:$0xf]
        %v1033 = vld [vmem:[%s431 + $0x774] sm:$0xff]
        %v1034 = vld [vmem:[%s431 + $0x77c] sm:$0xff]
        %v1035 = vld [vmem:[%s431 + $0x784] sm:$0xff]
        %v1036 = vld [vmem:[%s431 + $0x78c] sm:$0xff]
        %v1037 = vld [vmem:[%s431 + $0x794] sm:$0xf]
        %v1038 = vld [vmem:[%s431 + $0x798] sm:$0xff]
        %v1039 = vld [vmem:[%s431 + $0x7a0] sm:$0xff]
        %v1040 = vld [vmem:[%s431 + $0x7a8] sm:$0xff]
        %v1041 = vld [vmem:[%s431 + $0x7b0] sm:$0xff]
        %v1042 = vld [vmem:[%s431 + $0x7b8] sm:$0xf]
        %v1043 = vld [vmem:[%s431 + $0x7bc] sm:$0xff]
        %v1044 = vld [vmem:[%s431 + $0x7c4] sm:$0xff]
        %v1045 = vld [vmem:[%s431 + $0x7cc] sm:$0xff]
        %v1046 = vld [vmem:[%s431 + $0x7d4] sm:$0xff]
        %v1047 = vld [vmem:[%s431 + $0x7dc] sm:$0xf]
        %v1048 = vld [vmem:[%s431 + $0x7e0] sm:$0xff]
        %v1049 = vld [vmem:[%s431 + $0x7e8] sm:$0xff]
        %v1050 = vld [vmem:[%s431 + $0x7f0] sm:$0xff]
        %v1051 = vld [vmem:[%s431 + $0x7f8] sm:$0xff]
        %v1052 = vld [vmem:[%s431 + $0x800] sm:$0xf]
        %v1053 = vld [vmem:[%s431 + $0x804] sm:$0xff]
        %v1054 = vld [vmem:[%s431 + $0x80c] sm:$0xff]
        %v1055 = vld [vmem:[%s431 + $0x814] sm:$0xff]
        %v1056 = vld [vmem:[%s431 + $0x81c] sm:$0xff]
        %v1057 = vld [vmem:[%s431 + $0x824] sm:$0xf]
        %v1058 = vld [vmem:[%s431 + $0x828] sm:$0xff]
        %v1059 = vld [vmem:[%s431 + $0x830] sm:$0xff]
        %v1060 = vld [vmem:[%s431 + $0x838] sm:$0xff]
        %v1061 = vld [vmem:[%s431 + $0x840] sm:$0xff]
        %v1062 = vld [vmem:[%s431 + $0x848] sm:$0xf]
        %v1063 = vld [vmem:[%s431 + $0x84c] sm:$0xff]
        %v1064 = vld [vmem:[%s431 + $0x854] sm:$0xff]
        %v1065 = vld [vmem:[%s431 + $0x85c] sm:$0xff]
        %v1066 = vld [vmem:[%s431 + $0x864] sm:$0xff]
        %v1067 = vld [vmem:[%s431 + $0x86c] sm:$0xf]
        %v1068 = vld [vmem:[%s431 + $0x870] sm:$0xff]
        %v1069 = vld [vmem:[%s431 + $0x878] sm:$0xff]
        %v1070 = vld [vmem:[%s431 + $0x880] sm:$0xff]
        %v1071 = vld [vmem:[%s431 + $0x888] sm:$0xff]
        %v1072 = vld [vmem:[%s431 + $0x890] sm:$0xf]
        %v1073 = vld [vmem:[%s431 + $0x894] sm:$0xff]
        %v1074 = vld [vmem:[%s431 + $0x89c] sm:$0xff]
        %v1075 = vld [vmem:[%s431 + $0x8a4] sm:$0xff]
        %v1076 = vld [vmem:[%s431 + $0x8ac] sm:$0xff]
        %v1077 = vld [vmem:[%s431 + $0x8b4] sm:$0xf]
        %v1078 = vld [vmem:[%s431 + $0x8b8] sm:$0xff]
        %v1079 = vld [vmem:[%s431 + $0x8c0] sm:$0xff]
        %v1080 = vld [vmem:[%s431 + $0x8c8] sm:$0xff]
        %v1081 = vld [vmem:[%s431 + $0x8d0] sm:$0xff]
        %v1082 = vld [vmem:[%s431 + $0x8d8] sm:$0xf]
        %v1083 = vld [vmem:[%s431 + $0x8dc] sm:$0xff]
        %v1084 = vld [vmem:[%s431 + $0x8e4] sm:$0xff]
        %v1085 = vld [vmem:[%s431 + $0x8ec] sm:$0xff]
        %v1086 = vld [vmem:[%s431 + $0x8f4] sm:$0xff]
        %v1087 = vld [vmem:[%s431 + $0x8fc] sm:$0xf]
        %v1120 = vunpack.c.l.b16 %v736
        %v1121 = vunpack.c.h.b16 %v736
        %v1122 = vunpack.c.l.b16 %v737
        %v1123 = vunpack.c.h.b16 %v737
        %v1124 = vunpack.c.l.b16 %v738
        %v1125 = vunpack.c.h.b16 %v738
        %v1126 = vunpack.c.l.b16 %v739
        %v1127 = vunpack.c.h.b16 %v739
        %v1128 = vunpack.c.l.b16 %v740
        %v1129 = vunpack.c.h.b16 %v740
        %v1130 = vunpack.c.l.b16 %v741
        %v1131 = vunpack.c.h.b16 %v741
        %v1132 = vunpack.c.l.b16 %v742
        %v1133 = vunpack.c.h.b16 %v742
        %v1134 = vunpack.c.l.b16 %v743
        %v1135 = vunpack.c.h.b16 %v743
        %v1136 = vunpack.c.l.b16 %v744
        %v1137 = vunpack.c.h.b16 %v744
        %v1138 = vunpack.c.l.b16 %v745
        %v1139 = vunpack.c.h.b16 %v745
        %v1140 = vunpack.c.l.b16 %v746
        %v1141 = vunpack.c.h.b16 %v746
        %v1142 = vunpack.c.l.b16 %v747
        %v1143 = vunpack.c.h.b16 %v747
        %v1144 = vunpack.c.l.b16 %v748
        %v1145 = vunpack.c.h.b16 %v748
        %v1146 = vunpack.c.l.b16 %v749
        %v1147 = vunpack.c.h.b16 %v749
        %v1148 = vunpack.c.l.b16 %v750
        %v1149 = vunpack.c.h.b16 %v750
        %v1150 = vunpack.c.l.b16 %v751
        %v1151 = vunpack.c.h.b16 %v751
        %v1152 = vunpack.c.l.b16 %v752
        %v1153 = vunpack.c.h.b16 %v752
        %v1154 = vunpack.c.l.b16 %v753
        %v1155 = vunpack.c.h.b16 %v753
        %v1156 = vunpack.c.l.b16 %v754
        %v1157 = vunpack.c.h.b16 %v754
        %v1158 = vunpack.c.l.b16 %v755
        %v1159 = vunpack.c.h.b16 %v755
        %v1160 = vunpack.c.l.b16 %v756
        %v1161 = vunpack.c.h.b16 %v756
        %v1162 = vunpack.c.l.b16 %v757
        %v1163 = vunpack.c.h.b16 %v757
        %v1164 = vunpack.c.l.b16 %v758
        %v1165 = vunpack.c.h.b16 %v758
        %v1166 = vunpack.c.l.b16 %v759
        %v1167 = vunpack.c.h.b16 %v759
        %v1168 = vunpack.c.l.b16 %v760
        %v1169 = vunpack.c.h.b16 %v760
        %v1170 = vunpack.c.l.b16 %v761
        %v1171 = vunpack.c.h.b16 %v761
        %v1172 = vunpack.c.l.b16 %v762
        %v1173 = vunpack.c.h.b16 %v762
        %v1174 = vunpack.c.l.b16 %v763
        %v1175 = vunpack.c.h.b16 %v763
        %v1176 = vunpack.c.l.b16 %v764
        %v1177 = vunpack.c.h.b16 %v764
        %v1178 = vunpack.c.l.b16 %v765
        %v1179 = vunpack.c.h.b16 %v765
        %v1180 = vunpack.c.l.b16 %v766
        %v1181 = vunpack.c.h.b16 %v766
        %v1182 = vunpack.c.l.b16 %v767
        %v1183 = vunpack.c.h.b16 %v767
        %v1184 = vpack.c.b16 %v1124, %v1120
        %v1185 = vpack.c.b16 %v1125, %v1121
        %v1186 = vpack.c.b16 %v1126, %v1122
        %v1187 = vpack.c.b16 %v1127, %v1123
        %v1188 = vpack.c.b16 %v1132, %v1128
        %v1189 = vpack.c.b16 %v1133, %v1129
        %v1190 = vpack.c.b16 %v1134, %v1130
        %v1191 = vpack.c.b16 %v1135, %v1131
        %v1192 = vpack.c.b16 %v1140, %v1136
        %v1193 = vpack.c.b16 %v1141, %v1137
        %v1194 = vpack.c.b16 %v1142, %v1138
        %v1195 = vpack.c.b16 %v1143, %v1139
        %v1196 = vpack.c.b16 %v1148, %v1144
        %v1197 = vpack.c.b16 %v1149, %v1145
        %v1198 = vpack.c.b16 %v1150, %v1146
        %v1199 = vpack.c.b16 %v1151, %v1147
        %v1200 = vpack.c.b16 %v1156, %v1152
        %v1201 = vpack.c.b16 %v1157, %v1153
        %v1202 = vpack.c.b16 %v1158, %v1154
        %v1203 = vpack.c.b16 %v1159, %v1155
        %v1204 = vpack.c.b16 %v1164, %v1160
        %v1205 = vpack.c.b16 %v1165, %v1161
        %v1206 = vpack.c.b16 %v1166, %v1162
        %v1207 = vpack.c.b16 %v1167, %v1163
        %v1208 = vpack.c.b16 %v1172, %v1168
        %v1209 = vpack.c.b16 %v1173, %v1169
        %v1210 = vpack.c.b16 %v1174, %v1170
        %v1211 = vpack.c.b16 %v1175, %v1171
        %v1212 = vpack.c.b16 %v1180, %v1176
        %v1213 = vpack.c.b16 %v1181, %v1177
        %v1214 = vpack.c.b16 %v1182, %v1178
        %v1215 = vpack.c.b16 %v1183, %v1179
        %v1568 = vunpack.c.l.b16 %v768
        %v1569 = vunpack.c.h.b16 %v768
        %v1570 = vunpack.c.l.b16 %v769
        %v1571 = vunpack.c.h.b16 %v769
        %v1572 = vunpack.c.l.b16 %v770
        %v1573 = vunpack.c.h.b16 %v770
        %v1574 = vunpack.c.l.b16 %v771
        %v1575 = vunpack.c.h.b16 %v771
        %v1576 = vunpack.c.l.b16 %v772
        %v1577 = vunpack.c.l.b16 %v773
        %v1578 = vunpack.c.h.b16 %v773
        %v1579 = vunpack.c.l.b16 %v774
        %v1580 = vunpack.c.h.b16 %v774
        %v1581 = vunpack.c.l.b16 %v775
        %v1582 = vunpack.c.h.b16 %v775
        %v1583 = vunpack.c.l.b16 %v776
        %v1584 = vunpack.c.h.b16 %v776
        %v1585 = vunpack.c.l.b16 %v777
        %v1586 = vunpack.c.l.b16 %v778
        %v1587 = vunpack.c.h.b16 %v778
        %v1588 = vunpack.c.l.b16 %v779
        %v1589 = vunpack.c.h.b16 %v779
        %v1590 = vunpack.c.l.b16 %v780
        %v1591 = vunpack.c.h.b16 %v780
        %v1592 = vunpack.c.l.b16 %v781
        %v1593 = vunpack.c.h.b16 %v781
        %v1594 = vunpack.c.l.b16 %v782
        %v1595 = vunpack.c.l.b16 %v783
        %v1596 = vunpack.c.h.b16 %v783
        %v1597 = vunpack.c.l.b16 %v784
        %v1598 = vunpack.c.h.b16 %v784
        %v1599 = vunpack.c.l.b16 %v785
        %v1600 = vunpack.c.h.b16 %v785
        %v1601 = vunpack.c.l.b16 %v786
        %v1602 = vunpack.c.h.b16 %v786
        %v1603 = vunpack.c.l.b16 %v787
        %v1604 = vunpack.c.l.b16 %v788
        %v1605 = vunpack.c.h.b16 %v788
        %v1606 = vunpack.c.l.b16 %v789
        %v1607 = vunpack.c.h.b16 %v789
        %v1608 = vunpack.c.l.b16 %v790
        %v1609 = vunpack.c.h.b16 %v790
        %v1610 = vunpack.c.l.b16 %v791
        %v1611 = vunpack.c.h.b16 %v791
        %v1612 = vunpack.c.l.b16 %v792
        %v1613 = vunpack.c.l.b16 %v793
        %v1614 = vunpack.c.h.b16 %v793
        %v1615 = vunpack.c.l.b16 %v794
        %v1616 = vunpack.c.h.b16 %v794
        %v1617 = vunpack.c.l.b16 %v795
        %v1618 = vunpack.c.h.b16 %v795
        %v1619 = vunpack.c.l.b16 %v796
        %v1620 = vunpack.c.h.b16 %v796
        %v1621 = vunpack.c.l.b16 %v797
        %v1622 = vunpack.c.l.b16 %v798
        %v1623 = vunpack.c.h.b16 %v798
        %v1624 = vunpack.c.l.b16 %v799
        %v1625 = vunpack.c.h.b16 %v799
        %v1626 = vunpack.c.l.b16 %v800
        %v1627 = vunpack.c.h.b16 %v800
        %v1628 = vunpack.c.l.b16 %v801
        %v1629 = vunpack.c.h.b16 %v801
        %v1630 = vunpack.c.l.b16 %v802
        %v1631 = vunpack.c.l.b16 %v803
        %v1632 = vunpack.c.h.b16 %v803
        %v1633 = vunpack.c.l.b16 %v804
        %v1634 = vunpack.c.h.b16 %v804
        %v1635 = vunpack.c.l.b16 %v805
        %v1636 = vunpack.c.h.b16 %v805
        %v1637 = vunpack.c.l.b16 %v806
        %v1638 = vunpack.c.h.b16 %v806
        %v1639 = vunpack.c.l.b16 %v807
        %v1640 = vunpack.c.l.b16 %v808
        %v1641 = vunpack.c.h.b16 %v808
        %v1642 = vunpack.c.l.b16 %v809
        %v1643 = vunpack.c.h.b16 %v809
        %v1644 = vunpack.c.l.b16 %v810
        %v1645 = vunpack.c.h.b16 %v810
        %v1646 = vunpack.c.l.b16 %v811
        %v1647 = vunpack.c.h.b16 %v811
        %v1648 = vunpack.c.l.b16 %v812
        %v1649 = vunpack.c.l.b16 %v813
        %v1650 = vunpack.c.h.b16 %v813
        %v1651 = vunpack.c.l.b16 %v814
        %v1652 = vunpack.c.h.b16 %v814
        %v1653 = vunpack.c.l.b16 %v815
        %v1654 = vunpack.c.h.b16 %v815
        %v1655 = vunpack.c.l.b16 %v816
        %v1656 = vunpack.c.h.b16 %v816
        %v1657 = vunpack.c.l.b16 %v817
        %v1658 = vunpack.c.l.b16 %v818
        %v1659 = vunpack.c.h.b16 %v818
        %v1660 = vunpack.c.l.b16 %v819
        %v1661 = vunpack.c.h.b16 %v819
        %v1662 = vunpack.c.l.b16 %v820
        %v1663 = vunpack.c.h.b16 %v820
        %v1664 = vunpack.c.l.b16 %v821
        %v1665 = vunpack.c.h.b16 %v821
        %v1666 = vunpack.c.l.b16 %v822
        %v1667 = vunpack.c.l.b16 %v823
        %v1668 = vunpack.c.h.b16 %v823
        %v1669 = vunpack.c.l.b16 %v824
        %v1670 = vunpack.c.h.b16 %v824
        %v1671 = vunpack.c.l.b16 %v825
        %v1672 = vunpack.c.h.b16 %v825
        %v1673 = vunpack.c.l.b16 %v826
        %v1674 = vunpack.c.h.b16 %v826
        %v1675 = vunpack.c.l.b16 %v827
        %v1676 = vunpack.c.l.b16 %v828
        %v1677 = vunpack.c.h.b16 %v828
        %v1678 = vunpack.c.l.b16 %v829
        %v1679 = vunpack.c.h.b16 %v829
        %v1680 = vunpack.c.l.b16 %v830
        %v1681 = vunpack.c.h.b16 %v830
        %v1682 = vunpack.c.l.b16 %v831
        %v1683 = vunpack.c.h.b16 %v831
        %v1684 = vunpack.c.l.b16 %v832
        %v1685 = vunpack.c.l.b16 %v833
        %v1686 = vunpack.c.h.b16 %v833
        %v1687 = vunpack.c.l.b16 %v834
        %v1688 = vunpack.c.h.b16 %v834
        %v1689 = vunpack.c.l.b16 %v835
        %v1690 = vunpack.c.h.b16 %v835
        %v1691 = vunpack.c.l.b16 %v836
        %v1692 = vunpack.c.h.b16 %v836
        %v1693 = vunpack.c.l.b16 %v837
        %v1694 = vunpack.c.l.b16 %v838
        %v1695 = vunpack.c.h.b16 %v838
        %v1696 = vunpack.c.l.b16 %v839
        %v1697 = vunpack.c.h.b16 %v839
        %v1698 = vunpack.c.l.b16 %v840
        %v1699 = vunpack.c.h.b16 %v840
        %v1700 = vunpack.c.l.b16 %v841
        %v1701 = vunpack.c.h.b16 %v841
        %v1702 = vunpack.c.l.b16 %v842
        %v1703 = vunpack.c.l.b16 %v843
        %v1704 = vunpack.c.h.b16 %v843
        %v1705 = vunpack.c.l.b16 %v844
        %v1706 = vunpack.c.h.b16 %v844
        %v1707 = vunpack.c.l.b16 %v845
        %v1708 = vunpack.c.h.b16 %v845
        %v1709 = vunpack.c.l.b16 %v846
        %v1710 = vunpack.c.h.b16 %v846
        %v1711 = vunpack.c.l.b16 %v847
        %v1712 = vunpack.c.l.b16 %v848
        %v1713 = vunpack.c.h.b16 %v848
        %v1714 = vunpack.c.l.b16 %v849
        %v1715 = vunpack.c.h.b16 %v849
        %v1716 = vunpack.c.l.b16 %v850
        %v1717 = vunpack.c.h.b16 %v850
        %v1718 = vunpack.c.l.b16 %v851
        %v1719 = vunpack.c.h.b16 %v851
        %v1720 = vunpack.c.l.b16 %v852
        %v1721 = vunpack.c.l.b16 %v853
        %v1722 = vunpack.c.h.b16 %v853
        %v1723 = vunpack.c.l.b16 %v854
        %v1724 = vunpack.c.h.b16 %v854
        %v1725 = vunpack.c.l.b16 %v855
        %v1726 = vunpack.c.h.b16 %v855
        %v1727 = vunpack.c.l.b16 %v856
        %v1728 = vunpack.c.h.b16 %v856
        %v1729 = vunpack.c.l.b16 %v857
        %v1730 = vunpack.c.l.b16 %v858
        %v1731 = vunpack.c.h.b16 %v858
        %v1732 = vunpack.c.l.b16 %v859
        %v1733 = vunpack.c.h.b16 %v859
        %v1734 = vunpack.c.l.b16 %v860
        %v1735 = vunpack.c.h.b16 %v860
        %v1736 = vunpack.c.l.b16 %v861
        %v1737 = vunpack.c.h.b16 %v861
        %v1738 = vunpack.c.l.b16 %v862
        %v1739 = vunpack.c.l.b16 %v863
        %v1740 = vunpack.c.h.b16 %v863
        %v1741 = vunpack.c.l.b16 %v864
        %v1742 = vunpack.c.h.b16 %v864
        %v1743 = vunpack.c.l.b16 %v865
        %v1744 = vunpack.c.h.b16 %v865
        %v1745 = vunpack.c.l.b16 %v866
        %v1746 = vunpack.c.h.b16 %v866
        %v1747 = vunpack.c.l.b16 %v867
        %v1748 = vunpack.c.l.b16 %v868
        %v1749 = vunpack.c.h.b16 %v868
        %v1750 = vunpack.c.l.b16 %v869
        %v1751 = vunpack.c.h.b16 %v869
        %v1752 = vunpack.c.l.b16 %v870
        %v1753 = vunpack.c.h.b16 %v870
        %v1754 = vunpack.c.l.b16 %v871
        %v1755 = vunpack.c.h.b16 %v871
        %v1756 = vunpack.c.l.b16 %v872
        %v1757 = vunpack.c.l.b16 %v873
        %v1758 = vunpack.c.h.b16 %v873
        %v1759 = vunpack.c.l.b16 %v874
        %v1760 = vunpack.c.h.b16 %v874
        %v1761 = vunpack.c.l.b16 %v875
        %v1762 = vunpack.c.h.b16 %v875
        %v1763 = vunpack.c.l.b16 %v876
        %v1764 = vunpack.c.h.b16 %v876
        %v1765 = vunpack.c.l.b16 %v877
        %v1766 = vunpack.c.l.b16 %v878
        %v1767 = vunpack.c.h.b16 %v878
        %v1768 = vunpack.c.l.b16 %v879
        %v1769 = vunpack.c.h.b16 %v879
        %v1770 = vunpack.c.l.b16 %v880
        %v1771 = vunpack.c.h.b16 %v880
        %v1772 = vunpack.c.l.b16 %v881
        %v1773 = vunpack.c.h.b16 %v881
        %v1774 = vunpack.c.l.b16 %v882
        %v1775 = vunpack.c.l.b16 %v883
        %v1776 = vunpack.c.h.b16 %v883
        %v1777 = vunpack.c.l.b16 %v884
        %v1778 = vunpack.c.h.b16 %v884
        %v1779 = vunpack.c.l.b16 %v885
        %v1780 = vunpack.c.h.b16 %v885
        %v1781 = vunpack.c.l.b16 %v886
        %v1782 = vunpack.c.h.b16 %v886
        %v1783 = vunpack.c.l.b16 %v887
        %v1784 = vunpack.c.l.b16 %v888
        %v1785 = vunpack.c.h.b16 %v888
        %v1786 = vunpack.c.l.b16 %v889
        %v1787 = vunpack.c.h.b16 %v889
        %v1788 = vunpack.c.l.b16 %v890
        %v1789 = vunpack.c.h.b16 %v890
        %v1790 = vunpack.c.l.b16 %v891
        %v1791 = vunpack.c.h.b16 %v891
        %v1792 = vunpack.c.l.b16 %v892
        %v1793 = vunpack.c.l.b16 %v893
        %v1794 = vunpack.c.h.b16 %v893
        %v1795 = vunpack.c.l.b16 %v894
        %v1796 = vunpack.c.h.b16 %v894
        %v1797 = vunpack.c.l.b16 %v895
        %v1798 = vunpack.c.h.b16 %v895
        %v1799 = vunpack.c.l.b16 %v896
        %v1800 = vunpack.c.h.b16 %v896
        %v1801 = vunpack.c.l.b16 %v897
        %v1802 = vunpack.c.l.b16 %v898
        %v1803 = vunpack.c.h.b16 %v898
        %v1804 = vunpack.c.l.b16 %v899
        %v1805 = vunpack.c.h.b16 %v899
        %v1806 = vunpack.c.l.b16 %v900
        %v1807 = vunpack.c.h.b16 %v900
        %v1808 = vunpack.c.l.b16 %v901
        %v1809 = vunpack.c.h.b16 %v901
        %v1810 = vunpack.c.l.b16 %v902
        %v1811 = vunpack.c.l.b16 %v903
        %v1812 = vunpack.c.h.b16 %v903
        %v1813 = vunpack.c.l.b16 %v904
        %v1814 = vunpack.c.h.b16 %v904
        %v1815 = vunpack.c.l.b16 %v905
        %v1816 = vunpack.c.h.b16 %v905
        %v1817 = vunpack.c.l.b16 %v906
        %v1818 = vunpack.c.h.b16 %v906
        %v1819 = vunpack.c.l.b16 %v907
        %v1820 = vunpack.c.l.b16 %v908
        %v1821 = vunpack.c.h.b16 %v908
        %v1822 = vunpack.c.l.b16 %v909
        %v1823 = vunpack.c.h.b16 %v909
        %v1824 = vunpack.c.l.b16 %v910
        %v1825 = vunpack.c.h.b16 %v910
        %v1826 = vunpack.c.l.b16 %v911
        %v1827 = vunpack.c.h.b16 %v911
        %v1828 = vunpack.c.l.b16 %v912
        %v1829 = vunpack.c.l.b16 %v913
        %v1830 = vunpack.c.h.b16 %v913
        %v1831 = vunpack.c.l.b16 %v914
        %v1832 = vunpack.c.h.b16 %v914
        %v1833 = vunpack.c.l.b16 %v915
        %v1834 = vunpack.c.h.b16 %v915
        %v1835 = vunpack.c.l.b16 %v916
        %v1836 = vunpack.c.h.b16 %v916
        %v1837 = vunpack.c.l.b16 %v917
        %v1838 = vunpack.c.l.b16 %v918
        %v1839 = vunpack.c.h.b16 %v918
        %v1840 = vunpack.c.l.b16 %v919
        %v1841 = vunpack.c.h.b16 %v919
        %v1842 = vunpack.c.l.b16 %v920
        %v1843 = vunpack.c.h.b16 %v920
        %v1844 = vunpack.c.l.b16 %v921
        %v1845 = vunpack.c.h.b16 %v921
        %v1846 = vunpack.c.l.b16 %v922
        %v1847 = vunpack.c.l.b16 %v923
        %v1848 = vunpack.c.h.b16 %v923
        %v1849 = vunpack.c.l.b16 %v924
        %v1850 = vunpack.c.h.b16 %v924
        %v1851 = vunpack.c.l.b16 %v925
        %v1852 = vunpack.c.h.b16 %v925
        %v1853 = vunpack.c.l.b16 %v926
        %v1854 = vunpack.c.h.b16 %v926
        %v1855 = vunpack.c.l.b16 %v927
        %v1856 = vunpack.c.l.b16 %v928
        %v1857 = vunpack.c.h.b16 %v928
        %v1858 = vunpack.c.l.b16 %v929
        %v1859 = vunpack.c.h.b16 %v929
        %v1860 = vunpack.c.l.b16 %v930
        %v1861 = vunpack.c.h.b16 %v930
        %v1862 = vunpack.c.l.b16 %v931
        %v1863 = vunpack.c.h.b16 %v931
        %v1864 = vunpack.c.l.b16 %v932
        %v1865 = vunpack.c.l.b16 %v933
        %v1866 = vunpack.c.h.b16 %v933
        %v1867 = vunpack.c.l.b16 %v934
        %v1868 = vunpack.c.h.b16 %v934
        %v1869 = vunpack.c.l.b16 %v935
        %v1870 = vunpack.c.h.b16 %v935
        %v1871 = vunpack.c.l.b16 %v936
        %v1872 = vunpack.c.h.b16 %v936
        %v1873 = vunpack.c.l.b16 %v937
        %v1874 = vunpack.c.l.b16 %v938
        %v1875 = vunpack.c.h.b16 %v938
        %v1876 = vunpack.c.l.b16 %v939
        %v1877 = vunpack.c.h.b16 %v939
        %v1878 = vunpack.c.l.b16 %v940
        %v1879 = vunpack.c.h.b16 %v940
        %v1880 = vunpack.c.l.b16 %v941
        %v1881 = vunpack.c.h.b16 %v941
        %v1882 = vunpack.c.l.b16 %v942
        %v1883 = vunpack.c.l.b16 %v943
        %v1884 = vunpack.c.h.b16 %v943
        %v1885 = vunpack.c.l.b16 %v944
        %v1886 = vunpack.c.h.b16 %v944
        %v1887 = vunpack.c.l.b16 %v945
        %v1888 = vunpack.c.h.b16 %v945
        %v1889 = vunpack.c.l.b16 %v946
        %v1890 = vunpack.c.h.b16 %v946
        %v1891 = vunpack.c.l.b16 %v947
        %v1892 = vunpack.c.l.b16 %v948
        %v1893 = vunpack.c.h.b16 %v948
        %v1894 = vunpack.c.l.b16 %v949
        %v1895 = vunpack.c.h.b16 %v949
        %v1896 = vunpack.c.l.b16 %v950
        %v1897 = vunpack.c.h.b16 %v950
        %v1898 = vunpack.c.l.b16 %v951
        %v1899 = vunpack.c.h.b16 %v951
        %v1900 = vunpack.c.l.b16 %v952
        %v1901 = vunpack.c.l.b16 %v953
        %v1902 = vunpack.c.h.b16 %v953
        %v1903 = vunpack.c.l.b16 %v954
        %v1904 = vunpack.c.h.b16 %v954
        %v1905 = vunpack.c.l.b16 %v955
        %v1906 = vunpack.c.h.b16 %v955
        %v1907 = vunpack.c.l.b16 %v956
        %v1908 = vunpack.c.h.b16 %v956
        %v1909 = vunpack.c.l.b16 %v957
        %v1910 = vunpack.c.l.b16 %v958
        %v1911 = vunpack.c.h.b16 %v958
        %v1912 = vunpack.c.l.b16 %v959
        %v1913 = vunpack.c.h.b16 %v959
        %v1914 = vunpack.c.l.b16 %v960
        %v1915 = vunpack.c.h.b16 %v960
        %v1916 = vunpack.c.l.b16 %v961
        %v1917 = vunpack.c.h.b16 %v961
        %v1918 = vunpack.c.l.b16 %v962
        %v1919 = vunpack.c.l.b16 %v963
        %v1920 = vunpack.c.h.b16 %v963
        %v1921 = vunpack.c.l.b16 %v964
        %v1922 = vunpack.c.h.b16 %v964
        %v1923 = vunpack.c.l.b16 %v965
        %v1924 = vunpack.c.h.b16 %v965
        %v1925 = vunpack.c.l.b16 %v966
        %v1926 = vunpack.c.h.b16 %v966
        %v1927 = vunpack.c.l.b16 %v967
        %v1928 = vunpack.c.l.b16 %v968
        %v1929 = vunpack.c.h.b16 %v968
        %v1930 = vunpack.c.l.b16 %v969
        %v1931 = vunpack.c.h.b16 %v969
        %v1932 = vunpack.c.l.b16 %v970
        %v1933 = vunpack.c.h.b16 %v970
        %v1934 = vunpack.c.l.b16 %v971
        %v1935 = vunpack.c.h.b16 %v971
        %v1936 = vunpack.c.l.b16 %v972
        %v1937 = vunpack.c.l.b16 %v973
        %v1938 = vunpack.c.h.b16 %v973
        %v1939 = vunpack.c.l.b16 %v974
        %v1940 = vunpack.c.h.b16 %v974
        %v1941 = vunpack.c.l.b16 %v975
        %v1942 = vunpack.c.h.b16 %v975
        %v1943 = vunpack.c.l.b16 %v976
        %v1944 = vunpack.c.h.b16 %v976
        %v1945 = vunpack.c.l.b16 %v977
        %v1946 = vunpack.c.l.b16 %v978
        %v1947 = vunpack.c.h.b16 %v978
        %v1948 = vunpack.c.l.b16 %v979
        %v1949 = vunpack.c.h.b16 %v979
        %v1950 = vunpack.c.l.b16 %v980
        %v1951 = vunpack.c.h.b16 %v980
        %v1952 = vunpack.c.l.b16 %v981
        %v1953 = vunpack.c.h.b16 %v981
        %v1954 = vunpack.c.l.b16 %v982
        %v1955 = vunpack.c.l.b16 %v983
        %v1956 = vunpack.c.h.b16 %v983
        %v1957 = vunpack.c.l.b16 %v984
        %v1958 = vunpack.c.h.b16 %v984
        %v1959 = vunpack.c.l.b16 %v985
        %v1960 = vunpack.c.h.b16 %v985
        %v1961 = vunpack.c.l.b16 %v986
        %v1962 = vunpack.c.h.b16 %v986
        %v1963 = vunpack.c.l.b16 %v987
        %v1964 = vunpack.c.l.b16 %v988
        %v1965 = vunpack.c.h.b16 %v988
        %v1966 = vunpack.c.l.b16 %v989
        %v1967 = vunpack.c.h.b16 %v989
        %v1968 = vunpack.c.l.b16 %v990
        %v1969 = vunpack.c.h.b16 %v990
        %v1970 = vunpack.c.l.b16 %v991
        %v1971 = vunpack.c.h.b16 %v991
        %v1972 = vunpack.c.l.b16 %v992
        %v1973 = vunpack.c.l.b16 %v993
        %v1974 = vunpack.c.h.b16 %v993
        %v1975 = vunpack.c.l.b16 %v994
        %v1976 = vunpack.c.h.b16 %v994
        %v1977 = vunpack.c.l.b16 %v995
        %v1978 = vunpack.c.h.b16 %v995
        %v1979 = vunpack.c.l.b16 %v996
        %v1980 = vunpack.c.h.b16 %v996
        %v1981 = vunpack.c.l.b16 %v997
        %v1982 = vunpack.c.l.b16 %v998
        %v1983 = vunpack.c.h.b16 %v998
        %v1984 = vunpack.c.l.b16 %v999
        %v1985 = vunpack.c.h.b16 %v999
        %v1986 = vunpack.c.l.b16 %v1000
        %v1987 = vunpack.c.h.b16 %v1000
        %v1988 = vunpack.c.l.b16 %v1001
        %v1989 = vunpack.c.h.b16 %v1001
        %v1990 = vunpack.c.l.b16 %v1002
        %v1991 = vunpack.c.l.b16 %v1003
        %v1992 = vunpack.c.h.b16 %v1003
        %v1993 = vunpack.c.l.b16 %v1004
        %v1994 = vunpack.c.h.b16 %v1004
        %v1995 = vunpack.c.l.b16 %v1005
        %v1996 = vunpack.c.h.b16 %v1005
        %v1997 = vunpack.c.l.b16 %v1006
        %v1998 = vunpack.c.h.b16 %v1006
        %v1999 = vunpack.c.l.b16 %v1007
        %v2000 = vunpack.c.l.b16 %v1008
        %v2001 = vunpack.c.h.b16 %v1008
        %v2002 = vunpack.c.l.b16 %v1009
        %v2003 = vunpack.c.h.b16 %v1009
        %v2004 = vunpack.c.l.b16 %v1010
        %v2005 = vunpack.c.h.b16 %v1010
        %v2006 = vunpack.c.l.b16 %v1011
        %v2007 = vunpack.c.h.b16 %v1011
        %v2008 = vunpack.c.l.b16 %v1012
        %v2009 = vunpack.c.l.b16 %v1013
        %v2010 = vunpack.c.h.b16 %v1013
        %v2011 = vunpack.c.l.b16 %v1014
        %v2012 = vunpack.c.h.b16 %v1014
        %v2013 = vunpack.c.l.b16 %v1015
        %v2014 = vunpack.c.h.b16 %v1015
        %v2015 = vunpack.c.l.b16 %v1016
        %v2016 = vunpack.c.h.b16 %v1016
        %v2017 = vunpack.c.l.b16 %v1017
        %v2018 = vunpack.c.l.b16 %v1018
        %v2019 = vunpack.c.h.b16 %v1018
        %v2020 = vunpack.c.l.b16 %v1019
        %v2021 = vunpack.c.h.b16 %v1019
        %v2022 = vunpack.c.l.b16 %v1020
        %v2023 = vunpack.c.h.b16 %v1020
        %v2024 = vunpack.c.l.b16 %v1021
        %v2025 = vunpack.c.h.b16 %v1021
        %v2026 = vunpack.c.l.b16 %v1022
        %v2027 = vunpack.c.l.b16 %v1023
        %v2028 = vunpack.c.h.b16 %v1023
        %v2029 = vunpack.c.l.b16 %v1024
        %v2030 = vunpack.c.h.b16 %v1024
        %v2031 = vunpack.c.l.b16 %v1025
        %v2032 = vunpack.c.h.b16 %v1025
        %v2033 = vunpack.c.l.b16 %v1026
        %v2034 = vunpack.c.h.b16 %v1026
        %v2035 = vunpack.c.l.b16 %v1027
        %v2036 = vunpack.c.l.b16 %v1028
        %v2037 = vunpack.c.h.b16 %v1028
        %v2038 = vunpack.c.l.b16 %v1029
        %v2039 = vunpack.c.h.b16 %v1029
        %v2040 = vunpack.c.l.b16 %v1030
        %v2041 = vunpack.c.h.b16 %v1030
        %v2042 = vunpack.c.l.b16 %v1031
        %v2043 = vunpack.c.h.b16 %v1031
        %v2044 = vunpack.c.l.b16 %v1032
        %v2045 = vunpack.c.l.b16 %v1033
        %v2046 = vunpack.c.h.b16 %v1033
        %v2047 = vunpack.c.l.b16 %v1034
        %v2048 = vunpack.c.h.b16 %v1034
        %v2049 = vunpack.c.l.b16 %v1035
        %v2050 = vunpack.c.h.b16 %v1035
        %v2051 = vunpack.c.l.b16 %v1036
        %v2052 = vunpack.c.h.b16 %v1036
        %v2053 = vunpack.c.l.b16 %v1037
        %v2054 = vunpack.c.l.b16 %v1038
        %v2055 = vunpack.c.h.b16 %v1038
        %v2056 = vunpack.c.l.b16 %v1039
        %v2057 = vunpack.c.h.b16 %v1039
        %v2058 = vunpack.c.l.b16 %v1040
        %v2059 = vunpack.c.h.b16 %v1040
        %v2060 = vunpack.c.l.b16 %v1041
        %v2061 = vunpack.c.h.b16 %v1041
        %v2062 = vunpack.c.l.b16 %v1042
        %v2063 = vunpack.c.l.b16 %v1043
        %v2064 = vunpack.c.h.b16 %v1043
        %v2065 = vunpack.c.l.b16 %v1044
        %v2066 = vunpack.c.h.b16 %v1044
        %v2067 = vunpack.c.l.b16 %v1045
        %v2068 = vunpack.c.h.b16 %v1045
        %v2069 = vunpack.c.l.b16 %v1046
        %v2070 = vunpack.c.h.b16 %v1046
        %v2071 = vunpack.c.l.b16 %v1047
        %v2072 = vunpack.c.l.b16 %v1048
        %v2073 = vunpack.c.h.b16 %v1048
        %v2074 = vunpack.c.l.b16 %v1049
        %v2075 = vunpack.c.h.b16 %v1049
        %v2076 = vunpack.c.l.b16 %v1050
        %v2077 = vunpack.c.h.b16 %v1050
        %v2078 = vunpack.c.l.b16 %v1051
        %v2079 = vunpack.c.h.b16 %v1051
        %v2080 = vunpack.c.l.b16 %v1052
        %v2081 = vunpack.c.l.b16 %v1053
        %v2082 = vunpack.c.h.b16 %v1053
        %v2083 = vunpack.c.l.b16 %v1054
        %v2084 = vunpack.c.h.b16 %v1054
        %v2085 = vunpack.c.l.b16 %v1055
        %v2086 = vunpack.c.h.b16 %v1055
        %v2087 = vunpack.c.l.b16 %v1056
        %v2088 = vunpack.c.h.b16 %v1056
        %v2089 = vunpack.c.l.b16 %v1057
        %v2090 = vunpack.c.l.b16 %v1058
        %v2091 = vunpack.c.h.b16 %v1058
        %v2092 = vunpack.c.l.b16 %v1059
        %v2093 = vunpack.c.h.b16 %v1059
        %v2094 = vunpack.c.l.b16 %v1060
        %v2095 = vunpack.c.h.b16 %v1060
        %v2096 = vunpack.c.l.b16 %v1061
        %v2097 = vunpack.c.h.b16 %v1061
        %v2098 = vunpack.c.l.b16 %v1062
        %v2099 = vunpack.c.l.b16 %v1063
        %v2100 = vunpack.c.h.b16 %v1063
        %v2101 = vunpack.c.l.b16 %v1064
        %v2102 = vunpack.c.h.b16 %v1064
        %v2103 = vunpack.c.l.b16 %v1065
        %v2104 = vunpack.c.h.b16 %v1065
        %v2105 = vunpack.c.l.b16 %v1066
        %v2106 = vunpack.c.h.b16 %v1066
        %v2107 = vunpack.c.l.b16 %v1067
        %v2108 = vunpack.c.l.b16 %v1068
        %v2109 = vunpack.c.h.b16 %v1068
        %v2110 = vunpack.c.l.b16 %v1069
        %v2111 = vunpack.c.h.b16 %v1069
        %v2112 = vunpack.c.l.b16 %v1070
        %v2113 = vunpack.c.h.b16 %v1070
        %v2114 = vunpack.c.l.b16 %v1071
        %v2115 = vunpack.c.h.b16 %v1071
        %v2116 = vunpack.c.l.b16 %v1072
        %v2117 = vunpack.c.l.b16 %v1073
        %v2118 = vunpack.c.h.b16 %v1073
        %v2119 = vunpack.c.l.b16 %v1074
        %v2120 = vunpack.c.h.b16 %v1074
        %v2121 = vunpack.c.l.b16 %v1075
        %v2122 = vunpack.c.h.b16 %v1075
        %v2123 = vunpack.c.l.b16 %v1076
        %v2124 = vunpack.c.h.b16 %v1076
        %v2125 = vunpack.c.l.b16 %v1077
        %v2126 = vunpack.c.l.b16 %v1078
        %v2127 = vunpack.c.h.b16 %v1078
        %v2128 = vunpack.c.l.b16 %v1079
        %v2129 = vunpack.c.h.b16 %v1079
        %v2130 = vunpack.c.l.b16 %v1080
        %v2131 = vunpack.c.h.b16 %v1080
        %v2132 = vunpack.c.l.b16 %v1081
        %v2133 = vunpack.c.h.b16 %v1081
        %v2134 = vunpack.c.l.b16 %v1082
        %v2135 = vunpack.c.l.b16 %v1083
        %v2136 = vunpack.c.h.b16 %v1083
        %v2137 = vunpack.c.l.b16 %v1084
        %v2138 = vunpack.c.h.b16 %v1084
        %v2139 = vunpack.c.l.b16 %v1085
        %v2140 = vunpack.c.h.b16 %v1085
        %v2141 = vunpack.c.l.b16 %v1086
        %v2142 = vunpack.c.h.b16 %v1086
        %v2143 = vunpack.c.l.b16 %v1087
        %v2144 = vpack.c.b16 %v1577, %v1568
        %v2145 = vpack.c.b16 %v1578, %v1569
        %v2146 = vpack.c.b16 %v1579, %v1570
        %v2147 = vpack.c.b16 %v1580, %v1571
        %v2148 = vpack.c.b16 %v1581, %v1572
        %v2149 = vpack.c.b16 %v1582, %v1573
        %v2150 = vpack.c.b16 %v1583, %v1574
        %v2151 = vpack.c.b16 %v1584, %v1575
        %v2152 = vpack.c.b16 %v1585, %v1576
        %v2153 = vpack.c.b16 %v1595, %v1586
        %v2154 = vpack.c.b16 %v1596, %v1587
        %v2155 = vpack.c.b16 %v1597, %v1588
        %v2156 = vpack.c.b16 %v1598, %v1589
        %v2157 = vpack.c.b16 %v1599, %v1590
        %v2158 = vpack.c.b16 %v1600, %v1591
        %v2159 = vpack.c.b16 %v1601, %v1592
        %v2160 = vpack.c.b16 %v1602, %v1593
        %v2161 = vpack.c.b16 %v1603, %v1594
        %v2162 = vpack.c.b16 %v1613, %v1604
        %v2163 = vpack.c.b16 %v1614, %v1605
        %v2164 = vpack.c.b16 %v1615, %v1606
        %v2165 = vpack.c.b16 %v1616, %v1607
        %v2166 = vpack.c.b16 %v1617, %v1608
        %v2167 = vpack.c.b16 %v1618, %v1609
        %v2168 = vpack.c.b16 %v1619, %v1610
        %v2169 = vpack.c.b16 %v1620, %v1611
        %v2170 = vpack.c.b16 %v1621, %v1612
        %v2171 = vpack.c.b16 %v1631, %v1622
        %v2172 = vpack.c.b16 %v1632, %v1623
        %v2173 = vpack.c.b16 %v1633, %v1624
        %v2174 = vpack.c.b16 %v1634, %v1625
        %v2175 = vpack.c.b16 %v1635, %v1626
        %v2176 = vpack.c.b16 %v1636, %v1627
        %v2177 = vpack.c.b16 %v1637, %v1628
        %v2178 = vpack.c.b16 %v1638, %v1629
        %v2179 = vpack.c.b16 %v1639, %v1630
        %v2180 = vpack.c.b16 %v1649, %v1640
        %v2181 = vpack.c.b16 %v1650, %v1641
        %v2182 = vpack.c.b16 %v1651, %v1642
        %v2183 = vpack.c.b16 %v1652, %v1643
        %v2184 = vpack.c.b16 %v1653, %v1644
        %v2185 = vpack.c.b16 %v1654, %v1645
        %v2186 = vpack.c.b16 %v1655, %v1646
        %v2187 = vpack.c.b16 %v1656, %v1647
        %v2188 = vpack.c.b16 %v1657, %v1648
        %v2189 = vpack.c.b16 %v1667, %v1658
        %v2190 = vpack.c.b16 %v1668, %v1659
        %v2191 = vpack.c.b16 %v1669, %v1660
        %v2192 = vpack.c.b16 %v1670, %v1661
        %v2193 = vpack.c.b16 %v1671, %v1662
        %v2194 = vpack.c.b16 %v1672, %v1663
        %v2195 = vpack.c.b16 %v1673, %v1664
        %v2196 = vpack.c.b16 %v1674, %v1665
        %v2197 = vpack.c.b16 %v1675, %v1666
        %v2198 = vpack.c.b16 %v1685, %v1676
        %v2199 = vpack.c.b16 %v1686, %v1677
        %v2200 = vpack.c.b16 %v1687, %v1678
        %v2201 = vpack.c.b16 %v1688, %v1679
        %v2202 = vpack.c.b16 %v1689, %v1680
        %v2203 = vpack.c.b16 %v1690, %v1681
        %v2204 = vpack.c.b16 %v1691, %v1682
        %v2205 = vpack.c.b16 %v1692, %v1683
        %v2206 = vpack.c.b16 %v1693, %v1684
        %v2207 = vpack.c.b16 %v1703, %v1694
        %v2208 = vpack.c.b16 %v1704, %v1695
        %v2209 = vpack.c.b16 %v1705, %v1696
        %v2210 = vpack.c.b16 %v1706, %v1697
        %v2211 = vpack.c.b16 %v1707, %v1698
        %v2212 = vpack.c.b16 %v1708, %v1699
        %v2213 = vpack.c.b16 %v1709, %v1700
        %v2214 = vpack.c.b16 %v1710, %v1701
        %v2215 = vpack.c.b16 %v1711, %v1702
        %v2216 = vpack.c.b16 %v1721, %v1712
        %v2217 = vpack.c.b16 %v1722, %v1713
        %v2218 = vpack.c.b16 %v1723, %v1714
        %v2219 = vpack.c.b16 %v1724, %v1715
        %v2220 = vpack.c.b16 %v1725, %v1716
        %v2221 = vpack.c.b16 %v1726, %v1717
        %v2222 = vpack.c.b16 %v1727, %v1718
        %v2223 = vpack.c.b16 %v1728, %v1719
        %v2224 = vpack.c.b16 %v1729, %v1720
        %v2225 = vpack.c.b16 %v1739, %v1730
        %v2226 = vpack.c.b16 %v1740, %v1731
        %v2227 = vpack.c.b16 %v1741, %v1732
        %v2228 = vpack.c.b16 %v1742, %v1733
        %v2229 = vpack.c.b16 %v1743, %v1734
        %v2230 = vpack.c.b16 %v1744, %v1735
        %v2231 = vpack.c.b16 %v1745, %v1736
        %v2232 = vpack.c.b16 %v1746, %v1737
        %v2233 = vpack.c.b16 %v1747, %v1738
        %v2234 = vpack.c.b16 %v1757, %v1748
        %v2235 = vpack.c.b16 %v1758, %v1749
        %v2236 = vpack.c.b16 %v1759, %v1750
        %v2237 = vpack.c.b16 %v1760, %v1751
        %v2238 = vpack.c.b16 %v1761, %v1752
        %v2239 = vpack.c.b16 %v1762, %v1753
        %v2240 = vpack.c.b16 %v1763, %v1754
        %v2241 = vpack.c.b16 %v1764, %v1755
        %v2242 = vpack.c.b16 %v1765, %v1756
        %v2243 = vpack.c.b16 %v1775, %v1766
        %v2244 = vpack.c.b16 %v1776, %v1767
        %v2245 = vpack.c.b16 %v1777, %v1768
        %v2246 = vpack.c.b16 %v1778, %v1769
        %v2247 = vpack.c.b16 %v1779, %v1770
        %v2248 = vpack.c.b16 %v1780, %v1771
        %v2249 = vpack.c.b16 %v1781, %v1772
        %v2250 = vpack.c.b16 %v1782, %v1773
        %v2251 = vpack.c.b16 %v1783, %v1774
        %v2252 = vpack.c.b16 %v1793, %v1784
        %v2253 = vpack.c.b16 %v1794, %v1785
        %v2254 = vpack.c.b16 %v1795, %v1786
        %v2255 = vpack.c.b16 %v1796, %v1787
        %v2256 = vpack.c.b16 %v1797, %v1788
        %v2257 = vpack.c.b16 %v1798, %v1789
        %v2258 = vpack.c.b16 %v1799, %v1790
        %v2259 = vpack.c.b16 %v1800, %v1791
        %v2260 = vpack.c.b16 %v1801, %v1792
        %v2261 = vpack.c.b16 %v1811, %v1802
        %v2262 = vpack.c.b16 %v1812, %v1803
        %v2263 = vpack.c.b16 %v1813, %v1804
        %v2264 = vpack.c.b16 %v1814, %v1805
        %v2265 = vpack.c.b16 %v1815, %v1806
        %v2266 = vpack.c.b16 %v1816, %v1807
        %v2267 = vpack.c.b16 %v1817, %v1808
        %v2268 = vpack.c.b16 %v1818, %v1809
        %v2269 = vpack.c.b16 %v1819, %v1810
        %v2270 = vpack.c.b16 %v1829, %v1820
        %v2271 = vpack.c.b16 %v1830, %v1821
        %v2272 = vpack.c.b16 %v1831, %v1822
        %v2273 = vpack.c.b16 %v1832, %v1823
        %v2274 = vpack.c.b16 %v1833, %v1824
        %v2275 = vpack.c.b16 %v1834, %v1825
        %v2276 = vpack.c.b16 %v1835, %v1826
        %v2277 = vpack.c.b16 %v1836, %v1827
        %v2278 = vpack.c.b16 %v1837, %v1828
        %v2279 = vpack.c.b16 %v1847, %v1838
        %v2280 = vpack.c.b16 %v1848, %v1839
        %v2281 = vpack.c.b16 %v1849, %v1840
        %v2282 = vpack.c.b16 %v1850, %v1841
        %v2283 = vpack.c.b16 %v1851, %v1842
        %v2284 = vpack.c.b16 %v1852, %v1843
        %v2285 = vpack.c.b16 %v1853, %v1844
        %v2286 = vpack.c.b16 %v1854, %v1845
        %v2287 = vpack.c.b16 %v1855, %v1846
        %v2288 = vpack.c.b16 %v1865, %v1856
        %v2289 = vpack.c.b16 %v1866, %v1857
        %v2290 = vpack.c.b16 %v1867, %v1858
        %v2291 = vpack.c.b16 %v1868, %v1859
        %v2292 = vpack.c.b16 %v1869, %v1860
        %v2293 = vpack.c.b16 %v1870, %v1861
        %v2294 = vpack.c.b16 %v1871, %v1862
        %v2295 = vpack.c.b16 %v1872, %v1863
        %v2296 = vpack.c.b16 %v1873, %v1864
        %v2297 = vpack.c.b16 %v1883, %v1874
        %v2298 = vpack.c.b16 %v1884, %v1875
        %v2299 = vpack.c.b16 %v1885, %v1876
        %v2300 = vpack.c.b16 %v1886, %v1877
        %v2301 = vpack.c.b16 %v1887, %v1878
        %v2302 = vpack.c.b16 %v1888, %v1879
        %v2303 = vpack.c.b16 %v1889, %v1880
        %v2304 = vpack.c.b16 %v1890, %v1881
        %v2305 = vpack.c.b16 %v1891, %v1882
        %v2306 = vpack.c.b16 %v1901, %v1892
        %v2307 = vpack.c.b16 %v1902, %v1893
        %v2308 = vpack.c.b16 %v1903, %v1894
        %v2309 = vpack.c.b16 %v1904, %v1895
        %v2310 = vpack.c.b16 %v1905, %v1896
        %v2311 = vpack.c.b16 %v1906, %v1897
        %v2312 = vpack.c.b16 %v1907, %v1898
        %v2313 = vpack.c.b16 %v1908, %v1899
        %v2314 = vpack.c.b16 %v1909, %v1900
        %v2315 = vpack.c.b16 %v1919, %v1910
        %v2316 = vpack.c.b16 %v1920, %v1911
        %v2317 = vpack.c.b16 %v1921, %v1912
        %v2318 = vpack.c.b16 %v1922, %v1913
        %v2319 = vpack.c.b16 %v1923, %v1914
        %v2320 = vpack.c.b16 %v1924, %v1915
        %v2321 = vpack.c.b16 %v1925, %v1916
        %v2322 = vpack.c.b16 %v1926, %v1917
        %v2323 = vpack.c.b16 %v1927, %v1918
        %v2324 = vpack.c.b16 %v1937, %v1928
        %v2325 = vpack.c.b16 %v1938, %v1929
        %v2326 = vpack.c.b16 %v1939, %v1930
        %v2327 = vpack.c.b16 %v1940, %v1931
        %v2328 = vpack.c.b16 %v1941, %v1932
        %v2329 = vpack.c.b16 %v1942, %v1933
        %v2330 = vpack.c.b16 %v1943, %v1934
        %v2331 = vpack.c.b16 %v1944, %v1935
        %v2332 = vpack.c.b16 %v1945, %v1936
        %v2333 = vpack.c.b16 %v1955, %v1946
        %v2334 = vpack.c.b16 %v1956, %v1947
        %v2335 = vpack.c.b16 %v1957, %v1948
        %v2336 = vpack.c.b16 %v1958, %v1949
        %v2337 = vpack.c.b16 %v1959, %v1950
        %v2338 = vpack.c.b16 %v1960, %v1951
        %v2339 = vpack.c.b16 %v1961, %v1952
        %v2340 = vpack.c.b16 %v1962, %v1953
        %v2341 = vpack.c.b16 %v1963, %v1954
        %v2342 = vpack.c.b16 %v1973, %v1964
        %v2343 = vpack.c.b16 %v1974, %v1965
        %v2344 = vpack.c.b16 %v1975, %v1966
        %v2345 = vpack.c.b16 %v1976, %v1967
        %v2346 = vpack.c.b16 %v1977, %v1968
        %v2347 = vpack.c.b16 %v1978, %v1969
        %v2348 = vpack.c.b16 %v1979, %v1970
        %v2349 = vpack.c.b16 %v1980, %v1971
        %v2350 = vpack.c.b16 %v1981, %v1972
        %v2351 = vpack.c.b16 %v1991, %v1982
        %v2352 = vpack.c.b16 %v1992, %v1983
        %v2353 = vpack.c.b16 %v1993, %v1984
        %v2354 = vpack.c.b16 %v1994, %v1985
        %v2355 = vpack.c.b16 %v1995, %v1986
        %v2356 = vpack.c.b16 %v1996, %v1987
        %v2357 = vpack.c.b16 %v1997, %v1988
        %v2358 = vpack.c.b16 %v1998, %v1989
        %v2359 = vpack.c.b16 %v1999, %v1990
        %v2360 = vpack.c.b16 %v2009, %v2000
        %v2361 = vpack.c.b16 %v2010, %v2001
        %v2362 = vpack.c.b16 %v2011, %v2002
        %v2363 = vpack.c.b16 %v2012, %v2003
        %v2364 = vpack.c.b16 %v2013, %v2004
        %v2365 = vpack.c.b16 %v2014, %v2005
        %v2366 = vpack.c.b16 %v2015, %v2006
        %v2367 = vpack.c.b16 %v2016, %v2007
        %v2368 = vpack.c.b16 %v2017, %v2008
        %v2369 = vpack.c.b16 %v2027, %v2018
        %v2370 = vpack.c.b16 %v2028, %v2019
        %v2371 = vpack.c.b16 %v2029, %v2020
        %v2372 = vpack.c.b16 %v2030, %v2021
        %v2373 = vpack.c.b16 %v2031, %v2022
        %v2374 = vpack.c.b16 %v2032, %v2023
        %v2375 = vpack.c.b16 %v2033, %v2024
        %v2376 = vpack.c.b16 %v2034, %v2025
        %v2377 = vpack.c.b16 %v2035, %v2026
        %v2378 = vpack.c.b16 %v2045, %v2036
        %v2379 = vpack.c.b16 %v2046, %v2037
        %v2380 = vpack.c.b16 %v2047, %v2038
        %v2381 = vpack.c.b16 %v2048, %v2039
        %v2382 = vpack.c.b16 %v2049, %v2040
        %v2383 = vpack.c.b16 %v2050, %v2041
        %v2384 = vpack.c.b16 %v2051, %v2042
        %v2385 = vpack.c.b16 %v2052, %v2043
        %v2386 = vpack.c.b16 %v2053, %v2044
        %v2387 = vpack.c.b16 %v2063, %v2054
        %v2388 = vpack.c.b16 %v2064, %v2055
        %v2389 = vpack.c.b16 %v2065, %v2056
        %v2390 = vpack.c.b16 %v2066, %v2057
        %v2391 = vpack.c.b16 %v2067, %v2058
        %v2392 = vpack.c.b16 %v2068, %v2059
        %v2393 = vpack.c.b16 %v2069, %v2060
        %v2394 = vpack.c.b16 %v2070, %v2061
        %v2395 = vpack.c.b16 %v2071, %v2062
        %v2396 = vpack.c.b16 %v2081, %v2072
        %v2397 = vpack.c.b16 %v2082, %v2073
        %v2398 = vpack.c.b16 %v2083, %v2074
        %v2399 = vpack.c.b16 %v2084, %v2075
        %v2400 = vpack.c.b16 %v2085, %v2076
        %v2401 = vpack.c.b16 %v2086, %v2077
        %v2402 = vpack.c.b16 %v2087, %v2078
        %v2403 = vpack.c.b16 %v2088, %v2079
        %v2404 = vpack.c.b16 %v2089, %v2080
        %v2405 = vpack.c.b16 %v2099, %v2090
        %v2406 = vpack.c.b16 %v2100, %v2091
        %v2407 = vpack.c.b16 %v2101, %v2092
        %v2408 = vpack.c.b16 %v2102, %v2093
        %v2409 = vpack.c.b16 %v2103, %v2094
        %v2410 = vpack.c.b16 %v2104, %v2095
        %v2411 = vpack.c.b16 %v2105, %v2096
        %v2412 = vpack.c.b16 %v2106, %v2097
        %v2413 = vpack.c.b16 %v2107, %v2098
        %v2414 = vpack.c.b16 %v2117, %v2108
        %v2415 = vpack.c.b16 %v2118, %v2109
        %v2416 = vpack.c.b16 %v2119, %v2110
        %v2417 = vpack.c.b16 %v2120, %v2111
        %v2418 = vpack.c.b16 %v2121, %v2112
        %v2419 = vpack.c.b16 %v2122, %v2113
        %v2420 = vpack.c.b16 %v2123, %v2114
        %v2421 = vpack.c.b16 %v2124, %v2115
        %v2422 = vpack.c.b16 %v2125, %v2116
        %v2423 = vpack.c.b16 %v2135, %v2126
        %v2424 = vpack.c.b16 %v2136, %v2127
        %v2425 = vpack.c.b16 %v2137, %v2128
        %v2426 = vpack.c.b16 %v2138, %v2129
        %v2427 = vpack.c.b16 %v2139, %v2130
        %v2428 = vpack.c.b16 %v2140, %v2131
        %v2429 = vpack.c.b16 %v2141, %v2132
        %v2430 = vpack.c.b16 %v2142, %v2133
        %v2431 = vpack.c.b16 %v2143, %v2134
        %2720 = vmatprep.subr.bf16.mxu0 %v2145
        %2721 = vmatpush1.bf16.msra.mxu0 %v2144
        %2722 = vmatprep.subr.bf16.mxu0 %v2154
        %2723 = vmatpush1.bf16.msra.mxu0 %v2153
        %2724 = vmatprep.subr.bf16.mxu0 %v2163
        %2725 = vmatpush1.bf16.msra.mxu0 %v2162
        %2726 = vmatprep.subr.bf16.mxu0 %v2172
        %2727 = vmatpush1.bf16.msra.mxu0 %v2171
        %2728 = vmatprep.subr.bf16.mxu0 %v2181
        %2729 = vmatpush1.bf16.msra.mxu0 %v2180
        %2730 = vmatprep.subr.bf16.mxu0 %v2190
        %2731 = vmatpush1.bf16.msra.mxu0 %v2189
        %2732 = vmatprep.subr.bf16.mxu0 %v2199
        %2733 = vmatpush1.bf16.msra.mxu0 %v2198
        %2734 = vmatprep.subr.bf16.mxu0 %v2208
        %2735 = vmatpush1.bf16.msra.mxu0 %v2207
        %2736 = vmatprep.subr.bf16.mxu0 %v2217
        %2737 = vmatpush1.bf16.msra.mxu0 %v2216
        %2738 = vmatprep.subr.bf16.mxu0 %v2226
        %2739 = vmatpush1.bf16.msra.mxu0 %v2225
        %2740 = vmatprep.subr.bf16.mxu0 %v2235
        %2741 = vmatpush1.bf16.msra.mxu0 %v2234
        %2742 = vmatprep.subr.bf16.mxu0 %v2244
        %2743 = vmatpush1.bf16.msra.mxu0 %v2243
        %2744 = vmatprep.subr.bf16.mxu0 %v2253
        %2745 = vmatpush1.bf16.msra.mxu0 %v2252
        %2746 = vmatprep.subr.bf16.mxu0 %v2262
        %2747 = vmatpush1.bf16.msra.mxu0 %v2261
        %2748 = vmatprep.subr.bf16.mxu0 %v2271
        %2749 = vmatpush1.bf16.msra.mxu0 %v2270
        %2750 = vmatprep.subr.bf16.mxu0 %v2280
        %2751 = vmatpush1.bf16.msra.mxu0 %v2279
        %2752 = vmatprep.mubr.bf16.mxu0 %v1185
        %2753 = vmatmul.mubr.bf16.gmra.mrb[0].mxu0 %v1184
        %v2754 = vpop.f32.mrb[0].mxu0
        %v2755 = vadd.f32 0.0, %v2754
        %v2756 = vpop.f32.mrb[0].mxu0
        %v2757 = vadd.f32 0.0, %v2756
        %v2758 = vpop.f32.mrb[0].mxu0
        %v2759 = vadd.f32 0.0, %v2758
        %v2760 = vpop.f32.mrb[0].mxu0
        %v2761 = vadd.f32 0.0, %v2760
        %2762 = vmatprep.mubr.bf16.mxu0 %v1189
        %2763 = vmatmul.mubr.bf16.gmra.mrb[0].mxu0 %v1188
        %v2764 = vpop.f32.mrb[0].mxu0
        %v2765 = vadd.f32 0.0, %v2764
        %v2766 = vpop.f32.mrb[0].mxu0
        %v2767 = vadd.f32 0.0, %v2766
        %v2768 = vpop.f32.mrb[0].mxu0
        %v2769 = vadd.f32 0.0, %v2768
        %v2770 = vpop.f32.mrb[0].mxu0
        %v2771 = vadd.f32 0.0, %v2770
        %2772 = vmatprep.mubr.bf16.mxu0 %v1193
        %2773 = vmatmul.mubr.bf16.gmra.mrb[0].mxu0 %v1192
        %v2774 = vpop.f32.mrb[0].mxu0
        %v2775 = vadd.f32 0.0, %v2774
        %v2776 = vpop.f32.mrb[0].mxu0
        %v2777 = vadd.f32 0.0, %v2776
        %v2778 = vpop.f32.mrb[0].mxu0
        %v2779 = vadd.f32 0.0, %v2778
        %v2780 = vpop.f32.mrb[0].mxu0
        %v2781 = vadd.f32 0.0, %v2780
        %2782 = vmatprep.mubr.bf16.mxu0 %v1197
        %2783 = vmatmul.mubr.bf16.gmra.mrb[0].mxu0 %v1196
        %v2784 = vpop.f32.mrb[0].mxu0
        %v2785 = vadd.f32 0.0, %v2784
        %v2786 = vpop.f32.mrb[0].mxu0
        %v2787 = vadd.f32 0.0, %v2786
        %v2788 = vpop.f32.mrb[0].mxu0
        %v2789 = vadd.f32 0.0, %v2788
        %v2790 = vpop.f32.mrb[0].mxu0
        %v2791 = vadd.f32 0.0, %v2790
        %2792 = vmatprep.mubr.bf16.mxu0 %v1201
        %2793 = vmatmul.mubr.bf16.gmra.mrb[0].mxu0 %v1200
        %v2794 = vpop.f32.mrb[0].mxu0
        %v2795 = vadd.f32 0.0, %v2794
        %v2796 = vpop.f32.mrb[0].mxu0
        %v2797 = vadd.f32 0.0, %v2796
        %v2798 = vpop.f32.mrb[0].mxu0
        %v2799 = vadd.f32 0.0, %v2798
        %v2800 = vpop.f32.mrb[0].mxu0
        %v2801 = vadd.f32 0.0, %v2800
        %2802 = vmatprep.mubr.bf16.mxu0 %v1205
        %2803 = vmatmul.mubr.bf16.gmra.mrb[0].mxu0 %v1204
        %v2804 = vpop.f32.mrb[0].mxu0
        %v2805 = vadd.f32 0.0, %v2804
        %v2806 = vpop.f32.mrb[0].mxu0
        %v2807 = vadd.f32 0.0, %v2806
        %v2808 = vpop.f32.mrb[0].mxu0
        %v2809 = vadd.f32 0.0, %v2808
        %v2810 = vpop.f32.mrb[0].mxu0
        %v2811 = vadd.f32 0.0, %v2810
        %2812 = vmatprep.mubr.bf16.mxu0 %v1209
        %2813 = vmatmul.mubr.bf16.gmra.mrb[0].mxu0 %v1208
        %v2814 = vpop.f32.mrb[0].mxu0
        %v2815 = vadd.f32 0.0, %v2814
        %v2816 = vpop.f32.mrb[0].mxu0
        %v2817 = vadd.f32 0.0, %v2816
        %v2818 = vpop.f32.mrb[0].mxu0
        %v2819 = vadd.f32 0.0, %v2818
        %v2820 = vpop.f32.mrb[0].mxu0
        %v2821 = vadd.f32 0.0, %v2820
        %2822 = vmatprep.mubr.bf16.mxu0 %v1213
        %2823 = vmatmul.mubr.bf16.gmra.mrb[0].mxu0 %v1212
        %v2824 = vpop.f32.mrb[0].mxu0
        %v2825 = vadd.f32 0.0, %v2824
        %v2826 = vpop.f32.mrb[0].mxu0
        %v2827 = vadd.f32 0.0, %v2826
        %v2828 = vpop.f32.mrb[0].mxu0
        %v2829 = vadd.f32 0.0, %v2828
        %v2830 = vpop.f32.mrb[0].mxu0
        %v2831 = vadd.f32 0.0, %v2830
        %2832 = vdwg.mxu0
        %2833 = vmatprep.subr.bf16.mxu0 %v2289
        %2834 = vmatpush1.bf16.msra.mxu0 %v2288
        %2835 = vmatprep.subr.bf16.mxu0 %v2298
        %2836 = vmatpush1.bf16.msra.mxu0 %v2297
        %2837 = vmatprep.subr.bf16.mxu0 %v2307
        %2838 = vmatpush1.bf16.msra.mxu0 %v2306
        %2839 = vmatprep.subr.bf16.mxu0 %v2316
        %2840 = vmatpush1.bf16.msra.mxu0 %v2315
        %2841 = vmatprep.subr.bf16.mxu0 %v2325
        %2842 = vmatpush1.bf16.msra.mxu0 %v2324
        %2843 = vmatprep.subr.bf16.mxu0 %v2334
        %2844 = vmatpush1.bf16.msra.mxu0 %v2333
        %2845 = vmatprep.subr.bf16.mxu0 %v2343
        %2846 = vmatpush1.bf16.msra.mxu0 %v2342
        %2847 = vmatprep.subr.bf16.mxu0 %v2352
        %2848 = vmatpush1.bf16.msra.mxu0 %v2351
        %2849 = vmatprep.subr.bf16.mxu0 %v2361
        %2850 = vmatpush1.bf16.msra.mxu0 %v2360
        %2851 = vmatprep.subr.bf16.mxu0 %v2370
        %2852 = vmatpush1.bf16.msra.mxu0 %v2369
        %2853 = vmatprep.subr.bf16.mxu0 %v2379
        %2854 = vmatpush1.bf16.msra.mxu0 %v2378
        %2855 = vmatprep.subr.bf16.mxu0 %v2388
        %2856 = vmatpush1.bf16.msra.mxu0 %v2387
        %2857 = vmatprep.subr.bf16.mxu0 %v2397
        %2858 = vmatpush1.bf16.msra.mxu0 %v2396
        %2859 = vmatprep.subr.bf16.mxu0 %v2406
        %2860 = vmatpush1.bf16.msra.mxu0 %v2405
        %2861 = vmatprep.subr.bf16.mxu0 %v2415
        %2862 = vmatpush1.bf16.msra.mxu0 %v2414
        %2863 = vmatprep.subr.bf16.mxu0 %v2424
        %2864 = vmatpush1.bf16.msra.mxu0 %v2423
        %2865 = vmatprep.mubr.bf16.mxu0 %v1187
        %2866 = vmatmul.mubr.bf16.gmra.mrb[0].mxu0 %v1186
        %v2867 = vpop.f32.mrb[0].mxu0
        %v2868 = vadd.f32 %v2755, %v2867
        %v2869 = vpop.f32.mrb[0].mxu0
        %v2870 = vadd.f32 %v2757, %v2869
        %v2871 = vpop.f32.mrb[0].mxu0
        %v2872 = vadd.f32 %v2759, %v2871
        %v2873 = vpop.f32.mrb[0].mxu0
        %v2874 = vadd.f32 %v2761, %v2873
        %2875 = vmatprep.mubr.bf16.mxu0 %v1191
        %2876 = vmatmul.mubr.bf16.gmra.mrb[0].mxu0 %v1190
        %v2877 = vpop.f32.mrb[0].mxu0
        %v2878 = vadd.f32 %v2765, %v2877
        %v2879 = vpop.f32.mrb[0].mxu0
        %v2880 = vadd.f32 %v2767, %v2879
        %v2881 = vpop.f32.mrb[0].mxu0
        %v2882 = vadd.f32 %v2769, %v2881
        %v2883 = vpop.f32.mrb[0].mxu0
        %v2884 = vadd.f32 %v2771, %v2883
        %2885 = vmatprep.mubr.bf16.mxu0 %v1195
        %2886 = vmatmul.mubr.bf16.gmra.mrb[0].mxu0 %v1194
        %v2887 = vpop.f32.mrb[0].mxu0
        %v2888 = vadd.f32 %v2775, %v2887
        %v2889 = vpop.f32.mrb[0].mxu0
        %v2890 = vadd.f32 %v2777, %v2889
        %v2891 = vpop.f32.mrb[0].mxu0
        %v2892 = vadd.f32 %v2779, %v2891
        %v2893 = vpop.f32.mrb[0].mxu0
        %v2894 = vadd.f32 %v2781, %v2893
        %2895 = vmatprep.mubr.bf16.mxu0 %v1199
        %2896 = vmatmul.mubr.bf16.gmra.mrb[0].mxu0 %v1198
        %v2897 = vpop.f32.mrb[0].mxu0
        %v2898 = vadd.f32 %v2785, %v2897
        %v2899 = vpop.f32.mrb[0].mxu0
        %v2900 = vadd.f32 %v2787, %v2899
        %v2901 = vpop.f32.mrb[0].mxu0
        %v2902 = vadd.f32 %v2789, %v2901
        %v2903 = vpop.f32.mrb[0].mxu0
        %v2904 = vadd.f32 %v2791, %v2903
        %2905 = vmatprep.mubr.bf16.mxu0 %v1203
        %2906 = vmatmul.mubr.bf16.gmra.mrb[0].mxu0 %v1202
        %v2907 = vpop.f32.mrb[0].mxu0
        %v2908 = vadd.f32 %v2795, %v2907
        %v2909 = vpop.f32.mrb[0].mxu0
        %v2910 = vadd.f32 %v2797, %v2909
        %v2911 = vpop.f32.mrb[0].mxu0
        %v2912 = vadd.f32 %v2799, %v2911
        %v2913 = vpop.f32.mrb[0].mxu0
        %v2914 = vadd.f32 %v2801, %v2913
        %2915 = vmatprep.mubr.bf16.mxu0 %v1207
        %2916 = vmatmul.mubr.bf16.gmra.mrb[0].mxu0 %v1206
        %v2917 = vpop.f32.mrb[0].mxu0
        %v2918 = vadd.f32 %v2805, %v2917
        %v2919 = vpop.f32.mrb[0].mxu0
        %v2920 = vadd.f32 %v2807, %v2919
        %v2921 = vpop.f32.mrb[0].mxu0
        %v2922 = vadd.f32 %v2809, %v2921
        %v2923 = vpop.f32.mrb[0].mxu0
        %v2924 = vadd.f32 %v2811, %v2923
        %2925 = vmatprep.mubr.bf16.mxu0 %v1211
        %2926 = vmatmul.mubr.bf16.gmra.mrb[0].mxu0 %v1210
        %v2927 = vpop.f32.mrb[0].mxu0
        %v2928 = vadd.f32 %v2815, %v2927
        %v2929 = vpop.f32.mrb[0].mxu0
        %v2930 = vadd.f32 %v2817, %v2929
        %v2931 = vpop.f32.mrb[0].mxu0
        %v2932 = vadd.f32 %v2819, %v2931
        %v2933 = vpop.f32.mrb[0].mxu0
        %v2934 = vadd.f32 %v2821, %v2933
        %2935 = vmatprep.mubr.bf16.mxu0 %v1215
        %2936 = vmatmul.mubr.bf16.gmra.mrb[0].mxu0 %v1214
        %v2937 = vpop.f32.mrb[0].mxu0
        %v2938 = vadd.f32 %v2825, %v2937
        %v2939 = vpop.f32.mrb[0].mxu0
        %v2940 = vadd.f32 %v2827, %v2939
        %v2941 = vpop.f32.mrb[0].mxu0
        %v2942 = vadd.f32 %v2829, %v2941
        %v2943 = vpop.f32.mrb[0].mxu0
        %v2944 = vadd.f32 %v2831, %v2943
        %2945 = vdwg.mxu0
        %2946 = vmatprep.subr.bf16.mxu0 %v2147
        %2947 = vmatpush1.bf16.msra.mxu0 %v2146
        %2948 = vmatprep.subr.bf16.mxu0 %v2156
        %2949 = vmatpush1.bf16.msra.mxu0 %v2155
        %2950 = vmatprep.subr.bf16.mxu0 %v2165
        %2951 = vmatpush1.bf16.msra.mxu0 %v2164
        %2952 = vmatprep.subr.bf16.mxu0 %v2174
        %2953 = vmatpush1.bf16.msra.mxu0 %v2173
        %2954 = vmatprep.subr.bf16.mxu0 %v2183
        %2955 = vmatpush1.bf16.msra.mxu0 %v2182
        %2956 = vmatprep.subr.bf16.mxu0 %v2192
        %2957 = vmatpush1.bf16.msra.mxu0 %v2191
        %2958 = vmatprep.subr.bf16.mxu0 %v2201
        %2959 = vmatpush1.bf16.msra.mxu0 %v2200
        %2960 = vmatprep.subr.bf16.mxu0 %v2210
        %2961 = vmatpush1.bf16.msra.mxu0 %v2209
        %2962 = vmatprep.subr.bf16.mxu0 %v2219
        %2963 = vmatpush1.bf16.msra.mxu0 %v2218
        %2964 = vmatprep.subr.bf16.mxu0 %v2228
        %2965 = vmatpush1.bf16.msra.mxu0 %v2227
        %2966 = vmatprep.subr.bf16.mxu0 %v2237
        %2967 = vmatpush1.bf16.msra.mxu0 %v2236
        %2968 = vmatprep.subr.bf16.mxu0 %v2246
        %2969 = vmatpush1.bf16.msra.mxu0 %v2245
        %2970 = vmatprep.subr.bf16.mxu0 %v2255
        %2971 = vmatpush1.bf16.msra.mxu0 %v2254
        %2972 = vmatprep.subr.bf16.mxu0 %v2264
        %2973 = vmatpush1.bf16.msra.mxu0 %v2263
        %2974 = vmatprep.subr.bf16.mxu0 %v2273
        %2975 = vmatpush1.bf16.msra.mxu0 %v2272
        %2976 = vmatprep.subr.bf16.mxu0 %v2282
        %2977 = vmatpush1.bf16.msra.mxu0 %v2281
        %2978 = vmatprep.mubr.bf16.mxu0 %v1185
        %2979 = vmatmul.mubr.bf16.gmra.mrb[0].mxu0 %v1184
        %v2980 = vpop.f32.mrb[0].mxu0
        %v2981 = vadd.f32 0.0, %v2980
        %v2982 = vpop.f32.mrb[0].mxu0
        %v2983 = vadd.f32 0.0, %v2982
        %v2984 = vpop.f32.mrb[0].mxu0
        %v2985 = vadd.f32 0.0, %v2984
        %v2986 = vpop.f32.mrb[0].mxu0
        %v2987 = vadd.f32 0.0, %v2986
        %2988 = vmatprep.mubr.bf16.mxu0 %v1189
        %2989 = vmatmul.mubr.bf16.gmra.mrb[0].mxu0 %v1188
        %v2990 = vpop.f32.mrb[0].mxu0
        %v2991 = vadd.f32 0.0, %v2990
        %v2992 = vpop.f32.mrb[0].mxu0
        %v2993 = vadd.f32 0.0, %v2992
        %v2994 = vpop.f32.mrb[0].mxu0
        %v2995 = vadd.f32 0.0, %v2994
        %v2996 = vpop.f32.mrb[0].mxu0
        %v2997 = vadd.f32 0.0, %v2996
        %2998 = vmatprep.mubr.bf16.mxu0 %v1193
        %2999 = vmatmul.mubr.bf16.gmra.mrb[0].mxu0 %v1192
        %v3000 = vpop.f32.mrb[0].mxu0
        %v3001 = vadd.f32 0.0, %v3000
        %v3002 = vpop.f32.mrb[0].mxu0
        %v3003 = vadd.f32 0.0, %v3002
        %v3004 = vpop.f32.mrb[0].mxu0
        %v3005 = vadd.f32 0.0, %v3004
        %v3006 = vpop.f32.mrb[0].mxu0
        %v3007 = vadd.f32 0.0, %v3006
        %3008 = vmatprep.mubr.bf16.mxu0 %v1197
        %3009 = vmatmul.mubr.bf16.gmra.mrb[0].mxu0 %v1196
        %v3010 = vpop.f32.mrb[0].mxu0
        %v3011 = vadd.f32 0.0, %v3010
        %v3012 = vpop.f32.mrb[0].mxu0
        %v3013 = vadd.f32 0.0, %v3012
        %v3014 = vpop.f32.mrb[0].mxu0
        %v3015 = vadd.f32 0.0, %v3014
        %v3016 = vpop.f32.mrb[0].mxu0
        %v3017 = vadd.f32 0.0, %v3016
        %3018 = vmatprep.mubr.bf16.mxu0 %v1201
        %3019 = vmatmul.mubr.bf16.gmra.mrb[0].mxu0 %v1200
        %v3020 = vpop.f32.mrb[0].mxu0
        %v3021 = vadd.f32 0.0, %v3020
        %v3022 = vpop.f32.mrb[0].mxu0
        %v3023 = vadd.f32 0.0, %v3022
        %v3024 = vpop.f32.mrb[0].mxu0
        %v3025 = vadd.f32 0.0, %v3024
        %v3026 = vpop.f32.mrb[0].mxu0
        %v3027 = vadd.f32 0.0, %v3026
        %3028 = vmatprep.mubr.bf16.mxu0 %v1205
        %3029 = vmatmul.mubr.bf16.gmra.mrb[0].mxu0 %v1204
        %v3030 = vpop.f32.mrb[0].mxu0
        %v3031 = vadd.f32 0.0, %v3030
        %v3032 = vpop.f32.mrb[0].mxu0
        %v3033 = vadd.f32 0.0, %v3032
        %v3034 = vpop.f32.mrb[0].mxu0
        %v3035 = vadd.f32 0.0, %v3034
        %v3036 = vpop.f32.mrb[0].mxu0
        %v3037 = vadd.f32 0.0, %v3036
        %3038 = vmatprep.mubr.bf16.mxu0 %v1209
        %3039 = vmatmul.mubr.bf16.gmra.mrb[0].mxu0 %v1208
        %v3040 = vpop.f32.mrb[0].mxu0
        %v3041 = vadd.f32 0.0, %v3040
        %v3042 = vpop.f32.mrb[0].mxu0
        %v3043 = vadd.f32 0.0, %v3042
        %v3044 = vpop.f32.mrb[0].mxu0
        %v3045 = vadd.f32 0.0, %v3044
        %v3046 = vpop.f32.mrb[0].mxu0
        %v3047 = vadd.f32 0.0, %v3046
        %3048 = vmatprep.mubr.bf16.mxu0 %v1213
        %3049 = vmatmul.mubr.bf16.gmra.mrb[0].mxu0 %v1212
        %v3050 = vpop.f32.mrb[0].mxu0
        %v3051 = vadd.f32 0.0, %v3050
        %v3052 = vpop.f32.mrb[0].mxu0
        %v3053 = vadd.f32 0.0, %v3052
        %v3054 = vpop.f32.mrb[0].mxu0
        %v3055 = vadd.f32 0.0, %v3054
        %v3056 = vpop.f32.mrb[0].mxu0
        %v3057 = vadd.f32 0.0, %v3056
        %3058 = vdwg.mxu0
        %3059 = vmatprep.subr.bf16.mxu0 %v2291
        %3060 = vmatpush1.bf16.msra.mxu0 %v2290
        %3061 = vmatprep.subr.bf16.mxu0 %v2300
        %3062 = vmatpush1.bf16.msra.mxu0 %v2299
        %3063 = vmatprep.subr.bf16.mxu0 %v2309
        %3064 = vmatpush1.bf16.msra.mxu0 %v2308
        %3065 = vmatprep.subr.bf16.mxu0 %v2318
        %3066 = vmatpush1.bf16.msra.mxu0 %v2317
        %3067 = vmatprep.subr.bf16.mxu0 %v2327
        %3068 = vmatpush1.bf16.msra.mxu0 %v2326
        %3069 = vmatprep.subr.bf16.mxu0 %v2336
        %3070 = vmatpush1.bf16.msra.mxu0 %v2335
        %3071 = vmatprep.subr.bf16.mxu0 %v2345
        %3072 = vmatpush1.bf16.msra.mxu0 %v2344
        %3073 = vmatprep.subr.bf16.mxu0 %v2354
        %3074 = vmatpush1.bf16.msra.mxu0 %v2353
        %3075 = vmatprep.subr.bf16.mxu0 %v2363
        %3076 = vmatpush1.bf16.msra.mxu0 %v2362
        %3077 = vmatprep.subr.bf16.mxu0 %v2372
        %3078 = vmatpush1.bf16.msra.mxu0 %v2371
        %3079 = vmatprep.subr.bf16.mxu0 %v2381
        %3080 = vmatpush1.bf16.msra.mxu0 %v2380
        %3081 = vmatprep.subr.bf16.mxu0 %v2390
        %3082 = vmatpush1.bf16.msra.mxu0 %v2389
        %3083 = vmatprep.subr.bf16.mxu0 %v2399
        %3084 = vmatpush1.bf16.msra.mxu0 %v2398
        %3085 = vmatprep.subr.bf16.mxu0 %v2408
        %3086 = vmatpush1.bf16.msra.mxu0 %v2407
        %3087 = vmatprep.subr.bf16.mxu0 %v2417
        %3088 = vmatpush1.bf16.msra.mxu0 %v2416
        %3089 = vmatprep.subr.bf16.mxu0 %v2426
        %3090 = vmatpush1.bf16.msra.mxu0 %v2425
        %3091 = vmatprep.mubr.bf16.mxu0 %v1187
        %3092 = vmatmul.mubr.bf16.gmra.mrb[0].mxu0 %v1186
        %v3093 = vpop.f32.mrb[0].mxu0
        %v3094 = vadd.f32 %v2981, %v3093
        %v3095 = vpop.f32.mrb[0].mxu0
        %v3096 = vadd.f32 %v2983, %v3095
        %v3097 = vpop.f32.mrb[0].mxu0
        %v3098 = vadd.f32 %v2985, %v3097
        %v3099 = vpop.f32.mrb[0].mxu0
        %v3100 = vadd.f32 %v2987, %v3099
        %3101 = vmatprep.mubr.bf16.mxu0 %v1191
        %3102 = vmatmul.mubr.bf16.gmra.mrb[0].mxu0 %v1190
        %v3103 = vpop.f32.mrb[0].mxu0
        %v3104 = vadd.f32 %v2991, %v3103
        %v3105 = vpop.f32.mrb[0].mxu0
        %v3106 = vadd.f32 %v2993, %v3105
        %v3107 = vpop.f32.mrb[0].mxu0
        %v3108 = vadd.f32 %v2995, %v3107
        %v3109 = vpop.f32.mrb[0].mxu0
        %v3110 = vadd.f32 %v2997, %v3109
        %3111 = vmatprep.mubr.bf16.mxu0 %v1195
        %3112 = vmatmul.mubr.bf16.gmra.mrb[0].mxu0 %v1194
        %v3113 = vpop.f32.mrb[0].mxu0
        %v3114 = vadd.f32 %v3001, %v3113
        %v3115 = vpop.f32.mrb[0].mxu0
        %v3116 = vadd.f32 %v3003, %v3115
        %v3117 = vpop.f32.mrb[0].mxu0
        %v3118 = vadd.f32 %v3005, %v3117
        %v3119 = vpop.f32.mrb[0].mxu0
        %v3120 = vadd.f32 %v3007, %v3119
        %3121 = vmatprep.mubr.bf16.mxu0 %v1199
        %3122 = vmatmul.mubr.bf16.gmra.mrb[0].mxu0 %v1198
        %v3123 = vpop.f32.mrb[0].mxu0
        %v3124 = vadd.f32 %v3011, %v3123
        %v3125 = vpop.f32.mrb[0].mxu0
        %v3126 = vadd.f32 %v3013, %v3125
        %v3127 = vpop.f32.mrb[0].mxu0
        %v3128 = vadd.f32 %v3015, %v3127
        %v3129 = vpop.f32.mrb[0].mxu0
        %v3130 = vadd.f32 %v3017, %v3129
        %3131 = vmatprep.mubr.bf16.mxu0 %v1203
        %3132 = vmatmul.mubr.bf16.gmra.mrb[0].mxu0 %v1202
        %v3133 = vpop.f32.mrb[0].mxu0
        %v3134 = vadd.f32 %v3021, %v3133
        %v3135 = vpop.f32.mrb[0].mxu0
        %v3136 = vadd.f32 %v3023, %v3135
        %v3137 = vpop.f32.mrb[0].mxu0
        %v3138 = vadd.f32 %v3025, %v3137
        %v3139 = vpop.f32.mrb[0].mxu0
        %v3140 = vadd.f32 %v3027, %v3139
        %3141 = vmatprep.mubr.bf16.mxu0 %v1207
        %3142 = vmatmul.mubr.bf16.gmra.mrb[0].mxu0 %v1206
        %v3143 = vpop.f32.mrb[0].mxu0
        %v3144 = vadd.f32 %v3031, %v3143
        %v3145 = vpop.f32.mrb[0].mxu0
        %v3146 = vadd.f32 %v3033, %v3145
        %v3147 = vpop.f32.mrb[0].mxu0
        %v3148 = vadd.f32 %v3035, %v3147
        %v3149 = vpop.f32.mrb[0].mxu0
        %v3150 = vadd.f32 %v3037, %v3149
        %3151 = vmatprep.mubr.bf16.mxu0 %v1211
        %3152 = vmatmul.mubr.bf16.gmra.mrb[0].mxu0 %v1210
        %v3153 = vpop.f32.mrb[0].mxu0
        %v3154 = vadd.f32 %v3041, %v3153
        %v3155 = vpop.f32.mrb[0].mxu0
        %v3156 = vadd.f32 %v3043, %v3155
        %v3157 = vpop.f32.mrb[0].mxu0
        %v3158 = vadd.f32 %v3045, %v3157
        %v3159 = vpop.f32.mrb[0].mxu0
        %v3160 = vadd.f32 %v3047, %v3159
        %3161 = vmatprep.mubr.bf16.mxu0 %v1215
        %3162 = vmatmul.mubr.bf16.gmra.mrb[0].mxu0 %v1214
        %v3163 = vpop.f32.mrb[0].mxu0
        %v3164 = vadd.f32 %v3051, %v3163
        %v3165 = vpop.f32.mrb[0].mxu0
        %v3166 = vadd.f32 %v3053, %v3165
        %v3167 = vpop.f32.mrb[0].mxu0
        %v3168 = vadd.f32 %v3055, %v3167
        %v3169 = vpop.f32.mrb[0].mxu0
        %v3170 = vadd.f32 %v3057, %v3169
        %3171 = vdwg.mxu0
        %3172 = vmatprep.subr.bf16.mxu0 %v2149
        %3173 = vmatpush1.bf16.msra.mxu0 %v2148
        %3174 = vmatprep.subr.bf16.mxu0 %v2158
        %3175 = vmatpush1.bf16.msra.mxu0 %v2157
        %3176 = vmatprep.subr.bf16.mxu0 %v2167
        %3177 = vmatpush1.bf16.msra.mxu0 %v2166
        %3178 = vmatprep.subr.bf16.mxu0 %v2176
        %3179 = vmatpush1.bf16.msra.mxu0 %v2175
        %3180 = vmatprep.subr.bf16.mxu0 %v2185
        %3181 = vmatpush1.bf16.msra.mxu0 %v2184
        %3182 = vmatprep.subr.bf16.mxu0 %v2194
        %3183 = vmatpush1.bf16.msra.mxu0 %v2193
        %3184 = vmatprep.subr.bf16.mxu0 %v2203
        %3185 = vmatpush1.bf16.msra.mxu0 %v2202
        %3186 = vmatprep.subr.bf16.mxu0 %v2212
        %3187 = vmatpush1.bf16.msra.mxu0 %v2211
        %3188 = vmatprep.subr.bf16.mxu0 %v2221
        %3189 = vmatpush1.bf16.msra.mxu0 %v2220
        %3190 = vmatprep.subr.bf16.mxu0 %v2230
        %3191 = vmatpush1.bf16.msra.mxu0 %v2229
        %3192 = vmatprep.subr.bf16.mxu0 %v2239
        %3193 = vmatpush1.bf16.msra.mxu0 %v2238
        %3194 = vmatprep.subr.bf16.mxu0 %v2248
        %3195 = vmatpush1.bf16.msra.mxu0 %v2247
        %3196 = vmatprep.subr.bf16.mxu0 %v2257
        %3197 = vmatpush1.bf16.msra.mxu0 %v2256
        %3198 = vmatprep.subr.bf16.mxu0 %v2266
        %3199 = vmatpush1.bf16.msra.mxu0 %v2265
        %3200 = vmatprep.subr.bf16.mxu0 %v2275
        %3201 = vmatpush1.bf16.msra.mxu0 %v2274
        %3202 = vmatprep.subr.bf16.mxu0 %v2284
        %3203 = vmatpush1.bf16.msra.mxu0 %v2283
        %3204 = vmatprep.mubr.bf16.mxu0 %v1185
        %3205 = vmatmul.mubr.bf16.gmra.mrb[0].mxu0 %v1184
        %v3206 = vpop.f32.mrb[0].mxu0
        %v3207 = vadd.f32 0.0, %v3206
        %v3208 = vpop.f32.mrb[0].mxu0
        %v3209 = vadd.f32 0.0, %v3208
        %v3210 = vpop.f32.mrb[0].mxu0
        %v3211 = vadd.f32 0.0, %v3210
        %v3212 = vpop.f32.mrb[0].mxu0
        %v3213 = vadd.f32 0.0, %v3212
        %3214 = vmatprep.mubr.bf16.mxu0 %v1189
        %3215 = vmatmul.mubr.bf16.gmra.mrb[0].mxu0 %v1188
        %v3216 = vpop.f32.mrb[0].mxu0
        %v3217 = vadd.f32 0.0, %v3216
        %v3218 = vpop.f32.mrb[0].mxu0
        %v3219 = vadd.f32 0.0, %v3218
        %v3220 = vpop.f32.mrb[0].mxu0
        %v3221 = vadd.f32 0.0, %v3220
        %v3222 = vpop.f32.mrb[0].mxu0
        %v3223 = vadd.f32 0.0, %v3222
        %3224 = vmatprep.mubr.bf16.mxu0 %v1193
        %3225 = vmatmul.mubr.bf16.gmra.mrb[0].mxu0 %v1192
        %v3226 = vpop.f32.mrb[0].mxu0
        %v3227 = vadd.f32 0.0, %v3226
        %v3228 = vpop.f32.mrb[0].mxu0
        %v3229 = vadd.f32 0.0, %v3228
        %v3230 = vpop.f32.mrb[0].mxu0
        %v3231 = vadd.f32 0.0, %v3230
        %v3232 = vpop.f32.mrb[0].mxu0
        %v3233 = vadd.f32 0.0, %v3232
        %3234 = vmatprep.mubr.bf16.mxu0 %v1197
        %3235 = vmatmul.mubr.bf16.gmra.mrb[0].mxu0 %v1196
        %v3236 = vpop.f32.mrb[0].mxu0
        %v3237 = vadd.f32 0.0, %v3236
        %v3238 = vpop.f32.mrb[0].mxu0
        %v3239 = vadd.f32 0.0, %v3238
        %v3240 = vpop.f32.mrb[0].mxu0
        %v3241 = vadd.f32 0.0, %v3240
        %v3242 = vpop.f32.mrb[0].mxu0
        %v3243 = vadd.f32 0.0, %v3242
        %3244 = vmatprep.mubr.bf16.mxu0 %v1201
        %3245 = vmatmul.mubr.bf16.gmra.mrb[0].mxu0 %v1200
        %v3246 = vpop.f32.mrb[0].mxu0
        %v3247 = vadd.f32 0.0, %v3246
        %v3248 = vpop.f32.mrb[0].mxu0
        %v3249 = vadd.f32 0.0, %v3248
        %v3250 = vpop.f32.mrb[0].mxu0
        %v3251 = vadd.f32 0.0, %v3250
        %v3252 = vpop.f32.mrb[0].mxu0
        %v3253 = vadd.f32 0.0, %v3252
        %3254 = vmatprep.mubr.bf16.mxu0 %v1205
        %3255 = vmatmul.mubr.bf16.gmra.mrb[0].mxu0 %v1204
        %v3256 = vpop.f32.mrb[0].mxu0
        %v3257 = vadd.f32 0.0, %v3256
        %v3258 = vpop.f32.mrb[0].mxu0
        %v3259 = vadd.f32 0.0, %v3258
        %v3260 = vpop.f32.mrb[0].mxu0
        %v3261 = vadd.f32 0.0, %v3260
        %v3262 = vpop.f32.mrb[0].mxu0
        %v3263 = vadd.f32 0.0, %v3262
        %3264 = vmatprep.mubr.bf16.mxu0 %v1209
        %3265 = vmatmul.mubr.bf16.gmra.mrb[0].mxu0 %v1208
        %v3266 = vpop.f32.mrb[0].mxu0
        %v3267 = vadd.f32 0.0, %v3266
        %v3268 = vpop.f32.mrb[0].mxu0
        %v3269 = vadd.f32 0.0, %v3268
        %v3270 = vpop.f32.mrb[0].mxu0
        %v3271 = vadd.f32 0.0, %v3270
        %v3272 = vpop.f32.mrb[0].mxu0
        %v3273 = vadd.f32 0.0, %v3272
        %3274 = vmatprep.mubr.bf16.mxu0 %v1213
        %3275 = vmatmul.mubr.bf16.gmra.mrb[0].mxu0 %v1212
        %v3276 = vpop.f32.mrb[0].mxu0
        %v3277 = vadd.f32 0.0, %v3276
        %v3278 = vpop.f32.mrb[0].mxu0
        %v3279 = vadd.f32 0.0, %v3278
        %v3280 = vpop.f32.mrb[0].mxu0
        %v3281 = vadd.f32 0.0, %v3280
        %v3282 = vpop.f32.mrb[0].mxu0
        %v3283 = vadd.f32 0.0, %v3282
        %3284 = vdwg.mxu0
        %3285 = vmatprep.subr.bf16.mxu0 %v2293
        %3286 = vmatpush1.bf16.msra.mxu0 %v2292
        %3287 = vmatprep.subr.bf16.mxu0 %v2302
        %3288 = vmatpush1.bf16.msra.mxu0 %v2301
        %3289 = vmatprep.subr.bf16.mxu0 %v2311
        %3290 = vmatpush1.bf16.msra.mxu0 %v2310
        %3291 = vmatprep.subr.bf16.mxu0 %v2320
        %3292 = vmatpush1.bf16.msra.mxu0 %v2319
        %3293 = vmatprep.subr.bf16.mxu0 %v2329
        %3294 = vmatpush1.bf16.msra.mxu0 %v2328
        %3295 = vmatprep.subr.bf16.mxu0 %v2338
        %3296 = vmatpush1.bf16.msra.mxu0 %v2337
        %3297 = vmatprep.subr.bf16.mxu0 %v2347
        %3298 = vmatpush1.bf16.msra.mxu0 %v2346
        %3299 = vmatprep.subr.bf16.mxu0 %v2356
        %3300 = vmatpush1.bf16.msra.mxu0 %v2355
        %3301 = vmatprep.subr.bf16.mxu0 %v2365
        %3302 = vmatpush1.bf16.msra.mxu0 %v2364
        %3303 = vmatprep.subr.bf16.mxu0 %v2374
        %3304 = vmatpush1.bf16.msra.mxu0 %v2373
        %3305 = vmatprep.subr.bf16.mxu0 %v2383
        %3306 = vmatpush1.bf16.msra.mxu0 %v2382
        %3307 = vmatprep.subr.bf16.mxu0 %v2392
        %3308 = vmatpush1.bf16.msra.mxu0 %v2391
        %3309 = vmatprep.subr.bf16.mxu0 %v2401
        %3310 = vmatpush1.bf16.msra.mxu0 %v2400
        %3311 = vmatprep.subr.bf16.mxu0 %v2410
        %3312 = vmatpush1.bf16.msra.mxu0 %v2409
        %3313 = vmatprep.subr.bf16.mxu0 %v2419
        %3314 = vmatpush1.bf16.msra.mxu0 %v2418
        %3315 = vmatprep.subr.bf16.mxu0 %v2428
        %3316 = vmatpush1.bf16.msra.mxu0 %v2427
        %3317 = vmatprep.mubr.bf16.mxu0 %v1187
        %3318 = vmatmul.mubr.bf16.gmra.mrb[0].mxu0 %v1186
        %v3319 = vpop.f32.mrb[0].mxu0
        %v3320 = vadd.f32 %v3207, %v3319
        %v3321 = vpop.f32.mrb[0].mxu0
        %v3322 = vadd.f32 %v3209, %v3321
        %v3323 = vpop.f32.mrb[0].mxu0
        %v3324 = vadd.f32 %v3211, %v3323
        %v3325 = vpop.f32.mrb[0].mxu0
        %v3326 = vadd.f32 %v3213, %v3325
        %3327 = vmatprep.mubr.bf16.mxu0 %v1191
        %3328 = vmatmul.mubr.bf16.gmra.mrb[0].mxu0 %v1190
        %v3329 = vpop.f32.mrb[0].mxu0
        %v3330 = vadd.f32 %v3217, %v3329
        %v3331 = vpop.f32.mrb[0].mxu0
        %v3332 = vadd.f32 %v3219, %v3331
        %v3333 = vpop.f32.mrb[0].mxu0
        %v3334 = vadd.f32 %v3221, %v3333
        %v3335 = vpop.f32.mrb[0].mxu0
        %v3336 = vadd.f32 %v3223, %v3335
        %3337 = vmatprep.mubr.bf16.mxu0 %v1195
        %3338 = vmatmul.mubr.bf16.gmra.mrb[0].mxu0 %v1194
        %v3339 = vpop.f32.mrb[0].mxu0
        %v3340 = vadd.f32 %v3227, %v3339
        %v3341 = vpop.f32.mrb[0].mxu0
        %v3342 = vadd.f32 %v3229, %v3341
        %v3343 = vpop.f32.mrb[0].mxu0
        %v3344 = vadd.f32 %v3231, %v3343
        %v3345 = vpop.f32.mrb[0].mxu0
        %v3346 = vadd.f32 %v3233, %v3345
        %3347 = vmatprep.mubr.bf16.mxu0 %v1199
        %3348 = vmatmul.mubr.bf16.gmra.mrb[0].mxu0 %v1198
        %v3349 = vpop.f32.mrb[0].mxu0
        %v3350 = vadd.f32 %v3237, %v3349
        %v3351 = vpop.f32.mrb[0].mxu0
        %v3352 = vadd.f32 %v3239, %v3351
        %v3353 = vpop.f32.mrb[0].mxu0
        %v3354 = vadd.f32 %v3241, %v3353
        %v3355 = vpop.f32.mrb[0].mxu0
        %v3356 = vadd.f32 %v3243, %v3355
        %3357 = vmatprep.mubr.bf16.mxu0 %v1203
        %3358 = vmatmul.mubr.bf16.gmra.mrb[0].mxu0 %v1202
        %v3359 = vpop.f32.mrb[0].mxu0
        %v3360 = vadd.f32 %v3247, %v3359
        %v3361 = vpop.f32.mrb[0].mxu0
        %v3362 = vadd.f32 %v3249, %v3361
        %v3363 = vpop.f32.mrb[0].mxu0
        %v3364 = vadd.f32 %v3251, %v3363
        %v3365 = vpop.f32.mrb[0].mxu0
        %v3366 = vadd.f32 %v3253, %v3365
        %3367 = vmatprep.mubr.bf16.mxu0 %v1207
        %3368 = vmatmul.mubr.bf16.gmra.mrb[0].mxu0 %v1206
        %v3369 = vpop.f32.mrb[0].mxu0
        %v3370 = vadd.f32 %v3257, %v3369
        %v3371 = vpop.f32.mrb[0].mxu0
        %v3372 = vadd.f32 %v3259, %v3371
        %v3373 = vpop.f32.mrb[0].mxu0
        %v3374 = vadd.f32 %v3261, %v3373
        %v3375 = vpop.f32.mrb[0].mxu0
        %v3376 = vadd.f32 %v3263, %v3375
        %3377 = vmatprep.mubr.bf16.mxu0 %v1211
        %3378 = vmatmul.mubr.bf16.gmra.mrb[0].mxu0 %v1210
        %v3379 = vpop.f32.mrb[0].mxu0
        %v3380 = vadd.f32 %v3267, %v3379
        %v3381 = vpop.f32.mrb[0].mxu0
        %v3382 = vadd.f32 %v3269, %v3381
        %v3383 = vpop.f32.mrb[0].mxu0
        %v3384 = vadd.f32 %v3271, %v3383
        %v3385 = vpop.f32.mrb[0].mxu0
        %v3386 = vadd.f32 %v3273, %v3385
        %3387 = vmatprep.mubr.bf16.mxu0 %v1215
        %3388 = vmatmul.mubr.bf16.gmra.mrb[0].mxu0 %v1214
        %v3389 = vpop.f32.mrb[0].mxu0
        %v3390 = vadd.f32 %v3277, %v3389
        %v3391 = vpop.f32.mrb[0].mxu0
        %v3392 = vadd.f32 %v3279, %v3391
        %v3393 = vpop.f32.mrb[0].mxu0
        %v3394 = vadd.f32 %v3281, %v3393
        %v3395 = vpop.f32.mrb[0].mxu0
        %v3396 = vadd.f32 %v3283, %v3395
        %3397 = vdwg.mxu0
        %3398 = vmatprep.subr.bf16.mxu0 %v2151
        %3399 = vmatpush1.bf16.msra.mxu0 %v2150
        %3400 = vmatprep.subr.bf16.mxu0 %v2160
        %3401 = vmatpush1.bf16.msra.mxu0 %v2159
        %3402 = vmatprep.subr.bf16.mxu0 %v2169
        %3403 = vmatpush1.bf16.msra.mxu0 %v2168
        %3404 = vmatprep.subr.bf16.mxu0 %v2178
        %3405 = vmatpush1.bf16.msra.mxu0 %v2177
        %3406 = vmatprep.subr.bf16.mxu0 %v2187
        %3407 = vmatpush1.bf16.msra.mxu0 %v2186
        %3408 = vmatprep.subr.bf16.mxu0 %v2196
        %3409 = vmatpush1.bf16.msra.mxu0 %v2195
        %3410 = vmatprep.subr.bf16.mxu0 %v2205
        %3411 = vmatpush1.bf16.msra.mxu0 %v2204
        %3412 = vmatprep.subr.bf16.mxu0 %v2214
        %3413 = vmatpush1.bf16.msra.mxu0 %v2213
        %3414 = vmatprep.subr.bf16.mxu0 %v2223
        %3415 = vmatpush1.bf16.msra.mxu0 %v2222
        %3416 = vmatprep.subr.bf16.mxu0 %v2232
        %3417 = vmatpush1.bf16.msra.mxu0 %v2231
        %3418 = vmatprep.subr.bf16.mxu0 %v2241
        %3419 = vmatpush1.bf16.msra.mxu0 %v2240
        %3420 = vmatprep.subr.bf16.mxu0 %v2250
        %3421 = vmatpush1.bf16.msra.mxu0 %v2249
        %3422 = vmatprep.subr.bf16.mxu0 %v2259
        %3423 = vmatpush1.bf16.msra.mxu0 %v2258
        %3424 = vmatprep.subr.bf16.mxu0 %v2268
        %3425 = vmatpush1.bf16.msra.mxu0 %v2267
        %3426 = vmatprep.subr.bf16.mxu0 %v2277
        %3427 = vmatpush1.bf16.msra.mxu0 %v2276
        %3428 = vmatprep.subr.bf16.mxu0 %v2286
        %3429 = vmatpush1.bf16.msra.mxu0 %v2285
        %3430 = vmatprep.mubr.bf16.mxu0 %v1185
        %3431 = vmatmul.mubr.bf16.gmra.mrb[0].mxu0 %v1184
        %v3432 = vpop.f32.mrb[0].mxu0
        %v3433 = vadd.f32 0.0, %v3432
        %v3434 = vpop.f32.mrb[0].mxu0
        %v3435 = vadd.f32 0.0, %v3434
        %v3436 = vpop.f32.mrb[0].mxu0
        %v3437 = vadd.f32 0.0, %v3436
        %v3438 = vpop.f32.mrb[0].mxu0
        %v3439 = vadd.f32 0.0, %v3438
        %3440 = vmatprep.mubr.bf16.mxu0 %v1189
        %3441 = vmatmul.mubr.bf16.gmra.mrb[0].mxu0 %v1188
        %v3442 = vpop.f32.mrb[0].mxu0
        %v3443 = vadd.f32 0.0, %v3442
        %v3444 = vpop.f32.mrb[0].mxu0
        %v3445 = vadd.f32 0.0, %v3444
        %v3446 = vpop.f32.mrb[0].mxu0
        %v3447 = vadd.f32 0.0, %v3446
        %v3448 = vpop.f32.mrb[0].mxu0
        %v3449 = vadd.f32 0.0, %v3448
        %3450 = vmatprep.mubr.bf16.mxu0 %v1193
        %3451 = vmatmul.mubr.bf16.gmra.mrb[0].mxu0 %v1192
        %v3452 = vpop.f32.mrb[0].mxu0
        %v3453 = vadd.f32 0.0, %v3452
        %v3454 = vpop.f32.mrb[0].mxu0
        %v3455 = vadd.f32 0.0, %v3454
        %v3456 = vpop.f32.mrb[0].mxu0
        %v3457 = vadd.f32 0.0, %v3456
        %v3458 = vpop.f32.mrb[0].mxu0
        %v3459 = vadd.f32 0.0, %v3458
        %3460 = vmatprep.mubr.bf16.mxu0 %v1197
        %3461 = vmatmul.mubr.bf16.gmra.mrb[0].mxu0 %v1196
        %v3462 = vpop.f32.mrb[0].mxu0
        %v3463 = vadd.f32 0.0, %v3462
        %v3464 = vpop.f32.mrb[0].mxu0
        %v3465 = vadd.f32 0.0, %v3464
        %v3466 = vpop.f32.mrb[0].mxu0
        %v3467 = vadd.f32 0.0, %v3466
        %v3468 = vpop.f32.mrb[0].mxu0
        %v3469 = vadd.f32 0.0, %v3468
        %3470 = vmatprep.mubr.bf16.mxu0 %v1201
        %3471 = vmatmul.mubr.bf16.gmra.mrb[0].mxu0 %v1200
        %v3472 = vpop.f32.mrb[0].mxu0
        %v3473 = vadd.f32 0.0, %v3472
        %v3474 = vpop.f32.mrb[0].mxu0
        %v3475 = vadd.f32 0.0, %v3474
        %v3476 = vpop.f32.mrb[0].mxu0
        %v3477 = vadd.f32 0.0, %v3476
        %v3478 = vpop.f32.mrb[0].mxu0
        %v3479 = vadd.f32 0.0, %v3478
        %3480 = vmatprep.mubr.bf16.mxu0 %v1205
        %3481 = vmatmul.mubr.bf16.gmra.mrb[0].mxu0 %v1204
        %v3482 = vpop.f32.mrb[0].mxu0
        %v3483 = vadd.f32 0.0, %v3482
        %v3484 = vpop.f32.mrb[0].mxu0
        %v3485 = vadd.f32 0.0, %v3484
        %v3486 = vpop.f32.mrb[0].mxu0
        %v3487 = vadd.f32 0.0, %v3486
        %v3488 = vpop.f32.mrb[0].mxu0
        %v3489 = vadd.f32 0.0, %v3488
        %3490 = vmatprep.mubr.bf16.mxu0 %v1209
        %3491 = vmatmul.mubr.bf16.gmra.mrb[0].mxu0 %v1208
        %v3492 = vpop.f32.mrb[0].mxu0
        %v3493 = vadd.f32 0.0, %v3492
        %v3494 = vpop.f32.mrb[0].mxu0
        %v3495 = vadd.f32 0.0, %v3494
        %v3496 = vpop.f32.mrb[0].mxu0
        %v3497 = vadd.f32 0.0, %v3496
        %v3498 = vpop.f32.mrb[0].mxu0
        %v3499 = vadd.f32 0.0, %v3498
        %3500 = vmatprep.mubr.bf16.mxu0 %v1213
        %3501 = vmatmul.mubr.bf16.gmra.mrb[0].mxu0 %v1212
        %v3502 = vpop.f32.mrb[0].mxu0
        %v3503 = vadd.f32 0.0, %v3502
        %v3504 = vpop.f32.mrb[0].mxu0
        %v3505 = vadd.f32 0.0, %v3504
        %v3506 = vpop.f32.mrb[0].mxu0
        %v3507 = vadd.f32 0.0, %v3506
        %v3508 = vpop.f32.mrb[0].mxu0
        %v3509 = vadd.f32 0.0, %v3508
        %3510 = vdwg.mxu0
        %3511 = vmatprep.subr.bf16.mxu0 %v2295
        %3512 = vmatpush1.bf16.msra.mxu0 %v2294
        %3513 = vmatprep.subr.bf16.mxu0 %v2304
        %3514 = vmatpush1.bf16.msra.mxu0 %v2303
        %3515 = vmatprep.subr.bf16.mxu0 %v2313
        %3516 = vmatpush1.bf16.msra.mxu0 %v2312
        %3517 = vmatprep.subr.bf16.mxu0 %v2322
        %3518 = vmatpush1.bf16.msra.mxu0 %v2321
        %3519 = vmatprep.subr.bf16.mxu0 %v2331
        %3520 = vmatpush1.bf16.msra.mxu0 %v2330
        %3521 = vmatprep.subr.bf16.mxu0 %v2340
        %3522 = vmatpush1.bf16.msra.mxu0 %v2339
        %3523 = vmatprep.subr.bf16.mxu0 %v2349
        %3524 = vmatpush1.bf16.msra.mxu0 %v2348
        %3525 = vmatprep.subr.bf16.mxu0 %v2358
        %3526 = vmatpush1.bf16.msra.mxu0 %v2357
        %3527 = vmatprep.subr.bf16.mxu0 %v2367
        %3528 = vmatpush1.bf16.msra.mxu0 %v2366
        %3529 = vmatprep.subr.bf16.mxu0 %v2376
        %3530 = vmatpush1.bf16.msra.mxu0 %v2375
        %3531 = vmatprep.subr.bf16.mxu0 %v2385
        %3532 = vmatpush1.bf16.msra.mxu0 %v2384
        %3533 = vmatprep.subr.bf16.mxu0 %v2394
        %3534 = vmatpush1.bf16.msra.mxu0 %v2393
        %3535 = vmatprep.subr.bf16.mxu0 %v2403
        %3536 = vmatpush1.bf16.msra.mxu0 %v2402
        %3537 = vmatprep.subr.bf16.mxu0 %v2412
        %3538 = vmatpush1.bf16.msra.mxu0 %v2411
        %3539 = vmatprep.subr.bf16.mxu0 %v2421
        %3540 = vmatpush1.bf16.msra.mxu0 %v2420
        %3541 = vmatprep.subr.bf16.mxu0 %v2430
        %3542 = vmatpush1.bf16.msra.mxu0 %v2429
        %3543 = vmatprep.mubr.bf16.mxu0 %v1187
        %3544 = vmatmul.mubr.bf16.gmra.mrb[0].mxu0 %v1186
        %v3545 = vpop.f32.mrb[0].mxu0
        %v3546 = vadd.f32 %v3433, %v3545
        %v3547 = vpop.f32.mrb[0].mxu0
        %v3548 = vadd.f32 %v3435, %v3547
        %v3549 = vpop.f32.mrb[0].mxu0
        %v3550 = vadd.f32 %v3437, %v3549
        %v3551 = vpop.f32.mrb[0].mxu0
        %v3552 = vadd.f32 %v3439, %v3551
        %3553 = vmatprep.mubr.bf16.mxu0 %v1191
        %3554 = vmatmul.mubr.bf16.gmra.mrb[0].mxu0 %v1190
        %v3555 = vpop.f32.mrb[0].mxu0
        %v3556 = vadd.f32 %v3443, %v3555
        %v3557 = vpop.f32.mrb[0].mxu0
        %v3558 = vadd.f32 %v3445, %v3557
        %v3559 = vpop.f32.mrb[0].mxu0
        %v3560 = vadd.f32 %v3447, %v3559
        %v3561 = vpop.f32.mrb[0].mxu0
        %v3562 = vadd.f32 %v3449, %v3561
        %3563 = vmatprep.mubr.bf16.mxu0 %v1195
        %3564 = vmatmul.mubr.bf16.gmra.mrb[0].mxu0 %v1194
        %v3565 = vpop.f32.mrb[0].mxu0
        %v3566 = vadd.f32 %v3453, %v3565
        %v3567 = vpop.f32.mrb[0].mxu0
        %v3568 = vadd.f32 %v3455, %v3567
        %v3569 = vpop.f32.mrb[0].mxu0
        %v3570 = vadd.f32 %v3457, %v3569
        %v3571 = vpop.f32.mrb[0].mxu0
        %v3572 = vadd.f32 %v3459, %v3571
        %3573 = vmatprep.mubr.bf16.mxu0 %v1199
        %3574 = vmatmul.mubr.bf16.gmra.mrb[0].mxu0 %v1198
        %v3575 = vpop.f32.mrb[0].mxu0
        %v3576 = vadd.f32 %v3463, %v3575
        %v3577 = vpop.f32.mrb[0].mxu0
        %v3578 = vadd.f32 %v3465, %v3577
        %v3579 = vpop.f32.mrb[0].mxu0
        %v3580 = vadd.f32 %v3467, %v3579
        %v3581 = vpop.f32.mrb[0].mxu0
        %v3582 = vadd.f32 %v3469, %v3581
        %3583 = vmatprep.mubr.bf16.mxu0 %v1203
        %3584 = vmatmul.mubr.bf16.gmra.mrb[0].mxu0 %v1202
        %v3585 = vpop.f32.mrb[0].mxu0
        %v3586 = vadd.f32 %v3473, %v3585
        %v3587 = vpop.f32.mrb[0].mxu0
        %v3588 = vadd.f32 %v3475, %v3587
        %v3589 = vpop.f32.mrb[0].mxu0
        %v3590 = vadd.f32 %v3477, %v3589
        %v3591 = vpop.f32.mrb[0].mxu0
        %v3592 = vadd.f32 %v3479, %v3591
        %3593 = vmatprep.mubr.bf16.mxu0 %v1207
        %3594 = vmatmul.mubr.bf16.gmra.mrb[0].mxu0 %v1206
        %v3595 = vpop.f32.mrb[0].mxu0
        %v3596 = vadd.f32 %v3483, %v3595
        %v3597 = vpop.f32.mrb[0].mxu0
        %v3598 = vadd.f32 %v3485, %v3597
        %v3599 = vpop.f32.mrb[0].mxu0
        %v3600 = vadd.f32 %v3487, %v3599
        %v3601 = vpop.f32.mrb[0].mxu0
        %v3602 = vadd.f32 %v3489, %v3601
        %3603 = vmatprep.mubr.bf16.mxu0 %v1211
        %3604 = vmatmul.mubr.bf16.gmra.mrb[0].mxu0 %v1210
        %v3605 = vpop.f32.mrb[0].mxu0
        %v3606 = vadd.f32 %v3493, %v3605
        %v3607 = vpop.f32.mrb[0].mxu0
        %v3608 = vadd.f32 %v3495, %v3607
        %v3609 = vpop.f32.mrb[0].mxu0
        %v3610 = vadd.f32 %v3497, %v3609
        %v3611 = vpop.f32.mrb[0].mxu0
        %v3612 = vadd.f32 %v3499, %v3611
        %3613 = vmatprep.mubr.bf16.mxu0 %v1215
        %3614 = vmatmul.mubr.bf16.gmra.mrb[0].mxu0 %v1214
        %v3615 = vpop.f32.mrb[0].mxu0
        %v3616 = vadd.f32 %v3503, %v3615
        %v3617 = vpop.f32.mrb[0].mxu0
        %v3618 = vadd.f32 %v3505, %v3617
        %v3619 = vpop.f32.mrb[0].mxu0
        %v3620 = vadd.f32 %v3507, %v3619
        %v3621 = vpop.f32.mrb[0].mxu0
        %v3622 = vadd.f32 %v3509, %v3621
        %3623 = vdwg.mxu0
        %3624 = vmatprep.subr.bf16.mxu0 0
        %3625 = vmatpush1.bf16.msra.mxu0 %v2152
        %3626 = vmatprep.subr.bf16.mxu0 0
        %3627 = vmatpush1.bf16.msra.mxu0 %v2161
        %3628 = vmatprep.subr.bf16.mxu0 0
        %3629 = vmatpush1.bf16.msra.mxu0 %v2170
        %3630 = vmatprep.subr.bf16.mxu0 0
        %3631 = vmatpush1.bf16.msra.mxu0 %v2179
        %3632 = vmatprep.subr.bf16.mxu0 0
        %3633 = vmatpush1.bf16.msra.mxu0 %v2188
        %3634 = vmatprep.subr.bf16.mxu0 0
        %3635 = vmatpush1.bf16.msra.mxu0 %v2197
        %3636 = vmatprep.subr.bf16.mxu0 0
        %3637 = vmatpush1.bf16.msra.mxu0 %v2206
        %3638 = vmatprep.subr.bf16.mxu0 0
        %3639 = vmatpush1.bf16.msra.mxu0 %v2215
        %3640 = vmatprep.subr.bf16.mxu0 0
        %3641 = vmatpush1.bf16.msra.mxu0 %v2224
        %3642 = vmatprep.subr.bf16.mxu0 0
        %3643 = vmatpush1.bf16.msra.mxu0 %v2233
        %3644 = vmatprep.subr.bf16.mxu0 0
        %3645 = vmatpush1.bf16.msra.mxu0 %v2242
        %3646 = vmatprep.subr.bf16.mxu0 0
        %3647 = vmatpush1.bf16.msra.mxu0 %v2251
        %3648 = vmatprep.subr.bf16.mxu0 0
        %3649 = vmatpush1.bf16.msra.mxu0 %v2260
        %3650 = vmatprep.subr.bf16.mxu0 0
        %3651 = vmatpush1.bf16.msra.mxu0 %v2269
        %3652 = vmatprep.subr.bf16.mxu0 0
        %3653 = vmatpush1.bf16.msra.mxu0 %v2278
        %3654 = vmatprep.subr.bf16.mxu0 0
        %3655 = vmatpush1.bf16.msra.mxu0 %v2287
        %3656 = vmatprep.mubr.bf16.mxu0 %v1185
        %3657 = vmatmul.mubr.bf16.gmra.mrb[0].mxu0 %v1184
        %v3658 = vpop.f32.mrb[0].mxu0
        %v3659 = vadd.f32 0.0, %v3658
        %v3660 = vpop.f32.mrb[0].mxu0
        %v3661 = vpop.f32.mrb[0].mxu0
        %v3662 = vadd.f32 0.0, %v3661
        %v3663 = vpop.f32.mrb[0].mxu0
        %3664 = vmatprep.mubr.bf16.mxu0 %v1189
        %3665 = vmatmul.mubr.bf16.gmra.mrb[0].mxu0 %v1188
        %v3666 = vpop.f32.mrb[0].mxu0
        %v3667 = vadd.f32 0.0, %v3666
        %v3668 = vpop.f32.mrb[0].mxu0
        %v3669 = vpop.f32.mrb[0].mxu0
        %v3670 = vadd.f32 0.0, %v3669
        %v3671 = vpop.f32.mrb[0].mxu0
        %3672 = vmatprep.mubr.bf16.mxu0 %v1193
        %3673 = vmatmul.mubr.bf16.gmra.mrb[0].mxu0 %v1192
        %v3674 = vpop.f32.mrb[0].mxu0
        %v3675 = vadd.f32 0.0, %v3674
        %v3676 = vpop.f32.mrb[0].mxu0
        %v3677 = vpop.f32.mrb[0].mxu0
        %v3678 = vadd.f32 0.0, %v3677
        %v3679 = vpop.f32.mrb[0].mxu0
        %3680 = vmatprep.mubr.bf16.mxu0 %v1197
        %3681 = vmatmul.mubr.bf16.gmra.mrb[0].mxu0 %v1196
        %v3682 = vpop.f32.mrb[0].mxu0
        %v3683 = vadd.f32 0.0, %v3682
        %v3684 = vpop.f32.mrb[0].mxu0
        %v3685 = vpop.f32.mrb[0].mxu0
        %v3686 = vadd.f32 0.0, %v3685
        %v3687 = vpop.f32.mrb[0].mxu0
        %3688 = vmatprep.mubr.bf16.mxu0 %v1201
        %3689 = vmatmul.mubr.bf16.gmra.mrb[0].mxu0 %v1200
        %v3690 = vpop.f32.mrb[0].mxu0
        %v3691 = vadd.f32 0.0, %v3690
        %v3692 = vpop.f32.mrb[0].mxu0
        %v3693 = vpop.f32.mrb[0].mxu0
        %v3694 = vadd.f32 0.0, %v3693
        %v3695 = vpop.f32.mrb[0].mxu0
        %3696 = vmatprep.mubr.bf16.mxu0 %v1205
        %3697 = vmatmul.mubr.bf16.gmra.mrb[0].mxu0 %v1204
        %v3698 = vpop.f32.mrb[0].mxu0
        %v3699 = vadd.f32 0.0, %v3698
        %v3700 = vpop.f32.mrb[0].mxu0
        %v3701 = vpop.f32.mrb[0].mxu0
        %v3702 = vadd.f32 0.0, %v3701
        %v3703 = vpop.f32.mrb[0].mxu0
        %3704 = vmatprep.mubr.bf16.mxu0 %v1209
        %3705 = vmatmul.mubr.bf16.gmra.mrb[0].mxu0 %v1208
        %v3706 = vpop.f32.mrb[0].mxu0
        %v3707 = vadd.f32 0.0, %v3706
        %v3708 = vpop.f32.mrb[0].mxu0
        %v3709 = vpop.f32.mrb[0].mxu0
        %v3710 = vadd.f32 0.0, %v3709
        %v3711 = vpop.f32.mrb[0].mxu0
        %3712 = vmatprep.mubr.bf16.mxu0 %v1213
        %3713 = vmatmul.mubr.bf16.gmra.mrb[0].mxu0 %v1212
        %v3714 = vpop.f32.mrb[0].mxu0
        %v3715 = vadd.f32 0.0, %v3714
        %v3716 = vpop.f32.mrb[0].mxu0
        %v3717 = vpop.f32.mrb[0].mxu0
        %v3718 = vadd.f32 0.0, %v3717
        %v3719 = vpop.f32.mrb[0].mxu0
        %3720 = vdwg.mxu0
        %3721 = vmatprep.subr.bf16.mxu0 0
        %3722 = vmatpush1.bf16.msra.mxu0 %v2296
        %3723 = vmatprep.subr.bf16.mxu0 0
        %3724 = vmatpush1.bf16.msra.mxu0 %v2305
        %3725 = vmatprep.subr.bf16.mxu0 0
        %3726 = vmatpush1.bf16.msra.mxu0 %v2314
        %3727 = vmatprep.subr.bf16.mxu0 0
        %3728 = vmatpush1.bf16.msra.mxu0 %v2323
        %3729 = vmatprep.subr.bf16.mxu0 0
        %3730 = vmatpush1.bf16.msra.mxu0 %v2332
        %3731 = vmatprep.subr.bf16.mxu0 0
        %3732 = vmatpush1.bf16.msra.mxu0 %v2341
        %3733 = vmatprep.subr.bf16.mxu0 0
        %3734 = vmatpush1.bf16.msra.mxu0 %v2350
        %3735 = vmatprep.subr.bf16.mxu0 0
        %3736 = vmatpush1.bf16.msra.mxu0 %v2359
        %3737 = vmatprep.subr.bf16.mxu0 0
        %3738 = vmatpush1.bf16.msra.mxu0 %v2368
        %3739 = vmatprep.subr.bf16.mxu0 0
        %3740 = vmatpush1.bf16.msra.mxu0 %v2377
        %3741 = vmatprep.subr.bf16.mxu0 0
        %3742 = vmatpush1.bf16.msra.mxu0 %v2386
        %3743 = vmatprep.subr.bf16.mxu0 0
        %3744 = vmatpush1.bf16.msra.mxu0 %v2395
        %3745 = vmatprep.subr.bf16.mxu0 0
        %3746 = vmatpush1.bf16.msra.mxu0 %v2404
        %3747 = vmatprep.subr.bf16.mxu0 0
        %3748 = vmatpush1.bf16.msra.mxu0 %v2413
        %3749 = vmatprep.subr.bf16.mxu0 0
        %3750 = vmatpush1.bf16.msra.mxu0 %v2422
        %3751 = vmatprep.subr.bf16.mxu0 0
        %3752 = vmatpush1.bf16.msra.mxu0 %v2431
        %3753 = vmatprep.mubr.bf16.mxu0 %v1187
        %3754 = vmatmul.mubr.bf16.gmra.mrb[0].mxu0 %v1186
        %v3755 = vpop.f32.mrb[0].mxu0
        %v3756 = vadd.f32 %v3659, %v3755
        %v3757 = vpop.f32.mrb[0].mxu0
        %v3758 = vpop.f32.mrb[0].mxu0
        %v3759 = vadd.f32 %v3662, %v3758
        %v3760 = vpop.f32.mrb[0].mxu0
        %3761 = vmatprep.mubr.bf16.mxu0 %v1191
        %3762 = vmatmul.mubr.bf16.gmra.mrb[0].mxu0 %v1190
        %v3763 = vpop.f32.mrb[0].mxu0
        %v3764 = vadd.f32 %v3667, %v3763
        %v3765 = vpop.f32.mrb[0].mxu0
        %v3766 = vpop.f32.mrb[0].mxu0
        %v3767 = vadd.f32 %v3670, %v3766
        %v3768 = vpop.f32.mrb[0].mxu0
        %3769 = vmatprep.mubr.bf16.mxu0 %v1195
        %3770 = vmatmul.mubr.bf16.gmra.mrb[0].mxu0 %v1194
        %v3771 = vpop.f32.mrb[0].mxu0
        %v3772 = vadd.f32 %v3675, %v3771
        %v3773 = vpop.f32.mrb[0].mxu0
        %v3774 = vpop.f32.mrb[0].mxu0
        %v3775 = vadd.f32 %v3678, %v3774
        %v3776 = vpop.f32.mrb[0].mxu0
        %3777 = vmatprep.mubr.bf16.mxu0 %v1199
        %3778 = vmatmul.mubr.bf16.gmra.mrb[0].mxu0 %v1198
        %v3779 = vpop.f32.mrb[0].mxu0
        %v3780 = vadd.f32 %v3683, %v3779
        %v3781 = vpop.f32.mrb[0].mxu0
        %v3782 = vpop.f32.mrb[0].mxu0
        %v3783 = vadd.f32 %v3686, %v3782
        %v3784 = vpop.f32.mrb[0].mxu0
        %3785 = vmatprep.mubr.bf16.mxu0 %v1203
        %3786 = vmatmul.mubr.bf16.gmra.mrb[0].mxu0 %v1202
        %v3787 = vpop.f32.mrb[0].mxu0
        %v3788 = vadd.f32 %v3691, %v3787
        %v3789 = vpop.f32.mrb[0].mxu0
        %v3790 = vpop.f32.mrb[0].mxu0
        %v3791 = vadd.f32 %v3694, %v3790
        %v3792 = vpop.f32.mrb[0].mxu0
        %3793 = vmatprep.mubr.bf16.mxu0 %v1207
        %3794 = vmatmul.mubr.bf16.gmra.mrb[0].mxu0 %v1206
        %v3795 = vpop.f32.mrb[0].mxu0
        %v3796 = vadd.f32 %v3699, %v3795
        %v3797 = vpop.f32.mrb[0].mxu0
        %v3798 = vpop.f32.mrb[0].mxu0
        %v3799 = vadd.f32 %v3702, %v3798
        %v3800 = vpop.f32.mrb[0].mxu0
        %3801 = vmatprep.mubr.bf16.mxu0 %v1211
        %3802 = vmatmul.mubr.bf16.gmra.mrb[0].mxu0 %v1210
        %v3803 = vpop.f32.mrb[0].mxu0
        %v3804 = vadd.f32 %v3707, %v3803
        %v3805 = vpop.f32.mrb[0].mxu0
        %v3806 = vpop.f32.mrb[0].mxu0
        %v3807 = vadd.f32 %v3710, %v3806
        %v3808 = vpop.f32.mrb[0].mxu0
        %3809 = vmatprep.mubr.bf16.mxu0 %v1215
        %3810 = vmatmul.mubr.bf16.gmra.mrb[0].mxu0 %v1214
        %v3811 = vpop.f32.mrb[0].mxu0
        %v3812 = vadd.f32 %v3715, %v3811
        %v3813 = vpop.f32.mrb[0].mxu0
        %v3814 = vpop.f32.mrb[0].mxu0
        %v3815 = vadd.f32 %v3718, %v3814
        %v3816 = vpop.f32.mrb[0].mxu0
        %3817 = vdwg.mxu0
        %v3818 = vadd.f32 %v592, %v2868
        %v3819 = vadd.f32 %v593, %v2870
        %v3820 = vadd.f32 %v594, %v3094
        %v3821 = vadd.f32 %v595, %v3096
        %v3822 = vadd.f32 %v596, %v3320
        %v3823 = vadd.f32 %v597, %v3322
        %v3824 = vadd.f32 %v598, %v3546
        %v3825 = vadd.f32 %v599, %v3548
        %v3826 = vadd.f32 %v600, %v3756
        %v3827 = vadd.f32 %v601, %v2872
        %v3828 = vadd.f32 %v602, %v2874
        %v3829 = vadd.f32 %v603, %v3098
        %v3830 = vadd.f32 %v604, %v3100
        %v3831 = vadd.f32 %v605, %v3324
        %v3832 = vadd.f32 %v606, %v3326
        %v3833 = vadd.f32 %v607, %v3550
        %v3834 = vadd.f32 %v608, %v3552
        %v3835 = vadd.f32 %v609, %v3759
        %v3836 = vadd.f32 %v610, %v2878
        %v3837 = vadd.f32 %v611, %v2880
        %v3838 = vadd.f32 %v612, %v3104
        %v3839 = vadd.f32 %v613, %v3106
        %v3840 = vadd.f32 %v614, %v3330
        %v3841 = vadd.f32 %v615, %v3332
        %v3842 = vadd.f32 %v616, %v3556
        %v3843 = vadd.f32 %v617, %v3558
        %v3844 = vadd.f32 %v618, %v3764
        %v3845 = vadd.f32 %v619, %v2882
        %v3846 = vadd.f32 %v620, %v2884
        %v3847 = vadd.f32 %v621, %v3108
        %v3848 = vadd.f32 %v622, %v3110
        %v3849 = vadd.f32 %v623, %v3334
        %v3850 = vadd.f32 %v624, %v3336
        %v3851 = vadd.f32 %v625, %v3560
        %v3852 = vadd.f32 %v626, %v3562
        %v3853 = vadd.f32 %v627, %v3767
        %v3854 = vadd.f32 %v628, %v2888
        %v3855 = vadd.f32 %v629, %v2890
        %v3856 = vadd.f32 %v630, %v3114
        %v3857 = vadd.f32 %v631, %v3116
        %v3858 = vadd.f32 %v632, %v3340
        %v3859 = vadd.f32 %v633, %v3342
        %v3860 = vadd.f32 %v634, %v3566
        %v3861 = vadd.f32 %v635, %v3568
        %v3862 = vadd.f32 %v636, %v3772
        %v3863 = vadd.f32 %v637, %v2892
        %v3864 = vadd.f32 %v638, %v2894
        %v3865 = vadd.f32 %v639, %v3118
        %v3866 = vadd.f32 %v640, %v3120
        %v3867 = vadd.f32 %v641, %v3344
        %v3868 = vadd.f32 %v642, %v3346
        %v3869 = vadd.f32 %v643, %v3570
        %v3870 = vadd.f32 %v644, %v3572
        %v3871 = vadd.f32 %v645, %v3775
        %v3872 = vadd.f32 %v646, %v2898
        %v3873 = vadd.f32 %v647, %v2900
        %v3874 = vadd.f32 %v648, %v3124
        %v3875 = vadd.f32 %v649, %v3126
        %v3876 = vadd.f32 %v650, %v3350
        %v3877 = vadd.f32 %v651, %v3352
        %v3878 = vadd.f32 %v652, %v3576
        %v3879 = vadd.f32 %v653, %v3578
        %v3880 = vadd.f32 %v654, %v3780
        %v3881 = vadd.f32 %v655, %v2902
        %v3882 = vadd.f32 %v656, %v2904
        %v3883 = vadd.f32 %v657, %v3128
        %v3884 = vadd.f32 %v658, %v3130
        %v3885 = vadd.f32 %v659, %v3354
        %v3886 = vadd.f32 %v660, %v3356
        %v3887 = vadd.f32 %v661, %v3580
        %v3888 = vadd.f32 %v662, %v3582
        %v3889 = vadd.f32 %v663, %v3783
        %v3890 = vadd.f32 %v664, %v2908
        %v3891 = vadd.f32 %v665, %v2910
        %v3892 = vadd.f32 %v666, %v3134
        %v3893 = vadd.f32 %v667, %v3136
        %v3894 = vadd.f32 %v668, %v3360
        %v3895 = vadd.f32 %v669, %v3362
        %v3896 = vadd.f32 %v670, %v3586
        %v3897 = vadd.f32 %v671, %v3588
        %v3898 = vadd.f32 %v672, %v3788
        %v3899 = vadd.f32 %v673, %v2912
        %v3900 = vadd.f32 %v674, %v2914
        %v3901 = vadd.f32 %v675, %v3138
        %v3902 = vadd.f32 %v676, %v3140
        %v3903 = vadd.f32 %v677, %v3364
        %v3904 = vadd.f32 %v678, %v3366
        %v3905 = vadd.f32 %v679, %v3590
        %v3906 = vadd.f32 %v680, %v3592
        %v3907 = vadd.f32 %v681, %v3791
        %v3908 = vadd.f32 %v682, %v2918
        %v3909 = vadd.f32 %v683, %v2920
        %v3910 = vadd.f32 %v684, %v3144
        %v3911 = vadd.f32 %v685, %v3146
        %v3912 = vadd.f32 %v686, %v3370
        %v3913 = vadd.f32 %v687, %v3372
        %v3914 = vadd.f32 %v688, %v3596
        %v3915 = vadd.f32 %v689, %v3598
        %v3916 = vadd.f32 %v690, %v3796
        %v3917 = vadd.f32 %v691, %v2922
        %v3918 = vadd.f32 %v692, %v2924
        %v3919 = vadd.f32 %v693, %v3148
        %v3920 = vadd.f32 %v694, %v3150
        %v3921 = vadd.f32 %v695, %v3374
        %v3922 = vadd.f32 %v696, %v3376
        %v3923 = vadd.f32 %v697, %v3600
        %v3924 = vadd.f32 %v698, %v3602
        %v3925 = vadd.f32 %v699, %v3799
        %v3926 = vadd.f32 %v700, %v2928
        %v3927 = vadd.f32 %v701, %v2930
        %v3928 = vadd.f32 %v702, %v3154
        %v3929 = vadd.f32 %v703, %v3156
        %v3930 = vadd.f32 %v704, %v3380
        %v3931 = vadd.f32 %v705, %v3382
        %v3932 = vadd.f32 %v706, %v3606
        %v3933 = vadd.f32 %v707, %v3608
        %v3934 = vadd.f32 %v708, %v3804
        %v3935 = vadd.f32 %v709, %v2932
        %v3936 = vadd.f32 %v710, %v2934
        %v3937 = vadd.f32 %v711, %v3158
        %v3938 = vadd.f32 %v712, %v3160
        %v3939 = vadd.f32 %v713, %v3384
        %v3940 = vadd.f32 %v714, %v3386
        %v3941 = vadd.f32 %v715, %v3610
        %v3942 = vadd.f32 %v716, %v3612
        %v3943 = vadd.f32 %v717, %v3807
        %v3944 = vadd.f32 %v718, %v2938
        %v3945 = vadd.f32 %v719, %v2940
        %v3946 = vadd.f32 %v720, %v3164
        %v3947 = vadd.f32 %v721, %v3166
        %v3948 = vadd.f32 %v722, %v3390
        %v3949 = vadd.f32 %v723, %v3392
        %v3950 = vadd.f32 %v724, %v3616
        %v3951 = vadd.f32 %v725, %v3618
        %v3952 = vadd.f32 %v726, %v3812
        %v3953 = vadd.f32 %v727, %v2942
        %v3954 = vadd.f32 %v728, %v2944
        %v3955 = vadd.f32 %v729, %v3168
        %v3956 = vadd.f32 %v730, %v3170
        %v3957 = vadd.f32 %v731, %v3394
        %v3958 = vadd.f32 %v732, %v3396
        %v3959 = vadd.f32 %v733, %v3620
        %v3960 = vadd.f32 %v734, %v3622
        %v3961 = vadd.f32 %v735, %v3815
        %3962 = vst [vmem:[#allocation2] sm:$0xff] %v3818
        %3963 = vst [vmem:[#allocation2 + $0x8] sm:$0xff] %v3819
        %3964 = vst [vmem:[#allocation2 + $0x10] sm:$0xff] %v3820
        %3965 = vst [vmem:[#allocation2 + $0x18] sm:$0xff] %v3821
        %3966 = vst [vmem:[#allocation2 + $0x20] sm:$0xff] %v3822
        %3967 = vst [vmem:[#allocation2 + $0x28] sm:$0xff] %v3823
        %3968 = vst [vmem:[#allocation2 + $0x30] sm:$0xff] %v3824
        %3969 = vst [vmem:[#allocation2 + $0x38] sm:$0xff] %v3825
        %3970 = vst [vmem:[#allocation2 + $0x40] sm:$0xff] %v3826
        %3971 = vst [vmem:[#allocation2 + $0x48] sm:$0xff] %v3827
        %3972 = vst [vmem:[#allocation2 + $0x50] sm:$0xff] %v3828
        %3973 = vst [vmem:[#allocation2 + $0x58] sm:$0xff] %v3829
        %3974 = vst [vmem:[#allocation2 + $0x60] sm:$0xff] %v3830
        %3975 = vst [vmem:[#allocation2 + $0x68] sm:$0xff] %v3831
        %3976 = vst [vmem:[#allocation2 + $0x70] sm:$0xff] %v3832
        %3977 = vst [vmem:[#allocation2 + $0x78] sm:$0xff] %v3833
        %3978 = vst [vmem:[#allocation2 + $0x80] sm:$0xff] %v3834
        %3979 = vst [vmem:[#allocation2 + $0x88] sm:$0xff] %v3835
        %3980 = vst [vmem:[#allocation2 + $0x90] sm:$0xff] %v3836
        %3981 = vst [vmem:[#allocation2 + $0x98] sm:$0xff] %v3837
        %3982 = vst [vmem:[#allocation2 + $0xa0] sm:$0xff] %v3838
        %3983 = vst [vmem:[#allocation2 + $0xa8] sm:$0xff] %v3839
        %3984 = vst [vmem:[#allocation2 + $0xb0] sm:$0xff] %v3840
        %3985 = vst [vmem:[#allocation2 + $0xb8] sm:$0xff] %v3841
        %3986 = vst [vmem:[#allocation2 + $0xc0] sm:$0xff] %v3842
        %3987 = vst [vmem:[#allocation2 + $0xc8] sm:$0xff] %v3843
        %3988 = vst [vmem:[#allocation2 + $0xd0] sm:$0xff] %v3844
        %3989 = vst [vmem:[#allocation2 + $0xd8] sm:$0xff] %v3845
        %3990 = vst [vmem:[#allocation2 + $0xe0] sm:$0xff] %v3846
        %3991 = vst [vmem:[#allocation2 + $0xe8] sm:$0xff] %v3847
        %3992 = vst [vmem:[#allocation2 + $0xf0] sm:$0xff] %v3848
        %3993 = vst [vmem:[#allocation2 + $0xf8] sm:$0xff] %v3849
        %3994 = vst [vmem:[#allocation2 + $0x100] sm:$0xff] %v3850
        %3995 = vst [vmem:[#allocation2 + $0x108] sm:$0xff] %v3851
        %3996 = vst [vmem:[#allocation2 + $0x110] sm:$0xff] %v3852
        %3997 = vst [vmem:[#allocation2 + $0x118] sm:$0xff] %v3853
        %3998 = vst [vmem:[#allocation2 + $0x120] sm:$0xff] %v3854
        %3999 = vst [vmem:[#allocation2 + $0x128] sm:$0xff] %v3855
        %4000 = vst [vmem:[#allocation2 + $0x130] sm:$0xff] %v3856
        %4001 = vst [vmem:[#allocation2 + $0x138] sm:$0xff] %v3857
        %4002 = vst [vmem:[#allocation2 + $0x140] sm:$0xff] %v3858
        %4003 = vst [vmem:[#allocation2 + $0x148] sm:$0xff] %v3859
        %4004 = vst [vmem:[#allocation2 + $0x150] sm:$0xff] %v3860
        %4005 = vst [vmem:[#allocation2 + $0x158] sm:$0xff] %v3861
        %4006 = vst [vmem:[#allocation2 + $0x160] sm:$0xff] %v3862
        %4007 = vst [vmem:[#allocation2 + $0x168] sm:$0xff] %v3863
        %4008 = vst [vmem:[#allocation2 + $0x170] sm:$0xff] %v3864
        %4009 = vst [vmem:[#allocation2 + $0x178] sm:$0xff] %v3865
        %4010 = vst [vmem:[#allocation2 + $0x180] sm:$0xff] %v3866
        %4011 = vst [vmem:[#allocation2 + $0x188] sm:$0xff] %v3867
        %4012 = vst [vmem:[#allocation2 + $0x190] sm:$0xff] %v3868
        %4013 = vst [vmem:[#allocation2 + $0x198] sm:$0xff] %v3869
        %4014 = vst [vmem:[#allocation2 + $0x1a0] sm:$0xff] %v3870
        %4015 = vst [vmem:[#allocation2 + $0x1a8] sm:$0xff] %v3871
        %4016 = vst [vmem:[#allocation2 + $0x1b0] sm:$0xff] %v3872
        %4017 = vst [vmem:[#allocation2 + $0x1b8] sm:$0xff] %v3873
        %4018 = vst [vmem:[#allocation2 + $0x1c0] sm:$0xff] %v3874
        %4019 = vst [vmem:[#allocation2 + $0x1c8] sm:$0xff] %v3875
        %4020 = vst [vmem:[#allocation2 + $0x1d0] sm:$0xff] %v3876
        %4021 = vst [vmem:[#allocation2 + $0x1d8] sm:$0xff] %v3877
        %4022 = vst [vmem:[#allocation2 + $0x1e0] sm:$0xff] %v3878
        %4023 = vst [vmem:[#allocation2 + $0x1e8] sm:$0xff] %v3879
        %4024 = vst [vmem:[#allocation2 + $0x1f0] sm:$0xff] %v3880
        %4025 = vst [vmem:[#allocation2 + $0x1f8] sm:$0xff] %v3881
        %4026 = vst [vmem:[#allocation2 + $0x200] sm:$0xff] %v3882
        %4027 = vst [vmem:[#allocation2 + $0x208] sm:$0xff] %v3883
        %4028 = vst [vmem:[#allocation2 + $0x210] sm:$0xff] %v3884
        %4029 = vst [vmem:[#allocation2 + $0x218] sm:$0xff] %v3885
        %4030 = vst [vmem:[#allocation2 + $0x220] sm:$0xff] %v3886
        %4031 = vst [vmem:[#allocation2 + $0x228] sm:$0xff] %v3887
        %4032 = vst [vmem:[#allocation2 + $0x230] sm:$0xff] %v3888
        %4033 = vst [vmem:[#allocation2 + $0x238] sm:$0xff] %v3889
        %4034 = vst [vmem:[#allocation2 + $0x240] sm:$0xff] %v3890
        %4035 = vst [vmem:[#allocation2 + $0x248] sm:$0xff] %v3891
        %4036 = vst [vmem:[#allocation2 + $0x250] sm:$0xff] %v3892
        %4037 = vst [vmem:[#allocation2 + $0x258] sm:$0xff] %v3893
        %4038 = vst [vmem:[#allocation2 + $0x260] sm:$0xff] %v3894
        %4039 = vst [vmem:[#allocation2 + $0x268] sm:$0xff] %v3895
        %4040 = vst [vmem:[#allocation2 + $0x270] sm:$0xff] %v3896
        %4041 = vst [vmem:[#allocation2 + $0x278] sm:$0xff] %v3897
        %4042 = vst [vmem:[#allocation2 + $0x280] sm:$0xff] %v3898
        %4043 = vst [vmem:[#allocation2 + $0x288] sm:$0xff] %v3899
        %4044 = vst [vmem:[#allocation2 + $0x290] sm:$0xff] %v3900
        %4045 = vst [vmem:[#allocation2 + $0x298] sm:$0xff] %v3901
        %4046 = vst [vmem:[#allocation2 + $0x2a0] sm:$0xff] %v3902
        %4047 = vst [vmem:[#allocation2 + $0x2a8] sm:$0xff] %v3903
        %4048 = vst [vmem:[#allocation2 + $0x2b0] sm:$0xff] %v3904
        %4049 = vst [vmem:[#allocation2 + $0x2b8] sm:$0xff] %v3905
        %4050 = vst [vmem:[#allocation2 + $0x2c0] sm:$0xff] %v3906
        %4051 = vst [vmem:[#allocation2 + $0x2c8] sm:$0xff] %v3907
        %4052 = vst [vmem:[#allocation2 + $0x2d0] sm:$0xff] %v3908
        %4053 = vst [vmem:[#allocation2 + $0x2d8] sm:$0xff] %v3909
        %4054 = vst [vmem:[#allocation2 + $0x2e0] sm:$0xff] %v3910
        %4055 = vst [vmem:[#allocation2 + $0x2e8] sm:$0xff] %v3911
        %4056 = vst [vmem:[#allocation2 + $0x2f0] sm:$0xff] %v3912
        %4057 = vst [vmem:[#allocation2 + $0x2f8] sm:$0xff] %v3913
        %4058 = vst [vmem:[#allocation2 + $0x300] sm:$0xff] %v3914
        %4059 = vst [vmem:[#allocation2 + $0x308] sm:$0xff] %v3915
        %4060 = vst [vmem:[#allocation2 + $0x310] sm:$0xff] %v3916
        %4061 = vst [vmem:[#allocation2 + $0x318] sm:$0xff] %v3917
        %4062 = vst [vmem:[#allocation2 + $0x320] sm:$0xff] %v3918
        %4063 = vst [vmem:[#allocation2 + $0x328] sm:$0xff] %v3919
        %4064 = vst [vmem:[#allocation2 + $0x330] sm:$0xff] %v3920
        %4065 = vst [vmem:[#allocation2 + $0x338] sm:$0xff] %v3921
        %4066 = vst [vmem:[#allocation2 + $0x340] sm:$0xff] %v3922
        %4067 = vst [vmem:[#allocation2 + $0x348] sm:$0xff] %v3923
        %4068 = vst [vmem:[#allocation2 + $0x350] sm:$0xff] %v3924
        %4069 = vst [vmem:[#allocation2 + $0x358] sm:$0xff] %v3925
        %4070 = vst [vmem:[#allocation2 + $0x360] sm:$0xff] %v3926
        %4071 = vst [vmem:[#allocation2 + $0x368] sm:$0xff] %v3927
        %4072 = vst [vmem:[#allocation2 + $0x370] sm:$0xff] %v3928
        %4073 = vst [vmem:[#allocation2 + $0x378] sm:$0xff] %v3929
        %4074 = vst [vmem:[#allocation2 + $0x380] sm:$0xff] %v3930
        %4075 = vst [vmem:[#allocation2 + $0x388] sm:$0xff] %v3931
        %4076 = vst [vmem:[#allocation2 + $0x390] sm:$0xff] %v3932
        %4077 = vst [vmem:[#allocation2 + $0x398] sm:$0xff] %v3933
        %4078 = vst [vmem:[#allocation2 + $0x3a0] sm:$0xff] %v3934
        %4079 = vst [vmem:[#allocation2 + $0x3a8] sm:$0xff] %v3935
        %4080 = vst [vmem:[#allocation2 + $0x3b0] sm:$0xff] %v3936
        %4081 = vst [vmem:[#allocation2 + $0x3b8] sm:$0xff] %v3937
        %4082 = vst [vmem:[#allocation2 + $0x3c0] sm:$0xff] %v3938
        %4083 = vst [vmem:[#allocation2 + $0x3c8] sm:$0xff] %v3939
        %4084 = vst [vmem:[#allocation2 + $0x3d0] sm:$0xff] %v3940
        %4085 = vst [vmem:[#allocation2 + $0x3d8] sm:$0xff] %v3941
        %4086 = vst [vmem:[#allocation2 + $0x3e0] sm:$0xff] %v3942
        %4087 = vst [vmem:[#allocation2 + $0x3e8] sm:$0xff] %v3943
        %4088 = vst [vmem:[#allocation2 + $0x3f0] sm:$0xff] %v3944
        %4089 = vst [vmem:[#allocation2 + $0x3f8] sm:$0xff] %v3945
        %4090 = vst [vmem:[#allocation2 + $0x400] sm:$0xff] %v3946
        %4091 = vst [vmem:[#allocation2 + $0x408] sm:$0xff] %v3947
        %4092 = vst [vmem:[#allocation2 + $0x410] sm:$0xff] %v3948
        %4093 = vst [vmem:[#allocation2 + $0x418] sm:$0xff] %v3949
        %4094 = vst [vmem:[#allocation2 + $0x420] sm:$0xff] %v3950
        %4095 = vst [vmem:[#allocation2 + $0x428] sm:$0xff] %v3951
        %4096 = vst [vmem:[#allocation2 + $0x430] sm:$0xff] %v3952
        %4097 = vst [vmem:[#allocation2 + $0x438] sm:$0xff] %v3953
        %4098 = vst [vmem:[#allocation2 + $0x440] sm:$0xff] %v3954
        %4099 = vst [vmem:[#allocation2 + $0x448] sm:$0xff] %v3955
        %4100 = vst [vmem:[#allocation2 + $0x450] sm:$0xff] %v3956
        %4101 = vst [vmem:[#allocation2 + $0x458] sm:$0xff] %v3957
        %4102 = vst [vmem:[#allocation2 + $0x460] sm:$0xff] %v3958
        %4103 = vst [vmem:[#allocation2 + $0x468] sm:$0xff] %v3959
        %4104 = vst [vmem:[#allocation2 + $0x470] sm:$0xff] %v3960
        %4105 = vst [vmem:[#allocation2 + $0x478] sm:$0xff] %v3961
        %p4106 = scmp.eq.s32.totalorder %s25, 3
        // Predicated region
        $region76: #{proposal_net_forward.2} parent=66 // pred_check
          %p4107 = pneg %p4106
        $region77: #{proposal_net_forward.2} parent=66 // pred_check_branch
          %4109 = sbr.rel (%p4107) target = $region79
        $region78: #{proposal_net_forward.2} parent=66 // pred_region
          %v4110 = vld [vmem:[#allocation2] sm:$0xff]
          %v4111 = vld [vmem:[#allocation2 + $0x8] sm:$0xff]
          %v4112 = vld [vmem:[#allocation2 + $0x10] sm:$0xff]
          %v4113 = vld [vmem:[#allocation2 + $0x48] sm:$0xff]
          %v4114 = vld [vmem:[#allocation2 + $0x50] sm:$0xff]
          %v4115 = vld [vmem:[#allocation2 + $0x58] sm:$0xff]
          %v4116 = vld [vmem:[#allocation2 + $0x60] sm:$0xff]
          %v4117 = vld [vmem:[#allocation2 + $0x68] sm:$0xff]
          %v4118 = vld [vmem:[#allocation2 + $0x70] sm:$0xff]
          %v4119 = vld [vmem:[#allocation2 + $0x90] sm:$0xff]
          %v4120 = vld [vmem:[#allocation2 + $0x98] sm:$0xff]
          %v4121 = vld [vmem:[#allocation2 + $0xa0] sm:$0xff]
          %v4122 = vld [vmem:[#allocation2 + $0xa8] sm:$0xff]
          %v4123 = vld [vmem:[#allocation2 + $0xb0] sm:$0xff]
          %v4124 = vld [vmem:[#allocation2 + $0xb8] sm:$0xff]
          %v4125 = vld [vmem:[#allocation2 + $0xc0] sm:$0xff]
          %v4126 = vld [vmem:[#allocation2 + $0xc8] sm:$0xff]
          %v4127 = vld [vmem:[#allocation2 + $0xd0] sm:$0xff]
          %v4128 = vld [vmem:[#allocation2 + $0xd8] sm:$0xff]
          %v4129 = vld [vmem:[#allocation2 + $0xe0] sm:$0xff]
          %v4130 = vld [vmem:[#allocation2 + $0xe8] sm:$0xff]
          %v4131 = vld [vmem:[#allocation2 + $0xf0] sm:$0xff]
          %v4132 = vld [vmem:[#allocation2 + $0xf8] sm:$0xff]
          %v4133 = vld [vmem:[#allocation2 + $0x100] sm:$0xff]
          %v4134 = vld [vmem:[#allocation2 + $0x108] sm:$0xff]
          %v4135 = vld [vmem:[#allocation2 + $0x110] sm:$0xff]
          %v4136 = vld [vmem:[#allocation2 + $0x118] sm:$0xff]
          %v4137 = vld [vmem:[#allocation2 + $0x120] sm:$0xff]
          %v4138 = vld [vmem:[#allocation2 + $0x128] sm:$0xff]
          %v4139 = vld [vmem:[#allocation2 + $0x130] sm:$0xff]
          %v4140 = vld [vmem:[#allocation2 + $0x138] sm:$0xff]
          %v4141 = vld [vmem:[#allocation2 + $0x140] sm:$0xff]
          %v4142 = vld [vmem:[#allocation2 + $0x148] sm:$0xff]
          %v4143 = vld [vmem:[#allocation2 + $0x150] sm:$0xff]
          %v4144 = vld [vmem:[#allocation2 + $0x158] sm:$0xff]
          %v4145 = vld [vmem:[#allocation2 + $0x160] sm:$0xff]
          %v4146 = vld [vmem:[#allocation2 + $0x168] sm:$0xff]
          %v4147 = vld [vmem:[#allocation2 + $0x170] sm:$0xff]
          %v4148 = vld [vmem:[#allocation2 + $0x178] sm:$0xff]
          %v4149 = vld [vmem:[#allocation2 + $0x180] sm:$0xff]
          %v4150 = vld [vmem:[#allocation2 + $0x188] sm:$0xff]
          %v4151 = vld [vmem:[#allocation2 + $0x190] sm:$0xff]
          %v4152 = vld [vmem:[#allocation2 + $0x198] sm:$0xff]
          %v4153 = vld [vmem:[#allocation2 + $0x1a0] sm:$0xff]
          %v4154 = vld [vmem:[#allocation2 + $0x1a8] sm:$0xff]
          %v4155 = vld [vmem:[#allocation2 + $0x1b0] sm:$0xff]
          %v4156 = vld [vmem:[#allocation2 + $0x1b8] sm:$0xff]
          %v4157 = vld [vmem:[#allocation2 + $0x1c0] sm:$0xff]
          %v4158 = vld [vmem:[#allocation2 + $0x1c8] sm:$0xff]
          %v4159 = vld [vmem:[#allocation2 + $0x1d0] sm:$0xff]
          %v4160 = vld [vmem:[#allocation2 + $0x1d8] sm:$0xff]
          %v4161 = vld [vmem:[#allocation2 + $0x1e0] sm:$0xff]
          %v4162 = vld [vmem:[#allocation2 + $0x1e8] sm:$0xff]
          %v4163 = vld [vmem:[#allocation2 + $0x1f0] sm:$0xff]
          %v4164 = vld [vmem:[#allocation2 + $0x1f8] sm:$0xff]
          %v4165 = vld [vmem:[#allocation2 + $0x200] sm:$0xff]
          %v4166 = vld [vmem:[#allocation2 + $0x208] sm:$0xff]
          %v4167 = vld [vmem:[#allocation2 + $0x210] sm:$0xff]
          %v4168 = vld [vmem:[#allocation2 + $0x218] sm:$0xff]
          %v4169 = vld [vmem:[#allocation2 + $0x220] sm:$0xff]
          %v4170 = vld [vmem:[#allocation2 + $0x228] sm:$0xff]
          %v4171 = vld [vmem:[#allocation2 + $0x230] sm:$0xff]
          %v4172 = vld [vmem:[#allocation2 + $0x238] sm:$0xff]
          %v4173 = vld [vmem:[#allocation2 + $0x240] sm:$0xff]
          %v4174 = vld [vmem:[#allocation2 + $0x248] sm:$0xff]
          %v4175 = vld [vmem:[#allocation2 + $0x250] sm:$0xff]
          %v4176 = vld [vmem:[#allocation2 + $0x258] sm:$0xff]
          %v4177 = vld [vmem:[#allocation2 + $0x260] sm:$0xff]
          %v4178 = vld [vmem:[#allocation2 + $0x268] sm:$0xff]
          %v4179 = vld [vmem:[#allocation2 + $0x270] sm:$0xff]
          %v4180 = vld [vmem:[#allocation2 + $0x278] sm:$0xff]
          %v4181 = vld [vmem:[#allocation2 + $0x280] sm:$0xff]
          %v4182 = vld [vmem:[#allocation2 + $0x288] sm:$0xff]
          %v4183 = vld [vmem:[#allocation2 + $0x290] sm:$0xff]
          %v4184 = vld [vmem:[#allocation2 + $0x298] sm:$0xff]
          %v4185 = vld [vmem:[#allocation2 + $0x2a0] sm:$0xff]
          %v4186 = vld [vmem:[#allocation2 + $0x2a8] sm:$0xff]
          %v4187 = vld [vmem:[#allocation2 + $0x2b0] sm:$0xff]
          %v4188 = vld [vmem:[#allocation2 + $0x2b8] sm:$0xff]
          %v4189 = vld [vmem:[#allocation2 + $0x2c0] sm:$0xff]
          %v4190 = vld [vmem:[#allocation2 + $0x2c8] sm:$0xff]
          %v4191 = vld [vmem:[#allocation2 + $0x2d0] sm:$0xff]
          %v4192 = vld [vmem:[#allocation2 + $0x2d8] sm:$0xff]
          %v4193 = vld [vmem:[#allocation2 + $0x2e0] sm:$0xff]
          %v4194 = vld [vmem:[#allocation2 + $0x2e8] sm:$0xff]
          %v4195 = vld [vmem:[#allocation2 + $0x2f0] sm:$0xff]
          %v4196 = vld [vmem:[#allocation2 + $0x2f8] sm:$0xff]
          %v4197 = vld [vmem:[#allocation2 + $0x300] sm:$0xff]
          %v4198 = vld [vmem:[#allocation2 + $0x308] sm:$0xff]
          %v4199 = vld [vmem:[#allocation2 + $0x310] sm:$0xff]
          %v4200 = vld [vmem:[#allocation2 + $0x318] sm:$0xff]
          %v4201 = vld [vmem:[#allocation2 + $0x320] sm:$0xff]
          %v4202 = vld [vmem:[#allocation2 + $0x328] sm:$0xff]
          %v4203 = vld [vmem:[#allocation2 + $0x330] sm:$0xff]
          %v4204 = vld [vmem:[#allocation2 + $0x338] sm:$0xff]
          %v4205 = vld [vmem:[#allocation2 + $0x340] sm:$0xff]
          %v4206 = vld [vmem:[#allocation2 + $0x348] sm:$0xff]
          %v4207 = vld [vmem:[#allocation2 + $0x350] sm:$0xff]
          %v4208 = vld [vmem:[#allocation2 + $0x358] sm:$0xff]
          %v4209 = vld [vmem:[#allocation2 + $0x360] sm:$0xff]
          %v4210 = vld [vmem:[#allocation2 + $0x368] sm:$0xff]
          %v4211 = vld [vmem:[#allocation2 + $0x370] sm:$0xff]
          %v4212 = vld [vmem:[#allocation2 + $0x378] sm:$0xff]
          %v4213 = vld [vmem:[#allocation2 + $0x380] sm:$0xff]
          %v4214 = vld [vmem:[#allocation2 + $0x388] sm:$0xff]
          %v4215 = vld [vmem:[#allocation2 + $0x390] sm:$0xff]
          %v4216 = vld [vmem:[#allocation2 + $0x398] sm:$0xff]
          %v4217 = vld [vmem:[#allocation2 + $0x3a0] sm:$0xff]
          %v4218 = vld [vmem:[#allocation2 + $0x3c0] sm:$0xff]
          %v4219 = vld [vmem:[#allocation2 + $0x3c8] sm:$0xff]
          %v4220 = vld [vmem:[#allocation2 + $0x3d0] sm:$0xff]
          %v4221 = vld [vmem:[#allocation2 + $0x3d8] sm:$0xff]
          %v4222 = vld [vmem:[#allocation2 + $0x3e0] sm:$0xff]
          %v4223 = vld [vmem:[#allocation2 + $0x3e8] sm:$0xff]
          %v4224 = vld [vmem:[#allocation2 + $0x420] sm:$0xff]
          %v4225 = vld [vmem:[#allocation2 + $0x428] sm:$0xff]
          %v4226 = vld [vmem:[#allocation2 + $0x430] sm:$0xff]
          %v4227 = vld [vmem:[#allocation2 + $0x470] sm:$0xff]
          %v4228 = vld [vmem:[#allocation2 + $0x478] sm:$0xff]
          %vm4242 = vcmask 1046528
          %v4243 = vrot.slane %v4111, 1
          %v4244 = vrot.slane %v4114, 1
          %v4245 = vsel %vm4242, %v4243, %v4244
          %v4246 = vrot.slane %v4120, 1
          %v4247 = vsel %vm4242, %v4244, %v4246
          %v4248 = vrot.slane %v4129, 1
          %v4249 = vsel %vm4242, %v4246, %v4248
          %v4250 = vrot.slane %v4138, 1
          %v4251 = vsel %vm4242, %v4248, %v4250
          %v4252 = vrot.slane %v4147, 1
          %v4253 = vsel %vm4242, %v4250, %v4252
          %v4254 = vrot.slane %v4156, 1
          %v4255 = vsel %vm4242, %v4252, %v4254
          %v4256 = vrot.slane %v4165, 1
          %v4257 = vsel %vm4242, %v4254, %v4256
          %v4258 = vrot.slane %v4174, 1
          %v4259 = vsel %vm4242, %v4256, %v4258
          %v4260 = vrot.slane %v4183, 1
          %v4261 = vsel %vm4242, %v4258, %v4260
          %v4262 = vrot.slane %v4192, 1
          %v4263 = vsel %vm4242, %v4260, %v4262
          %v4264 = vrot.slane %v4201, 1
          %v4265 = vsel %vm4242, %v4262, %v4264
          %v4266 = vrot.slane %v4210, 1
          %v4267 = vsel %vm4242, %v4264, %v4266
          %v4281 = vadd.f32 %v4110, %v4245
          %v4282 = vadd.f32 %v4113, %v4247
          %v4283 = vadd.f32 %v4119, %v4249
          %v4284 = vadd.f32 %v4128, %v4251
          %v4285 = vadd.f32 %v4137, %v4253
          %v4286 = vadd.f32 %v4146, %v4255
          %v4287 = vadd.f32 %v4155, %v4257
          %v4288 = vadd.f32 %v4164, %v4259
          %v4289 = vadd.f32 %v4173, %v4261
          %v4290 = vadd.f32 %v4182, %v4263
          %v4291 = vadd.f32 %v4191, %v4265
          %v4292 = vadd.f32 %v4200, %v4267
          %v4293 = vadd.f32 %v4209, %v4266
          %v4294 = vadd.f32 %v4112, %v4116
          %v4295 = vadd.f32 %v4115, %v4122
          %v4296 = vadd.f32 %v4121, %v4131
          %v4297 = vadd.f32 %v4130, %v4140
          %v4298 = vadd.f32 %v4139, %v4149
          %v4299 = vadd.f32 %v4148, %v4158
          %v4300 = vadd.f32 %v4157, %v4167
          %v4301 = vadd.f32 %v4166, %v4176
          %v4302 = vadd.f32 %v4175, %v4185
          %v4303 = vadd.f32 %v4184, %v4194
          %v4304 = vadd.f32 %v4193, %v4203
          %v4305 = vadd.f32 %v4202, %v4212
          %v4306 = vadd.f32 %v4211, %v4218
          %v4320 = vrot.slane %v4118, 1
          %v4321 = vrot.slane %v4124, 1
          %v4322 = vsel %vm4242, %v4320, %v4321
          %v4323 = vrot.slane %v4133, 1
          %v4324 = vsel %vm4242, %v4321, %v4323
          %v4325 = vrot.slane %v4142, 1
          %v4326 = vsel %vm4242, %v4323, %v4325
          %v4327 = vrot.slane %v4151, 1
          %v4328 = vsel %vm4242, %v4325, %v4327
          %v4329 = vrot.slane %v4160, 1
          %v4330 = vsel %vm4242, %v4327, %v4329
          %v4331 = vrot.slane %v4169, 1
          %v4332 = vsel %vm4242, %v4329, %v4331
          %v4333 = vrot.slane %v4178, 1
          %v4334 = vsel %vm4242, %v4331, %v4333
          %v4335 = vrot.slane %v4187, 1
          %v4336 = vsel %vm4242, %v4333, %v4335
          %v4337 = vrot.slane %v4196, 1
          %v4338 = vsel %vm4242, %v4335, %v4337
          %v4339 = vrot.slane %v4205, 1
          %v4340 = vsel %vm4242, %v4337, %v4339
          %v4341 = vrot.slane %v4214, 1
          %v4342 = vsel %vm4242, %v4339, %v4341
          %v4343 = vrot.slane %v4220, 1
          %v4344 = vsel %vm4242, %v4341, %v4343
          %v4358 = vadd.f32 %v4117, %v4322
          %v4359 = vadd.f32 %v4123, %v4324
          %v4360 = vadd.f32 %v4132, %v4326
          %v4361 = vadd.f32 %v4141, %v4328
          %v4362 = vadd.f32 %v4150, %v4330
          %v4363 = vadd.f32 %v4159, %v4332
          %v4364 = vadd.f32 %v4168, %v4334
          %v4365 = vadd.f32 %v4177, %v4336
          %v4366 = vadd.f32 %v4186, %v4338
          %v4367 = vadd.f32 %v4195, %v4340
          %v4368 = vadd.f32 %v4204, %v4342
          %v4369 = vadd.f32 %v4213, %v4344
          %v4370 = vadd.f32 %v4219, %v4343
          %v4385 = vrot.slane %v4126, 1
          %v4386 = vrot.slane %v4135, 1
          %v4387 = vsel %vm4242, %v4385, %v4386
          %v4388 = vrot.slane %v4144, 1
          %v4389 = vsel %vm4242, %v4386, %v4388
          %v4390 = vrot.slane %v4153, 1
          %v4391 = vsel %vm4242, %v4388, %v4390
          %v4392 = vrot.slane %v4162, 1
          %v4393 = vsel %vm4242, %v4390, %v4392
          %v4394 = vrot.slane %v4171, 1
          %v4395 = vsel %vm4242, %v4392, %v4394
          %v4396 = vrot.slane %v4180, 1
          %v4397 = vsel %vm4242, %v4394, %v4396
          %v4398 = vrot.slane %v4189, 1
          %v4399 = vsel %vm4242, %v4396, %v4398
          %v4400 = vrot.slane %v4198, 1
          %v4401 = vsel %vm4242, %v4398, %v4400
          %v4402 = vrot.slane %v4207, 1
          %v4403 = vsel %vm4242, %v4400, %v4402
          %v4404 = vrot.slane %v4216, 1
          %v4405 = vsel %vm4242, %v4402, %v4404
          %v4406 = vrot.slane %v4222, 1
          %v4407 = vsel %vm4242, %v4404, %v4406
          %v4408 = vrot.slane %v4225, 1
          %v4409 = vsel %vm4242, %v4406, %v4408
          %v4410 = vrot.slane %v4227, 1
          %v4411 = vsel %vm4242, %v4408, %v4410
          %v4425 = vadd.f32 %v4125, %v4387
          %v4426 = vadd.f32 %v4134, %v4389
          %v4427 = vadd.f32 %v4143, %v4391
          %v4428 = vadd.f32 %v4152, %v4393
          %v4429 = vadd.f32 %v4161, %v4395
          %v4430 = vadd.f32 %v4170, %v4397
          %v4431 = vadd.f32 %v4179, %v4399
          %v4432 = vadd.f32 %v4188, %v4401
          %v4433 = vadd.f32 %v4197, %v4403
          %v4434 = vadd.f32 %v4206, %v4405
          %v4435 = vadd.f32 %v4215, %v4407
          %v4436 = vadd.f32 %v4221, %v4409
          %v4437 = vadd.f32 %v4224, %v4411
          %vm4451 = vcmask 1045504
          %v4452 = vrot.slane %v4294, 2
          %v4453 = vrot.slane %v4295, 2
          %v4454 = vsel %vm4451, %v4452, %v4453
          %v4455 = vrot.slane %v4296, 2
          %v4456 = vsel %vm4451, %v4453, %v4455
          %v4457 = vrot.slane %v4297, 2
          %v4458 = vsel %vm4451, %v4455, %v4457
          %v4459 = vrot.slane %v4298, 2
          %v4460 = vsel %vm4451, %v4457, %v4459
          %v4461 = vrot.slane %v4299, 2
          %v4462 = vsel %vm4451, %v4459, %v4461
          %v4463 = vrot.slane %v4300, 2
          %v4464 = vsel %vm4451, %v4461, %v4463
          %v4465 = vrot.slane %v4301, 2
          %v4466 = vsel %vm4451, %v4463, %v4465
          %v4467 = vrot.slane %v4302, 2
          %v4468 = vsel %vm4451, %v4465, %v4467
          %v4469 = vrot.slane %v4303, 2
          %v4470 = vsel %vm4451, %v4467, %v4469
          %v4471 = vrot.slane %v4304, 2
          %v4472 = vsel %vm4451, %v4469, %v4471
          %v4473 = vrot.slane %v4305, 2
          %v4474 = vsel %vm4451, %v4471, %v4473
          %v4475 = vrot.slane %v4306, 2
          %v4476 = vsel %vm4451, %v4473, %v4475
          %v4490 = vadd.f32 %v4281, %v4454
          %v4491 = vadd.f32 %v4282, %v4456
          %v4492 = vadd.f32 %v4283, %v4458
          %v4493 = vadd.f32 %v4284, %v4460
          %v4494 = vadd.f32 %v4285, %v4462
          %v4495 = vadd.f32 %v4286, %v4464
          %v4496 = vadd.f32 %v4287, %v4466
          %v4497 = vadd.f32 %v4288, %v4468
          %v4498 = vadd.f32 %v4289, %v4470
          %v4499 = vadd.f32 %v4290, %v4472
          %v4500 = vadd.f32 %v4291, %v4474
          %v4501 = vadd.f32 %v4292, %v4476
          %v4502 = vadd.f32 %v4293, %v4475
          %v4516 = vrot.slane %v4425, 1
          %v4517 = vrot.slane %v4426, 1
          %v4518 = vsel %vm4242, %v4516, %v4517
          %v4519 = vrot.slane %v4427, 1
          %v4520 = vsel %vm4242, %v4517, %v4519
          %v4521 = vrot.slane %v4428, 1
          %v4522 = vsel %vm4242, %v4519, %v4521
          %v4523 = vrot.slane %v4429, 1
          %v4524 = vsel %vm4242, %v4521, %v4523
          %v4525 = vrot.slane %v4430, 1
          %v4526 = vsel %vm4242, %v4523, %v4525
          %v4527 = vrot.slane %v4431, 1
          %v4528 = vsel %vm4242, %v4525, %v4527
          %v4529 = vrot.slane %v4432, 1
          %v4530 = vsel %vm4242, %v4527, %v4529
          %v4531 = vrot.slane %v4433, 1
          %v4532 = vsel %vm4242, %v4529, %v4531
          %v4533 = vrot.slane %v4434, 1
          %v4534 = vsel %vm4242, %v4531, %v4533
          %v4535 = vrot.slane %v4435, 1
          %v4536 = vsel %vm4242, %v4533, %v4535
          %v4537 = vrot.slane %v4436, 1
          %v4538 = vsel %vm4242, %v4535, %v4537
          %v4539 = vrot.slane %v4437, 1
          %v4540 = vsel %vm4242, %v4537, %v4539
          %v4554 = vadd.f32 %v4358, %v4518
          %v4555 = vadd.f32 %v4359, %v4520
          %v4556 = vadd.f32 %v4360, %v4522
          %v4557 = vadd.f32 %v4361, %v4524
          %v4558 = vadd.f32 %v4362, %v4526
          %v4559 = vadd.f32 %v4363, %v4528
          %v4560 = vadd.f32 %v4364, %v4530
          %v4561 = vadd.f32 %v4365, %v4532
          %v4562 = vadd.f32 %v4366, %v4534
          %v4563 = vadd.f32 %v4367, %v4536
          %v4564 = vadd.f32 %v4368, %v4538
          %v4565 = vadd.f32 %v4369, %v4540
          %v4566 = vadd.f32 %v4370, %v4539
          %vm4580 = vcmask 1044480
          %v4581 = vrot.slane %v4554, 3
          %v4582 = vrot.slane %v4555, 3
          %v4583 = vsel %vm4580, %v4581, %v4582
          %v4584 = vrot.slane %v4556, 3
          %v4585 = vsel %vm4580, %v4582, %v4584
          %v4586 = vrot.slane %v4557, 3
          %v4587 = vsel %vm4580, %v4584, %v4586
          %v4588 = vrot.slane %v4558, 3
          %v4589 = vsel %vm4580, %v4586, %v4588
          %v4590 = vrot.slane %v4559, 3
          %v4591 = vsel %vm4580, %v4588, %v4590
          %v4592 = vrot.slane %v4560, 3
          %v4593 = vsel %vm4580, %v4590, %v4592
          %v4594 = vrot.slane %v4561, 3
          %v4595 = vsel %vm4580, %v4592, %v4594
          %v4596 = vrot.slane %v4562, 3
          %v4597 = vsel %vm4580, %v4594, %v4596
          %v4598 = vrot.slane %v4563, 3
          %v4599 = vsel %vm4580, %v4596, %v4598
          %v4600 = vrot.slane %v4564, 3
          %v4601 = vsel %vm4580, %v4598, %v4600
          %v4602 = vrot.slane %v4565, 3
          %v4603 = vsel %vm4580, %v4600, %v4602
          %v4604 = vrot.slane %v4566, 3
          %v4605 = vsel %vm4580, %v4602, %v4604
          %v4619 = vadd.f32 %v4490, %v4583
          %v4620 = vadd.f32 %v4491, %v4585
          %v4621 = vadd.f32 %v4492, %v4587
          %v4622 = vadd.f32 %v4493, %v4589
          %v4623 = vadd.f32 %v4494, %v4591
          %v4624 = vadd.f32 %v4495, %v4593
          %v4625 = vadd.f32 %v4496, %v4595
          %v4626 = vadd.f32 %v4497, %v4597
          %v4627 = vadd.f32 %v4498, %v4599
          %v4628 = vadd.f32 %v4499, %v4601
          %v4629 = vadd.f32 %v4500, %v4603
          %v4630 = vadd.f32 %v4501, %v4605
          %v4631 = vadd.f32 %v4502, %v4604
          %vm4646 = vcmask 1041408
          %v4647 = vrot.slane %v4127, 6
          %v4648 = vrot.slane %v4136, 6
          %v4649 = vsel %vm4646, %v4647, %v4648
          %v4650 = vrot.slane %v4145, 6
          %v4651 = vsel %vm4646, %v4648, %v4650
          %v4652 = vrot.slane %v4154, 6
          %v4653 = vsel %vm4646, %v4650, %v4652
          %v4654 = vrot.slane %v4163, 6
          %v4655 = vsel %vm4646, %v4652, %v4654
          %v4656 = vrot.slane %v4172, 6
          %v4657 = vsel %vm4646, %v4654, %v4656
          %v4658 = vrot.slane %v4181, 6
          %v4659 = vsel %vm4646, %v4656, %v4658
          %v4660 = vrot.slane %v4190, 6
          %v4661 = vsel %vm4646, %v4658, %v4660
          %v4662 = vrot.slane %v4199, 6
          %v4663 = vsel %vm4646, %v4660, %v4662
          %v4664 = vrot.slane %v4208, 6
          %v4665 = vsel %vm4646, %v4662, %v4664
          %v4666 = vrot.slane %v4217, 6
          %v4667 = vsel %vm4646, %v4664, %v4666
          %v4668 = vrot.slane %v4223, 6
          %v4669 = vsel %vm4646, %v4666, %v4668
          %v4670 = vrot.slane %v4226, 6
          %v4671 = vsel %vm4646, %v4668, %v4670
          %v4672 = vrot.slane %v4228, 6
          %v4673 = vsel %vm4646, %v4670, %v4672
          %v4687 = vadd.f32 %v4619, %v4649
          %v4688 = vadd.f32 %v4620, %v4651
          %v4689 = vadd.f32 %v4621, %v4653
          %v4690 = vadd.f32 %v4622, %v4655
          %v4691 = vadd.f32 %v4623, %v4657
          %v4692 = vadd.f32 %v4624, %v4659
          %v4693 = vadd.f32 %v4625, %v4661
          %v4694 = vadd.f32 %v4626, %v4663
          %v4695 = vadd.f32 %v4627, %v4665
          %v4696 = vadd.f32 %v4628, %v4667
          %v4697 = vadd.f32 %v4629, %v4669
          %v4698 = vadd.f32 %v4630, %v4671
          %v4699 = vadd.f32 %v4631, %v4673
          %v4700 = vld [vmem:[%s2] sm:$0x1]
          %v4702 = vlaneseq
          %v4703 = vshrl.u32 %v4702, 7
          %v4704 = vsub.s32 0, %v4703
          %v4705 = vrot.slane %v4700, %v4704
          %v4707 = vadd.f32 %v4687, %v4705
          %v4708 = vadd.f32 %v4688, %v4705
          %v4709 = vadd.f32 %v4689, %v4705
          %v4710 = vadd.f32 %v4690, %v4705
          %v4711 = vadd.f32 %v4691, %v4705
          %v4712 = vadd.f32 %v4692, %v4705
          %v4713 = vadd.f32 %v4693, %v4705
          %v4714 = vadd.f32 %v4694, %v4705
          %v4715 = vadd.f32 %v4695, %v4705
          %v4716 = vadd.f32 %v4696, %v4705
          %v4717 = vadd.f32 %v4697, %v4705
          %v4718 = vadd.f32 %v4698, %v4705
          %v4719 = vadd.f32 %v4699, %v4705
          %v4720 = vmax.f32 %v4707, 0.0
          %v4721 = vmax.f32 %v4708, 0.0
          %v4722 = vmax.f32 %v4709, 0.0
          %v4723 = vmax.f32 %v4710, 0.0
          %v4724 = vmax.f32 %v4711, 0.0
          %v4725 = vmax.f32 %v4712, 0.0
          %v4726 = vmax.f32 %v4713, 0.0
          %v4727 = vmax.f32 %v4714, 0.0
          %v4728 = vmax.f32 %v4715, 0.0
          %v4729 = vmax.f32 %v4716, 0.0
          %v4730 = vmax.f32 %v4717, 0.0
          %v4731 = vmax.f32 %v4718, 0.0
          %v4732 = vmax.f32 %v4719, 0.0
          %v4733 = vpack.c.bf16 %v4721, %v4720
          %v4734 = vpack.c.bf16 %v4723, %v4722
          %v4735 = vpack.c.bf16 %v4725, %v4724
          %v4736 = vpack.c.bf16 %v4727, %v4726
          %v4737 = vpack.c.bf16 %v4729, %v4728
          %v4738 = vpack.c.bf16 %v4731, %v4730
          %v4739 = vpack.c.bf16 %v4732, %v4732
          %v4740 = vld [vmem:[%s5] sm:$0xf]
          %v4741 = vld [vmem:[%s5 + $0x4] sm:$0xf]
          %v4742 = vld [vmem:[%s5 + $0x8] sm:$0xf]
          %v4743 = vld [vmem:[%s5 + $0xc] sm:$0xf]
          %v4744 = vld [vmem:[%s5 + $0x10] sm:$0xf]
          %v4745 = vld [vmem:[%s5 + $0x14] sm:$0xf]
          %v4746 = vld [vmem:[%s5 + $0x18] sm:$0xf]
          %v4747 = vld [vmem:[%s5 + $0x1c] sm:$0xf]
          %v4748 = vld [vmem:[%s5 + $0x20] sm:$0xf]
          %v4749 = vld [vmem:[%s5 + $0x24] sm:$0xf]
          %v4750 = vld [vmem:[%s5 + $0x28] sm:$0xf]
          %v4751 = vld [vmem:[%s5 + $0x2c] sm:$0xf]
          %v4752 = vld [vmem:[%s5 + $0x30] sm:$0xf]
          %v4753 = vld [vmem:[%s5 + $0x34] sm:$0xf]
          %v4754 = vld [vmem:[%s5 + $0x38] sm:$0xf]
          %v4755 = vld [vmem:[%s5 + $0x3c] sm:$0xf]
          %v4772 = vunpack.c.l.b16 %v4740
          %v4773 = vunpack.c.l.b16 %v4741
          %v4774 = vunpack.c.l.b16 %v4742
          %v4775 = vunpack.c.l.b16 %v4743
          %v4776 = vunpack.c.l.b16 %v4744
          %v4777 = vunpack.c.l.b16 %v4745
          %v4778 = vunpack.c.l.b16 %v4746
          %v4779 = vunpack.c.l.b16 %v4747
          %v4780 = vunpack.c.l.b16 %v4748
          %v4781 = vunpack.c.l.b16 %v4749
          %v4782 = vunpack.c.l.b16 %v4750
          %v4783 = vunpack.c.l.b16 %v4751
          %v4784 = vunpack.c.l.b16 %v4752
          %v4785 = vunpack.c.l.b16 %v4753
          %v4786 = vunpack.c.l.b16 %v4754
          %v4787 = vunpack.c.l.b16 %v4755
          %v4788 = vpack.c.b16 %v4773, %v4772
          %v4789 = vpack.c.b16 %v4775, %v4774
          %v4790 = vpack.c.b16 %v4777, %v4776
          %v4791 = vpack.c.b16 %v4779, %v4778
          %v4792 = vpack.c.b16 %v4781, %v4780
          %v4793 = vpack.c.b16 %v4783, %v4782
          %v4794 = vpack.c.b16 %v4785, %v4784
          %v4795 = vpack.c.b16 %v4787, %v4786
          %vm4796 = vcmask 818176
          %v4798 = vsel %vm4796, %v4788, 0
          %v4801 = vsel %vm4796, %v4789, 0
          %v4804 = vsel %vm4796, %v4790, 0
          %v4807 = vsel %vm4796, %v4791, 0
          %v4810 = vsel %vm4796, %v4792, 0
          %v4813 = vsel %vm4796, %v4793, 0
          %v4816 = vsel %vm4796, %v4794, 0
          %v4819 = vsel %vm4796, %v4795, 0
          %v4822 = vsel %vm4646, %v4739, 0
          %4824 = vmatprep.subr.bf16.mxu0 0
          %4825 = vmatpush1.bf16.msra.mxu0 %v4733
          %4826 = vmatprep.subr.bf16.mxu0 0
          %4827 = vmatpush1.bf16.msra.mxu0 %v4734
          %4828 = vmatprep.subr.bf16.mxu0 0
          %4829 = vmatpush1.bf16.msra.mxu0 %v4735
          %4830 = vmatprep.subr.bf16.mxu0 0
          %4831 = vmatpush1.bf16.msra.mxu0 %v4736
          %4832 = vmatprep.subr.bf16.mxu0 0
          %4833 = vmatpush1.bf16.msra.mxu0 %v4737
          %4834 = vmatprep.subr.bf16.mxu0 0
          %4835 = vmatpush1.bf16.msra.mxu0 %v4738
          %4836 = vmatprep.subr.bf16.mxu0 0
          %4837 = vmatpush1.bf16.msra.mxu0 %v4822
          %4838 = vmatprep.subr.bf16.mxu0 0
          %4839 = vmatpush1.bf16.msra.mxu0 0
          %4840 = vmatprep.subr.bf16.mxu0 0
          %4841 = vmatpush1.bf16.msra.mxu0 0
          %4842 = vmatprep.subr.bf16.mxu0 0
          %4843 = vmatpush1.bf16.msra.mxu0 0
          %4844 = vmatprep.subr.bf16.mxu0 0
          %4845 = vmatpush1.bf16.msra.mxu0 0
          %4846 = vmatprep.subr.bf16.mxu0 0
          %4847 = vmatpush1.bf16.msra.mxu0 0
          %4848 = vmatprep.subr.bf16.mxu0 0
          %4849 = vmatpush1.bf16.msra.mxu0 0
          %4850 = vmatprep.subr.bf16.mxu0 0
          %4851 = vmatpush1.bf16.msra.mxu0 0
          %4852 = vmatprep.subr.bf16.mxu0 0
          %4853 = vmatpush1.bf16.msra.mxu0 0
          %4854 = vmatprep.subr.bf16.mxu0 0
          %4855 = vmatpush1.bf16.msra.mxu0 0
          %4856 = vmatprep.mubr.bf16.mxu0 0
          %4857 = vmatmul.mubr.bf16.gmra.mrb[0].mxu0 %v4798
          %v4858 = vpop.f32.mrb[0].mxu0
          %v4859 = vadd.f32 0.0, %v4858
          %v4860 = vpop.f32.mrb[0].mxu0
          %v4861 = vpop.f32.mrb[0].mxu0
          %v4862 = vadd.f32 0.0, %v4861
          %v4863 = vpop.f32.mrb[0].mxu0
          %4864 = vmatprep.mubr.bf16.mxu0 0
          %4865 = vmatmul.mubr.bf16.gmra.mrb[0].mxu0 %v4801
          %v4866 = vpop.f32.mrb[0].mxu0
          %v4867 = vadd.f32 0.0, %v4866
          %v4868 = vpop.f32.mrb[0].mxu0
          %v4869 = vpop.f32.mrb[0].mxu0
          %v4870 = vadd.f32 0.0, %v4869
          %v4871 = vpop.f32.mrb[0].mxu0
          %4872 = vmatprep.mubr.bf16.mxu0 0
          %4873 = vmatmul.mubr.bf16.gmra.mrb[0].mxu0 %v4804
          %v4874 = vpop.f32.mrb[0].mxu0
          %v4875 = vadd.f32 0.0, %v4874
          %v4876 = vpop.f32.mrb[0].mxu0
          %v4877 = vpop.f32.mrb[0].mxu0
          %v4878 = vadd.f32 0.0, %v4877
          %v4879 = vpop.f32.mrb[0].mxu0
          %4880 = vmatprep.mubr.bf16.mxu0 0
          %4881 = vmatmul.mubr.bf16.gmra.mrb[0].mxu0 %v4807
          %v4882 = vpop.f32.mrb[0].mxu0
          %v4883 = vadd.f32 0.0, %v4882
          %v4884 = vpop.f32.mrb[0].mxu0
          %v4885 = vpop.f32.mrb[0].mxu0
          %v4886 = vadd.f32 0.0, %v4885
          %v4887 = vpop.f32.mrb[0].mxu0
          %4888 = vmatprep.mubr.bf16.mxu0 0
          %4889 = vmatmul.mubr.bf16.gmra.mrb[0].mxu0 %v4810
          %v4890 = vpop.f32.mrb[0].mxu0
          %v4891 = vadd.f32 0.0, %v4890
          %v4892 = vpop.f32.mrb[0].mxu0
          %v4893 = vpop.f32.mrb[0].mxu0
          %v4894 = vadd.f32 0.0, %v4893
          %v4895 = vpop.f32.mrb[0].mxu0
          %4896 = vmatprep.mubr.bf16.mxu0 0
          %4897 = vmatmul.mubr.bf16.gmra.mrb[0].mxu0 %v4813
          %v4898 = vpop.f32.mrb[0].mxu0
          %v4899 = vadd.f32 0.0, %v4898
          %v4900 = vpop.f32.mrb[0].mxu0
          %v4901 = vpop.f32.mrb[0].mxu0
          %v4902 = vadd.f32 0.0, %v4901
          %v4903 = vpop.f32.mrb[0].mxu0
          %4904 = vmatprep.mubr.bf16.mxu0 0
          %4905 = vmatmul.mubr.bf16.gmra.mrb[0].mxu0 %v4816
          %v4906 = vpop.f32.mrb[0].mxu0
          %v4907 = vadd.f32 0.0, %v4906
          %v4908 = vpop.f32.mrb[0].mxu0
          %v4909 = vpop.f32.mrb[0].mxu0
          %v4910 = vadd.f32 0.0, %v4909
          %v4911 = vpop.f32.mrb[0].mxu0
          %4912 = vmatprep.mubr.bf16.mxu0 0
          %4913 = vmatmul.mubr.bf16.gmra.mrb[0].mxu0 %v4819
          %v4914 = vpop.f32.mrb[0].mxu0
          %v4915 = vadd.f32 0.0, %v4914
          %v4916 = vpop.f32.mrb[0].mxu0
          %v4917 = vpop.f32.mrb[0].mxu0
          %v4918 = vadd.f32 0.0, %v4917
          %v4919 = vpop.f32.mrb[0].mxu0
          %4920 = vdwg.mxu0
          %v4921 = vpack.c.bf16 %v4862, %v4859
          %v4922 = vpack.c.bf16 %v4870, %v4867
          %v4923 = vpack.c.bf16 %v4878, %v4875
          %v4924 = vpack.c.bf16 %v4886, %v4883
          %v4925 = vpack.c.bf16 %v4894, %v4891
          %v4926 = vpack.c.bf16 %v4902, %v4899
          %v4927 = vpack.c.bf16 %v4910, %v4907
          %v4928 = vpack.c.bf16 %v4918, %v4915
          %v4937 = vunpack.c.l.b16 %v4921
          %v4938 = vunpack.c.h.b16 %v4921
          %v4939 = vunpack.c.l.b16 %v4922
          %v4940 = vunpack.c.h.b16 %v4922
          %v4941 = vunpack.c.l.b16 %v4923
          %v4942 = vunpack.c.h.b16 %v4923
          %v4943 = vunpack.c.l.b16 %v4924
          %v4944 = vunpack.c.h.b16 %v4924
          %v4945 = vunpack.c.l.b16 %v4925
          %v4946 = vunpack.c.h.b16 %v4925
          %v4947 = vunpack.c.l.b16 %v4926
          %v4948 = vunpack.c.h.b16 %v4926
          %v4949 = vunpack.c.l.b16 %v4927
          %v4950 = vunpack.c.h.b16 %v4927
          %v4951 = vunpack.c.l.b16 %v4928
          %v4952 = vunpack.c.h.b16 %v4928
          %v4953 = vpack.c.b16 %v4937, %v4937
          %v4954 = vpack.c.b16 %v4938, %v4938
          %v4955 = vpack.c.b16 %v4939, %v4939
          %v4956 = vpack.c.b16 %v4940, %v4940
          %v4957 = vpack.c.b16 %v4941, %v4941
          %v4958 = vpack.c.b16 %v4942, %v4942
          %v4959 = vpack.c.b16 %v4943, %v4943
          %v4960 = vpack.c.b16 %v4944, %v4944
          %v4961 = vpack.c.b16 %v4945, %v4945
          %v4962 = vpack.c.b16 %v4946, %v4946
          %v4963 = vpack.c.b16 %v4947, %v4947
          %v4964 = vpack.c.b16 %v4948, %v4948
          %v4965 = vpack.c.b16 %v4949, %v4949
          %v4966 = vpack.c.b16 %v4950, %v4950
          %v4967 = vpack.c.b16 %v4951, %v4951
          %v4968 = vpack.c.b16 %v4952, %v4952
          %4985 = vst [vmem:[%s437] sm:$0xf] %v4953
          %4986 = vst [vmem:[%s437 + $0x4] sm:$0xf] %v4954
          %4987 = vst [vmem:[%s437 + $0x8] sm:$0xf] %v4955
          %4988 = vst [vmem:[%s437 + $0xc] sm:$0xf] %v4956
          %4989 = vst [vmem:[%s437 + $0x10] sm:$0xf] %v4957
          %4990 = vst [vmem:[%s437 + $0x14] sm:$0xf] %v4958
          %4991 = vst [vmem:[%s437 + $0x18] sm:$0xf] %v4959
          %4992 = vst [vmem:[%s437 + $0x1c] sm:$0xf] %v4960
          %4993 = vst [vmem:[%s437 + $0x20] sm:$0xf] %v4961
          %4994 = vst [vmem:[%s437 + $0x24] sm:$0xf] %v4962
          %4995 = vst [vmem:[%s437 + $0x28] sm:$0xf] %v4963
          %4996 = vst [vmem:[%s437 + $0x2c] sm:$0xf] %v4964
          %4997 = vst [vmem:[%s437 + $0x30] sm:$0xf] %v4965
          %4998 = vst [vmem:[%s437 + $0x34] sm:$0xf] %v4966
          %4999 = vst [vmem:[%s437 + $0x38] sm:$0xf] %v4967
          %5000 = vst [vmem:[%s437 + $0x3c] sm:$0xf] %v4968
          %v5001 = vld [vmem:[%s6] sm:$0xf]
          %v5002 = vld [vmem:[%s6 + $0x4] sm:$0xf]
          %v5003 = vld [vmem:[%s6 + $0x8] sm:$0xf]
          %v5004 = vld [vmem:[%s6 + $0xc] sm:$0xf]
          %v5005 = vld [vmem:[%s6 + $0x10] sm:$0xf]
          %v5006 = vld [vmem:[%s6 + $0x14] sm:$0xf]
          %v5007 = vld [vmem:[%s6 + $0x18] sm:$0xf]
          %v5008 = vld [vmem:[%s6 + $0x1c] sm:$0xf]
          %v5017 = vunpack.c.l.b16 %v5001
          %v5018 = vunpack.c.l.b16 %v5002
          %v5019 = vunpack.c.l.b16 %v5003
          %v5020 = vunpack.c.l.b16 %v5004
          %v5021 = vunpack.c.l.b16 %v5005
          %v5022 = vunpack.c.l.b16 %v5006
          %v5023 = vunpack.c.l.b16 %v5007
          %v5024 = vunpack.c.l.b16 %v5008
          %v5025 = vpack.c.b16 %v5018, %v5017
          %v5026 = vpack.c.b16 %v5020, %v5019
          %v5027 = vpack.c.b16 %v5022, %v5021
          %v5028 = vpack.c.b16 %v5024, %v5023
          %v5030 = vsel %vm4796, %v5025, 0
          %v5033 = vsel %vm4796, %v5026, 0
          %v5036 = vsel %vm4796, %v5027, 0
          %v5039 = vsel %vm4796, %v5028, 0
          %5041 = vmatprep.subr.bf16.mxu0 0
          %5042 = vmatpush1.bf16.msra.mxu0 %v4733
          %5043 = vmatprep.subr.bf16.mxu0 0
          %5044 = vmatpush1.bf16.msra.mxu0 %v4734
          %5045 = vmatprep.subr.bf16.mxu0 0
          %5046 = vmatpush1.bf16.msra.mxu0 %v4735
          %5047 = vmatprep.subr.bf16.mxu0 0
          %5048 = vmatpush1.bf16.msra.mxu0 %v4736
          %5049 = vmatprep.subr.bf16.mxu0 0
          %5050 = vmatpush1.bf16.msra.mxu0 %v4737
          %5051 = vmatprep.subr.bf16.mxu0 0
          %5052 = vmatpush1.bf16.msra.mxu0 %v4738
          %5053 = vmatprep.subr.bf16.mxu0 0
          %5054 = vmatpush1.bf16.msra.mxu0 %v4822
          %5055 = vmatprep.subr.bf16.mxu0 0
          %5056 = vmatpush1.bf16.msra.mxu0 0
          %5057 = vmatprep.subr.bf16.mxu0 0
          %5058 = vmatpush1.bf16.msra.mxu0 0
          %5059 = vmatprep.subr.bf16.mxu0 0
          %5060 = vmatpush1.bf16.msra.mxu0 0
          %5061 = vmatprep.subr.bf16.mxu0 0
          %5062 = vmatpush1.bf16.msra.mxu0 0
          %5063 = vmatprep.subr.bf16.mxu0 0
          %5064 = vmatpush1.bf16.msra.mxu0 0
          %5065 = vmatprep.subr.bf16.mxu0 0
          %5066 = vmatpush1.bf16.msra.mxu0 0
          %5067 = vmatprep.subr.bf16.mxu0 0
          %5068 = vmatpush1.bf16.msra.mxu0 0
          %5069 = vmatprep.subr.bf16.mxu0 0
          %5070 = vmatpush1.bf16.msra.mxu0 0
          %5071 = vmatprep.subr.bf16.mxu0 0
          %5072 = vmatpush1.bf16.msra.mxu0 0
          %5073 = vmatprep.mubr.bf16.mxu0 0
          %5074 = vmatmul.mubr.bf16.gmra.mrb[0].mxu0 %v5030
          %v5075 = vpop.f32.mrb[0].mxu0
          %v5076 = vadd.f32 0.0, %v5075
          %v5077 = vpop.f32.mrb[0].mxu0
          %v5078 = vpop.f32.mrb[0].mxu0
          %v5079 = vadd.f32 0.0, %v5078
          %v5080 = vpop.f32.mrb[0].mxu0
          %5081 = vmatprep.mubr.bf16.mxu0 0
          %5082 = vmatmul.mubr.bf16.gmra.mrb[0].mxu0 %v5033
          %v5083 = vpop.f32.mrb[0].mxu0
          %v5084 = vadd.f32 0.0, %v5083
          %v5085 = vpop.f32.mrb[0].mxu0
          %v5086 = vpop.f32.mrb[0].mxu0
          %v5087 = vadd.f32 0.0, %v5086
          %v5088 = vpop.f32.mrb[0].mxu0
          %5089 = vmatprep.mubr.bf16.mxu0 0
          %5090 = vmatmul.mubr.bf16.gmra.mrb[0].mxu0 %v5036
          %v5091 = vpop.f32.mrb[0].mxu0
          %v5092 = vadd.f32 0.0, %v5091
          %v5093 = vpop.f32.mrb[0].mxu0
          %v5094 = vpop.f32.mrb[0].mxu0
          %v5095 = vadd.f32 0.0, %v5094
          %v5096 = vpop.f32.mrb[0].mxu0
          %5097 = vmatprep.mubr.bf16.mxu0 0
          %5098 = vmatmul.mubr.bf16.gmra.mrb[0].mxu0 %v5039
          %v5099 = vpop.f32.mrb[0].mxu0
          %v5100 = vadd.f32 0.0, %v5099
          %v5101 = vpop.f32.mrb[0].mxu0
          %v5102 = vpop.f32.mrb[0].mxu0
          %v5103 = vadd.f32 0.0, %v5102
          %v5104 = vpop.f32.mrb[0].mxu0
          %5105 = vdwg.mxu0
          %v5106 = vpack.c.bf16 %v5079, %v5076
          %v5107 = vpack.c.bf16 %v5087, %v5084
          %v5108 = vpack.c.bf16 %v5095, %v5092
          %v5109 = vpack.c.bf16 %v5103, %v5100
          %v5110 = vld [vmem:[%s3] sm:$0xf]
          %v5111 = vld [vmem:[%s3 + $0x4] sm:$0xf]
          %v5112 = vld [vmem:[%s3 + $0x8] sm:$0xf]
          %v5113 = vld [vmem:[%s3 + $0xc] sm:$0xf]
          %v5114 = vld [vmem:[%s3 + $0x10] sm:$0xf]
          %v5115 = vld [vmem:[%s3 + $0x14] sm:$0xf]
          %v5116 = vld [vmem:[%s3 + $0x18] sm:$0xf]
          %v5117 = vld [vmem:[%s3 + $0x1c] sm:$0xf]
          %v5118 = vld [vmem:[%s3 + $0x20] sm:$0xf]
          %v5119 = vld [vmem:[%s3 + $0x24] sm:$0xf]
          %v5120 = vld [vmem:[%s3 + $0x28] sm:$0xf]
          %v5121 = vld [vmem:[%s3 + $0x2c] sm:$0xf]
          %v5122 = vld [vmem:[%s3 + $0x30] sm:$0xf]
          %v5123 = vld [vmem:[%s3 + $0x34] sm:$0xf]
          %v5124 = vld [vmem:[%s3 + $0x38] sm:$0xf]
          %v5125 = vld [vmem:[%s3 + $0x3c] sm:$0xf]
          %v5126 = vld [vmem:[%s4] sm:$0x1]
          %v5128 = vlaneseq
          %v5129 = vshrl.u32 %v5128, 7
          %v5130 = vsub.s32 0, %v5129
          %v5131 = vrot.slane %v5126, %v5130
          %v5149 = vunpack.c.l.b16 %v5110
          %v5150 = vunpack.c.l.b16 %v5111
          %v5151 = vunpack.c.l.b16 %v5112
          %v5152 = vunpack.c.l.b16 %v5113
          %v5153 = vunpack.c.l.b16 %v5114
          %v5154 = vunpack.c.l.b16 %v5115
          %v5155 = vunpack.c.l.b16 %v5116
          %v5156 = vunpack.c.l.b16 %v5117
          %v5157 = vunpack.c.l.b16 %v5118
          %v5158 = vunpack.c.l.b16 %v5119
          %v5159 = vunpack.c.l.b16 %v5120
          %v5160 = vunpack.c.l.b16 %v5121
          %v5161 = vunpack.c.l.b16 %v5122
          %v5162 = vunpack.c.l.b16 %v5123
          %v5163 = vunpack.c.l.b16 %v5124
          %v5164 = vunpack.c.l.b16 %v5125
          %v5165 = vpack.c.b16 %v5150, %v5149
          %v5166 = vpack.c.b16 %v5152, %v5151
          %v5167 = vpack.c.b16 %v5154, %v5153
          %v5168 = vpack.c.b16 %v5156, %v5155
          %v5169 = vpack.c.b16 %v5158, %v5157
          %v5170 = vpack.c.b16 %v5160, %v5159
          %v5171 = vpack.c.b16 %v5162, %v5161
          %v5172 = vpack.c.b16 %v5164, %v5163
          %5181 = vmatprep.subr.bf16.mxu0 0
          %5182 = vmatpush1.bf16.msra.mxu0 %v5165
          %5183 = vmatprep.subr.bf16.mxu0 0
          %5184 = vmatpush1.bf16.msra.mxu0 %v5166
          %5185 = vmatprep.subr.bf16.mxu0 0
          %5186 = vmatpush1.bf16.msra.mxu0 %v5167
          %5187 = vmatprep.subr.bf16.mxu0 0
          %5188 = vmatpush1.bf16.msra.mxu0 %v5168
          %5189 = vmatprep.subr.bf16.mxu0 0
          %5190 = vmatpush1.bf16.msra.mxu0 %v5169
          %5191 = vmatprep.subr.bf16.mxu0 0
          %5192 = vmatpush1.bf16.msra.mxu0 %v5170
          %5193 = vmatprep.subr.bf16.mxu0 0
          %5194 = vmatpush1.bf16.msra.mxu0 %v5171
          %5195 = vmatprep.subr.bf16.mxu0 0
          %5196 = vmatpush1.bf16.msra.mxu0 %v5172
          %5197 = vmatprep.subr.bf16.mxu0 0
          %5198 = vmatpush1.bf16.msra.mxu0 0
          %5199 = vmatprep.subr.bf16.mxu0 0
          %5200 = vmatpush1.bf16.msra.mxu0 0
          %5201 = vmatprep.subr.bf16.mxu0 0
          %5202 = vmatpush1.bf16.msra.mxu0 0
          %5203 = vmatprep.subr.bf16.mxu0 0
          %5204 = vmatpush1.bf16.msra.mxu0 0
          %5205 = vmatprep.subr.bf16.mxu0 0
          %5206 = vmatpush1.bf16.msra.mxu0 0
          %5207 = vmatprep.subr.bf16.mxu0 0
          %5208 = vmatpush1.bf16.msra.mxu0 0
          %5209 = vmatprep.subr.bf16.mxu0 0
          %5210 = vmatpush1.bf16.msra.mxu0 0
          %5211 = vmatprep.subr.bf16.mxu0 0
          %5212 = vmatpush1.bf16.msra.mxu0 0
          %5213 = vmatprep.mubr.bf16.mxu0 0
          %5214 = vmatmul.mubr.bf16.gmra.mrb[0].mxu0 %v5106
          %v5215 = vpop.f32.mrb[0].mxu0
          %v5216 = vadd.f32 %v5131, %v5215
          %v5217 = vpop.f32.mrb[0].mxu0
          %v5218 = vpop.f32.mrb[0].mxu0
          %v5219 = vadd.f32 %v5131, %v5218
          %v5220 = vpop.f32.mrb[0].mxu0
          %5221 = vmatprep.mubr.bf16.mxu0 0
          %5222 = vmatmul.mubr.bf16.gmra.mrb[0].mxu0 %v5107
          %v5223 = vpop.f32.mrb[0].mxu0
          %v5224 = vadd.f32 %v5131, %v5223
          %v5225 = vpop.f32.mrb[0].mxu0
          %v5226 = vpop.f32.mrb[0].mxu0
          %v5227 = vadd.f32 %v5131, %v5226
          %v5228 = vpop.f32.mrb[0].mxu0
          %5229 = vmatprep.mubr.bf16.mxu0 0
          %5230 = vmatmul.mubr.bf16.gmra.mrb[0].mxu0 %v5108
          %v5231 = vpop.f32.mrb[0].mxu0
          %v5232 = vadd.f32 %v5131, %v5231
          %v5233 = vpop.f32.mrb[0].mxu0
          %v5234 = vpop.f32.mrb[0].mxu0
          %v5235 = vadd.f32 %v5131, %v5234
          %v5236 = vpop.f32.mrb[0].mxu0
          %5237 = vmatprep.mubr.bf16.mxu0 0
          %5238 = vmatmul.mubr.bf16.gmra.mrb[0].mxu0 %v5109
          %v5239 = vpop.f32.mrb[0].mxu0
          %v5240 = vadd.f32 %v5131, %v5239
          %v5241 = vpop.f32.mrb[0].mxu0
          %v5242 = vpop.f32.mrb[0].mxu0
          %v5243 = vadd.f32 %v5131, %v5242
          %v5244 = vpop.f32.mrb[0].mxu0
          %5245 = vdwg.mxu0
          %5246 = vst [vmem:[%s442] sm:$0xff] %v5216
          %5247 = vst [vmem:[%s442 + $0x8] sm:$0xff] %v5219
          %5248 = vst [vmem:[%s442 + $0x10] sm:$0xff] %v5224
          %5249 = vst [vmem:[%s442 + $0x18] sm:$0xff] %v5227
          %5250 = vst [vmem:[%s442 + $0x20] sm:$0xff] %v5232
          %5251 = vst [vmem:[%s442 + $0x28] sm:$0xff] %v5235
          %5252 = vst [vmem:[%s442 + $0x30] sm:$0xff] %v5240
          %5253 = vst [vmem:[%s442 + $0x38] sm:$0xff] %v5243
        $region79: #{proposal_net_forward.2} parent=66 // pred_fallthru
          _
        %p5254 = scmp.lt.s32.totalorder %s24, 1
        %s5255 = scalar_select %p5254, %s24, 1
        %s5256 = smul.addr %s5255, 16
        %s5257 = smul.addr %s5256, 4
        %s5258 = scalar_lea.vmem %s7, %s5257
        %p5259 = scmp.lt.s32.totalorder %s24, 1
        %s5260 = scalar_select %p5259, %s24, 1
        %s5261 = smul.addr %s5260, 8
        %s5262 = smul.addr %s5261, 8
        %s5263 = scalar_lea.vmem %s8, %s5262
        // Predicated region
        $region80: #{proposal_net_forward.2} parent=66 // pred_check
          %p5264 = pneg %p209
        $region81: #{proposal_net_forward.2} parent=66 // pred_check_branch
          %5266 = sbr.rel (%p5264) target = $region83
        $region82: #{proposal_net_forward.2} parent=66 // pred_region
          _
        $region83: #{proposal_net_forward.2} parent=66 // pred_fallthru
          _
        // Predicated region
        $region84: #{proposal_net_forward.2} parent=66 // pred_check
          %p5267 = pneg %p235
        $region85: #{proposal_net_forward.2} parent=66 // pred_check_branch
          %5269 = sbr.rel (%p5267) target = $region87
        $region86: #{proposal_net_forward.2} parent=66 // pred_region
          _
        $region87: #{proposal_net_forward.2} parent=66 // pred_fallthru
          _
      $region67: #{proposal_net_forward.2} parent=5 // pred_fallthru
        _
      %p5270 = scmp.le.s32.totalorder 2, %s15
      // Predicated region
      $region88: #{proposal_net_forward.2} parent=5 // pred_check
        %p5271 = pneg %p5270
      $region89: #{proposal_net_forward.2} parent=5 // pred_check_branch
        %5273 = sbr.rel (%p5271) target = $region91
      $region90: #{proposal_net_forward.2} parent=5 // pred_region
        %s5274 = ssub.s32 %s15, 2
        // Predicated region
        $region92: #{proposal_net_forward.2} parent=90 // pred_check
          %p5275 = pneg %p215
        $region93: #{proposal_net_forward.2} parent=90 // pred_check_branch
          %5277 = sbr.rel (%p5275) target = $region95
        $region94: #{proposal_net_forward.2} parent=90 // pred_region
          %p5278 = scmp.lt.s32.totalorder %s26, 1
          %s5279 = scalar_select %p5278, %s26, 1
          %s5280 = smul.addr %s5279, 16
          %s5281 = smul.addr %s5280, 4
          %s5282 = scalar_lea.vmem %s7, %s5281
        $region95: #{proposal_net_forward.2} parent=90 // pred_fallthru
          _
        // Predicated region
        $region96: #{proposal_net_forward.2} parent=90 // pred_check
          %p5283 = pneg %p241
        $region97: #{proposal_net_forward.2} parent=90 // pred_check_branch
          %5285 = sbr.rel (%p5283) target = $region99
        $region98: #{proposal_net_forward.2} parent=90 // pred_region
          %p5286 = scmp.lt.s32.totalorder %s26, 1
          %s5287 = scalar_select %p5286, %s26, 1
          %s5288 = smul.addr %s5287, 8
          %s5289 = smul.addr %s5288, 8
          %s5290 = scalar_lea.vmem %s8, %s5289
        $region99: #{proposal_net_forward.2} parent=90 // pred_fallthru
          _
      $region91: #{proposal_net_forward.2} parent=5 // pred_fallthru
        _
    $region6: #{proposal_net_forward.2} parent=1 // loop_footer
      %s19 = sadd.s32 1, %s15
    $region7: #{proposal_net_forward.2} parent=1 // loop_footer_branch
      %14 = sbr.rel target = $region3
    $region8: #{proposal_net_forward.2} parent=1 // loop_exit
      _

</llo_original>
